<compile_context>
chip_gen: v7x
topology: tpu7x:2x2x1
jax: 0.10.0
libtpu: 0.0.40
codegen_flags: <defaults>
</compile_context>

<pallas_src>
import functools

import jax
import jax.numpy as jnp
from jax.experimental import pallas as pl
from jax.experimental.pallas import tpu as pltpu


def _vmem_limit_bytes():
    # ~3/4 of physical VMEM: 48 MiB on v7x (64 MiB), 96 MiB on v5e/v6e (128 MiB).
    try:
        cap = pltpu.get_tpu_info().vmem_capacity_bytes
    except Exception:
        cap = 64 * 1024 * 1024
    return int(min(cap * 3 // 4, 96 * 1024 * 1024))


_VMEM_LIMIT = _vmem_limit_bytes()
_PARALLEL = pltpu.CompilerParams(dimension_semantics=("parallel",),
                                 vmem_limit_bytes=_VMEM_LIMIT)


# ----------------------------------------------------------------------------
# Pallas kernels (all grids are one image per step -> fully parallel)
# ----------------------------------------------------------------------------
def _conv1x1_stats_kernel(x_ref, w_ref, y_ref, psum_ref, psq_ref):
    """Fused 1x1 convs (single wide matmul) for one image.

    Emits the pre-BN result in bf16 plus per-image per-channel sum / sum-sq
    partials in f32 (reduced outside, so the grid stays "parallel").
    """
    y = jnp.dot(x_ref[0], w_ref[...], preferred_element_type=jnp.float32)
    y_ref[0] = y.astype(y_ref.dtype)
    psum_ref[0] = jnp.sum(y, axis=0, keepdims=True)
    psq_ref[0] = jnp.sum(y * y, axis=0, keepdims=True)


def _conv3x3_stats_kernel(x_ref, w_ref, y_ref, psum_ref, psq_ref, xp_scr, *,
                          H, W, C):
    """3x3 conv (pad=1) for one image via a single deep-K MXU dot.

    x_ref:  (1, H, W, C)  bf16 unpadded tile
    w_ref:  (9*C, Cout)   bf16, rows ordered (kh, kw, cin)
    xp_scr: (H+2, W+2, C) f32 VMEM halo scratch (zero border, rebuilt per step)
    """
    xp_scr[...] = jnp.zeros_like(xp_scr)                    # zero halo border
    xp_scr[1:H + 1, 1:W + 1, :] = x_ref[0].astype(xp_scr.dtype)
    xp = xp_scr[...]
    # In-kernel im2col: columns ordered (kh, kw, cin) to match the weight rows.
    patches = jnp.concatenate(
        [xp[dh:dh + H, dw:dw + W, :].reshape(H * W, C)
         for dh in range(3) for dw in range(3)], axis=-1)    # (H*W, 9*C)
    y = jnp.dot(patches.astype(jnp.bfloat16), w_ref[...],
                preferred_element_type=jnp.float32)
    y_ref[0] = y.astype(y_ref.dtype)
    psum_ref[0] = jnp.sum(y, axis=0, keepdims=True)
    psq_ref[0] = jnp.sum(y * y, axis=0, keepdims=True)


def _pool_proj_stats_kernel(x_ref, w_ref, y_ref, psum_ref, psq_ref, xp_scr, *,
                            H, W, C):
    """Fused MaxPool2d(3, stride=1, pad=1) + 1x1 projection (pre-BN) + stats."""
    xp_scr[...] = jnp.full(xp_scr.shape, -jnp.inf, dtype=xp_scr.dtype)
    xp_scr[1:H + 1, 1:W + 1, :] = x_ref[0].astype(xp_scr.dtype)
    xp = xp_scr[...]
    # Separable 3x3 max: 3 vertical + 3 horizontal taps -> 4 maximum ops.
    v = jnp.maximum(jnp.maximum(xp[0:H, :, :], xp[1:H + 1, :, :]),
                    xp[2:H + 2, :, :])                       # (H, W+2, C)
    pooled = jnp.maximum(jnp.maximum(v[:, 0:W, :], v[:, 1:W + 1, :]),
                         v[:, 2:W + 2, :])                   # (H, W, C)
    y = jnp.dot(pooled.reshape(H * W, C).astype(jnp.bfloat16), w_ref[...],
                preferred_element_type=jnp.float32)
    y_ref[0] = y.astype(y_ref.dtype)
    psum_ref[0] = jnp.sum(y, axis=0, keepdims=True)
    psq_ref[0] = jnp.sum(y * y, axis=0, keepdims=True)


def _bn_relu_split_kernel(y_ref, sc_ref, sh_ref, b1_ref, b2_ref, b3_ref, *,
                          c1, c2):
    """BN (precomputed scale/shift) + ReLU over the fused stage-1 result,
    split into branch1 (f32, final) and the two bf16 3x3-reduce inputs."""
    a = jnp.maximum(y_ref[0].astype(jnp.float32) * sc_ref[0] + sh_ref[0], 0.0)
    b1_ref[0] = a[:, :c1]
    b2_ref[0] = a[:, c1:c1 + c2].astype(b2_ref.dtype)
    b3_ref[0] = a[:, c1 + c2:].astype(b3_ref.dtype)


def _bn_relu_concat_kernel(b1_ref, y2_ref, y3_ref, y4_ref, sc_ref, sh_ref,
                           o_ref, *, c2, c3):
    """BN+ReLU on the tail branches and assembly of the final output block
    (no wrapper-side concatenates)."""
    sc = sc_ref[0]
    sh = sh_ref[0]
    a2 = jnp.maximum(
        y2_ref[0].astype(jnp.float32) * sc[:, :c2] + sh[:, :c2], 0.0)
    a3 = jnp.maximum(
        y3_ref[0].astype(jnp.float32) * sc[:, c2:c2 + c3] + sh[:, c2:c2 + c3],
        0.0)
    a4 = jnp.maximum(
        y4_ref[0].astype(jnp.float32) * sc[:, c2 + c3:] + sh[:, c2 + c3:], 0.0)
    o_ref[0] = jnp.concatenate([b1_ref[0], a2, a3, a4], axis=-1)


# ----------------------------------------------------------------------------
# pallas_call wrappers
# ----------------------------------------------------------------------------
def conv1x1_stats(x3d, w):
    """x3d: (N, H*W, Cin) bf16, w: (Cin, Cout) bf16."""
    N, HW, Cin = x3d.shape
    Cout = w.shape[1]
    return pl.pallas_call(
        _conv1x1_stats_kernel,
        out_shape=(jax.ShapeDtypeStruct((N, HW, Cout), jnp.bfloat16),
                   jax.ShapeDtypeStruct((N, 1, Cout), jnp.float32),
                   jax.ShapeDtypeStruct((N, 1, Cout), jnp.float32)),
        grid=(N,),
        in_specs=[pl.BlockSpec((1, HW, Cin), lambda n: (n, 0, 0)),
                  pl.BlockSpec((Cin, Cout), lambda n: (0, 0))],
        out_specs=(pl.BlockSpec((1, HW, Cout), lambda n: (n, 0, 0)),
                   pl.BlockSpec((1, 1, Cout), lambda n: (n, 0, 0)),
                   pl.BlockSpec((1, 1, Cout), lambda n: (n, 0, 0))),
        compiler_params=_PARALLEL,
    )(x3d, w)


def conv3x3_stats(x_nhwc, w):
    """x_nhwc: (N, H, W, C) bf16, w: (9*C, Cout) bf16 (rows ordered kh,kw,cin)."""
    N, H, W, C = x_nhwc.shape
    Cout = w.shape[1]
    kern = functools.partial(_conv3x3_stats_kernel, H=H, W=W, C=C)
    return pl.pallas_call(
        kern,
        out_shape=(jax.ShapeDtypeStruct((N, H * W, Cout), jnp.bfloat16),
                   jax.ShapeDtypeStruct((N, 1, Cout), jnp.float32),
                   jax.ShapeDtypeStruct((N, 1, Cout), jnp.float32)),
        grid=(N,),
        in_specs=[pl.BlockSpec((1, H, W, C), lambda n: (n, 0, 0, 0)),
                  pl.BlockSpec((9 * C, Cout), lambda n: (0, 0))],
        out_specs=(pl.BlockSpec((1, H * W, Cout), lambda n: (n, 0, 0)),
                   pl.BlockSpec((1, 1, Cout), lambda n: (n, 0, 0)),
                   pl.BlockSpec((1, 1, Cout), lambda n: (n, 0, 0))),
        scratch_shapes=[pltpu.VMEM((H + 2, W + 2, C), jnp.float32)],
        compiler_params=_PARALLEL,
    )(x_nhwc, w)


def pool_proj_stats(x_nhwc, w):
    """x_nhwc: (N, H, W, C) bf16, w: (C, Cout) bf16."""
    N, H, W, C = x_nhwc.shape
    Cout = w.shape[1]
    kern = functools.partial(_pool_proj_stats_kernel, H=H, W=W, C=C)
    return pl.pallas_call(
        kern,
        out_shape=(jax.ShapeDtypeStruct((N, H * W, Cout), jnp.bfloat16),
                   jax.ShapeDtypeStruct((N, 1, Cout), jnp.float32),
                   jax.ShapeDtypeStruct((N, 1, Cout), jnp.float32)),
        grid=(N,),
        in_specs=[pl.BlockSpec((1, H, W, C), lambda n: (n, 0, 0, 0)),
                  pl.BlockSpec((C, Cout), lambda n: (0, 0))],
        out_specs=(pl.BlockSpec((1, H * W, Cout), lambda n: (n, 0, 0)),
                   pl.BlockSpec((1, 1, Cout), lambda n: (n, 0, 0)),
                   pl.BlockSpec((1, 1, Cout), lambda n: (n, 0, 0))),
        scratch_shapes=[pltpu.VMEM((H + 2, W + 2, C), jnp.float32)],
        compiler_params=_PARALLEL,
    )(x_nhwc, w)


def bn_relu_split(y, scale, shift, c1, c2, c3):
    """y: (N, H*W, c1+c2+c3) bf16; scale/shift: (1, 1, c1+c2+c3) f32."""
    N, HW, Ctot = y.shape
    kern = functools.partial(_bn_relu_split_kernel, c1=c1, c2=c2)
    return pl.pallas_call(
        kern,
        out_shape=(jax.ShapeDtypeStruct((N, HW, c1), jnp.float32),
                   jax.ShapeDtypeStruct((N, HW, c2), jnp.bfloat16),
                   jax.ShapeDtypeStruct((N, HW, c3), jnp.bfloat16)),
        grid=(N,),
        in_specs=[pl.BlockSpec((1, HW, Ctot), lambda n: (n, 0, 0)),
                  pl.BlockSpec((1, 1, Ctot), lambda n: (0, 0, 0)),
                  pl.BlockSpec((1, 1, Ctot), lambda n: (0, 0, 0))],
        out_specs=(pl.BlockSpec((1, HW, c1), lambda n: (n, 0, 0)),
                   pl.BlockSpec((1, HW, c2), lambda n: (n, 0, 0)),
                   pl.BlockSpec((1, HW, c3), lambda n: (n, 0, 0))),
        compiler_params=_PARALLEL,
    )(y, scale, shift)


def bn_relu_concat(b1, y2, y3, y4, scale_tail, shift_tail):
    """Final assembly: copy b1, BN+ReLU y2/y3/y4 into one (N, H*W, Ctot) f32."""
    N, HW, c1 = b1.shape
    c2, c3, c4 = y2.shape[-1], y3.shape[-1], y4.shape[-1]
    ctail = c2 + c3 + c4
    ctot = c1 + ctail
    kern = functools.partial(_bn_relu_concat_kernel, c2=c2, c3=c3)
    return pl.pallas_call(
        kern,
        out_shape=jax.ShapeDtypeStruct((N, HW, ctot), jnp.float32),
        grid=(N,),
        in_specs=[pl.BlockSpec((1, HW, c1), lambda n: (n, 0, 0)),
                  pl.BlockSpec((1, HW, c2), lambda n: (n, 0, 0)),
                  pl.BlockSpec((1, HW, c3), lambda n: (n, 0, 0)),
                  pl.BlockSpec((1, HW, c4), lambda n: (n, 0, 0)),
                  pl.BlockSpec((1, 1, ctail), lambda n: (0, 0, 0)),
                  pl.BlockSpec((1, 1, ctail), lambda n: (0, 0, 0))],
        out_specs=pl.BlockSpec((1, HW, ctot), lambda n: (n, 0, 0)),
        compiler_params=_PARALLEL,
    )(b1, y2, y3, y4, scale_tail, shift_tail)


# ----------------------------------------------------------------------------
# BN scale/shift from the per-image stat partials (tiny (C,) math in XLA)
# ----------------------------------------------------------------------------
def _bn_scale_shift(psum, psq, gamma, beta, count, eps=1e-3):
    s = jnp.sum(psum, axis=(0, 1))                     # (C,)
    q = jnp.sum(psq, axis=(0, 1))                      # (C,)
    mean = s / count
    # One-pass biased variance (same as torch BN training normalization).
    var = jnp.maximum(q / count - mean * mean, 0.0)
    scale = gamma * jax.lax.rsqrt(var + eps)
    shift = beta - mean * scale
    return (scale.reshape(1, 1, -1).astype(jnp.float32),
            shift.reshape(1, 1, -1).astype(jnp.float32))


# ----------------------------------------------------------------------------
# Inception forward (NCHW in / NCHW out)
# ----------------------------------------------------------------------------
def inception_forward(x_nchw, params):
    x = jnp.transpose(x_nchw, (0, 2, 3, 1)).astype(jnp.bfloat16)  # NHWC bf16
    N, H, W, Cin = x.shape
    HW = H * W
    M = N * HW

    w_b1, g_b1, be_b1 = params["branch1"]
    w_b2r, g_b2r, be_b2r = params["branch2_red"]
    w_b2, g_b2, be_b2 = params["branch2_3x3"]
    w_b3r, g_b3r, be_b3r = params["branch3_red"]
    w_b3, g_b3, be_b3 = params["branch3_3x3"]
    w_b4, g_b4, be_b4 = params["branch4_proj"]

    c1, c2r, c3r = w_b1.shape[1], w_b2r.shape[1], w_b3r.shape[1]

    # Stage 1: the three 1x1 convs that share x -> one wide matmul.
    w_cat = jnp.concatenate([w_b1, w_b2r, w_b3r], axis=1).astype(jnp.bfloat16)
    g_cat = jnp.concatenate([g_b1, g_b2r, g_b3r])
    be_cat = jnp.concatenate([be_b1, be_b2r, be_b3r])
    y1, s1, q1 = conv1x1_stats(x.reshape(N, HW, Cin), w_cat)
    sc1, sh1 = _bn_scale_shift(s1, q1, g_cat, be_cat, M)
    b1, b2red, b3red = bn_relu_split(y1, sc1, sh1, c1, c2r, c3r)

    # Stage 2: 3x3 convs (single deep-K dot) and fused pool + projection.
    y2, s2, q2 = conv3x3_stats(b2red.reshape(N, H, W, c2r),
                               w_b2.astype(jnp.bfloat16))
    y3, s3, q3 = conv3x3_stats(b3red.reshape(N, H, W, c3r),
                               w_b3.astype(jnp.bfloat16))
    y4, s4, q4 = pool_proj_stats(x, w_b4.astype(jnp.bfloat16))

    sc2, sh2 = _bn_scale_shift(s2, q2, g_b2, be_b2, M)
    sc3, sh3 = _bn_scale_shift(s3, q3, g_b3, be_b3, M)
    sc4, sh4 = _bn_scale_shift(s4, q4, g_b4, be_b4, M)
    sc_tail = jnp.concatenate([sc2, sc3, sc4], axis=-1)   # (1, 1, ctail) tiny
    sh_tail = jnp.concatenate([sh2, sh3, sh4], axis=-1)

    # Stage 3: BN+ReLU of the tail + assembly of the final channel layout,
    # all inside one kernel (no XLA concatenates over the activations).
    out3d = bn_relu_concat(b1, y2, y3, y4, sc_tail, sh_tail)  # (N, HW, Ctot)
    out = out3d.reshape(N, H, W, -1)
    return jnp.transpose(out, (0, 3, 1, 2))                   # -> NCHW


# ----------------------------------------------------------------------------
# Deterministic parameter construction
# ----------------------------------------------------------------------------
def make_params(key, in_channels, ch1x1, ch3x3red, ch3x3, ch5x5red, ch5x5,
                pool_proj):
    def conv_w(k, cin, cout, ksize):
        # matmul layout: (ksize*ksize*cin, cout), rows ordered (kh, kw, cin)
        return 0.1 * jax.random.normal(k, (ksize * ksize * cin, cout),
                                       dtype=jnp.float32)

    def bn(k, cout):
        k1, k2 = jax.random.split(k)
        gamma = 1.0 + 0.1 * jax.random.normal(k1, (cout,), dtype=jnp.float32)
        beta = 0.1 * jax.random.normal(k2, (cout,), dtype=jnp.float32)
        return gamma, beta

    keys = jax.random.split(key, 12)
    return {
        "branch1":      (conv_w(keys[0], in_channels, ch1x1, 1),
                         *bn(keys[1], ch1x1)),
        "branch2_red":  (conv_w(keys[2], in_channels, ch3x3red, 1),
                         *bn(keys[3], ch3x3red)),
        "branch2_3x3":  (conv_w(keys[4], ch3x3red, ch3x3, 3),
                         *bn(keys[5], ch3x3)),
        "branch3_red":  (conv_w(keys[6], in_channels, ch5x5red, 1),
                         *bn(keys[7], ch5x5red)),
        "branch3_3x3":  (conv_w(keys[8], ch5x5red, ch5x5, 3),
                         *bn(keys[9], ch5x5)),
        "branch4_proj": (conv_w(keys[10], in_channels, pool_proj, 1),
                         *bn(keys[11], pool_proj)),
    }


# ----------------------------------------------------------------------------
# Pure-XLA reference (f32) for a loose correctness check (bf16 MXU tolerance)
# ----------------------------------------------------------------------------
def _reference_forward(x_nchw, params, eps=1e-3):
    x = jnp.transpose(x_nchw, (0, 2, 3, 1))  # NHWC f32

    def basic_conv(inp, w, gamma, beta, ksize):
        cin, cout = inp.shape[-1], w.shape[1]
        w4 = w.reshape(ksize, ksize, cin, cout)  # HWIO, rows were (kh, kw, cin)
        y = jax.lax.conv_general_dilated(
            inp, w4, window_strides=(1, 1), padding="SAME",
            dimension_numbers=("NHWC", "HWIO", "NHWC"))
        mean = jnp.mean(y, axis=(0, 1, 2))
        var = jnp.mean((y - mean) ** 2, axis=(0, 1, 2))
        return jnp.maximum((y - mean) * jax.lax.rsqrt(var + eps) * gamma + beta,
                           0.0)

    w_b1, g_b1, be_b1 = params["branch1"]
    w_b2r, g_b2r, be_b2r = params["branch2_red"]
    w_b2, g_b2, be_b2 = params["branch2_3x3"]
    w_b3r, g_b3r, be_b3r = params["branch3_red"]
    w_b3, g_b3, be_b3 = params["branch3_3x3"]
    w_b4, g_b4, be_b4 = params["branch4_proj"]

    b1 = basic_conv(x, w_b1, g_b1, be_b1, 1)
    b2 = basic_conv(basic_conv(x, w_b2r, g_b2r, be_b2r, 1), w_b2, g_b2, be_b2, 3)
    b3 = basic_conv(basic_conv(x, w_b3r, g_b3r, be_b3r, 1), w_b3, g_b3, be_b3, 3)
    pooled = jax.lax.reduce_window(x, -jnp.inf, jax.lax.max,
                                   (1, 3, 3, 1), (1, 1, 1, 1), "SAME")
    b4 = basic_conv(pooled, w_b4, g_b4, be_b4, 1)
    out = jnp.concatenate([b1, b2, b3, b4], axis=-1)
    return jnp.transpose(out, (0, 3, 1, 2))


# ----------------------------------------------------------------------------
if __name__ == "__main__":
    # Small Inception block: Inception(4, 8, 6, 12, 4, 8, 6) on a 2x4x16x16 input.
    N, Cin, H, W = 2, 4, 16, 16
    ch1x1, ch3x3red, ch3x3, ch5x5red, ch5x5, pool_proj = 8, 6, 12, 4, 8, 6

    root = jax.random.PRNGKey(0)
    k_x, k_p = jax.random.split(root)
    x = jax.random.normal(k_x, (N, Cin, H, W), dtype=jnp.float32)
    params = make_params(k_p, Cin, ch1x1, ch3x3red, ch3x3, ch5x5red, ch5x5,
                         pool_proj)

    out = jax.jit(inception_forward)(x, params)
    out = jax.block_until_ready(out)

    expected_channels = ch1x1 + ch3x3 + ch5x5 + pool_proj
    assert out.shape == (N, expected_channels, H, W), out.shape
    assert bool(jnp.all(jnp.isfinite(out)))

    # Loose tolerance: the Pallas path uses bf16 MXU operands / intermediates.
    ref = _reference_forward(x, params)
    max_abs_err = float(jnp.max(jnp.abs(out - ref)))
    assert max_abs_err < 0.2, max_abs_err

    print("KERNEL_OK")
</pallas_src>

<mosaic_0001>
module attributes {stable_mosaic.version = 11 : i64} {
  func.func @_conv1x1_stats_kernel(%arg0: i32, %arg1: memref<1x256x4xbf16, #tpu.memory_space<vmem>>, %arg2: memref<4x18xbf16, #tpu.memory_space<vmem>>, %arg3: memref<1x256x18xbf16, #tpu.memory_space<vmem>>, %arg4: memref<1x1x18xf32, #tpu.memory_space<vmem>>, %arg5: memref<1x1x18xf32, #tpu.memory_space<vmem>>) attributes {dimension_semantics = [#tpu.dimension_semantics<parallel>], iteration_bounds = array<i64: 2>, scalar_prefetch = 0 : i64, scratch_operands = 0 : i64, tpu.core_type = #tpu.core_type<tc>, window_params = [{transform_indices = @transform_0, window_bounds = array<i64: 1, 256, 4>}, {pipeline_mode = #tpu.pipeline_mode<synchronous>, transform_indices = @transform_1, window_bounds = array<i64: 4, 18>}, {transform_indices = @transform_2, window_bounds = array<i64: 1, 256, 18>}, {transform_indices = @transform_3, window_bounds = array<i64: 1, 1, 18>}, {transform_indices = @transform_4, window_bounds = array<i64: 1, 1, 18>}]} {
    %c0 = arith.constant 0 : index
    %c0_0 = arith.constant 0 : index
    %c0_1 = arith.constant 0 : index
    %0 = vector.load %arg1[%c0, %c0_0, %c0_1] : memref<1x256x4xbf16, #tpu.memory_space<vmem>>, vector<1x256x4xbf16>
    %1 = vector.shape_cast %0 : vector<1x256x4xbf16> to vector<256x4xbf16>
    %c0_2 = arith.constant 0 : index
    %c0_3 = arith.constant 0 : index
    %2 = vector.load %arg2[%c0_2, %c0_3] : memref<4x18xbf16, #tpu.memory_space<vmem>>, vector<4x18xbf16>
    %cst = arith.constant dense<0.000000e+00> : vector<256x18xf32>
    %3 = tpu.matmul %1, %2, %cst {dimension_numbers = #tpu.dot_dimension_numbers<[1], [0], [0], [1], [0, 0, 1, 1], [], []>} : vector<256x4xbf16>, vector<4x18xbf16>, vector<256x18xf32> -> vector<256x18xf32>
    %4 = arith.truncf %3 : vector<256x18xf32> to vector<256x18xbf16>
    %c0_4 = arith.constant 0 : index
    %c0_5 = arith.constant 0 : index
    %c0_6 = arith.constant 0 : index
    %5 = vector.load %arg3[%c0_4, %c0_5, %c0_6] : memref<1x256x18xbf16, #tpu.memory_space<vmem>>, vector<1x256x18xbf16>
    %6 = vector.shape_cast %5 : vector<1x256x18xbf16> to vector<256x18xbf16>
    %7 = vector.shape_cast %4 : vector<256x18xbf16> to vector<1x256x18xbf16>
    tpu.vector_store %arg3[%c0_4, %c0_5, %c0_6], %7 {strides = array<i32>} : memref<1x256x18xbf16, #tpu.memory_space<vmem>>, vector<1x256x18xbf16>,
    %cst_7 = arith.constant dense<0.000000e+00> : vector<18xf32>
    %8 = vector.multi_reduction <add>, %3, %cst_7 [0] : vector<256x18xf32> to vector<18xf32>
    %9 = vector.shape_cast %8 : vector<18xf32> to vector<1x18xf32>
    %c0_8 = arith.constant 0 : index
    %c0_9 = arith.constant 0 : index
    %c0_10 = arith.constant 0 : index
    %10 = vector.load %arg4[%c0_8, %c0_9, %c0_10] : memref<1x1x18xf32, #tpu.memory_space<vmem>>, vector<1x1x18xf32>
    %11 = vector.shape_cast %10 : vector<1x1x18xf32> to vector<1x18xf32>
    %12 = vector.shape_cast %9 : vector<1x18xf32> to vector<1x1x18xf32>
    tpu.vector_store %arg4[%c0_8, %c0_9, %c0_10], %12 {strides = array<i32>} : memref<1x1x18xf32, #tpu.memory_space<vmem>>, vector<1x1x18xf32>,
    %13 = arith.mulf %3, %3 : vector<256x18xf32>
    %cst_11 = arith.constant dense<0.000000e+00> : vector<18xf32>
    %14 = vector.multi_reduction <add>, %13, %cst_11 [0] : vector<256x18xf32> to vector<18xf32>
    %15 = vector.shape_cast %14 : vector<18xf32> to vector<1x18xf32>
    %c0_12 = arith.constant 0 : index
    %c0_13 = arith.constant 0 : index
    %c0_14 = arith.constant 0 : index
    %16 = vector.load %arg5[%c0_12, %c0_13, %c0_14] : memref<1x1x18xf32, #tpu.memory_space<vmem>>, vector<1x1x18xf32>
    %17 = vector.shape_cast %16 : vector<1x1x18xf32> to vector<1x18xf32>
    %18 = vector.shape_cast %15 : vector<1x18xf32> to vector<1x1x18xf32>
    tpu.vector_store %arg5[%c0_12, %c0_13, %c0_14], %18 {strides = array<i32>} : memref<1x1x18xf32, #tpu.memory_space<vmem>>, vector<1x1x18xf32>,
    return
  }
  func.func @transform_0(%arg0: i32) -> (i32, i32, i32) {
    %c0_i32 = arith.constant 0 : i32
    %c0_i32_0 = arith.constant 0 : i32
    %c0_i32_1 = arith.constant 0 : i32
    return %arg0, %c0_i32, %c0_i32_0 : i32, i32, i32
  }
  func.func @transform_1(%arg0: i32) -> (i32, i32) {
    %c0_i32 = arith.constant 0 : i32
    %c0_i32_0 = arith.constant 0 : i32
    %c0_i32_1 = arith.constant 0 : i32
    return %c0_i32, %c0_i32_0 : i32, i32
  }
  func.func @transform_2(%arg0: i32) -> (i32, i32, i32) {
    %c0_i32 = arith.constant 0 : i32
    %c0_i32_0 = arith.constant 0 : i32
    %c0_i32_1 = arith.constant 0 : i32
    return %arg0, %c0_i32, %c0_i32_0 : i32, i32, i32
  }
  func.func @transform_3(%arg0: i32) -> (i32, i32, i32) {
    %c0_i32 = arith.constant 0 : i32
    %c0_i32_0 = arith.constant 0 : i32
    %c0_i32_1 = arith.constant 0 : i32
    return %arg0, %c0_i32, %c0_i32_0 : i32, i32, i32
  }
  func.func @transform_4(%arg0: i32) -> (i32, i32, i32) {
    %c0_i32 = arith.constant 0 : i32
    %c0_i32_0 = arith.constant 0 : i32
    %c0_i32_1 = arith.constant 0 : i32
    return %arg0, %c0_i32, %c0_i32_0 : i32, i32, i32
  }
}

module attributes {stable_mosaic.version = 11 : i64} {
  func.func @_pool_proj_stats_kernel(%arg0: i32, %arg1: memref<1x16x16x4xbf16, #tpu.memory_space<vmem>>, %arg2: memref<4x6xbf16, #tpu.memory_space<vmem>>, %arg3: memref<1x256x6xbf16, #tpu.memory_space<vmem>>, %arg4: memref<1x1x6xf32, #tpu.memory_space<vmem>>, %arg5: memref<1x1x6xf32, #tpu.memory_space<vmem>>, %arg6: memref<18x18x4xf32, #tpu.memory_space<vmem>>) attributes {dimension_semantics = [#tpu.dimension_semantics<parallel>], iteration_bounds = array<i64: 2>, scalar_prefetch = 0 : i64, scratch_operands = 1 : i64, tpu.core_type = #tpu.core_type<tc>, window_params = [{transform_indices = @transform_0, window_bounds = array<i64: 1, 16, 16, 4>}, {pipeline_mode = #tpu.pipeline_mode<synchronous>, transform_indices = @transform_1, window_bounds = array<i64: 4, 6>}, {transform_indices = @transform_2, window_bounds = array<i64: 1, 256, 6>}, {transform_indices = @transform_3, window_bounds = array<i64: 1, 1, 6>}, {transform_indices = @transform_4, window_bounds = array<i64: 1, 1, 6>}]} {
    %cst = arith.constant 0xFF800000 : f32
    %0 = vector.broadcast %cst : f32 to vector<18x18x4xf32>
    %c0 = arith.constant 0 : index
    %c0_0 = arith.constant 0 : index
    %c0_1 = arith.constant 0 : index
    %1 = vector.load %arg6[%c0, %c0_0, %c0_1] : memref<18x18x4xf32, #tpu.memory_space<vmem>>, vector<18x18x4xf32>
    tpu.vector_store %arg6[%c0, %c0_0, %c0_1], %0 {strides = array<i32>} : memref<18x18x4xf32, #tpu.memory_space<vmem>>, vector<18x18x4xf32>,
    %c0_2 = arith.constant 0 : index
    %c0_3 = arith.constant 0 : index
    %c0_4 = arith.constant 0 : index
    %c0_5 = arith.constant 0 : index
    %2 = vector.load %arg1[%c0_2, %c0_3, %c0_4, %c0_5] : memref<1x16x16x4xbf16, #tpu.memory_space<vmem>>, vector<1x16x16x4xbf16>
    %3 = vector.shape_cast %2 : vector<1x16x16x4xbf16> to vector<16x16x4xbf16>
    %4 = arith.extf %3 : vector<16x16x4xbf16> to vector<16x16x4xf32>
    %c1 = arith.constant 1 : index
    %c1_6 = arith.constant 1 : index
    %c0_7 = arith.constant 0 : index
    %5 = vector.load %arg6[%c1, %c1_6, %c0_7] : memref<18x18x4xf32, #tpu.memory_space<vmem>>, vector<16x16x4xf32>
    tpu.vector_store %arg6[%c1, %c1_6, %c0_7], %4 {strides = array<i32>} : memref<18x18x4xf32, #tpu.memory_space<vmem>>, vector<16x16x4xf32>,
    %c0_8 = arith.constant 0 : index
    %c0_9 = arith.constant 0 : index
    %c0_10 = arith.constant 0 : index
    %6 = vector.load %arg6[%c0_8, %c0_9, %c0_10] : memref<18x18x4xf32, #tpu.memory_space<vmem>>, vector<18x18x4xf32>
    %7 = vector.extract_strided_slice %6 {offsets = [0, 0, 0], sizes = [16, 18, 4], strides = [1, 1, 1]} : vector<18x18x4xf32> to vector<16x18x4xf32>
    %8 = vector.extract_strided_slice %6 {offsets = [1, 0, 0], sizes = [16, 18, 4], strides = [1, 1, 1]} : vector<18x18x4xf32> to vector<16x18x4xf32>
    %9 = arith.maximumf %7, %8 : vector<16x18x4xf32>
    %10 = vector.extract_strided_slice %6 {offsets = [2, 0, 0], sizes = [16, 18, 4], strides = [1, 1, 1]} : vector<18x18x4xf32> to vector<16x18x4xf32>
    %11 = arith.maximumf %9, %10 : vector<16x18x4xf32>
    %12 = vector.extract_strided_slice %11 {offsets = [0, 0, 0], sizes = [16, 16, 4], strides = [1, 1, 1]} : vector<16x18x4xf32> to vector<16x16x4xf32>
    %13 = vector.extract_strided_slice %11 {offsets = [0, 1, 0], sizes = [16, 16, 4], strides = [1, 1, 1]} : vector<16x18x4xf32> to vector<16x16x4xf32>
    %14 = arith.maximumf %12, %13 : vector<16x16x4xf32>
    %15 = vector.extract_strided_slice %11 {offsets = [0, 2, 0], sizes = [16, 16, 4], strides = [1, 1, 1]} : vector<16x18x4xf32> to vector<16x16x4xf32>
    %16 = arith.maximumf %14, %15 : vector<16x16x4xf32>
    %17 = vector.shape_cast %16 : vector<16x16x4xf32> to vector<256x4xf32>
    %18 = arith.truncf %17 : vector<256x4xf32> to vector<256x4xbf16>
    %c0_11 = arith.constant 0 : index
    %c0_12 = arith.constant 0 : index
    %19 = vector.load %arg2[%c0_11, %c0_12] : memref<4x6xbf16, #tpu.memory_space<vmem>>, vector<4x6xbf16>
    %cst_13 = arith.constant dense<0.000000e+00> : vector<256x6xf32>
    %20 = tpu.matmul %18, %19, %cst_13 {dimension_numbers = #tpu.dot_dimension_numbers<[1], [0], [0], [1], [0, 0, 1, 1], [], []>} : vector<256x4xbf16>, vector<4x6xbf16>, vector<256x6xf32> -> vector<256x6xf32>
    %21 = arith.truncf %20 : vector<256x6xf32> to vector<256x6xbf16>
    %c0_14 = arith.constant 0 : index
    %c0_15 = arith.constant 0 : index
    %c0_16 = arith.constant 0 : index
    %22 = vector.load %arg3[%c0_14, %c0_15, %c0_16] : memref<1x256x6xbf16, #tpu.memory_space<vmem>>, vector<1x256x6xbf16>
    %23 = vector.shape_cast %22 : vector<1x256x6xbf16> to vector<256x6xbf16>
    %24 = vector.shape_cast %21 : vector<256x6xbf16> to vector<1x256x6xbf16>
    tpu.vector_store %arg3[%c0_14, %c0_15, %c0_16], %24 {strides = array<i32>} : memref<1x256x6xbf16, #tpu.memory_space<vmem>>, vector<1x256x6xbf16>,
    %cst_17 = arith.constant dense<0.000000e+00> : vector<6xf32>
    %25 = vector.multi_reduction <add>, %20, %cst_17 [0] : vector<256x6xf32> to vector<6xf32>
    %26 = vector.shape_cast %25 : vector<6xf32> to vector<1x6xf32>
    %c0_18 = arith.constant 0 : index
    %c0_19 = arith.constant 0 : index
    %c0_20 = arith.constant 0 : index
    %27 = vector.load %arg4[%c0_18, %c0_19, %c0_20] : memref<1x1x6xf32, #tpu.memory_space<vmem>>, vector<1x1x6xf32>
    %28 = vector.shape_cast %27 : vector<1x1x6xf32> to vector<1x6xf32>
    %29 = vector.shape_cast %26 : vector<1x6xf32> to vector<1x1x6xf32>
    tpu.vector_store %arg4[%c0_18, %c0_19, %c0_20], %29 {strides = array<i32>} : memref<1x1x6xf32, #tpu.memory_space<vmem>>, vector<1x1x6xf32>,
    %30 = arith.mulf %20, %20 : vector<256x6xf32>
    %cst_21 = arith.constant dense<0.000000e+00> : vector<6xf32>
    %31 = vector.multi_reduction <add>, %30, %cst_21 [0] : vector<256x6xf32> to vector<6xf32>
    %32 = vector.shape_cast %31 : vector<6xf32> to vector<1x6xf32>
    %c0_22 = arith.constant 0 : index
    %c0_23 = arith.constant 0 : index
    %c0_24 = arith.constant 0 : index
    %33 = vector.load %arg5[%c0_22, %c0_23, %c0_24] : memref<1x1x6xf32, #tpu.memory_space<vmem>>, vector<1x1x6xf32>
    %34 = vector.shape_cast %33 : vector<1x1x6xf32> to vector<1x6xf32>
    %35 = vector.shape_cast %32 : vector<1x6xf32> to vector<1x1x6xf32>
    tpu.vector_store %arg5[%c0_22, %c0_23, %c0_24], %35 {strides = array<i32>} : memref<1x1x6xf32, #tpu.memory_space<vmem>>, vector<1x1x6xf32>,
    return
  }
  func.func @transform_0(%arg0: i32) -> (i32, i32, i32, i32) {
    %c0_i32 = arith.constant 0 : i32
    %c0_i32_0 = arith.constant 0 : i32
    %c0_i32_1 = arith.constant 0 : i32
    %c0_i32_2 = arith.constant 0 : i32
    return %arg0, %c0_i32, %c0_i32_0, %c0_i32_1 : i32, i32, i32, i32
  }
  func.func @transform_1(%arg0: i32) -> (i32, i32) {
    %c0_i32 = arith.constant 0 : i32
    %c0_i32_0 = arith.constant 0 : i32
    %c0_i32_1 = arith.constant 0 : i32
    return %c0_i32, %c0_i32_0 : i32, i32
  }
  func.func @transform_2(%arg0: i32) -> (i32, i32, i32) {
    %c0_i32 = arith.constant 0 : i32
    %c0_i32_0 = arith.constant 0 : i32
    %c0_i32_1 = arith.constant 0 : i32
    return %arg0, %c0_i32, %c0_i32_0 : i32, i32, i32
  }
  func.func @transform_3(%arg0: i32) -> (i32, i32, i32) {
    %c0_i32 = arith.constant 0 : i32
    %c0_i32_0 = arith.constant 0 : i32
    %c0_i32_1 = arith.constant 0 : i32
    return %arg0, %c0_i32, %c0_i32_0 : i32, i32, i32
  }
  func.func @transform_4(%arg0: i32) -> (i32, i32, i32) {
    %c0_i32 = arith.constant 0 : i32
    %c0_i32_0 = arith.constant 0 : i32
    %c0_i32_1 = arith.constant 0 : i32
    return %arg0, %c0_i32, %c0_i32_0 : i32, i32, i32
  }
}

module attributes {stable_mosaic.version = 11 : i64} {
  func.func @_conv3x3_stats_kernel(%arg0: i32, %arg1: memref<1x16x16x6xbf16, #tpu.memory_space<vmem>>, %arg2: memref<54x12xbf16, #tpu.memory_space<vmem>>, %arg3: memref<1x256x12xbf16, #tpu.memory_space<vmem>>, %arg4: memref<1x1x12xf32, #tpu.memory_space<vmem>>, %arg5: memref<1x1x12xf32, #tpu.memory_space<vmem>>, %arg6: memref<18x18x6xf32, #tpu.memory_space<vmem>>) attributes {dimension_semantics = [#tpu.dimension_semantics<parallel>], iteration_bounds = array<i64: 2>, scalar_prefetch = 0 : i64, scratch_operands = 1 : i64, tpu.core_type = #tpu.core_type<tc>, window_params = [{transform_indices = @transform_0, window_bounds = array<i64: 1, 16, 16, 6>}, {pipeline_mode = #tpu.pipeline_mode<synchronous>, transform_indices = @transform_1, window_bounds = array<i64: 54, 12>}, {transform_indices = @transform_2, window_bounds = array<i64: 1, 256, 12>}, {transform_indices = @transform_3, window_bounds = array<i64: 1, 1, 12>}, {transform_indices = @transform_4, window_bounds = array<i64: 1, 1, 12>}]} {
    %cst = arith.constant 0.000000e+00 : f32
    %0 = vector.broadcast %cst : f32 to vector<18x18x6xf32>
    %c0 = arith.constant 0 : index
    %c0_0 = arith.constant 0 : index
    %c0_1 = arith.constant 0 : index
    %1 = vector.load %arg6[%c0, %c0_0, %c0_1] : memref<18x18x6xf32, #tpu.memory_space<vmem>>, vector<18x18x6xf32>
    tpu.vector_store %arg6[%c0, %c0_0, %c0_1], %0 {strides = array<i32>} : memref<18x18x6xf32, #tpu.memory_space<vmem>>, vector<18x18x6xf32>,
    %c0_2 = arith.constant 0 : index
    %c0_3 = arith.constant 0 : index
    %c0_4 = arith.constant 0 : index
    %c0_5 = arith.constant 0 : index
    %2 = vector.load %arg1[%c0_2, %c0_3, %c0_4, %c0_5] : memref<1x16x16x6xbf16, #tpu.memory_space<vmem>>, vector<1x16x16x6xbf16>
    %3 = vector.shape_cast %2 : vector<1x16x16x6xbf16> to vector<16x16x6xbf16>
    %4 = arith.extf %3 : vector<16x16x6xbf16> to vector<16x16x6xf32>
    %c1 = arith.constant 1 : index
    %c1_6 = arith.constant 1 : index
    %c0_7 = arith.constant 0 : index
    %5 = vector.load %arg6[%c1, %c1_6, %c0_7] : memref<18x18x6xf32, #tpu.memory_space<vmem>>, vector<16x16x6xf32>
    tpu.vector_store %arg6[%c1, %c1_6, %c0_7], %4 {strides = array<i32>} : memref<18x18x6xf32, #tpu.memory_space<vmem>>, vector<16x16x6xf32>,
    %c0_8 = arith.constant 0 : index
    %c0_9 = arith.constant 0 : index
    %c0_10 = arith.constant 0 : index
    %6 = vector.load %arg6[%c0_8, %c0_9, %c0_10] : memref<18x18x6xf32, #tpu.memory_space<vmem>>, vector<18x18x6xf32>
    %7 = vector.extract_strided_slice %6 {offsets = [0, 0, 0], sizes = [16, 16, 6], strides = [1, 1, 1]} : vector<18x18x6xf32> to vector<16x16x6xf32>
    %8 = vector.shape_cast %7 : vector<16x16x6xf32> to vector<256x6xf32>
    %9 = vector.extract_strided_slice %6 {offsets = [0, 1, 0], sizes = [16, 16, 6], strides = [1, 1, 1]} : vector<18x18x6xf32> to vector<16x16x6xf32>
    %10 = vector.shape_cast %9 : vector<16x16x6xf32> to vector<256x6xf32>
    %11 = vector.extract_strided_slice %6 {offsets = [0, 2, 0], sizes = [16, 16, 6], strides = [1, 1, 1]} : vector<18x18x6xf32> to vector<16x16x6xf32>
    %12 = vector.shape_cast %11 : vector<16x16x6xf32> to vector<256x6xf32>
    %13 = vector.extract_strided_slice %6 {offsets = [1, 0, 0], sizes = [16, 16, 6], strides = [1, 1, 1]} : vector<18x18x6xf32> to vector<16x16x6xf32>
    %14 = vector.shape_cast %13 : vector<16x16x6xf32> to vector<256x6xf32>
    %15 = vector.extract_strided_slice %6 {offsets = [1, 1, 0], sizes = [16, 16, 6], strides = [1, 1, 1]} : vector<18x18x6xf32> to vector<16x16x6xf32>
    %16 = vector.shape_cast %15 : vector<16x16x6xf32> to vector<256x6xf32>
    %17 = vector.extract_strided_slice %6 {offsets = [1, 2, 0], sizes = [16, 16, 6], strides = [1, 1, 1]} : vector<18x18x6xf32> to vector<16x16x6xf32>
    %18 = vector.shape_cast %17 : vector<16x16x6xf32> to vector<256x6xf32>
    %19 = vector.extract_strided_slice %6 {offsets = [2, 0, 0], sizes = [16, 16, 6], strides = [1, 1, 1]} : vector<18x18x6xf32> to vector<16x16x6xf32>
    %20 = vector.shape_cast %19 : vector<16x16x6xf32> to vector<256x6xf32>
    %21 = vector.extract_strided_slice %6 {offsets = [2, 1, 0], sizes = [16, 16, 6], strides = [1, 1, 1]} : vector<18x18x6xf32> to vector<16x16x6xf32>
    %22 = vector.shape_cast %21 : vector<16x16x6xf32> to vector<256x6xf32>
    %23 = vector.extract_strided_slice %6 {offsets = [2, 2, 0], sizes = [16, 16, 6], strides = [1, 1, 1]} : vector<18x18x6xf32> to vector<16x16x6xf32>
    %24 = vector.shape_cast %23 : vector<16x16x6xf32> to vector<256x6xf32>
    %25 = tpu.concatenate %8, %10, %12, %14, %16, %18, %20, %22, %24 in 1 : vector<256x6xf32>, vector<256x6xf32>, vector<256x6xf32>, vector<256x6xf32>, vector<256x6xf32>, vector<256x6xf32>, vector<256x6xf32>, vector<256x6xf32>, vector<256x6xf32> -> vector<256x54xf32>
    %26 = arith.truncf %25 : vector<256x54xf32> to vector<256x54xbf16>
    %c0_11 = arith.constant 0 : index
    %c0_12 = arith.constant 0 : index
    %27 = vector.load %arg2[%c0_11, %c0_12] : memref<54x12xbf16, #tpu.memory_space<vmem>>, vector<54x12xbf16>
    %cst_13 = arith.constant dense<0.000000e+00> : vector<256x12xf32>
    %28 = tpu.matmul %26, %27, %cst_13 {dimension_numbers = #tpu.dot_dimension_numbers<[1], [0], [0], [1], [0, 0, 1, 1], [], []>} : vector<256x54xbf16>, vector<54x12xbf16>, vector<256x12xf32> -> vector<256x12xf32>
    %29 = arith.truncf %28 : vector<256x12xf32> to vector<256x12xbf16>
    %c0_14 = arith.constant 0 : index
    %c0_15 = arith.constant 0 : index
    %c0_16 = arith.constant 0 : index
    %30 = vector.load %arg3[%c0_14, %c0_15, %c0_16] : memref<1x256x12xbf16, #tpu.memory_space<vmem>>, vector<1x256x12xbf16>
    %31 = vector.shape_cast %30 : vector<1x256x12xbf16> to vector<256x12xbf16>
    %32 = vector.shape_cast %29 : vector<256x12xbf16> to vector<1x256x12xbf16>
    tpu.vector_store %arg3[%c0_14, %c0_15, %c0_16], %32 {strides = array<i32>} : memref<1x256x12xbf16, #tpu.memory_space<vmem>>, vector<1x256x12xbf16>,
    %cst_17 = arith.constant dense<0.000000e+00> : vector<12xf32>
    %33 = vector.multi_reduction <add>, %28, %cst_17 [0] : vector<256x12xf32> to vector<12xf32>
    %34 = vector.shape_cast %33 : vector<12xf32> to vector<1x12xf32>
    %c0_18 = arith.constant 0 : index
    %c0_19 = arith.constant 0 : index
    %c0_20 = arith.constant 0 : index
    %35 = vector.load %arg4[%c0_18, %c0_19, %c0_20] : memref<1x1x12xf32, #tpu.memory_space<vmem>>, vector<1x1x12xf32>
    %36 = vector.shape_cast %35 : vector<1x1x12xf32> to vector<1x12xf32>
    %37 = vector.shape_cast %34 : vector<1x12xf32> to vector<1x1x12xf32>
    tpu.vector_store %arg4[%c0_18, %c0_19, %c0_20], %37 {strides = array<i32>} : memref<1x1x12xf32, #tpu.memory_space<vmem>>, vector<1x1x12xf32>,
    %38 = arith.mulf %28, %28 : vector<256x12xf32>
    %cst_21 = arith.constant dense<0.000000e+00> : vector<12xf32>
    %39 = vector.multi_reduction <add>, %38, %cst_21 [0] : vector<256x12xf32> to vector<12xf32>
    %40 = vector.shape_cast %39 : vector<12xf32> to vector<1x12xf32>
    %c0_22 = arith.constant 0 : index
    %c0_23 = arith.constant 0 : index
    %c0_24 = arith.constant 0 : index
    %41 = vector.load %arg5[%c0_22, %c0_23, %c0_24] : memref<1x1x12xf32, #tpu.memory_space<vmem>>, vector<1x1x12xf32>
    %42 = vector.shape_cast %41 : vector<1x1x12xf32> to vector<1x12xf32>
    %43 = vector.shape_cast %40 : vector<1x12xf32> to vector<1x1x12xf32>
    tpu.vector_store %arg5[%c0_22, %c0_23, %c0_24], %43 {strides = array<i32>} : memref<1x1x12xf32, #tpu.memory_space<vmem>>, vector<1x1x12xf32>,
    return
  }
  func.func @transform_0(%arg0: i32) -> (i32, i32, i32, i32) {
    %c0_i32 = arith.constant 0 : i32
    %c0_i32_0 = arith.constant 0 : i32
    %c0_i32_1 = arith.constant 0 : i32
    %c0_i32_2 = arith.constant 0 : i32
    return %arg0, %c0_i32, %c0_i32_0, %c0_i32_1 : i32, i32, i32, i32
  }
  func.func @transform_1(%arg0: i32) -> (i32, i32) {
    %c0_i32 = arith.constant 0 : i32
    %c0_i32_0 = arith.constant 0 : i32
    %c0_i32_1 = arith.constant 0 : i32
    return %c0_i32, %c0_i32_0 : i32, i32
  }
  func.func @transform_2(%arg0: i32) -> (i32, i32, i32) {
    %c0_i32 = arith.constant 0 : i32
    %c0_i32_0 = arith.constant 0 : i32
    %c0_i32_1 = arith.constant 0 : i32
    return %arg0, %c0_i32, %c0_i32_0 : i32, i32, i32
  }
  func.func @transform_3(%arg0: i32) -> (i32, i32, i32) {
    %c0_i32 = arith.constant 0 : i32
    %c0_i32_0 = arith.constant 0 : i32
    %c0_i32_1 = arith.constant 0 : i32
    return %arg0, %c0_i32, %c0_i32_0 : i32, i32, i32
  }
  func.func @transform_4(%arg0: i32) -> (i32, i32, i32) {
    %c0_i32 = arith.constant 0 : i32
    %c0_i32_0 = arith.constant 0 : i32
    %c0_i32_1 = arith.constant 0 : i32
    return %arg0, %c0_i32, %c0_i32_0 : i32, i32, i32
  }
}

module attributes {stable_mosaic.version = 11 : i64} {
  func.func @_bn_relu_split_kernel(%arg0: i32, %arg1: memref<1x256x18xbf16, #tpu.memory_space<vmem>>, %arg2: memref<1x1x18xf32, #tpu.memory_space<vmem>>, %arg3: memref<1x1x18xf32, #tpu.memory_space<vmem>>, %arg4: memref<1x256x8xf32, #tpu.memory_space<vmem>>, %arg5: memref<1x256x6xbf16, #tpu.memory_space<vmem>>, %arg6: memref<1x256x4xbf16, #tpu.memory_space<vmem>>) attributes {dimension_semantics = [#tpu.dimension_semantics<parallel>], iteration_bounds = array<i64: 2>, scalar_prefetch = 0 : i64, scratch_operands = 0 : i64, tpu.core_type = #tpu.core_type<tc>, window_params = [{transform_indices = @transform_0, window_bounds = array<i64: 1, 256, 18>}, {pipeline_mode = #tpu.pipeline_mode<synchronous>, transform_indices = @transform_1, window_bounds = array<i64: 1, 1, 18>}, {pipeline_mode = #tpu.pipeline_mode<synchronous>, transform_indices = @transform_2, window_bounds = array<i64: 1, 1, 18>}, {transform_indices = @transform_3, window_bounds = array<i64: 1, 256, 8>}, {transform_indices = @transform_4, window_bounds = array<i64: 1, 256, 6>}, {transform_indices = @transform_5, window_bounds = array<i64: 1, 256, 4>}]} {
    %c0 = arith.constant 0 : index
    %c0_0 = arith.constant 0 : index
    %c0_1 = arith.constant 0 : index
    %0 = vector.load %arg1[%c0, %c0_0, %c0_1] : memref<1x256x18xbf16, #tpu.memory_space<vmem>>, vector<1x256x18xbf16>
    %1 = vector.shape_cast %0 : vector<1x256x18xbf16> to vector<256x18xbf16>
    %2 = arith.extf %1 : vector<256x18xbf16> to vector<256x18xf32>
    %c0_2 = arith.constant 0 : index
    %c0_3 = arith.constant 0 : index
    %c0_4 = arith.constant 0 : index
    %3 = vector.load %arg2[%c0_2, %c0_3, %c0_4] : memref<1x1x18xf32, #tpu.memory_space<vmem>>, vector<1x1x18xf32>
    %4 = vector.shape_cast %3 : vector<1x1x18xf32> to vector<1x18xf32>
    %5 = vector.broadcast %4 : vector<1x18xf32> to vector<256x18xf32>
    %6 = arith.mulf %2, %5 : vector<256x18xf32>
    %c0_5 = arith.constant 0 : index
    %c0_6 = arith.constant 0 : index
    %c0_7 = arith.constant 0 : index
    %7 = vector.load %arg3[%c0_5, %c0_6, %c0_7] : memref<1x1x18xf32, #tpu.memory_space<vmem>>, vector<1x1x18xf32>
    %8 = vector.shape_cast %7 : vector<1x1x18xf32> to vector<1x18xf32>
    %9 = vector.broadcast %8 : vector<1x18xf32> to vector<256x18xf32>
    %10 = arith.addf %6, %9 : vector<256x18xf32>
    %cst = arith.constant 0.000000e+00 : f32
    %11 = vector.broadcast %cst : f32 to vector<256x18xf32>
    %12 = arith.maximumf %10, %11 : vector<256x18xf32>
    %13 = vector.extract_strided_slice %12 {offsets = [0, 0], sizes = [256, 8], strides = [1, 1]} : vector<256x18xf32> to vector<256x8xf32>
    %c0_8 = arith.constant 0 : index
    %c0_9 = arith.constant 0 : index
    %c0_10 = arith.constant 0 : index
    %14 = vector.load %arg4[%c0_8, %c0_9, %c0_10] : memref<1x256x8xf32, #tpu.memory_space<vmem>>, vector<1x256x8xf32>
    %15 = vector.shape_cast %14 : vector<1x256x8xf32> to vector<256x8xf32>
    %16 = vector.shape_cast %13 : vector<256x8xf32> to vector<1x256x8xf32>
    tpu.vector_store %arg4[%c0_8, %c0_9, %c0_10], %16 {strides = array<i32>} : memref<1x256x8xf32, #tpu.memory_space<vmem>>, vector<1x256x8xf32>,
    %17 = vector.extract_strided_slice %12 {offsets = [0, 8], sizes = [256, 6], strides = [1, 1]} : vector<256x18xf32> to vector<256x6xf32>
    %18 = arith.truncf %17 : vector<256x6xf32> to vector<256x6xbf16>
    %c0_11 = arith.constant 0 : index
    %c0_12 = arith.constant 0 : index
    %c0_13 = arith.constant 0 : index
    %19 = vector.load %arg5[%c0_11, %c0_12, %c0_13] : memref<1x256x6xbf16, #tpu.memory_space<vmem>>, vector<1x256x6xbf16>
    %20 = vector.shape_cast %19 : vector<1x256x6xbf16> to vector<256x6xbf16>
    %21 = vector.shape_cast %18 : vector<256x6xbf16> to vector<1x256x6xbf16>
    tpu.vector_store %arg5[%c0_11, %c0_12, %c0_13], %21 {strides = array<i32>} : memref<1x256x6xbf16, #tpu.memory_space<vmem>>, vector<1x256x6xbf16>,
    %22 = vector.extract_strided_slice %12 {offsets = [0, 14], sizes = [256, 4], strides = [1, 1]} : vector<256x18xf32> to vector<256x4xf32>
    %23 = arith.truncf %22 : vector<256x4xf32> to vector<256x4xbf16>
    %c0_14 = arith.constant 0 : index
    %c0_15 = arith.constant 0 : index
    %c0_16 = arith.constant 0 : index
    %24 = vector.load %arg6[%c0_14, %c0_15, %c0_16] : memref<1x256x4xbf16, #tpu.memory_space<vmem>>, vector<1x256x4xbf16>
    %25 = vector.shape_cast %24 : vector<1x256x4xbf16> to vector<256x4xbf16>
    %26 = vector.shape_cast %23 : vector<256x4xbf16> to vector<1x256x4xbf16>
    tpu.vector_store %arg6[%c0_14, %c0_15, %c0_16], %26 {strides = array<i32>} : memref<1x256x4xbf16, #tpu.memory_space<vmem>>, vector<1x256x4xbf16>,
    return
  }
  func.func @transform_0(%arg0: i32) -> (i32, i32, i32) {
    %c0_i32 = arith.constant 0 : i32
    %c0_i32_0 = arith.constant 0 : i32
    %c0_i32_1 = arith.constant 0 : i32
    return %arg0, %c0_i32, %c0_i32_0 : i32, i32, i32
  }
  func.func @transform_1(%arg0: i32) -> (i32, i32, i32) {
    %c0_i32 = arith.constant 0 : i32
    %c0_i32_0 = arith.constant 0 : i32
    %c0_i32_1 = arith.constant 0 : i32
    %c0_i32_2 = arith.constant 0 : i32
    return %c0_i32, %c0_i32_0, %c0_i32_1 : i32, i32, i32
  }
  func.func @transform_2(%arg0: i32) -> (i32, i32, i32) {
    %c0_i32 = arith.constant 0 : i32
    %c0_i32_0 = arith.constant 0 : i32
    %c0_i32_1 = arith.constant 0 : i32
    %c0_i32_2 = arith.constant 0 : i32
    return %c0_i32, %c0_i32_0, %c0_i32_1 : i32, i32, i32
  }
  func.func @transform_3(%arg0: i32) -> (i32, i32, i32) {
    %c0_i32 = arith.constant 0 : i32
    %c0_i32_0 = arith.constant 0 : i32
    %c0_i32_1 = arith.constant 0 : i32
    return %arg0, %c0_i32, %c0_i32_0 : i32, i32, i32
  }
  func.func @transform_4(%arg0: i32) -> (i32, i32, i32) {
    %c0_i32 = arith.constant 0 : i32
    %c0_i32_0 = arith.constant 0 : i32
    %c0_i32_1 = arith.constant 0 : i32
    return %arg0, %c0_i32, %c0_i32_0 : i32, i32, i32
  }
  func.func @transform_5(%arg0: i32) -> (i32, i32, i32) {
    %c0_i32 = arith.constant 0 : i32
    %c0_i32_0 = arith.constant 0 : i32
    %c0_i32_1 = arith.constant 0 : i32
    return %arg0, %c0_i32, %c0_i32_0 : i32, i32, i32
  }
}

module attributes {stable_mosaic.version = 11 : i64} {
  func.func @_conv3x3_stats_kernel(%arg0: i32, %arg1: memref<1x16x16x4xbf16, #tpu.memory_space<vmem>>, %arg2: memref<36x8xbf16, #tpu.memory_space<vmem>>, %arg3: memref<1x256x8xbf16, #tpu.memory_space<vmem>>, %arg4: memref<1x1x8xf32, #tpu.memory_space<vmem>>, %arg5: memref<1x1x8xf32, #tpu.memory_space<vmem>>, %arg6: memref<18x18x4xf32, #tpu.memory_space<vmem>>) attributes {dimension_semantics = [#tpu.dimension_semantics<parallel>], iteration_bounds = array<i64: 2>, scalar_prefetch = 0 : i64, scratch_operands = 1 : i64, tpu.core_type = #tpu.core_type<tc>, window_params = [{transform_indices = @transform_0, window_bounds = array<i64: 1, 16, 16, 4>}, {pipeline_mode = #tpu.pipeline_mode<synchronous>, transform_indices = @transform_1, window_bounds = array<i64: 36, 8>}, {transform_indices = @transform_2, window_bounds = array<i64: 1, 256, 8>}, {transform_indices = @transform_3, window_bounds = array<i64: 1, 1, 8>}, {transform_indices = @transform_4, window_bounds = array<i64: 1, 1, 8>}]} {
    %cst = arith.constant 0.000000e+00 : f32
    %0 = vector.broadcast %cst : f32 to vector<18x18x4xf32>
    %c0 = arith.constant 0 : index
    %c0_0 = arith.constant 0 : index
    %c0_1 = arith.constant 0 : index
    %1 = vector.load %arg6[%c0, %c0_0, %c0_1] : memref<18x18x4xf32, #tpu.memory_space<vmem>>, vector<18x18x4xf32>
    tpu.vector_store %arg6[%c0, %c0_0, %c0_1], %0 {strides = array<i32>} : memref<18x18x4xf32, #tpu.memory_space<vmem>>, vector<18x18x4xf32>,
    %c0_2 = arith.constant 0 : index
    %c0_3 = arith.constant 0 : index
    %c0_4 = arith.constant 0 : index
    %c0_5 = arith.constant 0 : index
    %2 = vector.load %arg1[%c0_2, %c0_3, %c0_4, %c0_5] : memref<1x16x16x4xbf16, #tpu.memory_space<vmem>>, vector<1x16x16x4xbf16>
    %3 = vector.shape_cast %2 : vector<1x16x16x4xbf16> to vector<16x16x4xbf16>
    %4 = arith.extf %3 : vector<16x16x4xbf16> to vector<16x16x4xf32>
    %c1 = arith.constant 1 : index
    %c1_6 = arith.constant 1 : index
    %c0_7 = arith.constant 0 : index
    %5 = vector.load %arg6[%c1, %c1_6, %c0_7] : memref<18x18x4xf32, #tpu.memory_space<vmem>>, vector<16x16x4xf32>
    tpu.vector_store %arg6[%c1, %c1_6, %c0_7], %4 {strides = array<i32>} : memref<18x18x4xf32, #tpu.memory_space<vmem>>, vector<16x16x4xf32>,
    %c0_8 = arith.constant 0 : index
    %c0_9 = arith.constant 0 : index
    %c0_10 = arith.constant 0 : index
    %6 = vector.load %arg6[%c0_8, %c0_9, %c0_10] : memref<18x18x4xf32, #tpu.memory_space<vmem>>, vector<18x18x4xf32>
    %7 = vector.extract_strided_slice %6 {offsets = [0, 0, 0], sizes = [16, 16, 4], strides = [1, 1, 1]} : vector<18x18x4xf32> to vector<16x16x4xf32>
    %8 = vector.shape_cast %7 : vector<16x16x4xf32> to vector<256x4xf32>
    %9 = vector.extract_strided_slice %6 {offsets = [0, 1, 0], sizes = [16, 16, 4], strides = [1, 1, 1]} : vector<18x18x4xf32> to vector<16x16x4xf32>
    %10 = vector.shape_cast %9 : vector<16x16x4xf32> to vector<256x4xf32>
    %11 = vector.extract_strided_slice %6 {offsets = [0, 2, 0], sizes = [16, 16, 4], strides = [1, 1, 1]} : vector<18x18x4xf32> to vector<16x16x4xf32>
    %12 = vector.shape_cast %11 : vector<16x16x4xf32> to vector<256x4xf32>
    %13 = vector.extract_strided_slice %6 {offsets = [1, 0, 0], sizes = [16, 16, 4], strides = [1, 1, 1]} : vector<18x18x4xf32> to vector<16x16x4xf32>
    %14 = vector.shape_cast %13 : vector<16x16x4xf32> to vector<256x4xf32>
    %15 = vector.extract_strided_slice %6 {offsets = [1, 1, 0], sizes = [16, 16, 4], strides = [1, 1, 1]} : vector<18x18x4xf32> to vector<16x16x4xf32>
    %16 = vector.shape_cast %15 : vector<16x16x4xf32> to vector<256x4xf32>
    %17 = vector.extract_strided_slice %6 {offsets = [1, 2, 0], sizes = [16, 16, 4], strides = [1, 1, 1]} : vector<18x18x4xf32> to vector<16x16x4xf32>
    %18 = vector.shape_cast %17 : vector<16x16x4xf32> to vector<256x4xf32>
    %19 = vector.extract_strided_slice %6 {offsets = [2, 0, 0], sizes = [16, 16, 4], strides = [1, 1, 1]} : vector<18x18x4xf32> to vector<16x16x4xf32>
    %20 = vector.shape_cast %19 : vector<16x16x4xf32> to vector<256x4xf32>
    %21 = vector.extract_strided_slice %6 {offsets = [2, 1, 0], sizes = [16, 16, 4], strides = [1, 1, 1]} : vector<18x18x4xf32> to vector<16x16x4xf32>
    %22 = vector.shape_cast %21 : vector<16x16x4xf32> to vector<256x4xf32>
    %23 = vector.extract_strided_slice %6 {offsets = [2, 2, 0], sizes = [16, 16, 4], strides = [1, 1, 1]} : vector<18x18x4xf32> to vector<16x16x4xf32>
    %24 = vector.shape_cast %23 : vector<16x16x4xf32> to vector<256x4xf32>
    %25 = tpu.concatenate %8, %10, %12, %14, %16, %18, %20, %22, %24 in 1 : vector<256x4xf32>, vector<256x4xf32>, vector<256x4xf32>, vector<256x4xf32>, vector<256x4xf32>, vector<256x4xf32>, vector<256x4xf32>, vector<256x4xf32>, vector<256x4xf32> -> vector<256x36xf32>
    %26 = arith.truncf %25 : vector<256x36xf32> to vector<256x36xbf16>
    %c0_11 = arith.constant 0 : index
    %c0_12 = arith.constant 0 : index
    %27 = vector.load %arg2[%c0_11, %c0_12] : memref<36x8xbf16, #tpu.memory_space<vmem>>, vector<36x8xbf16>
    %cst_13 = arith.constant dense<0.000000e+00> : vector<256x8xf32>
    %28 = tpu.matmul %26, %27, %cst_13 {dimension_numbers = #tpu.dot_dimension_numbers<[1], [0], [0], [1], [0, 0, 1, 1], [], []>} : vector<256x36xbf16>, vector<36x8xbf16>, vector<256x8xf32> -> vector<256x8xf32>
    %29 = arith.truncf %28 : vector<256x8xf32> to vector<256x8xbf16>
    %c0_14 = arith.constant 0 : index
    %c0_15 = arith.constant 0 : index
    %c0_16 = arith.constant 0 : index
    %30 = vector.load %arg3[%c0_14, %c0_15, %c0_16] : memref<1x256x8xbf16, #tpu.memory_space<vmem>>, vector<1x256x8xbf16>
    %31 = vector.shape_cast %30 : vector<1x256x8xbf16> to vector<256x8xbf16>
    %32 = vector.shape_cast %29 : vector<256x8xbf16> to vector<1x256x8xbf16>
    tpu.vector_store %arg3[%c0_14, %c0_15, %c0_16], %32 {strides = array<i32>} : memref<1x256x8xbf16, #tpu.memory_space<vmem>>, vector<1x256x8xbf16>,
    %cst_17 = arith.constant dense<0.000000e+00> : vector<8xf32>
    %33 = vector.multi_reduction <add>, %28, %cst_17 [0] : vector<256x8xf32> to vector<8xf32>
    %34 = vector.shape_cast %33 : vector<8xf32> to vector<1x8xf32>
    %c0_18 = arith.constant 0 : index
    %c0_19 = arith.constant 0 : index
    %c0_20 = arith.constant 0 : index
    %35 = vector.load %arg4[%c0_18, %c0_19, %c0_20] : memref<1x1x8xf32, #tpu.memory_space<vmem>>, vector<1x1x8xf32>
    %36 = vector.shape_cast %35 : vector<1x1x8xf32> to vector<1x8xf32>
    %37 = vector.shape_cast %34 : vector<1x8xf32> to vector<1x1x8xf32>
    tpu.vector_store %arg4[%c0_18, %c0_19, %c0_20], %37 {strides = array<i32>} : memref<1x1x8xf32, #tpu.memory_space<vmem>>, vector<1x1x8xf32>,
    %38 = arith.mulf %28, %28 : vector<256x8xf32>
    %cst_21 = arith.constant dense<0.000000e+00> : vector<8xf32>
    %39 = vector.multi_reduction <add>, %38, %cst_21 [0] : vector<256x8xf32> to vector<8xf32>
    %40 = vector.shape_cast %39 : vector<8xf32> to vector<1x8xf32>
    %c0_22 = arith.constant 0 : index
    %c0_23 = arith.constant 0 : index
    %c0_24 = arith.constant 0 : index
    %41 = vector.load %arg5[%c0_22, %c0_23, %c0_24] : memref<1x1x8xf32, #tpu.memory_space<vmem>>, vector<1x1x8xf32>
    %42 = vector.shape_cast %41 : vector<1x1x8xf32> to vector<1x8xf32>
    %43 = vector.shape_cast %40 : vector<1x8xf32> to vector<1x1x8xf32>
    tpu.vector_store %arg5[%c0_22, %c0_23, %c0_24], %43 {strides = array<i32>} : memref<1x1x8xf32, #tpu.memory_space<vmem>>, vector<1x1x8xf32>,
    return
  }
  func.func @transform_0(%arg0: i32) -> (i32, i32, i32, i32) {
    %c0_i32 = arith.constant 0 : i32
    %c0_i32_0 = arith.constant 0 : i32
    %c0_i32_1 = arith.constant 0 : i32
    %c0_i32_2 = arith.constant 0 : i32
    return %arg0, %c0_i32, %c0_i32_0, %c0_i32_1 : i32, i32, i32, i32
  }
  func.func @transform_1(%arg0: i32) -> (i32, i32) {
    %c0_i32 = arith.constant 0 : i32
    %c0_i32_0 = arith.constant 0 : i32
    %c0_i32_1 = arith.constant 0 : i32
    return %c0_i32, %c0_i32_0 : i32, i32
  }
  func.func @transform_2(%arg0: i32) -> (i32, i32, i32) {
    %c0_i32 = arith.constant 0 : i32
    %c0_i32_0 = arith.constant 0 : i32
    %c0_i32_1 = arith.constant 0 : i32
    return %arg0, %c0_i32, %c0_i32_0 : i32, i32, i32
  }
  func.func @transform_3(%arg0: i32) -> (i32, i32, i32) {
    %c0_i32 = arith.constant 0 : i32
    %c0_i32_0 = arith.constant 0 : i32
    %c0_i32_1 = arith.constant 0 : i32
    return %arg0, %c0_i32, %c0_i32_0 : i32, i32, i32
  }
  func.func @transform_4(%arg0: i32) -> (i32, i32, i32) {
    %c0_i32 = arith.constant 0 : i32
    %c0_i32_0 = arith.constant 0 : i32
    %c0_i32_1 = arith.constant 0 : i32
    return %arg0, %c0_i32, %c0_i32_0 : i32, i32, i32
  }
}

module attributes {stable_mosaic.version = 11 : i64} {
  func.func @_bn_relu_concat_kernel(%arg0: i32, %arg1: memref<1x256x8xf32, #tpu.memory_space<vmem>>, %arg2: memref<1x256x12xbf16, #tpu.memory_space<vmem>>, %arg3: memref<1x256x8xbf16, #tpu.memory_space<vmem>>, %arg4: memref<1x256x6xbf16, #tpu.memory_space<vmem>>, %arg5: memref<1x1x26xf32, #tpu.memory_space<vmem>>, %arg6: memref<1x1x26xf32, #tpu.memory_space<vmem>>, %arg7: memref<1x256x34xf32, #tpu.memory_space<vmem>>) attributes {dimension_semantics = [#tpu.dimension_semantics<parallel>], iteration_bounds = array<i64: 2>, scalar_prefetch = 0 : i64, scratch_operands = 0 : i64, tpu.core_type = #tpu.core_type<tc>, window_params = [{transform_indices = @transform_0, window_bounds = array<i64: 1, 256, 8>}, {transform_indices = @transform_1, window_bounds = array<i64: 1, 256, 12>}, {transform_indices = @transform_2, window_bounds = array<i64: 1, 256, 8>}, {transform_indices = @transform_3, window_bounds = array<i64: 1, 256, 6>}, {pipeline_mode = #tpu.pipeline_mode<synchronous>, transform_indices = @transform_4, window_bounds = array<i64: 1, 1, 26>}, {pipeline_mode = #tpu.pipeline_mode<synchronous>, transform_indices = @transform_5, window_bounds = array<i64: 1, 1, 26>}, {transform_indices = @transform_6, window_bounds = array<i64: 1, 256, 34>}]} {
    %c0 = arith.constant 0 : index
    %c0_0 = arith.constant 0 : index
    %c0_1 = arith.constant 0 : index
    %0 = vector.load %arg5[%c0, %c0_0, %c0_1] : memref<1x1x26xf32, #tpu.memory_space<vmem>>, vector<1x1x26xf32>
    %1 = vector.shape_cast %0 : vector<1x1x26xf32> to vector<1x26xf32>
    %c0_2 = arith.constant 0 : index
    %c0_3 = arith.constant 0 : index
    %c0_4 = arith.constant 0 : index
    %2 = vector.load %arg6[%c0_2, %c0_3, %c0_4] : memref<1x1x26xf32, #tpu.memory_space<vmem>>, vector<1x1x26xf32>
    %3 = vector.shape_cast %2 : vector<1x1x26xf32> to vector<1x26xf32>
    %c0_5 = arith.constant 0 : index
    %c0_6 = arith.constant 0 : index
    %c0_7 = arith.constant 0 : index
    %4 = vector.load %arg2[%c0_5, %c0_6, %c0_7] : memref<1x256x12xbf16, #tpu.memory_space<vmem>>, vector<1x256x12xbf16>
    %5 = vector.shape_cast %4 : vector<1x256x12xbf16> to vector<256x12xbf16>
    %6 = arith.extf %5 : vector<256x12xbf16> to vector<256x12xf32>
    %7 = vector.extract_strided_slice %1 {offsets = [0, 0], sizes = [1, 12], strides = [1, 1]} : vector<1x26xf32> to vector<1x12xf32>
    %8 = vector.broadcast %7 : vector<1x12xf32> to vector<256x12xf32>
    %9 = arith.mulf %6, %8 : vector<256x12xf32>
    %10 = vector.extract_strided_slice %3 {offsets = [0, 0], sizes = [1, 12], strides = [1, 1]} : vector<1x26xf32> to vector<1x12xf32>
    %11 = vector.broadcast %10 : vector<1x12xf32> to vector<256x12xf32>
    %12 = arith.addf %9, %11 : vector<256x12xf32>
    %cst = arith.constant 0.000000e+00 : f32
    %13 = vector.broadcast %cst : f32 to vector<256x12xf32>
    %14 = arith.maximumf %12, %13 : vector<256x12xf32>
    %c0_8 = arith.constant 0 : index
    %c0_9 = arith.constant 0 : index
    %c0_10 = arith.constant 0 : index
    %15 = vector.load %arg3[%c0_8, %c0_9, %c0_10] : memref<1x256x8xbf16, #tpu.memory_space<vmem>>, vector<1x256x8xbf16>
    %16 = vector.shape_cast %15 : vector<1x256x8xbf16> to vector<256x8xbf16>
    %17 = arith.extf %16 : vector<256x8xbf16> to vector<256x8xf32>
    %18 = vector.extract_strided_slice %1 {offsets = [0, 12], sizes = [1, 8], strides = [1, 1]} : vector<1x26xf32> to vector<1x8xf32>
    %19 = vector.broadcast %18 : vector<1x8xf32> to vector<256x8xf32>
    %20 = arith.mulf %17, %19 : vector<256x8xf32>
    %21 = vector.extract_strided_slice %3 {offsets = [0, 12], sizes = [1, 8], strides = [1, 1]} : vector<1x26xf32> to vector<1x8xf32>
    %22 = vector.broadcast %21 : vector<1x8xf32> to vector<256x8xf32>
    %23 = arith.addf %20, %22 : vector<256x8xf32>
    %cst_11 = arith.constant 0.000000e+00 : f32
    %24 = vector.broadcast %cst_11 : f32 to vector<256x8xf32>
    %25 = arith.maximumf %23, %24 : vector<256x8xf32>
    %c0_12 = arith.constant 0 : index
    %c0_13 = arith.constant 0 : index
    %c0_14 = arith.constant 0 : index
    %26 = vector.load %arg4[%c0_12, %c0_13, %c0_14] : memref<1x256x6xbf16, #tpu.memory_space<vmem>>, vector<1x256x6xbf16>
    %27 = vector.shape_cast %26 : vector<1x256x6xbf16> to vector<256x6xbf16>
    %28 = arith.extf %27 : vector<256x6xbf16> to vector<256x6xf32>
    %29 = vector.extract_strided_slice %1 {offsets = [0, 20], sizes = [1, 6], strides = [1, 1]} : vector<1x26xf32> to vector<1x6xf32>
    %30 = vector.broadcast %29 : vector<1x6xf32> to vector<256x6xf32>
    %31 = arith.mulf %28, %30 : vector<256x6xf32>
    %32 = vector.extract_strided_slice %3 {offsets = [0, 20], sizes = [1, 6], strides = [1, 1]} : vector<1x26xf32> to vector<1x6xf32>
    %33 = vector.broadcast %32 : vector<1x6xf32> to vector<256x6xf32>
    %34 = arith.addf %31, %33 : vector<256x6xf32>
    %cst_15 = arith.constant 0.000000e+00 : f32
    %35 = vector.broadcast %cst_15 : f32 to vector<256x6xf32>
    %36 = arith.maximumf %34, %35 : vector<256x6xf32>
    %c0_16 = arith.constant 0 : index
    %c0_17 = arith.constant 0 : index
    %c0_18 = arith.constant 0 : index
    %37 = vector.load %arg1[%c0_16, %c0_17, %c0_18] : memref<1x256x8xf32, #tpu.memory_space<vmem>>, vector<1x256x8xf32>
    %38 = vector.shape_cast %37 : vector<1x256x8xf32> to vector<256x8xf32>
    %39 = tpu.concatenate %38, %14, %25, %36 in 1 : vector<256x8xf32>, vector<256x12xf32>, vector<256x8xf32>, vector<256x6xf32> -> vector<256x34xf32>
    %c0_19 = arith.constant 0 : index
    %c0_20 = arith.constant 0 : index
    %c0_21 = arith.constant 0 : index
    %40 = vector.load %arg7[%c0_19, %c0_20, %c0_21] : memref<1x256x34xf32, #tpu.memory_space<vmem>>, vector<1x256x34xf32>
    %41 = vector.shape_cast %40 : vector<1x256x34xf32> to vector<256x34xf32>
    %42 = vector.shape_cast %39 : vector<256x34xf32> to vector<1x256x34xf32>
    tpu.vector_store %arg7[%c0_19, %c0_20, %c0_21], %42 {strides = array<i32>} : memref<1x256x34xf32, #tpu.memory_space<vmem>>, vector<1x256x34xf32>,
    return
  }
  func.func @transform_0(%arg0: i32) -> (i32, i32, i32) {
    %c0_i32 = arith.constant 0 : i32
    %c0_i32_0 = arith.constant 0 : i32
    %c0_i32_1 = arith.constant 0 : i32
    return %arg0, %c0_i32, %c0_i32_0 : i32, i32, i32
  }
  func.func @transform_1(%arg0: i32) -> (i32, i32, i32) {
    %c0_i32 = arith.constant 0 : i32
    %c0_i32_0 = arith.constant 0 : i32
    %c0_i32_1 = arith.constant 0 : i32
    return %arg0, %c0_i32, %c0_i32_0 : i32, i32, i32
  }
  func.func @transform_2(%arg0: i32) -> (i32, i32, i32) {
    %c0_i32 = arith.constant 0 : i32
    %c0_i32_0 = arith.constant 0 : i32
    %c0_i32_1 = arith.constant 0 : i32
    return %arg0, %c0_i32, %c0_i32_0 : i32, i32, i32
  }
  func.func @transform_3(%arg0: i32) -> (i32, i32, i32) {
    %c0_i32 = arith.constant 0 : i32
    %c0_i32_0 = arith.constant 0 : i32
    %c0_i32_1 = arith.constant 0 : i32
    return %arg0, %c0_i32, %c0_i32_0 : i32, i32, i32
  }
  func.func @transform_4(%arg0: i32) -> (i32, i32, i32) {
    %c0_i32 = arith.constant 0 : i32
    %c0_i32_0 = arith.constant 0 : i32
    %c0_i32_1 = arith.constant 0 : i32
    %c0_i32_2 = arith.constant 0 : i32
    return %c0_i32, %c0_i32_0, %c0_i32_1 : i32, i32, i32
  }
  func.func @transform_5(%arg0: i32) -> (i32, i32, i32) {
    %c0_i32 = arith.constant 0 : i32
    %c0_i32_0 = arith.constant 0 : i32
    %c0_i32_1 = arith.constant 0 : i32
    %c0_i32_2 = arith.constant 0 : i32
    return %c0_i32, %c0_i32_0, %c0_i32_1 : i32, i32, i32
  }
  func.func @transform_6(%arg0: i32) -> (i32, i32, i32) {
    %c0_i32 = arith.constant 0 : i32
    %c0_i32_0 = arith.constant 0 : i32
    %c0_i32_1 = arith.constant 0 : i32
    return %arg0, %c0_i32, %c0_i32_0 : i32, i32, i32
  }
}

</mosaic_0001>

<llo_original>
// kernel: inception_forward.6
$region0: #{inception_forward.6}
  #allocation0 [shape = 'u32[]', space=smem, size = 0x4, offset = 0x4, fixed_abs, tag = 'smem constant byte address 0x4 - core index']
  #allocation1 [shape = 'u32[144,128]{1,0:T(1,128)}', space=vmem, size = 0x12000, scoped, tag = 'internal scratch']
  %s0 = inlined_call_operand.vmem [shape: bf16[2,256,4], index: 0, kind: input, shape index: {}]
  %s1 = inlined_call_operand.vmem [shape: bf16[4,18], index: 1, kind: input, shape index: {}]
  %s2 = inlined_call_operand.vmem [shape: bf16[2,256,18], index: 2, kind: output, shape index: {0}]
  %s3 = inlined_call_operand.vmem [shape: f32[2,1,18], index: 3, kind: output, shape index: {1}]
  %s4 = inlined_call_operand.vmem [shape: f32[2,1,18], index: 4, kind: output, shape index: {2}]
  %5 = xla_tuple %s2, %s3, %s4
  %s6 = sld [smem:[#allocation0]]
  $region57: #{inception_forward.6} parent=0
    _
  %s8 = ssub.s32 1, %s6
  %s9 = scalar_select 0, %s8, %s6
  loop: start=0, step=1, limit=4
  $region2: #{inception_forward.6} parent=0 // loop_pre_header
    _
  $region3: #{inception_forward.6} parent=0 // loop_header
    %s11 = sphi 0, %s15
    %p12 = scmp.ge.s32.totalorder %s11, 4
    %s21 = sphi 0, %s23
    %s24 = sphi 0, %s21
    %s25 = sphi 0, %s24
    %s41 = sphi 0, %s25
    %s45 = sphi 0, %s45
    %s47 = sphi 0, %s45
    %s48 = sphi 0, %s47
    %s62 = sphi 0, %s48
    %s68 = sphi 0, %s70
    %s71 = sphi 0, %s68
    %s72 = sphi 0, %s71
    %s88 = sphi 0, %s72
    %s94 = sphi 0, %s96
    %s97 = sphi 0, %s94
    %s98 = sphi 0, %s97
    %s114 = sphi 0, %s98
    %s120 = sphi 0, %s122
    %s123 = sphi 0, %s120
    %s124 = sphi 0, %s123
    %s140 = sphi 0, %s124
  $region4: #{inception_forward.6} parent=0 // loop_header_branch
    %14 = sbr.rel (%p12) target = $region8
  $region5: #{inception_forward.6} parent=0 // loop_body
    %s16 = ssub.s32 %s11, 1
    %s17 = ssub.s32 %s11, 2
    %s18 = sadd.s32 %s11, 1
    %s19 = ssub.s32 %s11, %s18
    %p20 = scmp.eq.s32.totalorder %s19, 0
    %s22 = sadd.s32 %s21, 1
    %s23 = scalar_select %p20, %s21, %s22
    %p26 = pneg %p20
    %p27 = scmp.eq.s32.totalorder %s11, 1
    %p28 = por %p26, %p27
    %p29 = scmp.ne.s32.totalorder %s21, %s24
    %p30 = scmp.eq.s32.totalorder %s11, 0
    %p31 = por %p29, %p30
    %p32 = scmp.ne.s32.totalorder %s21, %s24
    %p33 = scmp.eq.s32.totalorder %s16, 1
    %p34 = por %p32, %p33
    %p35 = scmp.ne.s32.totalorder %s24, %s25
    %p36 = scmp.eq.s32.totalorder %s16, 0
    %p37 = por %p35, %p36
    %p38 = scmp.ne.s32.totalorder %s24, %s25
    %p39 = scmp.eq.s32.totalorder %s17, 1
    %p40 = por %p38, %p39
    %p42 = scmp.ne.s32.totalorder %s25, %s41
    %p43 = scmp.eq.s32.totalorder %s17, 0
    %p44 = por %p42, %p43
    %s46 = sadd.s32 %s45, 1
    %p49 = scmp.eq.s32.totalorder %s11, 1
    %p50 = scmp.ne.s32.totalorder %s45, %s47
    %p51 = scmp.eq.s32.totalorder %s11, 0
    %p52 = por %p50, %p51
    %p53 = scmp.ne.s32.totalorder %s45, %s47
    %p54 = scmp.eq.s32.totalorder %s16, 1
    %p55 = por %p53, %p54
    %p56 = scmp.ne.s32.totalorder %s47, %s48
    %p57 = scmp.eq.s32.totalorder %s16, 0
    %p58 = por %p56, %p57
    %p59 = scmp.ne.s32.totalorder %s47, %s48
    %p60 = scmp.eq.s32.totalorder %s17, 1
    %p61 = por %p59, %p60
    %p63 = scmp.ne.s32.totalorder %s48, %s62
    %p64 = scmp.eq.s32.totalorder %s17, 0
    %p65 = por %p63, %p64
    %s66 = ssub.s32 %s11, %s18
    %p67 = scmp.eq.s32.totalorder %s66, 0
    %s69 = sadd.s32 %s68, 1
    %s70 = scalar_select %p67, %s68, %s69
    %p73 = pneg %p67
    %p74 = scmp.eq.s32.totalorder %s11, 1
    %p75 = por %p73, %p74
    %p76 = scmp.ne.s32.totalorder %s68, %s71
    %p77 = scmp.eq.s32.totalorder %s11, 0
    %p78 = por %p76, %p77
    %p79 = scmp.ne.s32.totalorder %s68, %s71
    %p80 = scmp.eq.s32.totalorder %s16, 1
    %p81 = por %p79, %p80
    %p82 = scmp.ne.s32.totalorder %s71, %s72
    %p83 = scmp.eq.s32.totalorder %s16, 0
    %p84 = por %p82, %p83
    %p85 = scmp.ne.s32.totalorder %s71, %s72
    %p86 = scmp.eq.s32.totalorder %s17, 1
    %p87 = por %p85, %p86
    %p89 = scmp.ne.s32.totalorder %s72, %s88
    %p90 = scmp.eq.s32.totalorder %s17, 0
    %p91 = por %p89, %p90
    %s92 = ssub.s32 %s11, %s18
    %p93 = scmp.eq.s32.totalorder %s92, 0
    %s95 = sadd.s32 %s94, 1
    %s96 = scalar_select %p93, %s94, %s95
    %p99 = pneg %p93
    %p100 = scmp.eq.s32.totalorder %s11, 1
    %p101 = por %p99, %p100
    %p102 = scmp.ne.s32.totalorder %s94, %s97
    %p103 = scmp.eq.s32.totalorder %s11, 0
    %p104 = por %p102, %p103
    %p105 = scmp.ne.s32.totalorder %s94, %s97
    %p106 = scmp.eq.s32.totalorder %s16, 1
    %p107 = por %p105, %p106
    %p108 = scmp.ne.s32.totalorder %s97, %s98
    %p109 = scmp.eq.s32.totalorder %s16, 0
    %p110 = por %p108, %p109
    %p111 = scmp.ne.s32.totalorder %s97, %s98
    %p112 = scmp.eq.s32.totalorder %s17, 1
    %p113 = por %p111, %p112
    %p115 = scmp.ne.s32.totalorder %s98, %s114
    %p116 = scmp.eq.s32.totalorder %s17, 0
    %p117 = por %p115, %p116
    %s118 = ssub.s32 %s11, %s18
    %p119 = scmp.eq.s32.totalorder %s118, 0
    %s121 = sadd.s32 %s120, 1
    %s122 = scalar_select %p119, %s120, %s121
    %p125 = pneg %p119
    %p126 = scmp.eq.s32.totalorder %s11, 1
    %p127 = por %p125, %p126
    %p128 = scmp.ne.s32.totalorder %s120, %s123
    %p129 = scmp.eq.s32.totalorder %s11, 0
    %p130 = por %p128, %p129
    %p131 = scmp.ne.s32.totalorder %s120, %s123
    %p132 = scmp.eq.s32.totalorder %s16, 1
    %p133 = por %p131, %p132
    %p134 = scmp.ne.s32.totalorder %s123, %s124
    %p135 = scmp.eq.s32.totalorder %s16, 0
    %p136 = por %p134, %p135
    %p137 = scmp.ne.s32.totalorder %s123, %s124
    %p138 = scmp.eq.s32.totalorder %s17, 1
    %p139 = por %p137, %p138
    %p141 = scmp.ne.s32.totalorder %s124, %s140
    %p142 = scmp.eq.s32.totalorder %s17, 0
    %p143 = por %p141, %p142
    %p144 = scmp.le.s32.totalorder 1, %s11
    %p145 = scmp.lt.s32.totalorder %s11, 3
    %p146 = pnand %p144, %p145
    %p147 = pneg %p146
    // Predicated region
    $region9: #{inception_forward.6} parent=5 // pred_check
      _
    $region10: #{inception_forward.6} parent=5 // pred_check_branch
      %149 = sbr.rel (%p146) target = $region12
    $region11: #{inception_forward.6} parent=5 // pred_region
      %s150 = ssub.s32 %s11, 1
      // Predicated region
      $region13: #{inception_forward.6} parent=11 // pred_check
        %p151 = pneg %p58
      $region14: #{inception_forward.6} parent=11 // pred_check_branch
        %153 = sbr.rel (%p151) target = $region16
      $region15: #{inception_forward.6} parent=11 // pred_region
        _
      $region16: #{inception_forward.6} parent=11 // pred_fallthru
        _
    $region12: #{inception_forward.6} parent=5 // pred_fallthru
      _
    %p154 = scmp.lt.s32.totalorder %s11, 2
    // Predicated region
    $region17: #{inception_forward.6} parent=5 // pred_check
      %p155 = pneg %p154
    $region18: #{inception_forward.6} parent=5 // pred_check_branch
      %157 = sbr.rel (%p155) target = $region20
    $region19: #{inception_forward.6} parent=5 // pred_region
      // Predicated region
      $region21: #{inception_forward.6} parent=19 // pred_check
        %p158 = pneg %p31
      $region22: #{inception_forward.6} parent=19 // pred_check_branch
        %160 = sbr.rel (%p158) target = $region24
      $region23: #{inception_forward.6} parent=19 // pred_region
        %p161 = scmp.lt.s32.totalorder %s11, 1
        %s162 = scalar_select %p161, %s11, 1
        %s163 = smul.addr %s162, 32
        %s164 = smul.addr %s163, 4
        %s165 = scalar_lea.vmem %s0, %s164
      $region24: #{inception_forward.6} parent=19 // pred_fallthru
        _
    $region20: #{inception_forward.6} parent=5 // pred_fallthru
      _
    %p166 = scmp.le.s32.totalorder 1, %s11
    %p167 = scmp.lt.s32.totalorder %s11, 3
    %p168 = pnand %p166, %p167
    %p169 = pneg %p168
    // Predicated region
    $region25: #{inception_forward.6} parent=5 // pred_check
      _
    $region26: #{inception_forward.6} parent=5 // pred_check_branch
      %171 = sbr.rel (%p168) target = $region28
    $region27: #{inception_forward.6} parent=5 // pred_region
      %s172 = ssub.s32 %s11, 1
      %p173 = scmp.lt.s32.totalorder %s16, 1
      %s174 = scalar_select %p173, %s16, 1
      %s175 = smul.addr %s174, 32
      %s176 = smul.addr %s175, 4
      %s177 = scalar_lea.vmem %s0, %s176
      %p178 = pneg %p37
      %p179 = pneg %p34
      %p180 = pneg %p58
      %p181 = pneg %p55
      %p182 = pneg %p84
      %p183 = pneg %p81
      %p184 = scmp.lt.s32.totalorder %s16, 1
      %s185 = scalar_select %p184, %s16, 1
      %s186 = smul.addr %s185, 32
      %s187 = smul.addr %s186, 4
      %s188 = scalar_lea.vmem %s2, %s187
      %p189 = pneg %p110
      %p190 = pneg %p107
      %p191 = scmp.lt.s32.totalorder %s16, 1
      %s192 = scalar_select %p191, %s16, 1
      %s193 = scalar_lea.vmem %s3, %s192
      %p194 = pneg %p136
      %p195 = pneg %p133
      %p196 = scmp.lt.s32.totalorder %s16, 1
      %s197 = scalar_select %p196, %s16, 1
      %s198 = scalar_lea.vmem %s4, %s197
      %p199 = scmp.lt.s32.totalorder %s16, 1
      %s200 = scalar_select %p199, %s16, 1
      %s201 = smul.addr %s200, 32
      %s202 = smul.addr %s201, 4
      %s203 = scalar_lea.vmem %s0, %s202
      %p204 = scmp.lt.s32.totalorder %s16, 1
      %s205 = scalar_select %p204, %s16, 1
      %s206 = smul.addr %s205, 32
      %s207 = smul.addr %s206, 4
      %s208 = scalar_lea.vmem %s2, %s207
      %p209 = scmp.lt.s32.totalorder %s16, 1
      %s210 = scalar_select %p209, %s16, 1
      %s211 = scalar_lea.vmem %s3, %s210
      %p212 = scmp.lt.s32.totalorder %s16, 1
      %s213 = scalar_select %p212, %s16, 1
      %s214 = scalar_lea.vmem %s4, %s213
      %v216 = vld [vmem:[%s203] sm:$0xf]
      %v217 = vld [vmem:[%s203 + $0x4] sm:$0xf]
      %v218 = vld [vmem:[%s203 + $0x8] sm:$0xf]
      %v219 = vld [vmem:[%s203 + $0xc] sm:$0xf]
      %v220 = vld [vmem:[%s203 + $0x10] sm:$0xf]
      %v221 = vld [vmem:[%s203 + $0x14] sm:$0xf]
      %v222 = vld [vmem:[%s203 + $0x18] sm:$0xf]
      %v223 = vld [vmem:[%s203 + $0x1c] sm:$0xf]
      %v224 = vld [vmem:[%s203 + $0x20] sm:$0xf]
      %v225 = vld [vmem:[%s203 + $0x24] sm:$0xf]
      %v226 = vld [vmem:[%s203 + $0x28] sm:$0xf]
      %v227 = vld [vmem:[%s203 + $0x2c] sm:$0xf]
      %v228 = vld [vmem:[%s203 + $0x30] sm:$0xf]
      %v229 = vld [vmem:[%s203 + $0x34] sm:$0xf]
      %v230 = vld [vmem:[%s203 + $0x38] sm:$0xf]
      %v231 = vld [vmem:[%s203 + $0x3c] sm:$0xf]
      %v232 = vld [vmem:[%s203 + $0x40] sm:$0xf]
      %v233 = vld [vmem:[%s203 + $0x44] sm:$0xf]
      %v234 = vld [vmem:[%s203 + $0x48] sm:$0xf]
      %v235 = vld [vmem:[%s203 + $0x4c] sm:$0xf]
      %v236 = vld [vmem:[%s203 + $0x50] sm:$0xf]
      %v237 = vld [vmem:[%s203 + $0x54] sm:$0xf]
      %v238 = vld [vmem:[%s203 + $0x58] sm:$0xf]
      %v239 = vld [vmem:[%s203 + $0x5c] sm:$0xf]
      %v240 = vld [vmem:[%s203 + $0x60] sm:$0xf]
      %v241 = vld [vmem:[%s203 + $0x64] sm:$0xf]
      %v242 = vld [vmem:[%s203 + $0x68] sm:$0xf]
      %v243 = vld [vmem:[%s203 + $0x6c] sm:$0xf]
      %v244 = vld [vmem:[%s203 + $0x70] sm:$0xf]
      %v245 = vld [vmem:[%s203 + $0x74] sm:$0xf]
      %v246 = vld [vmem:[%s203 + $0x78] sm:$0xf]
      %v247 = vld [vmem:[%s203 + $0x7c] sm:$0xf]
      %v248 = vld [vmem:[%s1] sm:$0x3]
      %v281 = vunpack.c.l.b16 %v216
      %v282 = vunpack.c.l.b16 %v217
      %v283 = vunpack.c.l.b16 %v218
      %v284 = vunpack.c.l.b16 %v219
      %v285 = vunpack.c.l.b16 %v220
      %v286 = vunpack.c.l.b16 %v221
      %v287 = vunpack.c.l.b16 %v222
      %v288 = vunpack.c.l.b16 %v223
      %v289 = vunpack.c.l.b16 %v224
      %v290 = vunpack.c.l.b16 %v225
      %v291 = vunpack.c.l.b16 %v226
      %v292 = vunpack.c.l.b16 %v227
      %v293 = vunpack.c.l.b16 %v228
      %v294 = vunpack.c.l.b16 %v229
      %v295 = vunpack.c.l.b16 %v230
      %v296 = vunpack.c.l.b16 %v231
      %v297 = vunpack.c.l.b16 %v232
      %v298 = vunpack.c.l.b16 %v233
      %v299 = vunpack.c.l.b16 %v234
      %v300 = vunpack.c.l.b16 %v235
      %v301 = vunpack.c.l.b16 %v236
      %v302 = vunpack.c.l.b16 %v237
      %v303 = vunpack.c.l.b16 %v238
      %v304 = vunpack.c.l.b16 %v239
      %v305 = vunpack.c.l.b16 %v240
      %v306 = vunpack.c.l.b16 %v241
      %v307 = vunpack.c.l.b16 %v242
      %v308 = vunpack.c.l.b16 %v243
      %v309 = vunpack.c.l.b16 %v244
      %v310 = vunpack.c.l.b16 %v245
      %v311 = vunpack.c.l.b16 %v246
      %v312 = vunpack.c.l.b16 %v247
      %v313 = vpack.c.b16 %v282, %v281
      %v314 = vpack.c.b16 %v284, %v283
      %v315 = vpack.c.b16 %v286, %v285
      %v316 = vpack.c.b16 %v288, %v287
      %v317 = vpack.c.b16 %v290, %v289
      %v318 = vpack.c.b16 %v292, %v291
      %v319 = vpack.c.b16 %v294, %v293
      %v320 = vpack.c.b16 %v296, %v295
      %v321 = vpack.c.b16 %v298, %v297
      %v322 = vpack.c.b16 %v300, %v299
      %v323 = vpack.c.b16 %v302, %v301
      %v324 = vpack.c.b16 %v304, %v303
      %v325 = vpack.c.b16 %v306, %v305
      %v326 = vpack.c.b16 %v308, %v307
      %v327 = vpack.c.b16 %v310, %v309
      %v328 = vpack.c.b16 %v312, %v311
      %vm329 = vcmask 31744
      %v331 = vsel %vm329, %v313, 0
      %v334 = vsel %vm329, %v314, 0
      %v337 = vsel %vm329, %v315, 0
      %v340 = vsel %vm329, %v316, 0
      %v343 = vsel %vm329, %v317, 0
      %v346 = vsel %vm329, %v318, 0
      %v349 = vsel %vm329, %v319, 0
      %v352 = vsel %vm329, %v320, 0
      %v355 = vsel %vm329, %v321, 0
      %v358 = vsel %vm329, %v322, 0
      %v361 = vsel %vm329, %v323, 0
      %v364 = vsel %vm329, %v324, 0
      %v367 = vsel %vm329, %v325, 0
      %v370 = vsel %vm329, %v326, 0
      %v373 = vsel %vm329, %v327, 0
      %v376 = vsel %vm329, %v328, 0
      %vm378 = vcmask 1041408
      %v380 = vsel %vm378, %v248, 0
      %382 = vmatprep.subr.bf16.mxu0 0
      %383 = vmatpush1.bf16.msra.mxu0 %v380
      %384 = vmatprep.subr.bf16.mxu0 0
      %385 = vmatpush1.bf16.msra.mxu0 0
      %386 = vmatprep.subr.bf16.mxu0 0
      %387 = vmatpush1.bf16.msra.mxu0 0
      %388 = vmatprep.subr.bf16.mxu0 0
      %389 = vmatpush1.bf16.msra.mxu0 0
      %390 = vmatprep.subr.bf16.mxu0 0
      %391 = vmatpush1.bf16.msra.mxu0 0
      %392 = vmatprep.subr.bf16.mxu0 0
      %393 = vmatpush1.bf16.msra.mxu0 0
      %394 = vmatprep.subr.bf16.mxu0 0
      %395 = vmatpush1.bf16.msra.mxu0 0
      %396 = vmatprep.subr.bf16.mxu0 0
      %397 = vmatpush1.bf16.msra.mxu0 0
      %398 = vmatprep.subr.bf16.mxu0 0
      %399 = vmatpush1.bf16.msra.mxu0 0
      %400 = vmatprep.subr.bf16.mxu0 0
      %401 = vmatpush1.bf16.msra.mxu0 0
      %402 = vmatprep.subr.bf16.mxu0 0
      %403 = vmatpush1.bf16.msra.mxu0 0
      %404 = vmatprep.subr.bf16.mxu0 0
      %405 = vmatpush1.bf16.msra.mxu0 0
      %406 = vmatprep.subr.bf16.mxu0 0
      %407 = vmatpush1.bf16.msra.mxu0 0
      %408 = vmatprep.subr.bf16.mxu0 0
      %409 = vmatpush1.bf16.msra.mxu0 0
      %410 = vmatprep.subr.bf16.mxu0 0
      %411 = vmatpush1.bf16.msra.mxu0 0
      %412 = vmatprep.subr.bf16.mxu0 0
      %413 = vmatpush1.bf16.msra.mxu0 0
      %414 = vmatprep.mubr.bf16.mxu0 0
      %415 = vmatmul.mubr.bf16.gmra.mrb[0].mxu0 %v331
      %v416 = vpop.f32.mrb[0].mxu0
      %v417 = vadd.f32 0.0, %v416
      %v418 = vpop.f32.mrb[0].mxu0
      %v419 = vpop.f32.mrb[0].mxu0
      %v420 = vadd.f32 0.0, %v419
      %v421 = vpop.f32.mrb[0].mxu0
      %422 = vmatprep.mubr.bf16.mxu0 0
      %423 = vmatmul.mubr.bf16.gmra.mrb[0].mxu0 %v334
      %v424 = vpop.f32.mrb[0].mxu0
      %v425 = vadd.f32 0.0, %v424
      %v426 = vpop.f32.mrb[0].mxu0
      %v427 = vpop.f32.mrb[0].mxu0
      %v428 = vadd.f32 0.0, %v427
      %v429 = vpop.f32.mrb[0].mxu0
      %430 = vmatprep.mubr.bf16.mxu0 0
      %431 = vmatmul.mubr.bf16.gmra.mrb[0].mxu0 %v337
      %v432 = vpop.f32.mrb[0].mxu0
      %v433 = vadd.f32 0.0, %v432
      %v434 = vpop.f32.mrb[0].mxu0
      %v435 = vpop.f32.mrb[0].mxu0
      %v436 = vadd.f32 0.0, %v435
      %v437 = vpop.f32.mrb[0].mxu0
      %438 = vmatprep.mubr.bf16.mxu0 0
      %439 = vmatmul.mubr.bf16.gmra.mrb[0].mxu0 %v340
      %v440 = vpop.f32.mrb[0].mxu0
      %v441 = vadd.f32 0.0, %v440
      %v442 = vpop.f32.mrb[0].mxu0
      %v443 = vpop.f32.mrb[0].mxu0
      %v444 = vadd.f32 0.0, %v443
      %v445 = vpop.f32.mrb[0].mxu0
      %446 = vmatprep.mubr.bf16.mxu0 0
      %447 = vmatmul.mubr.bf16.gmra.mrb[0].mxu0 %v343
      %v448 = vpop.f32.mrb[0].mxu0
      %v449 = vadd.f32 0.0, %v448
      %v450 = vpop.f32.mrb[0].mxu0
      %v451 = vpop.f32.mrb[0].mxu0
      %v452 = vadd.f32 0.0, %v451
      %v453 = vpop.f32.mrb[0].mxu0
      %454 = vmatprep.mubr.bf16.mxu0 0
      %455 = vmatmul.mubr.bf16.gmra.mrb[0].mxu0 %v346
      %v456 = vpop.f32.mrb[0].mxu0
      %v457 = vadd.f32 0.0, %v456
      %v458 = vpop.f32.mrb[0].mxu0
      %v459 = vpop.f32.mrb[0].mxu0
      %v460 = vadd.f32 0.0, %v459
      %v461 = vpop.f32.mrb[0].mxu0
      %462 = vmatprep.mubr.bf16.mxu0 0
      %463 = vmatmul.mubr.bf16.gmra.mrb[0].mxu0 %v349
      %v464 = vpop.f32.mrb[0].mxu0
      %v465 = vadd.f32 0.0, %v464
      %v466 = vpop.f32.mrb[0].mxu0
      %v467 = vpop.f32.mrb[0].mxu0
      %v468 = vadd.f32 0.0, %v467
      %v469 = vpop.f32.mrb[0].mxu0
      %470 = vmatprep.mubr.bf16.mxu0 0
      %471 = vmatmul.mubr.bf16.gmra.mrb[0].mxu0 %v352
      %v472 = vpop.f32.mrb[0].mxu0
      %v473 = vadd.f32 0.0, %v472
      %v474 = vpop.f32.mrb[0].mxu0
      %v475 = vpop.f32.mrb[0].mxu0
      %v476 = vadd.f32 0.0, %v475
      %v477 = vpop.f32.mrb[0].mxu0
      %478 = vmatprep.mubr.bf16.mxu0 0
      %479 = vmatmul.mubr.bf16.gmra.mrb[0].mxu0 %v355
      %v480 = vpop.f32.mrb[0].mxu0
      %v481 = vadd.f32 0.0, %v480
      %v482 = vpop.f32.mrb[0].mxu0
      %v483 = vpop.f32.mrb[0].mxu0
      %v484 = vadd.f32 0.0, %v483
      %v485 = vpop.f32.mrb[0].mxu0
      %486 = vmatprep.mubr.bf16.mxu0 0
      %487 = vmatmul.mubr.bf16.gmra.mrb[0].mxu0 %v358
      %v488 = vpop.f32.mrb[0].mxu0
      %v489 = vadd.f32 0.0, %v488
      %v490 = vpop.f32.mrb[0].mxu0
      %v491 = vpop.f32.mrb[0].mxu0
      %v492 = vadd.f32 0.0, %v491
      %v493 = vpop.f32.mrb[0].mxu0
      %494 = vmatprep.mubr.bf16.mxu0 0
      %495 = vmatmul.mubr.bf16.gmra.mrb[0].mxu0 %v361
      %v496 = vpop.f32.mrb[0].mxu0
      %v497 = vadd.f32 0.0, %v496
      %v498 = vpop.f32.mrb[0].mxu0
      %v499 = vpop.f32.mrb[0].mxu0
      %v500 = vadd.f32 0.0, %v499
      %v501 = vpop.f32.mrb[0].mxu0
      %502 = vmatprep.mubr.bf16.mxu0 0
      %503 = vmatmul.mubr.bf16.gmra.mrb[0].mxu0 %v364
      %v504 = vpop.f32.mrb[0].mxu0
      %v505 = vadd.f32 0.0, %v504
      %v506 = vpop.f32.mrb[0].mxu0
      %v507 = vpop.f32.mrb[0].mxu0
      %v508 = vadd.f32 0.0, %v507
      %v509 = vpop.f32.mrb[0].mxu0
      %510 = vmatprep.mubr.bf16.mxu0 0
      %511 = vmatmul.mubr.bf16.gmra.mrb[0].mxu0 %v367
      %v512 = vpop.f32.mrb[0].mxu0
      %v513 = vadd.f32 0.0, %v512
      %v514 = vpop.f32.mrb[0].mxu0
      %v515 = vpop.f32.mrb[0].mxu0
      %v516 = vadd.f32 0.0, %v515
      %v517 = vpop.f32.mrb[0].mxu0
      %518 = vmatprep.mubr.bf16.mxu0 0
      %519 = vmatmul.mubr.bf16.gmra.mrb[0].mxu0 %v370
      %v520 = vpop.f32.mrb[0].mxu0
      %v521 = vadd.f32 0.0, %v520
      %v522 = vpop.f32.mrb[0].mxu0
      %v523 = vpop.f32.mrb[0].mxu0
      %v524 = vadd.f32 0.0, %v523
      %v525 = vpop.f32.mrb[0].mxu0
      %526 = vmatprep.mubr.bf16.mxu0 0
      %527 = vmatmul.mubr.bf16.gmra.mrb[0].mxu0 %v373
      %v528 = vpop.f32.mrb[0].mxu0
      %v529 = vadd.f32 0.0, %v528
      %v530 = vpop.f32.mrb[0].mxu0
      %v531 = vpop.f32.mrb[0].mxu0
      %v532 = vadd.f32 0.0, %v531
      %v533 = vpop.f32.mrb[0].mxu0
      %534 = vmatprep.mubr.bf16.mxu0 0
      %535 = vmatmul.mubr.bf16.gmra.mrb[0].mxu0 %v376
      %v536 = vpop.f32.mrb[0].mxu0
      %v537 = vadd.f32 0.0, %v536
      %v538 = vpop.f32.mrb[0].mxu0
      %v539 = vpop.f32.mrb[0].mxu0
      %v540 = vadd.f32 0.0, %v539
      %v541 = vpop.f32.mrb[0].mxu0
      %542 = vdwg.mxu0
      %v543 = vpack.c.bf16 %v420, %v417
      %v544 = vpack.c.bf16 %v428, %v425
      %v545 = vpack.c.bf16 %v436, %v433
      %v546 = vpack.c.bf16 %v444, %v441
      %v547 = vpack.c.bf16 %v452, %v449
      %v548 = vpack.c.bf16 %v460, %v457
      %v549 = vpack.c.bf16 %v468, %v465
      %v550 = vpack.c.bf16 %v476, %v473
      %v551 = vpack.c.bf16 %v484, %v481
      %v552 = vpack.c.bf16 %v492, %v489
      %v553 = vpack.c.bf16 %v500, %v497
      %v554 = vpack.c.bf16 %v508, %v505
      %v555 = vpack.c.bf16 %v516, %v513
      %v556 = vpack.c.bf16 %v524, %v521
      %v557 = vpack.c.bf16 %v532, %v529
      %v558 = vpack.c.bf16 %v540, %v537
      %v575 = vunpack.c.l.b16 %v543
      %v576 = vunpack.c.h.b16 %v543
      %v577 = vunpack.c.l.b16 %v544
      %v578 = vunpack.c.h.b16 %v544
      %v579 = vunpack.c.l.b16 %v545
      %v580 = vunpack.c.h.b16 %v545
      %v581 = vunpack.c.l.b16 %v546
      %v582 = vunpack.c.h.b16 %v546
      %v583 = vunpack.c.l.b16 %v547
      %v584 = vunpack.c.h.b16 %v547
      %v585 = vunpack.c.l.b16 %v548
      %v586 = vunpack.c.h.b16 %v548
      %v587 = vunpack.c.l.b16 %v549
      %v588 = vunpack.c.h.b16 %v549
      %v589 = vunpack.c.l.b16 %v550
      %v590 = vunpack.c.h.b16 %v550
      %v591 = vunpack.c.l.b16 %v551
      %v592 = vunpack.c.h.b16 %v551
      %v593 = vunpack.c.l.b16 %v552
      %v594 = vunpack.c.h.b16 %v552
      %v595 = vunpack.c.l.b16 %v553
      %v596 = vunpack.c.h.b16 %v553
      %v597 = vunpack.c.l.b16 %v554
      %v598 = vunpack.c.h.b16 %v554
      %v599 = vunpack.c.l.b16 %v555
      %v600 = vunpack.c.h.b16 %v555
      %v601 = vunpack.c.l.b16 %v556
      %v602 = vunpack.c.h.b16 %v556
      %v603 = vunpack.c.l.b16 %v557
      %v604 = vunpack.c.h.b16 %v557
      %v605 = vunpack.c.l.b16 %v558
      %v606 = vunpack.c.h.b16 %v558
      %v607 = vpack.c.b16 %v575, %v575
      %v608 = vpack.c.b16 %v576, %v576
      %v609 = vpack.c.b16 %v577, %v577
      %v610 = vpack.c.b16 %v578, %v578
      %v611 = vpack.c.b16 %v579, %v579
      %v612 = vpack.c.b16 %v580, %v580
      %v613 = vpack.c.b16 %v581, %v581
      %v614 = vpack.c.b16 %v582, %v582
      %v615 = vpack.c.b16 %v583, %v583
      %v616 = vpack.c.b16 %v584, %v584
      %v617 = vpack.c.b16 %v585, %v585
      %v618 = vpack.c.b16 %v586, %v586
      %v619 = vpack.c.b16 %v587, %v587
      %v620 = vpack.c.b16 %v588, %v588
      %v621 = vpack.c.b16 %v589, %v589
      %v622 = vpack.c.b16 %v590, %v590
      %v623 = vpack.c.b16 %v591, %v591
      %v624 = vpack.c.b16 %v592, %v592
      %v625 = vpack.c.b16 %v593, %v593
      %v626 = vpack.c.b16 %v594, %v594
      %v627 = vpack.c.b16 %v595, %v595
      %v628 = vpack.c.b16 %v596, %v596
      %v629 = vpack.c.b16 %v597, %v597
      %v630 = vpack.c.b16 %v598, %v598
      %v631 = vpack.c.b16 %v599, %v599
      %v632 = vpack.c.b16 %v600, %v600
      %v633 = vpack.c.b16 %v601, %v601
      %v634 = vpack.c.b16 %v602, %v602
      %v635 = vpack.c.b16 %v603, %v603
      %v636 = vpack.c.b16 %v604, %v604
      %v637 = vpack.c.b16 %v605, %v605
      %v638 = vpack.c.b16 %v606, %v606
      %vm671 = vcmask 142336
      %672 = vst.msk [vmem:[%s208] sm:$0xf] %vm671, %v607
      %673 = vst.msk [vmem:[%s208 + $0x4] sm:$0xf] %vm671, %v608
      %674 = vst.msk [vmem:[%s208 + $0x8] sm:$0xf] %vm671, %v609
      %675 = vst.msk [vmem:[%s208 + $0xc] sm:$0xf] %vm671, %v610
      %676 = vst.msk [vmem:[%s208 + $0x10] sm:$0xf] %vm671, %v611
      %677 = vst.msk [vmem:[%s208 + $0x14] sm:$0xf] %vm671, %v612
      %678 = vst.msk [vmem:[%s208 + $0x18] sm:$0xf] %vm671, %v613
      %679 = vst.msk [vmem:[%s208 + $0x1c] sm:$0xf] %vm671, %v614
      %680 = vst.msk [vmem:[%s208 + $0x20] sm:$0xf] %vm671, %v615
      %681 = vst.msk [vmem:[%s208 + $0x24] sm:$0xf] %vm671, %v616
      %682 = vst.msk [vmem:[%s208 + $0x28] sm:$0xf] %vm671, %v617
      %683 = vst.msk [vmem:[%s208 + $0x2c] sm:$0xf] %vm671, %v618
      %684 = vst.msk [vmem:[%s208 + $0x30] sm:$0xf] %vm671, %v619
      %685 = vst.msk [vmem:[%s208 + $0x34] sm:$0xf] %vm671, %v620
      %686 = vst.msk [vmem:[%s208 + $0x38] sm:$0xf] %vm671, %v621
      %687 = vst.msk [vmem:[%s208 + $0x3c] sm:$0xf] %vm671, %v622
      %688 = vst.msk [vmem:[%s208 + $0x40] sm:$0xf] %vm671, %v623
      %689 = vst.msk [vmem:[%s208 + $0x44] sm:$0xf] %vm671, %v624
      %690 = vst.msk [vmem:[%s208 + $0x48] sm:$0xf] %vm671, %v625
      %691 = vst.msk [vmem:[%s208 + $0x4c] sm:$0xf] %vm671, %v626
      %692 = vst.msk [vmem:[%s208 + $0x50] sm:$0xf] %vm671, %v627
      %693 = vst.msk [vmem:[%s208 + $0x54] sm:$0xf] %vm671, %v628
      %694 = vst.msk [vmem:[%s208 + $0x58] sm:$0xf] %vm671, %v629
      %695 = vst.msk [vmem:[%s208 + $0x5c] sm:$0xf] %vm671, %v630
      %696 = vst.msk [vmem:[%s208 + $0x60] sm:$0xf] %vm671, %v631
      %697 = vst.msk [vmem:[%s208 + $0x64] sm:$0xf] %vm671, %v632
      %698 = vst.msk [vmem:[%s208 + $0x68] sm:$0xf] %vm671, %v633
      %699 = vst.msk [vmem:[%s208 + $0x6c] sm:$0xf] %vm671, %v634
      %700 = vst.msk [vmem:[%s208 + $0x70] sm:$0xf] %vm671, %v635
      %701 = vst.msk [vmem:[%s208 + $0x74] sm:$0xf] %vm671, %v636
      %702 = vst.msk [vmem:[%s208 + $0x78] sm:$0xf] %vm671, %v637
      %703 = vst.msk [vmem:[%s208 + $0x7c] sm:$0xf] %vm671, %v638
      %vm704 = vcmask 146432
      %v705 = vsel %vm704, %v417, 0.0
      %v706 = vsel %vm704, %v420, 0.0
      %v707 = vadd.f32 %v705, %v706
      %v708 = vsel %vm704, %v425, 0.0
      %v709 = vadd.f32 %v707, %v708
      %v710 = vsel %vm704, %v428, 0.0
      %v711 = vadd.f32 %v709, %v710
      %v712 = vsel %vm704, %v433, 0.0
      %v713 = vadd.f32 %v711, %v712
      %v714 = vsel %vm704, %v436, 0.0
      %v715 = vadd.f32 %v713, %v714
      %v716 = vsel %vm704, %v441, 0.0
      %v717 = vadd.f32 %v715, %v716
      %v718 = vsel %vm704, %v444, 0.0
      %v719 = vadd.f32 %v717, %v718
      %v720 = vsel %vm704, %v449, 0.0
      %v721 = vadd.f32 %v719, %v720
      %v722 = vsel %vm704, %v452, 0.0
      %v723 = vadd.f32 %v721, %v722
      %v724 = vsel %vm704, %v457, 0.0
      %v725 = vadd.f32 %v723, %v724
      %v726 = vsel %vm704, %v460, 0.0
      %v727 = vadd.f32 %v725, %v726
      %v728 = vsel %vm704, %v465, 0.0
      %v729 = vadd.f32 %v727, %v728
      %v730 = vsel %vm704, %v468, 0.0
      %v731 = vadd.f32 %v729, %v730
      %v732 = vsel %vm704, %v473, 0.0
      %v733 = vadd.f32 %v731, %v732
      %v734 = vsel %vm704, %v476, 0.0
      %v735 = vadd.f32 %v733, %v734
      %v736 = vsel %vm704, %v481, 0.0
      %v737 = vadd.f32 %v735, %v736
      %v738 = vsel %vm704, %v484, 0.0
      %v739 = vadd.f32 %v737, %v738
      %v740 = vsel %vm704, %v489, 0.0
      %v741 = vadd.f32 %v739, %v740
      %v742 = vsel %vm704, %v492, 0.0
      %v743 = vadd.f32 %v741, %v742
      %v744 = vsel %vm704, %v497, 0.0
      %v745 = vadd.f32 %v743, %v744
      %v746 = vsel %vm704, %v500, 0.0
      %v747 = vadd.f32 %v745, %v746
      %v748 = vsel %vm704, %v505, 0.0
      %v749 = vadd.f32 %v747, %v748
      %v750 = vsel %vm704, %v508, 0.0
      %v751 = vadd.f32 %v749, %v750
      %v752 = vsel %vm704, %v513, 0.0
      %v753 = vadd.f32 %v751, %v752
      %v754 = vsel %vm704, %v516, 0.0
      %v755 = vadd.f32 %v753, %v754
      %v756 = vsel %vm704, %v521, 0.0
      %v757 = vadd.f32 %v755, %v756
      %v758 = vsel %vm704, %v524, 0.0
      %v759 = vadd.f32 %v757, %v758
      %v760 = vsel %vm704, %v529, 0.0
      %v761 = vadd.f32 %v759, %v760
      %v762 = vsel %vm704, %v532, 0.0
      %v763 = vadd.f32 %v761, %v762
      %v764 = vsel %vm704, %v537, 0.0
      %v765 = vadd.f32 %v763, %v764
      %v766 = vsel %vm704, %v540, 0.0
      %v767 = vadd.f32 %v765, %v766
      %v768 = vrot.slane %v767, 4
      %v769 = vadd.f32 %v767, %v768
      %v770 = vrot.slane %v769, 2
      %v771 = vadd.f32 %v769, %v770
      %v772 = vrot.slane %v771, 1
      %v773 = vadd.f32 %v771, %v772
      %vm774 = vcmask 139264
      %775 = vst.msk [vmem:[%s211] sm:$0x1] %vm774, %v773
      %v776 = vmul.f32 %v417, %v417
      %v777 = vmul.f32 %v420, %v420
      %v778 = vmul.f32 %v425, %v425
      %v779 = vmul.f32 %v428, %v428
      %v780 = vmul.f32 %v433, %v433
      %v781 = vmul.f32 %v436, %v436
      %v782 = vmul.f32 %v441, %v441
      %v783 = vmul.f32 %v444, %v444
      %v784 = vmul.f32 %v449, %v449
      %v785 = vmul.f32 %v452, %v452
      %v786 = vmul.f32 %v457, %v457
      %v787 = vmul.f32 %v460, %v460
      %v788 = vmul.f32 %v465, %v465
      %v789 = vmul.f32 %v468, %v468
      %v790 = vmul.f32 %v473, %v473
      %v791 = vmul.f32 %v476, %v476
      %v792 = vmul.f32 %v481, %v481
      %v793 = vmul.f32 %v484, %v484
      %v794 = vmul.f32 %v489, %v489
      %v795 = vmul.f32 %v492, %v492
      %v796 = vmul.f32 %v497, %v497
      %v797 = vmul.f32 %v500, %v500
      %v798 = vmul.f32 %v505, %v505
      %v799 = vmul.f32 %v508, %v508
      %v800 = vmul.f32 %v513, %v513
      %v801 = vmul.f32 %v516, %v516
      %v802 = vmul.f32 %v521, %v521
      %v803 = vmul.f32 %v524, %v524
      %v804 = vmul.f32 %v529, %v529
      %v805 = vmul.f32 %v532, %v532
      %v806 = vmul.f32 %v537, %v537
      %v807 = vmul.f32 %v540, %v540
      %v808 = vsel %vm704, %v776, 0.0
      %v809 = vsel %vm704, %v777, 0.0
      %v810 = vadd.f32 %v808, %v809
      %v811 = vsel %vm704, %v778, 0.0
      %v812 = vadd.f32 %v810, %v811
      %v813 = vsel %vm704, %v779, 0.0
      %v814 = vadd.f32 %v812, %v813
      %v815 = vsel %vm704, %v780, 0.0
      %v816 = vadd.f32 %v814, %v815
      %v817 = vsel %vm704, %v781, 0.0
      %v818 = vadd.f32 %v816, %v817
      %v819 = vsel %vm704, %v782, 0.0
      %v820 = vadd.f32 %v818, %v819
      %v821 = vsel %vm704, %v783, 0.0
      %v822 = vadd.f32 %v820, %v821
      %v823 = vsel %vm704, %v784, 0.0
      %v824 = vadd.f32 %v822, %v823
      %v825 = vsel %vm704, %v785, 0.0
      %v826 = vadd.f32 %v824, %v825
      %v827 = vsel %vm704, %v786, 0.0
      %v828 = vadd.f32 %v826, %v827
      %v829 = vsel %vm704, %v787, 0.0
      %v830 = vadd.f32 %v828, %v829
      %v831 = vsel %vm704, %v788, 0.0
      %v832 = vadd.f32 %v830, %v831
      %v833 = vsel %vm704, %v789, 0.0
      %v834 = vadd.f32 %v832, %v833
      %v835 = vsel %vm704, %v790, 0.0
      %v836 = vadd.f32 %v834, %v835
      %v837 = vsel %vm704, %v791, 0.0
      %v838 = vadd.f32 %v836, %v837
      %v839 = vsel %vm704, %v792, 0.0
      %v840 = vadd.f32 %v838, %v839
      %v841 = vsel %vm704, %v793, 0.0
      %v842 = vadd.f32 %v840, %v841
      %v843 = vsel %vm704, %v794, 0.0
      %v844 = vadd.f32 %v842, %v843
      %v845 = vsel %vm704, %v795, 0.0
      %v846 = vadd.f32 %v844, %v845
      %v847 = vsel %vm704, %v796, 0.0
      %v848 = vadd.f32 %v846, %v847
      %v849 = vsel %vm704, %v797, 0.0
      %v850 = vadd.f32 %v848, %v849
      %v851 = vsel %vm704, %v798, 0.0
      %v852 = vadd.f32 %v850, %v851
      %v853 = vsel %vm704, %v799, 0.0
      %v854 = vadd.f32 %v852, %v853
      %v855 = vsel %vm704, %v800, 0.0
      %v856 = vadd.f32 %v854, %v855
      %v857 = vsel %vm704, %v801, 0.0
      %v858 = vadd.f32 %v856, %v857
      %v859 = vsel %vm704, %v802, 0.0
      %v860 = vadd.f32 %v858, %v859
      %v861 = vsel %vm704, %v803, 0.0
      %v862 = vadd.f32 %v860, %v861
      %v863 = vsel %vm704, %v804, 0.0
      %v864 = vadd.f32 %v862, %v863
      %v865 = vsel %vm704, %v805, 0.0
      %v866 = vadd.f32 %v864, %v865
      %v867 = vsel %vm704, %v806, 0.0
      %v868 = vadd.f32 %v866, %v867
      %v869 = vsel %vm704, %v807, 0.0
      %v870 = vadd.f32 %v868, %v869
      %v871 = vrot.slane %v870, 4
      %v872 = vadd.f32 %v870, %v871
      %v873 = vrot.slane %v872, 2
      %v874 = vadd.f32 %v872, %v873
      %v875 = vrot.slane %v874, 1
      %v876 = vadd.f32 %v874, %v875
      %877 = vst.msk [vmem:[%s214] sm:$0x1] %vm774, %v876
      %p878 = scmp.lt.s32.totalorder %s16, 1
      %s879 = scalar_select %p878, %s16, 1
      %s880 = smul.addr %s879, 32
      %s881 = smul.addr %s880, 4
      %s882 = scalar_lea.vmem %s2, %s881
      %p883 = scmp.lt.s32.totalorder %s16, 1
      %s884 = scalar_select %p883, %s16, 1
      %s885 = scalar_lea.vmem %s3, %s884
      %p886 = scmp.lt.s32.totalorder %s16, 1
      %s887 = scalar_select %p886, %s16, 1
      %s888 = scalar_lea.vmem %s4, %s887
      // Predicated region
      $region29: #{inception_forward.6} parent=27 // pred_check
        %p889 = pneg %p81
      $region30: #{inception_forward.6} parent=27 // pred_check_branch
        %891 = sbr.rel (%p889) target = $region32
      $region31: #{inception_forward.6} parent=27 // pred_region
        _
      $region32: #{inception_forward.6} parent=27 // pred_fallthru
        _
      // Predicated region
      $region33: #{inception_forward.6} parent=27 // pred_check
        %p892 = pneg %p107
      $region34: #{inception_forward.6} parent=27 // pred_check_branch
        %894 = sbr.rel (%p892) target = $region36
      $region35: #{inception_forward.6} parent=27 // pred_region
        _
      $region36: #{inception_forward.6} parent=27 // pred_fallthru
        _
      // Predicated region
      $region37: #{inception_forward.6} parent=27 // pred_check
        %p895 = pneg %p133
      $region38: #{inception_forward.6} parent=27 // pred_check_branch
        %897 = sbr.rel (%p895) target = $region40
      $region39: #{inception_forward.6} parent=27 // pred_region
        _
      $region40: #{inception_forward.6} parent=27 // pred_fallthru
        _
    $region28: #{inception_forward.6} parent=5 // pred_fallthru
      _
    %p898 = scmp.le.s32.totalorder 2, %s11
    // Predicated region
    $region41: #{inception_forward.6} parent=5 // pred_check
      %p899 = pneg %p898
    $region42: #{inception_forward.6} parent=5 // pred_check_branch
      %901 = sbr.rel (%p899) target = $region44
    $region43: #{inception_forward.6} parent=5 // pred_region
      %s902 = ssub.s32 %s11, 2
      // Predicated region
      $region45: #{inception_forward.6} parent=43 // pred_check
        %p903 = pneg %p87
      $region46: #{inception_forward.6} parent=43 // pred_check_branch
        %905 = sbr.rel (%p903) target = $region48
      $region47: #{inception_forward.6} parent=43 // pred_region
        %p906 = scmp.lt.s32.totalorder %s17, 1
        %s907 = scalar_select %p906, %s17, 1
        %s908 = smul.addr %s907, 32
        %s909 = smul.addr %s908, 4
        %s910 = scalar_lea.vmem %s2, %s909
      $region48: #{inception_forward.6} parent=43 // pred_fallthru
        _
      // Predicated region
      $region49: #{inception_forward.6} parent=43 // pred_check
        %p911 = pneg %p113
      $region50: #{inception_forward.6} parent=43 // pred_check_branch
        %913 = sbr.rel (%p911) target = $region52
      $region51: #{inception_forward.6} parent=43 // pred_region
        %p914 = scmp.lt.s32.totalorder %s17, 1
        %s915 = scalar_select %p914, %s17, 1
        %s916 = scalar_lea.vmem %s3, %s915
      $region52: #{inception_forward.6} parent=43 // pred_fallthru
        _
      // Predicated region
      $region53: #{inception_forward.6} parent=43 // pred_check
        %p917 = pneg %p139
      $region54: #{inception_forward.6} parent=43 // pred_check_branch
        %919 = sbr.rel (%p917) target = $region56
      $region55: #{inception_forward.6} parent=43 // pred_region
        %p920 = scmp.lt.s32.totalorder %s17, 1
        %s921 = scalar_select %p920, %s17, 1
        %s922 = scalar_lea.vmem %s4, %s921
      $region56: #{inception_forward.6} parent=43 // pred_fallthru
        _
    $region44: #{inception_forward.6} parent=5 // pred_fallthru
      _
  $region6: #{inception_forward.6} parent=0 // loop_footer
    %s15 = sadd.s32 1, %s11
  $region7: #{inception_forward.6} parent=0 // loop_footer_branch
    %10 = sbr.rel target = $region3
  $region8: #{inception_forward.6} parent=0 // loop_exit
    _

// kernel: inception_forward.10
$region0: #{inception_forward.10}
  #allocation0 [shape = 'u32[]', space=smem, size = 0x4, offset = 0x4, fixed_abs, tag = 'smem constant byte address 0x4 - core index']
  #allocation1 [shape = 'u32[144,128]{1,0:T(1,128)}', space=vmem, size = 0x12000, scoped, tag = 'internal scratch']
  #allocation2 [shape = 'f32[18,18,4]{2,1,0:T(8,128)}', space=vmem, size = 0x36000, scoped, tag = 'scratch operand']
  %s0 = inlined_call_operand.vmem [shape: bf16[2,16,16,4], index: 0, kind: input, shape index: {}]
  %s1 = inlined_call_operand.vmem [shape: bf16[4,6], index: 1, kind: input, shape index: {}]
  %s2 = inlined_call_operand.vmem [shape: bf16[2,256,6], index: 2, kind: output, shape index: {0}]
  %s3 = inlined_call_operand.vmem [shape: f32[2,1,6], index: 3, kind: output, shape index: {1}]
  %s4 = inlined_call_operand.vmem [shape: f32[2,1,6], index: 4, kind: output, shape index: {2}]
  %5 = xla_tuple %s2, %s3, %s4
  %s6 = sld [smem:[#allocation0]]
  $region57: #{inception_forward.10} parent=0
    _
  %s8 = ssub.s32 1, %s6
  %s9 = scalar_select 0, %s8, %s6
  loop: start=0, step=1, limit=4
  $region2: #{inception_forward.10} parent=0 // loop_pre_header
    _
  $region3: #{inception_forward.10} parent=0 // loop_header
    %s11 = sphi 0, %s15
    %p12 = scmp.ge.s32.totalorder %s11, 4
    %s21 = sphi 0, %s23
    %s24 = sphi 0, %s21
    %s25 = sphi 0, %s24
    %s41 = sphi 0, %s25
    %s45 = sphi 0, %s45
    %s47 = sphi 0, %s45
    %s48 = sphi 0, %s47
    %s62 = sphi 0, %s48
    %s68 = sphi 0, %s70
    %s71 = sphi 0, %s68
    %s72 = sphi 0, %s71
    %s88 = sphi 0, %s72
    %s94 = sphi 0, %s96
    %s97 = sphi 0, %s94
    %s98 = sphi 0, %s97
    %s114 = sphi 0, %s98
    %s120 = sphi 0, %s122
    %s123 = sphi 0, %s120
    %s124 = sphi 0, %s123
    %s140 = sphi 0, %s124
  $region4: #{inception_forward.10} parent=0 // loop_header_branch
    %14 = sbr.rel (%p12) target = $region8
  $region5: #{inception_forward.10} parent=0 // loop_body
    %s16 = ssub.s32 %s11, 1
    %s17 = ssub.s32 %s11, 2
    %s18 = sadd.s32 %s11, 1
    %s19 = ssub.s32 %s11, %s18
    %p20 = scmp.eq.s32.totalorder %s19, 0
    %s22 = sadd.s32 %s21, 1
    %s23 = scalar_select %p20, %s21, %s22
    %p26 = pneg %p20
    %p27 = scmp.eq.s32.totalorder %s11, 1
    %p28 = por %p26, %p27
    %p29 = scmp.ne.s32.totalorder %s21, %s24
    %p30 = scmp.eq.s32.totalorder %s11, 0
    %p31 = por %p29, %p30
    %p32 = scmp.ne.s32.totalorder %s21, %s24
    %p33 = scmp.eq.s32.totalorder %s16, 1
    %p34 = por %p32, %p33
    %p35 = scmp.ne.s32.totalorder %s24, %s25
    %p36 = scmp.eq.s32.totalorder %s16, 0
    %p37 = por %p35, %p36
    %p38 = scmp.ne.s32.totalorder %s24, %s25
    %p39 = scmp.eq.s32.totalorder %s17, 1
    %p40 = por %p38, %p39
    %p42 = scmp.ne.s32.totalorder %s25, %s41
    %p43 = scmp.eq.s32.totalorder %s17, 0
    %p44 = por %p42, %p43
    %s46 = sadd.s32 %s45, 1
    %p49 = scmp.eq.s32.totalorder %s11, 1
    %p50 = scmp.ne.s32.totalorder %s45, %s47
    %p51 = scmp.eq.s32.totalorder %s11, 0
    %p52 = por %p50, %p51
    %p53 = scmp.ne.s32.totalorder %s45, %s47
    %p54 = scmp.eq.s32.totalorder %s16, 1
    %p55 = por %p53, %p54
    %p56 = scmp.ne.s32.totalorder %s47, %s48
    %p57 = scmp.eq.s32.totalorder %s16, 0
    %p58 = por %p56, %p57
    %p59 = scmp.ne.s32.totalorder %s47, %s48
    %p60 = scmp.eq.s32.totalorder %s17, 1
    %p61 = por %p59, %p60
    %p63 = scmp.ne.s32.totalorder %s48, %s62
    %p64 = scmp.eq.s32.totalorder %s17, 0
    %p65 = por %p63, %p64
    %s66 = ssub.s32 %s11, %s18
    %p67 = scmp.eq.s32.totalorder %s66, 0
    %s69 = sadd.s32 %s68, 1
    %s70 = scalar_select %p67, %s68, %s69
    %p73 = pneg %p67
    %p74 = scmp.eq.s32.totalorder %s11, 1
    %p75 = por %p73, %p74
    %p76 = scmp.ne.s32.totalorder %s68, %s71
    %p77 = scmp.eq.s32.totalorder %s11, 0
    %p78 = por %p76, %p77
    %p79 = scmp.ne.s32.totalorder %s68, %s71
    %p80 = scmp.eq.s32.totalorder %s16, 1
    %p81 = por %p79, %p80
    %p82 = scmp.ne.s32.totalorder %s71, %s72
    %p83 = scmp.eq.s32.totalorder %s16, 0
    %p84 = por %p82, %p83
    %p85 = scmp.ne.s32.totalorder %s71, %s72
    %p86 = scmp.eq.s32.totalorder %s17, 1
    %p87 = por %p85, %p86
    %p89 = scmp.ne.s32.totalorder %s72, %s88
    %p90 = scmp.eq.s32.totalorder %s17, 0
    %p91 = por %p89, %p90
    %s92 = ssub.s32 %s11, %s18
    %p93 = scmp.eq.s32.totalorder %s92, 0
    %s95 = sadd.s32 %s94, 1
    %s96 = scalar_select %p93, %s94, %s95
    %p99 = pneg %p93
    %p100 = scmp.eq.s32.totalorder %s11, 1
    %p101 = por %p99, %p100
    %p102 = scmp.ne.s32.totalorder %s94, %s97
    %p103 = scmp.eq.s32.totalorder %s11, 0
    %p104 = por %p102, %p103
    %p105 = scmp.ne.s32.totalorder %s94, %s97
    %p106 = scmp.eq.s32.totalorder %s16, 1
    %p107 = por %p105, %p106
    %p108 = scmp.ne.s32.totalorder %s97, %s98
    %p109 = scmp.eq.s32.totalorder %s16, 0
    %p110 = por %p108, %p109
    %p111 = scmp.ne.s32.totalorder %s97, %s98
    %p112 = scmp.eq.s32.totalorder %s17, 1
    %p113 = por %p111, %p112
    %p115 = scmp.ne.s32.totalorder %s98, %s114
    %p116 = scmp.eq.s32.totalorder %s17, 0
    %p117 = por %p115, %p116
    %s118 = ssub.s32 %s11, %s18
    %p119 = scmp.eq.s32.totalorder %s118, 0
    %s121 = sadd.s32 %s120, 1
    %s122 = scalar_select %p119, %s120, %s121
    %p125 = pneg %p119
    %p126 = scmp.eq.s32.totalorder %s11, 1
    %p127 = por %p125, %p126
    %p128 = scmp.ne.s32.totalorder %s120, %s123
    %p129 = scmp.eq.s32.totalorder %s11, 0
    %p130 = por %p128, %p129
    %p131 = scmp.ne.s32.totalorder %s120, %s123
    %p132 = scmp.eq.s32.totalorder %s16, 1
    %p133 = por %p131, %p132
    %p134 = scmp.ne.s32.totalorder %s123, %s124
    %p135 = scmp.eq.s32.totalorder %s16, 0
    %p136 = por %p134, %p135
    %p137 = scmp.ne.s32.totalorder %s123, %s124
    %p138 = scmp.eq.s32.totalorder %s17, 1
    %p139 = por %p137, %p138
    %p141 = scmp.ne.s32.totalorder %s124, %s140
    %p142 = scmp.eq.s32.totalorder %s17, 0
    %p143 = por %p141, %p142
    %p144 = scmp.le.s32.totalorder 1, %s11
    %p145 = scmp.lt.s32.totalorder %s11, 3
    %p146 = pnand %p144, %p145
    %p147 = pneg %p146
    // Predicated region
    $region9: #{inception_forward.10} parent=5 // pred_check
      _
    $region10: #{inception_forward.10} parent=5 // pred_check_branch
      %149 = sbr.rel (%p146) target = $region12
    $region11: #{inception_forward.10} parent=5 // pred_region
      %s150 = ssub.s32 %s11, 1
      // Predicated region
      $region13: #{inception_forward.10} parent=11 // pred_check
        %p151 = pneg %p58
      $region14: #{inception_forward.10} parent=11 // pred_check_branch
        %153 = sbr.rel (%p151) target = $region16
      $region15: #{inception_forward.10} parent=11 // pred_region
        _
      $region16: #{inception_forward.10} parent=11 // pred_fallthru
        _
    $region12: #{inception_forward.10} parent=5 // pred_fallthru
      _
    %p154 = scmp.lt.s32.totalorder %s11, 2
    // Predicated region
    $region17: #{inception_forward.10} parent=5 // pred_check
      %p155 = pneg %p154
    $region18: #{inception_forward.10} parent=5 // pred_check_branch
      %157 = sbr.rel (%p155) target = $region20
    $region19: #{inception_forward.10} parent=5 // pred_region
      // Predicated region
      $region21: #{inception_forward.10} parent=19 // pred_check
        %p158 = pneg %p31
      $region22: #{inception_forward.10} parent=19 // pred_check_branch
        %160 = sbr.rel (%p158) target = $region24
      $region23: #{inception_forward.10} parent=19 // pred_region
        %p161 = scmp.lt.s32.totalorder %s11, 1
        %s162 = scalar_select %p161, %s11, 1
        %s163 = smul.addr %s162, 32
        %s164 = smul.addr %s163, 4
        %s165 = scalar_lea.vmem %s0, %s164
      $region24: #{inception_forward.10} parent=19 // pred_fallthru
        _
    $region20: #{inception_forward.10} parent=5 // pred_fallthru
      _
    %p166 = scmp.le.s32.totalorder 1, %s11
    %p167 = scmp.lt.s32.totalorder %s11, 3
    %p168 = pnand %p166, %p167
    %p169 = pneg %p168
    // Predicated region
    $region25: #{inception_forward.10} parent=5 // pred_check
      _
    $region26: #{inception_forward.10} parent=5 // pred_check_branch
      %171 = sbr.rel (%p168) target = $region28
    $region27: #{inception_forward.10} parent=5 // pred_region
      %s172 = ssub.s32 %s11, 1
      %p173 = scmp.lt.s32.totalorder %s16, 1
      %s174 = scalar_select %p173, %s16, 1
      %s175 = smul.addr %s174, 32
      %s176 = smul.addr %s175, 4
      %s177 = scalar_lea.vmem %s0, %s176
      %p178 = pneg %p37
      %p179 = pneg %p34
      %p180 = pneg %p58
      %p181 = pneg %p55
      %p182 = pneg %p84
      %p183 = pneg %p81
      %p184 = scmp.lt.s32.totalorder %s16, 1
      %s185 = scalar_select %p184, %s16, 1
      %s186 = smul.addr %s185, 32
      %s187 = smul.addr %s186, 4
      %s188 = scalar_lea.vmem %s2, %s187
      %p189 = pneg %p110
      %p190 = pneg %p107
      %p191 = scmp.lt.s32.totalorder %s16, 1
      %s192 = scalar_select %p191, %s16, 1
      %s193 = scalar_lea.vmem %s3, %s192
      %p194 = pneg %p136
      %p195 = pneg %p133
      %p196 = scmp.lt.s32.totalorder %s16, 1
      %s197 = scalar_select %p196, %s16, 1
      %s198 = scalar_lea.vmem %s4, %s197
      %p199 = scmp.lt.s32.totalorder %s16, 1
      %s200 = scalar_select %p199, %s16, 1
      %s201 = smul.addr %s200, 32
      %s202 = smul.addr %s201, 4
      %s203 = scalar_lea.vmem %s0, %s202
      %p204 = scmp.lt.s32.totalorder %s16, 1
      %s205 = scalar_select %p204, %s16, 1
      %s206 = smul.addr %s205, 32
      %s207 = smul.addr %s206, 4
      %s208 = scalar_lea.vmem %s2, %s207
      %p209 = scmp.lt.s32.totalorder %s16, 1
      %s210 = scalar_select %p209, %s16, 1
      %s211 = scalar_lea.vmem %s3, %s210
      %p212 = scmp.lt.s32.totalorder %s16, 1
      %s213 = scalar_select %p212, %s16, 1
      %s214 = scalar_lea.vmem %s4, %s213
      %vm216 = vcmask 31744
      %217 = vst.msk [vmem:[#allocation2] sm:$0xff] %vm216, -inf
      %218 = vst.msk [vmem:[#allocation2 + $0x8] sm:$0xff] %vm216, -inf
      %vm219 = vcmask 25600
      %220 = vst.msk [vmem:[#allocation2 + $0x10] sm:$0x3] %vm219, -inf
      %221 = vst.msk [vmem:[#allocation2 + $0x18] sm:$0xff] %vm216, -inf
      %222 = vst.msk [vmem:[#allocation2 + $0x20] sm:$0xff] %vm216, -inf
      %223 = vst.msk [vmem:[#allocation2 + $0x28] sm:$0x3] %vm219, -inf
      %224 = vst.msk [vmem:[#allocation2 + $0x30] sm:$0xff] %vm216, -inf
      %225 = vst.msk [vmem:[#allocation2 + $0x38] sm:$0xff] %vm216, -inf
      %226 = vst.msk [vmem:[#allocation2 + $0x40] sm:$0x3] %vm219, -inf
      %227 = vst.msk [vmem:[#allocation2 + $0x48] sm:$0xff] %vm216, -inf
      %228 = vst.msk [vmem:[#allocation2 + $0x50] sm:$0xff] %vm216, -inf
      %229 = vst.msk [vmem:[#allocation2 + $0x58] sm:$0x3] %vm219, -inf
      %230 = vst.msk [vmem:[#allocation2 + $0x60] sm:$0xff] %vm216, -inf
      %231 = vst.msk [vmem:[#allocation2 + $0x68] sm:$0xff] %vm216, -inf
      %232 = vst.msk [vmem:[#allocation2 + $0x70] sm:$0x3] %vm219, -inf
      %233 = vst.msk [vmem:[#allocation2 + $0x78] sm:$0xff] %vm216, -inf
      %234 = vst.msk [vmem:[#allocation2 + $0x80] sm:$0xff] %vm216, -inf
      %235 = vst.msk [vmem:[#allocation2 + $0x88] sm:$0x3] %vm219, -inf
      %236 = vst.msk [vmem:[#allocation2 + $0x90] sm:$0xff] %vm216, -inf
      %237 = vst.msk [vmem:[#allocation2 + $0x98] sm:$0xff] %vm216, -inf
      %238 = vst.msk [vmem:[#allocation2 + $0xa0] sm:$0x3] %vm219, -inf
      %239 = vst.msk [vmem:[#allocation2 + $0xa8] sm:$0xff] %vm216, -inf
      %240 = vst.msk [vmem:[#allocation2 + $0xb0] sm:$0xff] %vm216, -inf
      %241 = vst.msk [vmem:[#allocation2 + $0xb8] sm:$0x3] %vm219, -inf
      %242 = vst.msk [vmem:[#allocation2 + $0xc0] sm:$0xff] %vm216, -inf
      %243 = vst.msk [vmem:[#allocation2 + $0xc8] sm:$0xff] %vm216, -inf
      %244 = vst.msk [vmem:[#allocation2 + $0xd0] sm:$0x3] %vm219, -inf
      %245 = vst.msk [vmem:[#allocation2 + $0xd8] sm:$0xff] %vm216, -inf
      %246 = vst.msk [vmem:[#allocation2 + $0xe0] sm:$0xff] %vm216, -inf
      %247 = vst.msk [vmem:[#allocation2 + $0xe8] sm:$0x3] %vm219, -inf
      %248 = vst.msk [vmem:[#allocation2 + $0xf0] sm:$0xff] %vm216, -inf
      %249 = vst.msk [vmem:[#allocation2 + $0xf8] sm:$0xff] %vm216, -inf
      %250 = vst.msk [vmem:[#allocation2 + $0x100] sm:$0x3] %vm219, -inf
      %251 = vst.msk [vmem:[#allocation2 + $0x108] sm:$0xff] %vm216, -inf
      %252 = vst.msk [vmem:[#allocation2 + $0x110] sm:$0xff] %vm216, -inf
      %253 = vst.msk [vmem:[#allocation2 + $0x118] sm:$0x3] %vm219, -inf
      %254 = vst.msk [vmem:[#allocation2 + $0x120] sm:$0xff] %vm216, -inf
      %255 = vst.msk [vmem:[#allocation2 + $0x128] sm:$0xff] %vm216, -inf
      %256 = vst.msk [vmem:[#allocation2 + $0x130] sm:$0x3] %vm219, -inf
      %257 = vst.msk [vmem:[#allocation2 + $0x138] sm:$0xff] %vm216, -inf
      %258 = vst.msk [vmem:[#allocation2 + $0x140] sm:$0xff] %vm216, -inf
      %259 = vst.msk [vmem:[#allocation2 + $0x148] sm:$0x3] %vm219, -inf
      %260 = vst.msk [vmem:[#allocation2 + $0x150] sm:$0xff] %vm216, -inf
      %261 = vst.msk [vmem:[#allocation2 + $0x158] sm:$0xff] %vm216, -inf
      %262 = vst.msk [vmem:[#allocation2 + $0x160] sm:$0x3] %vm219, -inf
      %263 = vst.msk [vmem:[#allocation2 + $0x168] sm:$0xff] %vm216, -inf
      %264 = vst.msk [vmem:[#allocation2 + $0x170] sm:$0xff] %vm216, -inf
      %265 = vst.msk [vmem:[#allocation2 + $0x178] sm:$0x3] %vm219, -inf
      %266 = vst.msk [vmem:[#allocation2 + $0x180] sm:$0xff] %vm216, -inf
      %267 = vst.msk [vmem:[#allocation2 + $0x188] sm:$0xff] %vm216, -inf
      %268 = vst.msk [vmem:[#allocation2 + $0x190] sm:$0x3] %vm219, -inf
      %269 = vst.msk [vmem:[#allocation2 + $0x198] sm:$0xff] %vm216, -inf
      %270 = vst.msk [vmem:[#allocation2 + $0x1a0] sm:$0xff] %vm216, -inf
      %271 = vst.msk [vmem:[#allocation2 + $0x1a8] sm:$0x3] %vm219, -inf
      %v272 = vld [vmem:[%s203] sm:$0xf]
      %v273 = vld [vmem:[%s203 + $0x4] sm:$0xf]
      %v274 = vld [vmem:[%s203 + $0x8] sm:$0xf]
      %v275 = vld [vmem:[%s203 + $0xc] sm:$0xf]
      %v276 = vld [vmem:[%s203 + $0x10] sm:$0xf]
      %v277 = vld [vmem:[%s203 + $0x14] sm:$0xf]
      %v278 = vld [vmem:[%s203 + $0x18] sm:$0xf]
      %v279 = vld [vmem:[%s203 + $0x1c] sm:$0xf]
      %v280 = vld [vmem:[%s203 + $0x20] sm:$0xf]
      %v281 = vld [vmem:[%s203 + $0x24] sm:$0xf]
      %v282 = vld [vmem:[%s203 + $0x28] sm:$0xf]
      %v283 = vld [vmem:[%s203 + $0x2c] sm:$0xf]
      %v284 = vld [vmem:[%s203 + $0x30] sm:$0xf]
      %v285 = vld [vmem:[%s203 + $0x34] sm:$0xf]
      %v286 = vld [vmem:[%s203 + $0x38] sm:$0xf]
      %v287 = vld [vmem:[%s203 + $0x3c] sm:$0xf]
      %v288 = vld [vmem:[%s203 + $0x40] sm:$0xf]
      %v289 = vld [vmem:[%s203 + $0x44] sm:$0xf]
      %v290 = vld [vmem:[%s203 + $0x48] sm:$0xf]
      %v291 = vld [vmem:[%s203 + $0x4c] sm:$0xf]
      %v292 = vld [vmem:[%s203 + $0x50] sm:$0xf]
      %v293 = vld [vmem:[%s203 + $0x54] sm:$0xf]
      %v294 = vld [vmem:[%s203 + $0x58] sm:$0xf]
      %v295 = vld [vmem:[%s203 + $0x5c] sm:$0xf]
      %v296 = vld [vmem:[%s203 + $0x60] sm:$0xf]
      %v297 = vld [vmem:[%s203 + $0x64] sm:$0xf]
      %v298 = vld [vmem:[%s203 + $0x68] sm:$0xf]
      %v299 = vld [vmem:[%s203 + $0x6c] sm:$0xf]
      %v300 = vld [vmem:[%s203 + $0x70] sm:$0xf]
      %v301 = vld [vmem:[%s203 + $0x74] sm:$0xf]
      %v302 = vld [vmem:[%s203 + $0x78] sm:$0xf]
      %v303 = vld [vmem:[%s203 + $0x7c] sm:$0xf]
      %v304 = vunpack.c.l.bf16 %v272
      %v305 = vunpack.c.l.bf16 %v273
      %v306 = vunpack.c.l.bf16 %v274
      %v307 = vunpack.c.l.bf16 %v275
      %v308 = vunpack.c.l.bf16 %v276
      %v309 = vunpack.c.l.bf16 %v277
      %v310 = vunpack.c.l.bf16 %v278
      %v311 = vunpack.c.l.bf16 %v279
      %v312 = vunpack.c.l.bf16 %v280
      %v313 = vunpack.c.l.bf16 %v281
      %v314 = vunpack.c.l.bf16 %v282
      %v315 = vunpack.c.l.bf16 %v283
      %v316 = vunpack.c.l.bf16 %v284
      %v317 = vunpack.c.l.bf16 %v285
      %v318 = vunpack.c.l.bf16 %v286
      %v319 = vunpack.c.l.bf16 %v287
      %v320 = vunpack.c.l.bf16 %v288
      %v321 = vunpack.c.l.bf16 %v289
      %v322 = vunpack.c.l.bf16 %v290
      %v323 = vunpack.c.l.bf16 %v291
      %v324 = vunpack.c.l.bf16 %v292
      %v325 = vunpack.c.l.bf16 %v293
      %v326 = vunpack.c.l.bf16 %v294
      %v327 = vunpack.c.l.bf16 %v295
      %v328 = vunpack.c.l.bf16 %v296
      %v329 = vunpack.c.l.bf16 %v297
      %v330 = vunpack.c.l.bf16 %v298
      %v331 = vunpack.c.l.bf16 %v299
      %v332 = vunpack.c.l.bf16 %v300
      %v333 = vunpack.c.l.bf16 %v301
      %v334 = vunpack.c.l.bf16 %v302
      %v335 = vunpack.c.l.bf16 %v303
      %s336 = scalar_lea.vmem [#allocation2], 24
      %337 = vst.msk [vmem:[%s336 + $0x1] sm:$0xff] %vm216, %v304
      %338 = vst.msk [vmem:[%s336 + $0x9] sm:$0xff] %vm216, %v305
      %339 = vst.msk [vmem:[%s336 + $0x19] sm:$0xff] %vm216, %v306
      %340 = vst.msk [vmem:[%s336 + $0x21] sm:$0xff] %vm216, %v307
      %341 = vst.msk [vmem:[%s336 + $0x31] sm:$0xff] %vm216, %v308
      %342 = vst.msk [vmem:[%s336 + $0x39] sm:$0xff] %vm216, %v309
      %343 = vst.msk [vmem:[%s336 + $0x49] sm:$0xff] %vm216, %v310
      %344 = vst.msk [vmem:[%s336 + $0x51] sm:$0xff] %vm216, %v311
      %345 = vst.msk [vmem:[%s336 + $0x61] sm:$0xff] %vm216, %v312
      %346 = vst.msk [vmem:[%s336 + $0x69] sm:$0xff] %vm216, %v313
      %347 = vst.msk [vmem:[%s336 + $0x79] sm:$0xff] %vm216, %v314
      %348 = vst.msk [vmem:[%s336 + $0x81] sm:$0xff] %vm216, %v315
      %349 = vst.msk [vmem:[%s336 + $0x91] sm:$0xff] %vm216, %v316
      %350 = vst.msk [vmem:[%s336 + $0x99] sm:$0xff] %vm216, %v317
      %351 = vst.msk [vmem:[%s336 + $0xa9] sm:$0xff] %vm216, %v318
      %352 = vst.msk [vmem:[%s336 + $0xb1] sm:$0xff] %vm216, %v319
      %353 = vst.msk [vmem:[%s336 + $0xc1] sm:$0xff] %vm216, %v320
      %354 = vst.msk [vmem:[%s336 + $0xc9] sm:$0xff] %vm216, %v321
      %355 = vst.msk [vmem:[%s336 + $0xd9] sm:$0xff] %vm216, %v322
      %356 = vst.msk [vmem:[%s336 + $0xe1] sm:$0xff] %vm216, %v323
      %357 = vst.msk [vmem:[%s336 + $0xf1] sm:$0xff] %vm216, %v324
      %358 = vst.msk [vmem:[%s336 + $0xf9] sm:$0xff] %vm216, %v325
      %359 = vst.msk [vmem:[%s336 + $0x109] sm:$0xff] %vm216, %v326
      %360 = vst.msk [vmem:[%s336 + $0x111] sm:$0xff] %vm216, %v327
      %361 = vst.msk [vmem:[%s336 + $0x121] sm:$0xff] %vm216, %v328
      %362 = vst.msk [vmem:[%s336 + $0x129] sm:$0xff] %vm216, %v329
      %363 = vst.msk [vmem:[%s336 + $0x139] sm:$0xff] %vm216, %v330
      %364 = vst.msk [vmem:[%s336 + $0x141] sm:$0xff] %vm216, %v331
      %365 = vst.msk [vmem:[%s336 + $0x151] sm:$0xff] %vm216, %v332
      %366 = vst.msk [vmem:[%s336 + $0x159] sm:$0xff] %vm216, %v333
      %367 = vst.msk [vmem:[%s336 + $0x169] sm:$0xff] %vm216, %v334
      %368 = vst.msk [vmem:[%s336 + $0x171] sm:$0xff] %vm216, %v335
      %v369 = vld [vmem:[#allocation2] sm:$0xff]
      %v370 = vld [vmem:[#allocation2 + $0x8] sm:$0xff]
      %v371 = vld [vmem:[#allocation2 + $0x10] sm:$0x3]
      %v372 = vld [vmem:[#allocation2 + $0x18] sm:$0xff]
      %v373 = vld [vmem:[#allocation2 + $0x20] sm:$0xff]
      %v374 = vld [vmem:[#allocation2 + $0x28] sm:$0x3]
      %v375 = vld [vmem:[#allocation2 + $0x30] sm:$0xff]
      %v376 = vld [vmem:[#allocation2 + $0x38] sm:$0xff]
      %v377 = vld [vmem:[#allocation2 + $0x40] sm:$0x3]
      %v378 = vld [vmem:[#allocation2 + $0x48] sm:$0xff]
      %v379 = vld [vmem:[#allocation2 + $0x50] sm:$0xff]
      %v380 = vld [vmem:[#allocation2 + $0x58] sm:$0x3]
      %v381 = vld [vmem:[#allocation2 + $0x60] sm:$0xff]
      %v382 = vld [vmem:[#allocation2 + $0x68] sm:$0xff]
      %v383 = vld [vmem:[#allocation2 + $0x70] sm:$0x3]
      %v384 = vld [vmem:[#allocation2 + $0x78] sm:$0xff]
      %v385 = vld [vmem:[#allocation2 + $0x80] sm:$0xff]
      %v386 = vld [vmem:[#allocation2 + $0x88] sm:$0x3]
      %v387 = vld [vmem:[#allocation2 + $0x90] sm:$0xff]
      %v388 = vld [vmem:[#allocation2 + $0x98] sm:$0xff]
      %v389 = vld [vmem:[#allocation2 + $0xa0] sm:$0x3]
      %v390 = vld [vmem:[#allocation2 + $0xa8] sm:$0xff]
      %v391 = vld [vmem:[#allocation2 + $0xb0] sm:$0xff]
      %v392 = vld [vmem:[#allocation2 + $0xb8] sm:$0x3]
      %v393 = vld [vmem:[#allocation2 + $0xc0] sm:$0xff]
      %v394 = vld [vmem:[#allocation2 + $0xc8] sm:$0xff]
      %v395 = vld [vmem:[#allocation2 + $0xd0] sm:$0x3]
      %v396 = vld [vmem:[#allocation2 + $0xd8] sm:$0xff]
      %v397 = vld [vmem:[#allocation2 + $0xe0] sm:$0xff]
      %v398 = vld [vmem:[#allocation2 + $0xe8] sm:$0x3]
      %v399 = vld [vmem:[#allocation2 + $0xf0] sm:$0xff]
      %v400 = vld [vmem:[#allocation2 + $0xf8] sm:$0xff]
      %v401 = vld [vmem:[#allocation2 + $0x100] sm:$0x3]
      %v402 = vld [vmem:[#allocation2 + $0x108] sm:$0xff]
      %v403 = vld [vmem:[#allocation2 + $0x110] sm:$0xff]
      %v404 = vld [vmem:[#allocation2 + $0x118] sm:$0x3]
      %v405 = vld [vmem:[#allocation2 + $0x120] sm:$0xff]
      %v406 = vld [vmem:[#allocation2 + $0x128] sm:$0xff]
      %v407 = vld [vmem:[#allocation2 + $0x130] sm:$0x3]
      %v408 = vld [vmem:[#allocation2 + $0x138] sm:$0xff]
      %v409 = vld [vmem:[#allocation2 + $0x140] sm:$0xff]
      %v410 = vld [vmem:[#allocation2 + $0x148] sm:$0x3]
      %v411 = vld [vmem:[#allocation2 + $0x150] sm:$0xff]
      %v412 = vld [vmem:[#allocation2 + $0x158] sm:$0xff]
      %v413 = vld [vmem:[#allocation2 + $0x160] sm:$0x3]
      %v414 = vld [vmem:[#allocation2 + $0x168] sm:$0xff]
      %v415 = vld [vmem:[#allocation2 + $0x170] sm:$0xff]
      %v416 = vld [vmem:[#allocation2 + $0x178] sm:$0x3]
      %v417 = vld [vmem:[#allocation2 + $0x180] sm:$0xff]
      %v418 = vld [vmem:[#allocation2 + $0x188] sm:$0xff]
      %v419 = vld [vmem:[#allocation2 + $0x190] sm:$0x3]
      %v420 = vld [vmem:[#allocation2 + $0x198] sm:$0xff]
      %v421 = vld [vmem:[#allocation2 + $0x1a0] sm:$0xff]
      %v422 = vld [vmem:[#allocation2 + $0x1a8] sm:$0x3]
      %v423 = vmax.f32 %v369, %v372
      %v424 = vmax.f32 %v370, %v373
      %v425 = vmax.f32 %v371, %v374
      %v426 = vmax.f32 %v372, %v375
      %v427 = vmax.f32 %v373, %v376
      %v428 = vmax.f32 %v374, %v377
      %v429 = vmax.f32 %v375, %v378
      %v430 = vmax.f32 %v376, %v379
      %v431 = vmax.f32 %v377, %v380
      %v432 = vmax.f32 %v378, %v381
      %v433 = vmax.f32 %v379, %v382
      %v434 = vmax.f32 %v380, %v383
      %v435 = vmax.f32 %v381, %v384
      %v436 = vmax.f32 %v382, %v385
      %v437 = vmax.f32 %v383, %v386
      %v438 = vmax.f32 %v384, %v387
      %v439 = vmax.f32 %v385, %v388
      %v440 = vmax.f32 %v386, %v389
      %v441 = vmax.f32 %v387, %v390
      %v442 = vmax.f32 %v388, %v391
      %v443 = vmax.f32 %v389, %v392
      %v444 = vmax.f32 %v390, %v393
      %v445 = vmax.f32 %v391, %v394
      %v446 = vmax.f32 %v392, %v395
      %v447 = vmax.f32 %v393, %v396
      %v448 = vmax.f32 %v394, %v397
      %v449 = vmax.f32 %v395, %v398
      %v450 = vmax.f32 %v396, %v399
      %v451 = vmax.f32 %v397, %v400
      %v452 = vmax.f32 %v398, %v401
      %v453 = vmax.f32 %v399, %v402
      %v454 = vmax.f32 %v400, %v403
      %v455 = vmax.f32 %v401, %v404
      %v456 = vmax.f32 %v402, %v405
      %v457 = vmax.f32 %v403, %v406
      %v458 = vmax.f32 %v404, %v407
      %v459 = vmax.f32 %v405, %v408
      %v460 = vmax.f32 %v406, %v409
      %v461 = vmax.f32 %v407, %v410
      %v462 = vmax.f32 %v408, %v411
      %v463 = vmax.f32 %v409, %v412
      %v464 = vmax.f32 %v410, %v413
      %v465 = vmax.f32 %v411, %v414
      %v466 = vmax.f32 %v412, %v415
      %v467 = vmax.f32 %v413, %v416
      %v468 = vmax.f32 %v414, %v417
      %v469 = vmax.f32 %v415, %v418
      %v470 = vmax.f32 %v416, %v419
      %v471 = vmax.f32 %v423, %v375
      %v472 = vmax.f32 %v424, %v376
      %v473 = vmax.f32 %v425, %v377
      %v474 = vmax.f32 %v426, %v378
      %v475 = vmax.f32 %v427, %v379
      %v476 = vmax.f32 %v428, %v380
      %v477 = vmax.f32 %v429, %v381
      %v478 = vmax.f32 %v430, %v382
      %v479 = vmax.f32 %v431, %v383
      %v480 = vmax.f32 %v432, %v384
      %v481 = vmax.f32 %v433, %v385
      %v482 = vmax.f32 %v434, %v386
      %v483 = vmax.f32 %v435, %v387
      %v484 = vmax.f32 %v436, %v388
      %v485 = vmax.f32 %v437, %v389
      %v486 = vmax.f32 %v438, %v390
      %v487 = vmax.f32 %v439, %v391
      %v488 = vmax.f32 %v440, %v392
      %v489 = vmax.f32 %v441, %v393
      %v490 = vmax.f32 %v442, %v394
      %v491 = vmax.f32 %v443, %v395
      %v492 = vmax.f32 %v444, %v396
      %v493 = vmax.f32 %v445, %v397
      %v494 = vmax.f32 %v446, %v398
      %v495 = vmax.f32 %v447, %v399
      %v496 = vmax.f32 %v448, %v400
      %v497 = vmax.f32 %v449, %v401
      %v498 = vmax.f32 %v450, %v402
      %v499 = vmax.f32 %v451, %v403
      %v500 = vmax.f32 %v452, %v404
      %v501 = vmax.f32 %v453, %v405
      %v502 = vmax.f32 %v454, %v406
      %v503 = vmax.f32 %v455, %v407
      %v504 = vmax.f32 %v456, %v408
      %v505 = vmax.f32 %v457, %v409
      %v506 = vmax.f32 %v458, %v410
      %v507 = vmax.f32 %v459, %v411
      %v508 = vmax.f32 %v460, %v412
      %v509 = vmax.f32 %v461, %v413
      %v510 = vmax.f32 %v462, %v414
      %v511 = vmax.f32 %v463, %v415
      %v512 = vmax.f32 %v464, %v416
      %v513 = vmax.f32 %v465, %v417
      %v514 = vmax.f32 %v466, %v418
      %v515 = vmax.f32 %v467, %v419
      %v516 = vmax.f32 %v468, %v420
      %v517 = vmax.f32 %v469, %v421
      %v518 = vmax.f32 %v470, %v422
      %vm567 = vcmask 1046528
      %v568 = vrot.slane %v471, 1
      %v569 = vrot.slane %v472, 1
      %v570 = vsel %vm567, %v568, %v569
      %v571 = vrot.slane %v473, 1
      %v572 = vsel %vm567, %v569, %v571
      %v573 = vrot.slane %v474, 1
      %v574 = vrot.slane %v475, 1
      %v575 = vsel %vm567, %v573, %v574
      %v576 = vrot.slane %v476, 1
      %v577 = vsel %vm567, %v574, %v576
      %v578 = vrot.slane %v477, 1
      %v579 = vrot.slane %v478, 1
      %v580 = vsel %vm567, %v578, %v579
      %v581 = vrot.slane %v479, 1
      %v582 = vsel %vm567, %v579, %v581
      %v583 = vrot.slane %v480, 1
      %v584 = vrot.slane %v481, 1
      %v585 = vsel %vm567, %v583, %v584
      %v586 = vrot.slane %v482, 1
      %v587 = vsel %vm567, %v584, %v586
      %v588 = vrot.slane %v483, 1
      %v589 = vrot.slane %v484, 1
      %v590 = vsel %vm567, %v588, %v589
      %v591 = vrot.slane %v485, 1
      %v592 = vsel %vm567, %v589, %v591
      %v593 = vrot.slane %v486, 1
      %v594 = vrot.slane %v487, 1
      %v595 = vsel %vm567, %v593, %v594
      %v596 = vrot.slane %v488, 1
      %v597 = vsel %vm567, %v594, %v596
      %v598 = vrot.slane %v489, 1
      %v599 = vrot.slane %v490, 1
      %v600 = vsel %vm567, %v598, %v599
      %v601 = vrot.slane %v491, 1
      %v602 = vsel %vm567, %v599, %v601
      %v603 = vrot.slane %v492, 1
      %v604 = vrot.slane %v493, 1
      %v605 = vsel %vm567, %v603, %v604
      %v606 = vrot.slane %v494, 1
      %v607 = vsel %vm567, %v604, %v606
      %v608 = vrot.slane %v495, 1
      %v609 = vrot.slane %v496, 1
      %v610 = vsel %vm567, %v608, %v609
      %v611 = vrot.slane %v497, 1
      %v612 = vsel %vm567, %v609, %v611
      %v613 = vrot.slane %v498, 1
      %v614 = vrot.slane %v499, 1
      %v615 = vsel %vm567, %v613, %v614
      %v616 = vrot.slane %v500, 1
      %v617 = vsel %vm567, %v614, %v616
      %v618 = vrot.slane %v501, 1
      %v619 = vrot.slane %v502, 1
      %v620 = vsel %vm567, %v618, %v619
      %v621 = vrot.slane %v503, 1
      %v622 = vsel %vm567, %v619, %v621
      %v623 = vrot.slane %v504, 1
      %v624 = vrot.slane %v505, 1
      %v625 = vsel %vm567, %v623, %v624
      %v626 = vrot.slane %v506, 1
      %v627 = vsel %vm567, %v624, %v626
      %v628 = vrot.slane %v507, 1
      %v629 = vrot.slane %v508, 1
      %v630 = vsel %vm567, %v628, %v629
      %v631 = vrot.slane %v509, 1
      %v632 = vsel %vm567, %v629, %v631
      %v633 = vrot.slane %v510, 1
      %v634 = vrot.slane %v511, 1
      %v635 = vsel %vm567, %v633, %v634
      %v636 = vrot.slane %v512, 1
      %v637 = vsel %vm567, %v634, %v636
      %v638 = vrot.slane %v513, 1
      %v639 = vrot.slane %v514, 1
      %v640 = vsel %vm567, %v638, %v639
      %v641 = vrot.slane %v515, 1
      %v642 = vsel %vm567, %v639, %v641
      %v643 = vrot.slane %v516, 1
      %v644 = vrot.slane %v517, 1
      %v645 = vsel %vm567, %v643, %v644
      %v646 = vrot.slane %v518, 1
      %v647 = vsel %vm567, %v644, %v646
      %v680 = vmax.f32 %v471, %v570
      %v681 = vmax.f32 %v472, %v572
      %v682 = vmax.f32 %v474, %v575
      %v683 = vmax.f32 %v475, %v577
      %v684 = vmax.f32 %v477, %v580
      %v685 = vmax.f32 %v478, %v582
      %v686 = vmax.f32 %v480, %v585
      %v687 = vmax.f32 %v481, %v587
      %v688 = vmax.f32 %v483, %v590
      %v689 = vmax.f32 %v484, %v592
      %v690 = vmax.f32 %v486, %v595
      %v691 = vmax.f32 %v487, %v597
      %v692 = vmax.f32 %v489, %v600
      %v693 = vmax.f32 %v490, %v602
      %v694 = vmax.f32 %v492, %v605
      %v695 = vmax.f32 %v493, %v607
      %v696 = vmax.f32 %v495, %v610
      %v697 = vmax.f32 %v496, %v612
      %v698 = vmax.f32 %v498, %v615
      %v699 = vmax.f32 %v499, %v617
      %v700 = vmax.f32 %v501, %v620
      %v701 = vmax.f32 %v502, %v622
      %v702 = vmax.f32 %v504, %v625
      %v703 = vmax.f32 %v505, %v627
      %v704 = vmax.f32 %v507, %v630
      %v705 = vmax.f32 %v508, %v632
      %v706 = vmax.f32 %v510, %v635
      %v707 = vmax.f32 %v511, %v637
      %v708 = vmax.f32 %v513, %v640
      %v709 = vmax.f32 %v514, %v642
      %v710 = vmax.f32 %v516, %v645
      %v711 = vmax.f32 %v517, %v647
      %vm712 = vcmask 1045504
      %v713 = vrot.slane %v471, 2
      %v714 = vrot.slane %v472, 2
      %v715 = vsel %vm712, %v713, %v714
      %v716 = vrot.slane %v473, 2
      %v717 = vsel %vm712, %v714, %v716
      %v718 = vrot.slane %v474, 2
      %v719 = vrot.slane %v475, 2
      %v720 = vsel %vm712, %v718, %v719
      %v721 = vrot.slane %v476, 2
      %v722 = vsel %vm712, %v719, %v721
      %v723 = vrot.slane %v477, 2
      %v724 = vrot.slane %v478, 2
      %v725 = vsel %vm712, %v723, %v724
      %v726 = vrot.slane %v479, 2
      %v727 = vsel %vm712, %v724, %v726
      %v728 = vrot.slane %v480, 2
      %v729 = vrot.slane %v481, 2
      %v730 = vsel %vm712, %v728, %v729
      %v731 = vrot.slane %v482, 2
      %v732 = vsel %vm712, %v729, %v731
      %v733 = vrot.slane %v483, 2
      %v734 = vrot.slane %v484, 2
      %v735 = vsel %vm712, %v733, %v734
      %v736 = vrot.slane %v485, 2
      %v737 = vsel %vm712, %v734, %v736
      %v738 = vrot.slane %v486, 2
      %v739 = vrot.slane %v487, 2
      %v740 = vsel %vm712, %v738, %v739
      %v741 = vrot.slane %v488, 2
      %v742 = vsel %vm712, %v739, %v741
      %v743 = vrot.slane %v489, 2
      %v744 = vrot.slane %v490, 2
      %v745 = vsel %vm712, %v743, %v744
      %v746 = vrot.slane %v491, 2
      %v747 = vsel %vm712, %v744, %v746
      %v748 = vrot.slane %v492, 2
      %v749 = vrot.slane %v493, 2
      %v750 = vsel %vm712, %v748, %v749
      %v751 = vrot.slane %v494, 2
      %v752 = vsel %vm712, %v749, %v751
      %v753 = vrot.slane %v495, 2
      %v754 = vrot.slane %v496, 2
      %v755 = vsel %vm712, %v753, %v754
      %v756 = vrot.slane %v497, 2
      %v757 = vsel %vm712, %v754, %v756
      %v758 = vrot.slane %v498, 2
      %v759 = vrot.slane %v499, 2
      %v760 = vsel %vm712, %v758, %v759
      %v761 = vrot.slane %v500, 2
      %v762 = vsel %vm712, %v759, %v761
      %v763 = vrot.slane %v501, 2
      %v764 = vrot.slane %v502, 2
      %v765 = vsel %vm712, %v763, %v764
      %v766 = vrot.slane %v503, 2
      %v767 = vsel %vm712, %v764, %v766
      %v768 = vrot.slane %v504, 2
      %v769 = vrot.slane %v505, 2
      %v770 = vsel %vm712, %v768, %v769
      %v771 = vrot.slane %v506, 2
      %v772 = vsel %vm712, %v769, %v771
      %v773 = vrot.slane %v507, 2
      %v774 = vrot.slane %v508, 2
      %v775 = vsel %vm712, %v773, %v774
      %v776 = vrot.slane %v509, 2
      %v777 = vsel %vm712, %v774, %v776
      %v778 = vrot.slane %v510, 2
      %v779 = vrot.slane %v511, 2
      %v780 = vsel %vm712, %v778, %v779
      %v781 = vrot.slane %v512, 2
      %v782 = vsel %vm712, %v779, %v781
      %v783 = vrot.slane %v513, 2
      %v784 = vrot.slane %v514, 2
      %v785 = vsel %vm712, %v783, %v784
      %v786 = vrot.slane %v515, 2
      %v787 = vsel %vm712, %v784, %v786
      %v788 = vrot.slane %v516, 2
      %v789 = vrot.slane %v517, 2
      %v790 = vsel %vm712, %v788, %v789
      %v791 = vrot.slane %v518, 2
      %v792 = vsel %vm712, %v789, %v791
      %v825 = vmax.f32 %v680, %v715
      %v826 = vmax.f32 %v681, %v717
      %v827 = vmax.f32 %v682, %v720
      %v828 = vmax.f32 %v683, %v722
      %v829 = vmax.f32 %v684, %v725
      %v830 = vmax.f32 %v685, %v727
      %v831 = vmax.f32 %v686, %v730
      %v832 = vmax.f32 %v687, %v732
      %v833 = vmax.f32 %v688, %v735
      %v834 = vmax.f32 %v689, %v737
      %v835 = vmax.f32 %v690, %v740
      %v836 = vmax.f32 %v691, %v742
      %v837 = vmax.f32 %v692, %v745
      %v838 = vmax.f32 %v693, %v747
      %v839 = vmax.f32 %v694, %v750
      %v840 = vmax.f32 %v695, %v752
      %v841 = vmax.f32 %v696, %v755
      %v842 = vmax.f32 %v697, %v757
      %v843 = vmax.f32 %v698, %v760
      %v844 = vmax.f32 %v699, %v762
      %v845 = vmax.f32 %v700, %v765
      %v846 = vmax.f32 %v701, %v767
      %v847 = vmax.f32 %v702, %v770
      %v848 = vmax.f32 %v703, %v772
      %v849 = vmax.f32 %v704, %v775
      %v850 = vmax.f32 %v705, %v777
      %v851 = vmax.f32 %v706, %v780
      %v852 = vmax.f32 %v707, %v782
      %v853 = vmax.f32 %v708, %v785
      %v854 = vmax.f32 %v709, %v787
      %v855 = vmax.f32 %v710, %v790
      %v856 = vmax.f32 %v711, %v792
      %v857 = vpack.c.bf16 %v826, %v825
      %v858 = vpack.c.bf16 %v828, %v827
      %v859 = vpack.c.bf16 %v830, %v829
      %v860 = vpack.c.bf16 %v832, %v831
      %v861 = vpack.c.bf16 %v834, %v833
      %v862 = vpack.c.bf16 %v836, %v835
      %v863 = vpack.c.bf16 %v838, %v837
      %v864 = vpack.c.bf16 %v840, %v839
      %v865 = vpack.c.bf16 %v842, %v841
      %v866 = vpack.c.bf16 %v844, %v843
      %v867 = vpack.c.bf16 %v846, %v845
      %v868 = vpack.c.bf16 %v848, %v847
      %v869 = vpack.c.bf16 %v850, %v849
      %v870 = vpack.c.bf16 %v852, %v851
      %v871 = vpack.c.bf16 %v854, %v853
      %v872 = vpack.c.bf16 %v856, %v855
      %v873 = vld [vmem:[%s1] sm:$0x3]
      %v875 = vsel %vm216, %v857, 0
      %v878 = vsel %vm216, %v858, 0
      %v881 = vsel %vm216, %v859, 0
      %v884 = vsel %vm216, %v860, 0
      %v887 = vsel %vm216, %v861, 0
      %v890 = vsel %vm216, %v862, 0
      %v893 = vsel %vm216, %v863, 0
      %v896 = vsel %vm216, %v864, 0
      %v899 = vsel %vm216, %v865, 0
      %v902 = vsel %vm216, %v866, 0
      %v905 = vsel %vm216, %v867, 0
      %v908 = vsel %vm216, %v868, 0
      %v911 = vsel %vm216, %v869, 0
      %v914 = vsel %vm216, %v870, 0
      %v917 = vsel %vm216, %v871, 0
      %v920 = vsel %vm216, %v872, 0
      %vm922 = vcmask 1041408
      %v924 = vsel %vm922, %v873, 0
      %926 = vmatprep.subr.bf16.mxu0 0
      %927 = vmatpush1.bf16.msra.mxu0 %v924
      %928 = vmatprep.subr.bf16.mxu0 0
      %929 = vmatpush1.bf16.msra.mxu0 0
      %930 = vmatprep.subr.bf16.mxu0 0
      %931 = vmatpush1.bf16.msra.mxu0 0
      %932 = vmatprep.subr.bf16.mxu0 0
      %933 = vmatpush1.bf16.msra.mxu0 0
      %934 = vmatprep.subr.bf16.mxu0 0
      %935 = vmatpush1.bf16.msra.mxu0 0
      %936 = vmatprep.subr.bf16.mxu0 0
      %937 = vmatpush1.bf16.msra.mxu0 0
      %938 = vmatprep.subr.bf16.mxu0 0
      %939 = vmatpush1.bf16.msra.mxu0 0
      %940 = vmatprep.subr.bf16.mxu0 0
      %941 = vmatpush1.bf16.msra.mxu0 0
      %942 = vmatprep.subr.bf16.mxu0 0
      %943 = vmatpush1.bf16.msra.mxu0 0
      %944 = vmatprep.subr.bf16.mxu0 0
      %945 = vmatpush1.bf16.msra.mxu0 0
      %946 = vmatprep.subr.bf16.mxu0 0
      %947 = vmatpush1.bf16.msra.mxu0 0
      %948 = vmatprep.subr.bf16.mxu0 0
      %949 = vmatpush1.bf16.msra.mxu0 0
      %950 = vmatprep.subr.bf16.mxu0 0
      %951 = vmatpush1.bf16.msra.mxu0 0
      %952 = vmatprep.subr.bf16.mxu0 0
      %953 = vmatpush1.bf16.msra.mxu0 0
      %954 = vmatprep.subr.bf16.mxu0 0
      %955 = vmatpush1.bf16.msra.mxu0 0
      %956 = vmatprep.subr.bf16.mxu0 0
      %957 = vmatpush1.bf16.msra.mxu0 0
      %958 = vmatprep.mubr.bf16.mxu0 0
      %959 = vmatmul.mubr.bf16.gmra.mrb[0].mxu0 %v875
      %v960 = vpop.f32.mrb[0].mxu0
      %v961 = vadd.f32 0.0, %v960
      %v962 = vpop.f32.mrb[0].mxu0
      %v963 = vpop.f32.mrb[0].mxu0
      %v964 = vadd.f32 0.0, %v963
      %v965 = vpop.f32.mrb[0].mxu0
      %966 = vmatprep.mubr.bf16.mxu0 0
      %967 = vmatmul.mubr.bf16.gmra.mrb[0].mxu0 %v878
      %v968 = vpop.f32.mrb[0].mxu0
      %v969 = vadd.f32 0.0, %v968
      %v970 = vpop.f32.mrb[0].mxu0
      %v971 = vpop.f32.mrb[0].mxu0
      %v972 = vadd.f32 0.0, %v971
      %v973 = vpop.f32.mrb[0].mxu0
      %974 = vmatprep.mubr.bf16.mxu0 0
      %975 = vmatmul.mubr.bf16.gmra.mrb[0].mxu0 %v881
      %v976 = vpop.f32.mrb[0].mxu0
      %v977 = vadd.f32 0.0, %v976
      %v978 = vpop.f32.mrb[0].mxu0
      %v979 = vpop.f32.mrb[0].mxu0
      %v980 = vadd.f32 0.0, %v979
      %v981 = vpop.f32.mrb[0].mxu0
      %982 = vmatprep.mubr.bf16.mxu0 0
      %983 = vmatmul.mubr.bf16.gmra.mrb[0].mxu0 %v884
      %v984 = vpop.f32.mrb[0].mxu0
      %v985 = vadd.f32 0.0, %v984
      %v986 = vpop.f32.mrb[0].mxu0
      %v987 = vpop.f32.mrb[0].mxu0
      %v988 = vadd.f32 0.0, %v987
      %v989 = vpop.f32.mrb[0].mxu0
      %990 = vmatprep.mubr.bf16.mxu0 0
      %991 = vmatmul.mubr.bf16.gmra.mrb[0].mxu0 %v887
      %v992 = vpop.f32.mrb[0].mxu0
      %v993 = vadd.f32 0.0, %v992
      %v994 = vpop.f32.mrb[0].mxu0
      %v995 = vpop.f32.mrb[0].mxu0
      %v996 = vadd.f32 0.0, %v995
      %v997 = vpop.f32.mrb[0].mxu0
      %998 = vmatprep.mubr.bf16.mxu0 0
      %999 = vmatmul.mubr.bf16.gmra.mrb[0].mxu0 %v890
      %v1000 = vpop.f32.mrb[0].mxu0
      %v1001 = vadd.f32 0.0, %v1000
      %v1002 = vpop.f32.mrb[0].mxu0
      %v1003 = vpop.f32.mrb[0].mxu0
      %v1004 = vadd.f32 0.0, %v1003
      %v1005 = vpop.f32.mrb[0].mxu0
      %1006 = vmatprep.mubr.bf16.mxu0 0
      %1007 = vmatmul.mubr.bf16.gmra.mrb[0].mxu0 %v893
      %v1008 = vpop.f32.mrb[0].mxu0
      %v1009 = vadd.f32 0.0, %v1008
      %v1010 = vpop.f32.mrb[0].mxu0
      %v1011 = vpop.f32.mrb[0].mxu0
      %v1012 = vadd.f32 0.0, %v1011
      %v1013 = vpop.f32.mrb[0].mxu0
      %1014 = vmatprep.mubr.bf16.mxu0 0
      %1015 = vmatmul.mubr.bf16.gmra.mrb[0].mxu0 %v896
      %v1016 = vpop.f32.mrb[0].mxu0
      %v1017 = vadd.f32 0.0, %v1016
      %v1018 = vpop.f32.mrb[0].mxu0
      %v1019 = vpop.f32.mrb[0].mxu0
      %v1020 = vadd.f32 0.0, %v1019
      %v1021 = vpop.f32.mrb[0].mxu0
      %1022 = vmatprep.mubr.bf16.mxu0 0
      %1023 = vmatmul.mubr.bf16.gmra.mrb[0].mxu0 %v899
      %v1024 = vpop.f32.mrb[0].mxu0
      %v1025 = vadd.f32 0.0, %v1024
      %v1026 = vpop.f32.mrb[0].mxu0
      %v1027 = vpop.f32.mrb[0].mxu0
      %v1028 = vadd.f32 0.0, %v1027
      %v1029 = vpop.f32.mrb[0].mxu0
      %1030 = vmatprep.mubr.bf16.mxu0 0
      %1031 = vmatmul.mubr.bf16.gmra.mrb[0].mxu0 %v902
      %v1032 = vpop.f32.mrb[0].mxu0
      %v1033 = vadd.f32 0.0, %v1032
      %v1034 = vpop.f32.mrb[0].mxu0
      %v1035 = vpop.f32.mrb[0].mxu0
      %v1036 = vadd.f32 0.0, %v1035
      %v1037 = vpop.f32.mrb[0].mxu0
      %1038 = vmatprep.mubr.bf16.mxu0 0
      %1039 = vmatmul.mubr.bf16.gmra.mrb[0].mxu0 %v905
      %v1040 = vpop.f32.mrb[0].mxu0
      %v1041 = vadd.f32 0.0, %v1040
      %v1042 = vpop.f32.mrb[0].mxu0
      %v1043 = vpop.f32.mrb[0].mxu0
      %v1044 = vadd.f32 0.0, %v1043
      %v1045 = vpop.f32.mrb[0].mxu0
      %1046 = vmatprep.mubr.bf16.mxu0 0
      %1047 = vmatmul.mubr.bf16.gmra.mrb[0].mxu0 %v908
      %v1048 = vpop.f32.mrb[0].mxu0
      %v1049 = vadd.f32 0.0, %v1048
      %v1050 = vpop.f32.mrb[0].mxu0
      %v1051 = vpop.f32.mrb[0].mxu0
      %v1052 = vadd.f32 0.0, %v1051
      %v1053 = vpop.f32.mrb[0].mxu0
      %1054 = vmatprep.mubr.bf16.mxu0 0
      %1055 = vmatmul.mubr.bf16.gmra.mrb[0].mxu0 %v911
      %v1056 = vpop.f32.mrb[0].mxu0
      %v1057 = vadd.f32 0.0, %v1056
      %v1058 = vpop.f32.mrb[0].mxu0
      %v1059 = vpop.f32.mrb[0].mxu0
      %v1060 = vadd.f32 0.0, %v1059
      %v1061 = vpop.f32.mrb[0].mxu0
      %1062 = vmatprep.mubr.bf16.mxu0 0
      %1063 = vmatmul.mubr.bf16.gmra.mrb[0].mxu0 %v914
      %v1064 = vpop.f32.mrb[0].mxu0
      %v1065 = vadd.f32 0.0, %v1064
      %v1066 = vpop.f32.mrb[0].mxu0
      %v1067 = vpop.f32.mrb[0].mxu0
      %v1068 = vadd.f32 0.0, %v1067
      %v1069 = vpop.f32.mrb[0].mxu0
      %1070 = vmatprep.mubr.bf16.mxu0 0
      %1071 = vmatmul.mubr.bf16.gmra.mrb[0].mxu0 %v917
      %v1072 = vpop.f32.mrb[0].mxu0
      %v1073 = vadd.f32 0.0, %v1072
      %v1074 = vpop.f32.mrb[0].mxu0
      %v1075 = vpop.f32.mrb[0].mxu0
      %v1076 = vadd.f32 0.0, %v1075
      %v1077 = vpop.f32.mrb[0].mxu0
      %1078 = vmatprep.mubr.bf16.mxu0 0
      %1079 = vmatmul.mubr.bf16.gmra.mrb[0].mxu0 %v920
      %v1080 = vpop.f32.mrb[0].mxu0
      %v1081 = vadd.f32 0.0, %v1080
      %v1082 = vpop.f32.mrb[0].mxu0
      %v1083 = vpop.f32.mrb[0].mxu0
      %v1084 = vadd.f32 0.0, %v1083
      %v1085 = vpop.f32.mrb[0].mxu0
      %1086 = vdwg.mxu0
      %v1087 = vpack.c.bf16 %v964, %v961
      %v1088 = vpack.c.bf16 %v972, %v969
      %v1089 = vpack.c.bf16 %v980, %v977
      %v1090 = vpack.c.bf16 %v988, %v985
      %v1091 = vpack.c.bf16 %v996, %v993
      %v1092 = vpack.c.bf16 %v1004, %v1001
      %v1093 = vpack.c.bf16 %v1012, %v1009
      %v1094 = vpack.c.bf16 %v1020, %v1017
      %v1095 = vpack.c.bf16 %v1028, %v1025
      %v1096 = vpack.c.bf16 %v1036, %v1033
      %v1097 = vpack.c.bf16 %v1044, %v1041
      %v1098 = vpack.c.bf16 %v1052, %v1049
      %v1099 = vpack.c.bf16 %v1060, %v1057
      %v1100 = vpack.c.bf16 %v1068, %v1065
      %v1101 = vpack.c.bf16 %v1076, %v1073
      %v1102 = vpack.c.bf16 %v1084, %v1081
      %v1119 = vunpack.c.l.b16 %v1087
      %v1120 = vunpack.c.h.b16 %v1087
      %v1121 = vunpack.c.l.b16 %v1088
      %v1122 = vunpack.c.h.b16 %v1088
      %v1123 = vunpack.c.l.b16 %v1089
      %v1124 = vunpack.c.h.b16 %v1089
      %v1125 = vunpack.c.l.b16 %v1090
      %v1126 = vunpack.c.h.b16 %v1090
      %v1127 = vunpack.c.l.b16 %v1091
      %v1128 = vunpack.c.h.b16 %v1091
      %v1129 = vunpack.c.l.b16 %v1092
      %v1130 = vunpack.c.h.b16 %v1092
      %v1131 = vunpack.c.l.b16 %v1093
      %v1132 = vunpack.c.h.b16 %v1093
      %v1133 = vunpack.c.l.b16 %v1094
      %v1134 = vunpack.c.h.b16 %v1094
      %v1135 = vunpack.c.l.b16 %v1095
      %v1136 = vunpack.c.h.b16 %v1095
      %v1137 = vunpack.c.l.b16 %v1096
      %v1138 = vunpack.c.h.b16 %v1096
      %v1139 = vunpack.c.l.b16 %v1097
      %v1140 = vunpack.c.h.b16 %v1097
      %v1141 = vunpack.c.l.b16 %v1098
      %v1142 = vunpack.c.h.b16 %v1098
      %v1143 = vunpack.c.l.b16 %v1099
      %v1144 = vunpack.c.h.b16 %v1099
      %v1145 = vunpack.c.l.b16 %v1100
      %v1146 = vunpack.c.h.b16 %v1100
      %v1147 = vunpack.c.l.b16 %v1101
      %v1148 = vunpack.c.h.b16 %v1101
      %v1149 = vunpack.c.l.b16 %v1102
      %v1150 = vunpack.c.h.b16 %v1102
      %v1151 = vpack.c.b16 %v1119, %v1119
      %v1152 = vpack.c.b16 %v1120, %v1120
      %v1153 = vpack.c.b16 %v1121, %v1121
      %v1154 = vpack.c.b16 %v1122, %v1122
      %v1155 = vpack.c.b16 %v1123, %v1123
      %v1156 = vpack.c.b16 %v1124, %v1124
      %v1157 = vpack.c.b16 %v1125, %v1125
      %v1158 = vpack.c.b16 %v1126, %v1126
      %v1159 = vpack.c.b16 %v1127, %v1127
      %v1160 = vpack.c.b16 %v1128, %v1128
      %v1161 = vpack.c.b16 %v1129, %v1129
      %v1162 = vpack.c.b16 %v1130, %v1130
      %v1163 = vpack.c.b16 %v1131, %v1131
      %v1164 = vpack.c.b16 %v1132, %v1132
      %v1165 = vpack.c.b16 %v1133, %v1133
      %v1166 = vpack.c.b16 %v1134, %v1134
      %v1167 = vpack.c.b16 %v1135, %v1135
      %v1168 = vpack.c.b16 %v1136, %v1136
      %v1169 = vpack.c.b16 %v1137, %v1137
      %v1170 = vpack.c.b16 %v1138, %v1138
      %v1171 = vpack.c.b16 %v1139, %v1139
      %v1172 = vpack.c.b16 %v1140, %v1140
      %v1173 = vpack.c.b16 %v1141, %v1141
      %v1174 = vpack.c.b16 %v1142, %v1142
      %v1175 = vpack.c.b16 %v1143, %v1143
      %v1176 = vpack.c.b16 %v1144, %v1144
      %v1177 = vpack.c.b16 %v1145, %v1145
      %v1178 = vpack.c.b16 %v1146, %v1146
      %v1179 = vpack.c.b16 %v1147, %v1147
      %v1180 = vpack.c.b16 %v1148, %v1148
      %v1181 = vpack.c.b16 %v1149, %v1149
      %v1182 = vpack.c.b16 %v1150, %v1150
      %vm1215 = vcmask 44032
      %1216 = vst.msk [vmem:[%s208] sm:$0xf] %vm1215, %v1151
      %1217 = vst.msk [vmem:[%s208 + $0x4] sm:$0xf] %vm1215, %v1152
      %1218 = vst.msk [vmem:[%s208 + $0x8] sm:$0xf] %vm1215, %v1153
      %1219 = vst.msk [vmem:[%s208 + $0xc] sm:$0xf] %vm1215, %v1154
      %1220 = vst.msk [vmem:[%s208 + $0x10] sm:$0xf] %vm1215, %v1155
      %1221 = vst.msk [vmem:[%s208 + $0x14] sm:$0xf] %vm1215, %v1156
      %1222 = vst.msk [vmem:[%s208 + $0x18] sm:$0xf] %vm1215, %v1157
      %1223 = vst.msk [vmem:[%s208 + $0x1c] sm:$0xf] %vm1215, %v1158
      %1224 = vst.msk [vmem:[%s208 + $0x20] sm:$0xf] %vm1215, %v1159
      %1225 = vst.msk [vmem:[%s208 + $0x24] sm:$0xf] %vm1215, %v1160
      %1226 = vst.msk [vmem:[%s208 + $0x28] sm:$0xf] %vm1215, %v1161
      %1227 = vst.msk [vmem:[%s208 + $0x2c] sm:$0xf] %vm1215, %v1162
      %1228 = vst.msk [vmem:[%s208 + $0x30] sm:$0xf] %vm1215, %v1163
      %1229 = vst.msk [vmem:[%s208 + $0x34] sm:$0xf] %vm1215, %v1164
      %1230 = vst.msk [vmem:[%s208 + $0x38] sm:$0xf] %vm1215, %v1165
      %1231 = vst.msk [vmem:[%s208 + $0x3c] sm:$0xf] %vm1215, %v1166
      %1232 = vst.msk [vmem:[%s208 + $0x40] sm:$0xf] %vm1215, %v1167
      %1233 = vst.msk [vmem:[%s208 + $0x44] sm:$0xf] %vm1215, %v1168
      %1234 = vst.msk [vmem:[%s208 + $0x48] sm:$0xf] %vm1215, %v1169
      %1235 = vst.msk [vmem:[%s208 + $0x4c] sm:$0xf] %vm1215, %v1170
      %1236 = vst.msk [vmem:[%s208 + $0x50] sm:$0xf] %vm1215, %v1171
      %1237 = vst.msk [vmem:[%s208 + $0x54] sm:$0xf] %vm1215, %v1172
      %1238 = vst.msk [vmem:[%s208 + $0x58] sm:$0xf] %vm1215, %v1173
      %1239 = vst.msk [vmem:[%s208 + $0x5c] sm:$0xf] %vm1215, %v1174
      %1240 = vst.msk [vmem:[%s208 + $0x60] sm:$0xf] %vm1215, %v1175
      %1241 = vst.msk [vmem:[%s208 + $0x64] sm:$0xf] %vm1215, %v1176
      %1242 = vst.msk [vmem:[%s208 + $0x68] sm:$0xf] %vm1215, %v1177
      %1243 = vst.msk [vmem:[%s208 + $0x6c] sm:$0xf] %vm1215, %v1178
      %1244 = vst.msk [vmem:[%s208 + $0x70] sm:$0xf] %vm1215, %v1179
      %1245 = vst.msk [vmem:[%s208 + $0x74] sm:$0xf] %vm1215, %v1180
      %1246 = vst.msk [vmem:[%s208 + $0x78] sm:$0xf] %vm1215, %v1181
      %1247 = vst.msk [vmem:[%s208 + $0x7c] sm:$0xf] %vm1215, %v1182
      %vm1248 = vcmask 48128
      %v1249 = vsel %vm1248, %v961, 0.0
      %v1250 = vsel %vm1248, %v964, 0.0
      %v1251 = vadd.f32 %v1249, %v1250
      %v1252 = vsel %vm1248, %v969, 0.0
      %v1253 = vadd.f32 %v1251, %v1252
      %v1254 = vsel %vm1248, %v972, 0.0
      %v1255 = vadd.f32 %v1253, %v1254
      %v1256 = vsel %vm1248, %v977, 0.0
      %v1257 = vadd.f32 %v1255, %v1256
      %v1258 = vsel %vm1248, %v980, 0.0
      %v1259 = vadd.f32 %v1257, %v1258
      %v1260 = vsel %vm1248, %v985, 0.0
      %v1261 = vadd.f32 %v1259, %v1260
      %v1262 = vsel %vm1248, %v988, 0.0
      %v1263 = vadd.f32 %v1261, %v1262
      %v1264 = vsel %vm1248, %v993, 0.0
      %v1265 = vadd.f32 %v1263, %v1264
      %v1266 = vsel %vm1248, %v996, 0.0
      %v1267 = vadd.f32 %v1265, %v1266
      %v1268 = vsel %vm1248, %v1001, 0.0
      %v1269 = vadd.f32 %v1267, %v1268
      %v1270 = vsel %vm1248, %v1004, 0.0
      %v1271 = vadd.f32 %v1269, %v1270
      %v1272 = vsel %vm1248, %v1009, 0.0
      %v1273 = vadd.f32 %v1271, %v1272
      %v1274 = vsel %vm1248, %v1012, 0.0
      %v1275 = vadd.f32 %v1273, %v1274
      %v1276 = vsel %vm1248, %v1017, 0.0
      %v1277 = vadd.f32 %v1275, %v1276
      %v1278 = vsel %vm1248, %v1020, 0.0
      %v1279 = vadd.f32 %v1277, %v1278
      %v1280 = vsel %vm1248, %v1025, 0.0
      %v1281 = vadd.f32 %v1279, %v1280
      %v1282 = vsel %vm1248, %v1028, 0.0
      %v1283 = vadd.f32 %v1281, %v1282
      %v1284 = vsel %vm1248, %v1033, 0.0
      %v1285 = vadd.f32 %v1283, %v1284
      %v1286 = vsel %vm1248, %v1036, 0.0
      %v1287 = vadd.f32 %v1285, %v1286
      %v1288 = vsel %vm1248, %v1041, 0.0
      %v1289 = vadd.f32 %v1287, %v1288
      %v1290 = vsel %vm1248, %v1044, 0.0
      %v1291 = vadd.f32 %v1289, %v1290
      %v1292 = vsel %vm1248, %v1049, 0.0
      %v1293 = vadd.f32 %v1291, %v1292
      %v1294 = vsel %vm1248, %v1052, 0.0
      %v1295 = vadd.f32 %v1293, %v1294
      %v1296 = vsel %vm1248, %v1057, 0.0
      %v1297 = vadd.f32 %v1295, %v1296
      %v1298 = vsel %vm1248, %v1060, 0.0
      %v1299 = vadd.f32 %v1297, %v1298
      %v1300 = vsel %vm1248, %v1065, 0.0
      %v1301 = vadd.f32 %v1299, %v1300
      %v1302 = vsel %vm1248, %v1068, 0.0
      %v1303 = vadd.f32 %v1301, %v1302
      %v1304 = vsel %vm1248, %v1073, 0.0
      %v1305 = vadd.f32 %v1303, %v1304
      %v1306 = vsel %vm1248, %v1076, 0.0
      %v1307 = vadd.f32 %v1305, %v1306
      %v1308 = vsel %vm1248, %v1081, 0.0
      %v1309 = vadd.f32 %v1307, %v1308
      %v1310 = vsel %vm1248, %v1084, 0.0
      %v1311 = vadd.f32 %v1309, %v1310
      %v1312 = vrot.slane %v1311, 4
      %v1313 = vadd.f32 %v1311, %v1312
      %v1314 = vrot.slane %v1313, 2
      %v1315 = vadd.f32 %v1313, %v1314
      %v1316 = vrot.slane %v1315, 1
      %v1317 = vadd.f32 %v1315, %v1316
      %vm1318 = vcmask 40960
      %1319 = vst.msk [vmem:[%s211] sm:$0x1] %vm1318, %v1317
      %v1320 = vmul.f32 %v961, %v961
      %v1321 = vmul.f32 %v964, %v964
      %v1322 = vmul.f32 %v969, %v969
      %v1323 = vmul.f32 %v972, %v972
      %v1324 = vmul.f32 %v977, %v977
      %v1325 = vmul.f32 %v980, %v980
      %v1326 = vmul.f32 %v985, %v985
      %v1327 = vmul.f32 %v988, %v988
      %v1328 = vmul.f32 %v993, %v993
      %v1329 = vmul.f32 %v996, %v996
      %v1330 = vmul.f32 %v1001, %v1001
      %v1331 = vmul.f32 %v1004, %v1004
      %v1332 = vmul.f32 %v1009, %v1009
      %v1333 = vmul.f32 %v1012, %v1012
      %v1334 = vmul.f32 %v1017, %v1017
      %v1335 = vmul.f32 %v1020, %v1020
      %v1336 = vmul.f32 %v1025, %v1025
      %v1337 = vmul.f32 %v1028, %v1028
      %v1338 = vmul.f32 %v1033, %v1033
      %v1339 = vmul.f32 %v1036, %v1036
      %v1340 = vmul.f32 %v1041, %v1041
      %v1341 = vmul.f32 %v1044, %v1044
      %v1342 = vmul.f32 %v1049, %v1049
      %v1343 = vmul.f32 %v1052, %v1052
      %v1344 = vmul.f32 %v1057, %v1057
      %v1345 = vmul.f32 %v1060, %v1060
      %v1346 = vmul.f32 %v1065, %v1065
      %v1347 = vmul.f32 %v1068, %v1068
      %v1348 = vmul.f32 %v1073, %v1073
      %v1349 = vmul.f32 %v1076, %v1076
      %v1350 = vmul.f32 %v1081, %v1081
      %v1351 = vmul.f32 %v1084, %v1084
      %v1352 = vsel %vm1248, %v1320, 0.0
      %v1353 = vsel %vm1248, %v1321, 0.0
      %v1354 = vadd.f32 %v1352, %v1353
      %v1355 = vsel %vm1248, %v1322, 0.0
      %v1356 = vadd.f32 %v1354, %v1355
      %v1357 = vsel %vm1248, %v1323, 0.0
      %v1358 = vadd.f32 %v1356, %v1357
      %v1359 = vsel %vm1248, %v1324, 0.0
      %v1360 = vadd.f32 %v1358, %v1359
      %v1361 = vsel %vm1248, %v1325, 0.0
      %v1362 = vadd.f32 %v1360, %v1361
      %v1363 = vsel %vm1248, %v1326, 0.0
      %v1364 = vadd.f32 %v1362, %v1363
      %v1365 = vsel %vm1248, %v1327, 0.0
      %v1366 = vadd.f32 %v1364, %v1365
      %v1367 = vsel %vm1248, %v1328, 0.0
      %v1368 = vadd.f32 %v1366, %v1367
      %v1369 = vsel %vm1248, %v1329, 0.0
      %v1370 = vadd.f32 %v1368, %v1369
      %v1371 = vsel %vm1248, %v1330, 0.0
      %v1372 = vadd.f32 %v1370, %v1371
      %v1373 = vsel %vm1248, %v1331, 0.0
      %v1374 = vadd.f32 %v1372, %v1373
      %v1375 = vsel %vm1248, %v1332, 0.0
      %v1376 = vadd.f32 %v1374, %v1375
      %v1377 = vsel %vm1248, %v1333, 0.0
      %v1378 = vadd.f32 %v1376, %v1377
      %v1379 = vsel %vm1248, %v1334, 0.0
      %v1380 = vadd.f32 %v1378, %v1379
      %v1381 = vsel %vm1248, %v1335, 0.0
      %v1382 = vadd.f32 %v1380, %v1381
      %v1383 = vsel %vm1248, %v1336, 0.0
      %v1384 = vadd.f32 %v1382, %v1383
      %v1385 = vsel %vm1248, %v1337, 0.0
      %v1386 = vadd.f32 %v1384, %v1385
      %v1387 = vsel %vm1248, %v1338, 0.0
      %v1388 = vadd.f32 %v1386, %v1387
      %v1389 = vsel %vm1248, %v1339, 0.0
      %v1390 = vadd.f32 %v1388, %v1389
      %v1391 = vsel %vm1248, %v1340, 0.0
      %v1392 = vadd.f32 %v1390, %v1391
      %v1393 = vsel %vm1248, %v1341, 0.0
      %v1394 = vadd.f32 %v1392, %v1393
      %v1395 = vsel %vm1248, %v1342, 0.0
      %v1396 = vadd.f32 %v1394, %v1395
      %v1397 = vsel %vm1248, %v1343, 0.0
      %v1398 = vadd.f32 %v1396, %v1397
      %v1399 = vsel %vm1248, %v1344, 0.0
      %v1400 = vadd.f32 %v1398, %v1399
      %v1401 = vsel %vm1248, %v1345, 0.0
      %v1402 = vadd.f32 %v1400, %v1401
      %v1403 = vsel %vm1248, %v1346, 0.0
      %v1404 = vadd.f32 %v1402, %v1403
      %v1405 = vsel %vm1248, %v1347, 0.0
      %v1406 = vadd.f32 %v1404, %v1405
      %v1407 = vsel %vm1248, %v1348, 0.0
      %v1408 = vadd.f32 %v1406, %v1407
      %v1409 = vsel %vm1248, %v1349, 0.0
      %v1410 = vadd.f32 %v1408, %v1409
      %v1411 = vsel %vm1248, %v1350, 0.0
      %v1412 = vadd.f32 %v1410, %v1411
      %v1413 = vsel %vm1248, %v1351, 0.0
      %v1414 = vadd.f32 %v1412, %v1413
      %v1415 = vrot.slane %v1414, 4
      %v1416 = vadd.f32 %v1414, %v1415
      %v1417 = vrot.slane %v1416, 2
      %v1418 = vadd.f32 %v1416, %v1417
      %v1419 = vrot.slane %v1418, 1
      %v1420 = vadd.f32 %v1418, %v1419
      %1421 = vst.msk [vmem:[%s214] sm:$0x1] %vm1318, %v1420
      %p1422 = scmp.lt.s32.totalorder %s16, 1
      %s1423 = scalar_select %p1422, %s16, 1
      %s1424 = smul.addr %s1423, 32
      %s1425 = smul.addr %s1424, 4
      %s1426 = scalar_lea.vmem %s2, %s1425
      %p1427 = scmp.lt.s32.totalorder %s16, 1
      %s1428 = scalar_select %p1427, %s16, 1
      %s1429 = scalar_lea.vmem %s3, %s1428
      %p1430 = scmp.lt.s32.totalorder %s16, 1
      %s1431 = scalar_select %p1430, %s16, 1
      %s1432 = scalar_lea.vmem %s4, %s1431
      // Predicated region
      $region29: #{inception_forward.10} parent=27 // pred_check
        %p1433 = pneg %p81
      $region30: #{inception_forward.10} parent=27 // pred_check_branch
        %1435 = sbr.rel (%p1433) target = $region32
      $region31: #{inception_forward.10} parent=27 // pred_region
        _
      $region32: #{inception_forward.10} parent=27 // pred_fallthru
        _
      // Predicated region
      $region33: #{inception_forward.10} parent=27 // pred_check
        %p1436 = pneg %p107
      $region34: #{inception_forward.10} parent=27 // pred_check_branch
        %1438 = sbr.rel (%p1436) target = $region36
      $region35: #{inception_forward.10} parent=27 // pred_region
        _
      $region36: #{inception_forward.10} parent=27 // pred_fallthru
        _
      // Predicated region
      $region37: #{inception_forward.10} parent=27 // pred_check
        %p1439 = pneg %p133
      $region38: #{inception_forward.10} parent=27 // pred_check_branch
        %1441 = sbr.rel (%p1439) target = $region40
      $region39: #{inception_forward.10} parent=27 // pred_region
        _
      $region40: #{inception_forward.10} parent=27 // pred_fallthru
        _
    $region28: #{inception_forward.10} parent=5 // pred_fallthru
      _
    %p1442 = scmp.le.s32.totalorder 2, %s11
    // Predicated region
    $region41: #{inception_forward.10} parent=5 // pred_check
      %p1443 = pneg %p1442
    $region42: #{inception_forward.10} parent=5 // pred_check_branch
      %1445 = sbr.rel (%p1443) target = $region44
    $region43: #{inception_forward.10} parent=5 // pred_region
      %s1446 = ssub.s32 %s11, 2
      // Predicated region
      $region45: #{inception_forward.10} parent=43 // pred_check
        %p1447 = pneg %p87
      $region46: #{inception_forward.10} parent=43 // pred_check_branch
        %1449 = sbr.rel (%p1447) target = $region48
      $region47: #{inception_forward.10} parent=43 // pred_region
        %p1450 = scmp.lt.s32.totalorder %s17, 1
        %s1451 = scalar_select %p1450, %s17, 1
        %s1452 = smul.addr %s1451, 32
        %s1453 = smul.addr %s1452, 4
        %s1454 = scalar_lea.vmem %s2, %s1453
      $region48: #{inception_forward.10} parent=43 // pred_fallthru
        _
      // Predicated region
      $region49: #{inception_forward.10} parent=43 // pred_check
        %p1455 = pneg %p113
      $region50: #{inception_forward.10} parent=43 // pred_check_branch
        %1457 = sbr.rel (%p1455) target = $region52
      $region51: #{inception_forward.10} parent=43 // pred_region
        %p1458 = scmp.lt.s32.totalorder %s17, 1
        %s1459 = scalar_select %p1458, %s17, 1
        %s1460 = scalar_lea.vmem %s3, %s1459
      $region52: #{inception_forward.10} parent=43 // pred_fallthru
        _
      // Predicated region
      $region53: #{inception_forward.10} parent=43 // pred_check
        %p1461 = pneg %p139
      $region54: #{inception_forward.10} parent=43 // pred_check_branch
        %1463 = sbr.rel (%p1461) target = $region56
      $region55: #{inception_forward.10} parent=43 // pred_region
        %p1464 = scmp.lt.s32.totalorder %s17, 1
        %s1465 = scalar_select %p1464, %s17, 1
        %s1466 = scalar_lea.vmem %s4, %s1465
      $region56: #{inception_forward.10} parent=43 // pred_fallthru
        _
    $region44: #{inception_forward.10} parent=5 // pred_fallthru
      _
  $region6: #{inception_forward.10} parent=0 // loop_footer
    %s15 = sadd.s32 1, %s11
  $region7: #{inception_forward.10} parent=0 // loop_footer_branch
    %10 = sbr.rel target = $region3
  $region8: #{inception_forward.10} parent=0 // loop_exit
    _

// kernel: inception_forward.7
$region0: #{inception_forward.7}
  #allocation0 [shape = 'u32[]', space=smem, size = 0x4, offset = 0x4, fixed_abs, tag = 'smem constant byte address 0x4 - core index']
  #allocation1 [shape = 'u32[144,128]{1,0:T(1,128)}', space=vmem, size = 0x12000, scoped, tag = 'internal scratch']
  %s0 = inlined_call_operand.vmem [shape: bf16[2,256,18], index: 0, kind: input, shape index: {}]
  %s1 = inlined_call_operand.vmem [shape: f32[1,1,18], index: 1, kind: input, shape index: {}]
  %s2 = inlined_call_operand.vmem [shape: f32[1,1,18], index: 2, kind: input, shape index: {}]
  %s3 = inlined_call_operand.vmem [shape: f32[2,256,8], index: 3, kind: output, shape index: {0}]
  %s4 = inlined_call_operand.vmem [shape: bf16[2,256,6], index: 4, kind: output, shape index: {1}]
  %s5 = inlined_call_operand.vmem [shape: bf16[2,256,4], index: 5, kind: output, shape index: {2}]
  %6 = xla_tuple %s3, %s4, %s5
  %s7 = sld [smem:[#allocation0]]
  $region61: #{inception_forward.7} parent=0
    _
  %s9 = ssub.s32 1, %s7
  %s10 = scalar_select 0, %s9, %s7
  loop: start=0, step=1, limit=4
  $region2: #{inception_forward.7} parent=0 // loop_pre_header
    _
  $region3: #{inception_forward.7} parent=0 // loop_header
    %s12 = sphi 0, %s16
    %p13 = scmp.ge.s32.totalorder %s12, 4
    %s22 = sphi 0, %s24
    %s25 = sphi 0, %s22
    %s26 = sphi 0, %s25
    %s42 = sphi 0, %s26
    %s46 = sphi 0, %s46
    %s48 = sphi 0, %s46
    %s49 = sphi 0, %s48
    %s63 = sphi 0, %s49
    %s67 = sphi 0, %s67
    %s69 = sphi 0, %s67
    %s70 = sphi 0, %s69
    %s84 = sphi 0, %s70
    %s90 = sphi 0, %s92
    %s93 = sphi 0, %s90
    %s94 = sphi 0, %s93
    %s110 = sphi 0, %s94
    %s116 = sphi 0, %s118
    %s119 = sphi 0, %s116
    %s120 = sphi 0, %s119
    %s136 = sphi 0, %s120
    %s142 = sphi 0, %s144
    %s145 = sphi 0, %s142
    %s146 = sphi 0, %s145
    %s162 = sphi 0, %s146
  $region4: #{inception_forward.7} parent=0 // loop_header_branch
    %15 = sbr.rel (%p13) target = $region8
  $region5: #{inception_forward.7} parent=0 // loop_body
    %s17 = ssub.s32 %s12, 1
    %s18 = ssub.s32 %s12, 2
    %s19 = sadd.s32 %s12, 1
    %s20 = ssub.s32 %s12, %s19
    %p21 = scmp.eq.s32.totalorder %s20, 0
    %s23 = sadd.s32 %s22, 1
    %s24 = scalar_select %p21, %s22, %s23
    %p27 = pneg %p21
    %p28 = scmp.eq.s32.totalorder %s12, 1
    %p29 = por %p27, %p28
    %p30 = scmp.ne.s32.totalorder %s22, %s25
    %p31 = scmp.eq.s32.totalorder %s12, 0
    %p32 = por %p30, %p31
    %p33 = scmp.ne.s32.totalorder %s22, %s25
    %p34 = scmp.eq.s32.totalorder %s17, 1
    %p35 = por %p33, %p34
    %p36 = scmp.ne.s32.totalorder %s25, %s26
    %p37 = scmp.eq.s32.totalorder %s17, 0
    %p38 = por %p36, %p37
    %p39 = scmp.ne.s32.totalorder %s25, %s26
    %p40 = scmp.eq.s32.totalorder %s18, 1
    %p41 = por %p39, %p40
    %p43 = scmp.ne.s32.totalorder %s26, %s42
    %p44 = scmp.eq.s32.totalorder %s18, 0
    %p45 = por %p43, %p44
    %s47 = sadd.s32 %s46, 1
    %p50 = scmp.eq.s32.totalorder %s12, 1
    %p51 = scmp.ne.s32.totalorder %s46, %s48
    %p52 = scmp.eq.s32.totalorder %s12, 0
    %p53 = por %p51, %p52
    %p54 = scmp.ne.s32.totalorder %s46, %s48
    %p55 = scmp.eq.s32.totalorder %s17, 1
    %p56 = por %p54, %p55
    %p57 = scmp.ne.s32.totalorder %s48, %s49
    %p58 = scmp.eq.s32.totalorder %s17, 0
    %p59 = por %p57, %p58
    %p60 = scmp.ne.s32.totalorder %s48, %s49
    %p61 = scmp.eq.s32.totalorder %s18, 1
    %p62 = por %p60, %p61
    %p64 = scmp.ne.s32.totalorder %s49, %s63
    %p65 = scmp.eq.s32.totalorder %s18, 0
    %p66 = por %p64, %p65
    %s68 = sadd.s32 %s67, 1
    %p71 = scmp.eq.s32.totalorder %s12, 1
    %p72 = scmp.ne.s32.totalorder %s67, %s69
    %p73 = scmp.eq.s32.totalorder %s12, 0
    %p74 = por %p72, %p73
    %p75 = scmp.ne.s32.totalorder %s67, %s69
    %p76 = scmp.eq.s32.totalorder %s17, 1
    %p77 = por %p75, %p76
    %p78 = scmp.ne.s32.totalorder %s69, %s70
    %p79 = scmp.eq.s32.totalorder %s17, 0
    %p80 = por %p78, %p79
    %p81 = scmp.ne.s32.totalorder %s69, %s70
    %p82 = scmp.eq.s32.totalorder %s18, 1
    %p83 = por %p81, %p82
    %p85 = scmp.ne.s32.totalorder %s70, %s84
    %p86 = scmp.eq.s32.totalorder %s18, 0
    %p87 = por %p85, %p86
    %s88 = ssub.s32 %s12, %s19
    %p89 = scmp.eq.s32.totalorder %s88, 0
    %s91 = sadd.s32 %s90, 1
    %s92 = scalar_select %p89, %s90, %s91
    %p95 = pneg %p89
    %p96 = scmp.eq.s32.totalorder %s12, 1
    %p97 = por %p95, %p96
    %p98 = scmp.ne.s32.totalorder %s90, %s93
    %p99 = scmp.eq.s32.totalorder %s12, 0
    %p100 = por %p98, %p99
    %p101 = scmp.ne.s32.totalorder %s90, %s93
    %p102 = scmp.eq.s32.totalorder %s17, 1
    %p103 = por %p101, %p102
    %p104 = scmp.ne.s32.totalorder %s93, %s94
    %p105 = scmp.eq.s32.totalorder %s17, 0
    %p106 = por %p104, %p105
    %p107 = scmp.ne.s32.totalorder %s93, %s94
    %p108 = scmp.eq.s32.totalorder %s18, 1
    %p109 = por %p107, %p108
    %p111 = scmp.ne.s32.totalorder %s94, %s110
    %p112 = scmp.eq.s32.totalorder %s18, 0
    %p113 = por %p111, %p112
    %s114 = ssub.s32 %s12, %s19
    %p115 = scmp.eq.s32.totalorder %s114, 0
    %s117 = sadd.s32 %s116, 1
    %s118 = scalar_select %p115, %s116, %s117
    %p121 = pneg %p115
    %p122 = scmp.eq.s32.totalorder %s12, 1
    %p123 = por %p121, %p122
    %p124 = scmp.ne.s32.totalorder %s116, %s119
    %p125 = scmp.eq.s32.totalorder %s12, 0
    %p126 = por %p124, %p125
    %p127 = scmp.ne.s32.totalorder %s116, %s119
    %p128 = scmp.eq.s32.totalorder %s17, 1
    %p129 = por %p127, %p128
    %p130 = scmp.ne.s32.totalorder %s119, %s120
    %p131 = scmp.eq.s32.totalorder %s17, 0
    %p132 = por %p130, %p131
    %p133 = scmp.ne.s32.totalorder %s119, %s120
    %p134 = scmp.eq.s32.totalorder %s18, 1
    %p135 = por %p133, %p134
    %p137 = scmp.ne.s32.totalorder %s120, %s136
    %p138 = scmp.eq.s32.totalorder %s18, 0
    %p139 = por %p137, %p138
    %s140 = ssub.s32 %s12, %s19
    %p141 = scmp.eq.s32.totalorder %s140, 0
    %s143 = sadd.s32 %s142, 1
    %s144 = scalar_select %p141, %s142, %s143
    %p147 = pneg %p141
    %p148 = scmp.eq.s32.totalorder %s12, 1
    %p149 = por %p147, %p148
    %p150 = scmp.ne.s32.totalorder %s142, %s145
    %p151 = scmp.eq.s32.totalorder %s12, 0
    %p152 = por %p150, %p151
    %p153 = scmp.ne.s32.totalorder %s142, %s145
    %p154 = scmp.eq.s32.totalorder %s17, 1
    %p155 = por %p153, %p154
    %p156 = scmp.ne.s32.totalorder %s145, %s146
    %p157 = scmp.eq.s32.totalorder %s17, 0
    %p158 = por %p156, %p157
    %p159 = scmp.ne.s32.totalorder %s145, %s146
    %p160 = scmp.eq.s32.totalorder %s18, 1
    %p161 = por %p159, %p160
    %p163 = scmp.ne.s32.totalorder %s146, %s162
    %p164 = scmp.eq.s32.totalorder %s18, 0
    %p165 = por %p163, %p164
    %p166 = scmp.le.s32.totalorder 1, %s12
    %p167 = scmp.lt.s32.totalorder %s12, 3
    %p168 = pnand %p166, %p167
    %p169 = pneg %p168
    // Predicated region
    $region9: #{inception_forward.7} parent=5 // pred_check
      _
    $region10: #{inception_forward.7} parent=5 // pred_check_branch
      %171 = sbr.rel (%p168) target = $region12
    $region11: #{inception_forward.7} parent=5 // pred_region
      %s172 = ssub.s32 %s12, 1
      // Predicated region
      $region13: #{inception_forward.7} parent=11 // pred_check
        %p173 = pneg %p59
      $region14: #{inception_forward.7} parent=11 // pred_check_branch
        %175 = sbr.rel (%p173) target = $region16
      $region15: #{inception_forward.7} parent=11 // pred_region
        _
      $region16: #{inception_forward.7} parent=11 // pred_fallthru
        _
      // Predicated region
      $region17: #{inception_forward.7} parent=11 // pred_check
        %p176 = pneg %p80
      $region18: #{inception_forward.7} parent=11 // pred_check_branch
        %178 = sbr.rel (%p176) target = $region20
      $region19: #{inception_forward.7} parent=11 // pred_region
        _
      $region20: #{inception_forward.7} parent=11 // pred_fallthru
        _
    $region12: #{inception_forward.7} parent=5 // pred_fallthru
      _
    %p179 = scmp.lt.s32.totalorder %s12, 2
    // Predicated region
    $region21: #{inception_forward.7} parent=5 // pred_check
      %p180 = pneg %p179
    $region22: #{inception_forward.7} parent=5 // pred_check_branch
      %182 = sbr.rel (%p180) target = $region24
    $region23: #{inception_forward.7} parent=5 // pred_region
      // Predicated region
      $region25: #{inception_forward.7} parent=23 // pred_check
        %p183 = pneg %p32
      $region26: #{inception_forward.7} parent=23 // pred_check_branch
        %185 = sbr.rel (%p183) target = $region28
      $region27: #{inception_forward.7} parent=23 // pred_region
        %p186 = scmp.lt.s32.totalorder %s12, 1
        %s187 = scalar_select %p186, %s12, 1
        %s188 = smul.addr %s187, 32
        %s189 = smul.addr %s188, 4
        %s190 = scalar_lea.vmem %s0, %s189
      $region28: #{inception_forward.7} parent=23 // pred_fallthru
        _
    $region24: #{inception_forward.7} parent=5 // pred_fallthru
      _
    %p191 = scmp.le.s32.totalorder 1, %s12
    %p192 = scmp.lt.s32.totalorder %s12, 3
    %p193 = pnand %p191, %p192
    %p194 = pneg %p193
    // Predicated region
    $region29: #{inception_forward.7} parent=5 // pred_check
      _
    $region30: #{inception_forward.7} parent=5 // pred_check_branch
      %196 = sbr.rel (%p193) target = $region32
    $region31: #{inception_forward.7} parent=5 // pred_region
      %s197 = ssub.s32 %s12, 1
      %p198 = scmp.lt.s32.totalorder %s17, 1
      %s199 = scalar_select %p198, %s17, 1
      %s200 = smul.addr %s199, 32
      %s201 = smul.addr %s200, 4
      %s202 = scalar_lea.vmem %s0, %s201
      %p203 = pneg %p38
      %p204 = pneg %p35
      %p205 = pneg %p59
      %p206 = pneg %p56
      %p207 = pneg %p80
      %p208 = pneg %p77
      %p209 = pneg %p106
      %p210 = pneg %p103
      %p211 = scmp.lt.s32.totalorder %s17, 1
      %s212 = scalar_select %p211, %s17, 1
      %s213 = smul.addr %s212, 32
      %s214 = smul.addr %s213, 8
      %s215 = scalar_lea.vmem %s3, %s214
      %p216 = pneg %p132
      %p217 = pneg %p129
      %p218 = scmp.lt.s32.totalorder %s17, 1
      %s219 = scalar_select %p218, %s17, 1
      %s220 = smul.addr %s219, 32
      %s221 = smul.addr %s220, 4
      %s222 = scalar_lea.vmem %s4, %s221
      %p223 = pneg %p158
      %p224 = pneg %p155
      %p225 = scmp.lt.s32.totalorder %s17, 1
      %s226 = scalar_select %p225, %s17, 1
      %s227 = smul.addr %s226, 32
      %s228 = smul.addr %s227, 4
      %s229 = scalar_lea.vmem %s5, %s228
      %p230 = scmp.lt.s32.totalorder %s17, 1
      %s231 = scalar_select %p230, %s17, 1
      %s232 = smul.addr %s231, 32
      %s233 = smul.addr %s232, 4
      %s234 = scalar_lea.vmem %s0, %s233
      %p235 = scmp.lt.s32.totalorder %s17, 1
      %s236 = scalar_select %p235, %s17, 1
      %s237 = smul.addr %s236, 32
      %s238 = smul.addr %s237, 8
      %s239 = scalar_lea.vmem %s3, %s238
      %p240 = scmp.lt.s32.totalorder %s17, 1
      %s241 = scalar_select %p240, %s17, 1
      %s242 = smul.addr %s241, 32
      %s243 = smul.addr %s242, 4
      %s244 = scalar_lea.vmem %s4, %s243
      %p245 = scmp.lt.s32.totalorder %s17, 1
      %s246 = scalar_select %p245, %s17, 1
      %s247 = smul.addr %s246, 32
      %s248 = smul.addr %s247, 4
      %s249 = scalar_lea.vmem %s5, %s248
      %v250 = vld [vmem:[%s234] sm:$0xf]
      %v251 = vld [vmem:[%s234 + $0x4] sm:$0xf]
      %v252 = vld [vmem:[%s234 + $0x8] sm:$0xf]
      %v253 = vld [vmem:[%s234 + $0xc] sm:$0xf]
      %v254 = vld [vmem:[%s234 + $0x10] sm:$0xf]
      %v255 = vld [vmem:[%s234 + $0x14] sm:$0xf]
      %v256 = vld [vmem:[%s234 + $0x18] sm:$0xf]
      %v257 = vld [vmem:[%s234 + $0x1c] sm:$0xf]
      %v258 = vld [vmem:[%s234 + $0x20] sm:$0xf]
      %v259 = vld [vmem:[%s234 + $0x24] sm:$0xf]
      %v260 = vld [vmem:[%s234 + $0x28] sm:$0xf]
      %v261 = vld [vmem:[%s234 + $0x2c] sm:$0xf]
      %v262 = vld [vmem:[%s234 + $0x30] sm:$0xf]
      %v263 = vld [vmem:[%s234 + $0x34] sm:$0xf]
      %v264 = vld [vmem:[%s234 + $0x38] sm:$0xf]
      %v265 = vld [vmem:[%s234 + $0x3c] sm:$0xf]
      %v266 = vld [vmem:[%s234 + $0x40] sm:$0xf]
      %v267 = vld [vmem:[%s234 + $0x44] sm:$0xf]
      %v268 = vld [vmem:[%s234 + $0x48] sm:$0xf]
      %v269 = vld [vmem:[%s234 + $0x4c] sm:$0xf]
      %v270 = vld [vmem:[%s234 + $0x50] sm:$0xf]
      %v271 = vld [vmem:[%s234 + $0x54] sm:$0xf]
      %v272 = vld [vmem:[%s234 + $0x58] sm:$0xf]
      %v273 = vld [vmem:[%s234 + $0x5c] sm:$0xf]
      %v274 = vld [vmem:[%s234 + $0x60] sm:$0xf]
      %v275 = vld [vmem:[%s234 + $0x64] sm:$0xf]
      %v276 = vld [vmem:[%s234 + $0x68] sm:$0xf]
      %v277 = vld [vmem:[%s234 + $0x6c] sm:$0xf]
      %v278 = vld [vmem:[%s234 + $0x70] sm:$0xf]
      %v279 = vld [vmem:[%s234 + $0x74] sm:$0xf]
      %v280 = vld [vmem:[%s234 + $0x78] sm:$0xf]
      %v281 = vld [vmem:[%s234 + $0x7c] sm:$0xf]
      %v282 = vunpack.c.l.bf16 %v250
      %v283 = vunpack.c.l.bf16 %v251
      %v284 = vunpack.c.l.bf16 %v252
      %v285 = vunpack.c.l.bf16 %v253
      %v286 = vunpack.c.l.bf16 %v254
      %v287 = vunpack.c.l.bf16 %v255
      %v288 = vunpack.c.l.bf16 %v256
      %v289 = vunpack.c.l.bf16 %v257
      %v290 = vunpack.c.l.bf16 %v258
      %v291 = vunpack.c.l.bf16 %v259
      %v292 = vunpack.c.l.bf16 %v260
      %v293 = vunpack.c.l.bf16 %v261
      %v294 = vunpack.c.l.bf16 %v262
      %v295 = vunpack.c.l.bf16 %v263
      %v296 = vunpack.c.l.bf16 %v264
      %v297 = vunpack.c.l.bf16 %v265
      %v298 = vunpack.c.l.bf16 %v266
      %v299 = vunpack.c.l.bf16 %v267
      %v300 = vunpack.c.l.bf16 %v268
      %v301 = vunpack.c.l.bf16 %v269
      %v302 = vunpack.c.l.bf16 %v270
      %v303 = vunpack.c.l.bf16 %v271
      %v304 = vunpack.c.l.bf16 %v272
      %v305 = vunpack.c.l.bf16 %v273
      %v306 = vunpack.c.l.bf16 %v274
      %v307 = vunpack.c.l.bf16 %v275
      %v308 = vunpack.c.l.bf16 %v276
      %v309 = vunpack.c.l.bf16 %v277
      %v310 = vunpack.c.l.bf16 %v278
      %v311 = vunpack.c.l.bf16 %v279
      %v312 = vunpack.c.l.bf16 %v280
      %v313 = vunpack.c.l.bf16 %v281
      %v314 = vld [vmem:[%s1] sm:$0x1]
      %v316 = vlaneseq
      %v317 = vshrl.u32 %v316, 7
      %v318 = vsub.s32 0, %v317
      %v319 = vrot.slane %v314, %v318
      %v321 = vmul.f32 %v282, %v319
      %v322 = vmul.f32 %v283, %v319
      %v323 = vmul.f32 %v284, %v319
      %v324 = vmul.f32 %v285, %v319
      %v325 = vmul.f32 %v286, %v319
      %v326 = vmul.f32 %v287, %v319
      %v327 = vmul.f32 %v288, %v319
      %v328 = vmul.f32 %v289, %v319
      %v329 = vmul.f32 %v290, %v319
      %v330 = vmul.f32 %v291, %v319
      %v331 = vmul.f32 %v292, %v319
      %v332 = vmul.f32 %v293, %v319
      %v333 = vmul.f32 %v294, %v319
      %v334 = vmul.f32 %v295, %v319
      %v335 = vmul.f32 %v296, %v319
      %v336 = vmul.f32 %v297, %v319
      %v337 = vmul.f32 %v298, %v319
      %v338 = vmul.f32 %v299, %v319
      %v339 = vmul.f32 %v300, %v319
      %v340 = vmul.f32 %v301, %v319
      %v341 = vmul.f32 %v302, %v319
      %v342 = vmul.f32 %v303, %v319
      %v343 = vmul.f32 %v304, %v319
      %v344 = vmul.f32 %v305, %v319
      %v345 = vmul.f32 %v306, %v319
      %v346 = vmul.f32 %v307, %v319
      %v347 = vmul.f32 %v308, %v319
      %v348 = vmul.f32 %v309, %v319
      %v349 = vmul.f32 %v310, %v319
      %v350 = vmul.f32 %v311, %v319
      %v351 = vmul.f32 %v312, %v319
      %v352 = vmul.f32 %v313, %v319
      %v353 = vld [vmem:[%s2] sm:$0x1]
      %v355 = vlaneseq
      %v356 = vshrl.u32 %v355, 7
      %v357 = vsub.s32 0, %v356
      %v358 = vrot.slane %v353, %v357
      %v360 = vadd.f32 %v321, %v358
      %v361 = vadd.f32 %v322, %v358
      %v362 = vadd.f32 %v323, %v358
      %v363 = vadd.f32 %v324, %v358
      %v364 = vadd.f32 %v325, %v358
      %v365 = vadd.f32 %v326, %v358
      %v366 = vadd.f32 %v327, %v358
      %v367 = vadd.f32 %v328, %v358
      %v368 = vadd.f32 %v329, %v358
      %v369 = vadd.f32 %v330, %v358
      %v370 = vadd.f32 %v331, %v358
      %v371 = vadd.f32 %v332, %v358
      %v372 = vadd.f32 %v333, %v358
      %v373 = vadd.f32 %v334, %v358
      %v374 = vadd.f32 %v335, %v358
      %v375 = vadd.f32 %v336, %v358
      %v376 = vadd.f32 %v337, %v358
      %v377 = vadd.f32 %v338, %v358
      %v378 = vadd.f32 %v339, %v358
      %v379 = vadd.f32 %v340, %v358
      %v380 = vadd.f32 %v341, %v358
      %v381 = vadd.f32 %v342, %v358
      %v382 = vadd.f32 %v343, %v358
      %v383 = vadd.f32 %v344, %v358
      %v384 = vadd.f32 %v345, %v358
      %v385 = vadd.f32 %v346, %v358
      %v386 = vadd.f32 %v347, %v358
      %v387 = vadd.f32 %v348, %v358
      %v388 = vadd.f32 %v349, %v358
      %v389 = vadd.f32 %v350, %v358
      %v390 = vadd.f32 %v351, %v358
      %v391 = vadd.f32 %v352, %v358
      %v392 = vmax.f32 %v360, 0.0
      %v393 = vmax.f32 %v361, 0.0
      %v394 = vmax.f32 %v362, 0.0
      %v395 = vmax.f32 %v363, 0.0
      %v396 = vmax.f32 %v364, 0.0
      %v397 = vmax.f32 %v365, 0.0
      %v398 = vmax.f32 %v366, 0.0
      %v399 = vmax.f32 %v367, 0.0
      %v400 = vmax.f32 %v368, 0.0
      %v401 = vmax.f32 %v369, 0.0
      %v402 = vmax.f32 %v370, 0.0
      %v403 = vmax.f32 %v371, 0.0
      %v404 = vmax.f32 %v372, 0.0
      %v405 = vmax.f32 %v373, 0.0
      %v406 = vmax.f32 %v374, 0.0
      %v407 = vmax.f32 %v375, 0.0
      %v408 = vmax.f32 %v376, 0.0
      %v409 = vmax.f32 %v377, 0.0
      %v410 = vmax.f32 %v378, 0.0
      %v411 = vmax.f32 %v379, 0.0
      %v412 = vmax.f32 %v380, 0.0
      %v413 = vmax.f32 %v381, 0.0
      %v414 = vmax.f32 %v382, 0.0
      %v415 = vmax.f32 %v383, 0.0
      %v416 = vmax.f32 %v384, 0.0
      %v417 = vmax.f32 %v385, 0.0
      %v418 = vmax.f32 %v386, 0.0
      %v419 = vmax.f32 %v387, 0.0
      %v420 = vmax.f32 %v388, 0.0
      %v421 = vmax.f32 %v389, 0.0
      %v422 = vmax.f32 %v390, 0.0
      %v423 = vmax.f32 %v391, 0.0
      %vm424 = vcmask 64512
      %425 = vst.msk [vmem:[%s239] sm:$0xff] %vm424, %v392
      %426 = vst.msk [vmem:[%s239 + $0x8] sm:$0xff] %vm424, %v393
      %427 = vst.msk [vmem:[%s239 + $0x10] sm:$0xff] %vm424, %v394
      %428 = vst.msk [vmem:[%s239 + $0x18] sm:$0xff] %vm424, %v395
      %429 = vst.msk [vmem:[%s239 + $0x20] sm:$0xff] %vm424, %v396
      %430 = vst.msk [vmem:[%s239 + $0x28] sm:$0xff] %vm424, %v397
      %431 = vst.msk [vmem:[%s239 + $0x30] sm:$0xff] %vm424, %v398
      %432 = vst.msk [vmem:[%s239 + $0x38] sm:$0xff] %vm424, %v399
      %433 = vst.msk [vmem:[%s239 + $0x40] sm:$0xff] %vm424, %v400
      %434 = vst.msk [vmem:[%s239 + $0x48] sm:$0xff] %vm424, %v401
      %435 = vst.msk [vmem:[%s239 + $0x50] sm:$0xff] %vm424, %v402
      %436 = vst.msk [vmem:[%s239 + $0x58] sm:$0xff] %vm424, %v403
      %437 = vst.msk [vmem:[%s239 + $0x60] sm:$0xff] %vm424, %v404
      %438 = vst.msk [vmem:[%s239 + $0x68] sm:$0xff] %vm424, %v405
      %439 = vst.msk [vmem:[%s239 + $0x70] sm:$0xff] %vm424, %v406
      %440 = vst.msk [vmem:[%s239 + $0x78] sm:$0xff] %vm424, %v407
      %441 = vst.msk [vmem:[%s239 + $0x80] sm:$0xff] %vm424, %v408
      %442 = vst.msk [vmem:[%s239 + $0x88] sm:$0xff] %vm424, %v409
      %443 = vst.msk [vmem:[%s239 + $0x90] sm:$0xff] %vm424, %v410
      %444 = vst.msk [vmem:[%s239 + $0x98] sm:$0xff] %vm424, %v411
      %445 = vst.msk [vmem:[%s239 + $0xa0] sm:$0xff] %vm424, %v412
      %446 = vst.msk [vmem:[%s239 + $0xa8] sm:$0xff] %vm424, %v413
      %447 = vst.msk [vmem:[%s239 + $0xb0] sm:$0xff] %vm424, %v414
      %448 = vst.msk [vmem:[%s239 + $0xb8] sm:$0xff] %vm424, %v415
      %449 = vst.msk [vmem:[%s239 + $0xc0] sm:$0xff] %vm424, %v416
      %450 = vst.msk [vmem:[%s239 + $0xc8] sm:$0xff] %vm424, %v417
      %451 = vst.msk [vmem:[%s239 + $0xd0] sm:$0xff] %vm424, %v418
      %452 = vst.msk [vmem:[%s239 + $0xd8] sm:$0xff] %vm424, %v419
      %453 = vst.msk [vmem:[%s239 + $0xe0] sm:$0xff] %vm424, %v420
      %454 = vst.msk [vmem:[%s239 + $0xe8] sm:$0xff] %vm424, %v421
      %455 = vst.msk [vmem:[%s239 + $0xf0] sm:$0xff] %vm424, %v422
      %456 = vst.msk [vmem:[%s239 + $0xf8] sm:$0xff] %vm424, %v423
      %v457 = vpack.c.bf16 %v393, %v392
      %v458 = vpack.c.bf16 %v395, %v394
      %v459 = vpack.c.bf16 %v397, %v396
      %v460 = vpack.c.bf16 %v399, %v398
      %v461 = vpack.c.bf16 %v401, %v400
      %v462 = vpack.c.bf16 %v403, %v402
      %v463 = vpack.c.bf16 %v405, %v404
      %v464 = vpack.c.bf16 %v407, %v406
      %v465 = vpack.c.bf16 %v409, %v408
      %v466 = vpack.c.bf16 %v411, %v410
      %v467 = vpack.c.bf16 %v413, %v412
      %v468 = vpack.c.bf16 %v415, %v414
      %v469 = vpack.c.bf16 %v417, %v416
      %v470 = vpack.c.bf16 %v419, %v418
      %v471 = vpack.c.bf16 %v421, %v420
      %v472 = vpack.c.bf16 %v423, %v422
      %v489 = vunpack.c.l.b16 %v457
      %v490 = vunpack.c.h.b16 %v457
      %v491 = vunpack.c.l.b16 %v458
      %v492 = vunpack.c.h.b16 %v458
      %v493 = vunpack.c.l.b16 %v459
      %v494 = vunpack.c.h.b16 %v459
      %v495 = vunpack.c.l.b16 %v460
      %v496 = vunpack.c.h.b16 %v460
      %v497 = vunpack.c.l.b16 %v461
      %v498 = vunpack.c.h.b16 %v461
      %v499 = vunpack.c.l.b16 %v462
      %v500 = vunpack.c.h.b16 %v462
      %v501 = vunpack.c.l.b16 %v463
      %v502 = vunpack.c.h.b16 %v463
      %v503 = vunpack.c.l.b16 %v464
      %v504 = vunpack.c.h.b16 %v464
      %v505 = vunpack.c.l.b16 %v465
      %v506 = vunpack.c.h.b16 %v465
      %v507 = vunpack.c.l.b16 %v466
      %v508 = vunpack.c.h.b16 %v466
      %v509 = vunpack.c.l.b16 %v467
      %v510 = vunpack.c.h.b16 %v467
      %v511 = vunpack.c.l.b16 %v468
      %v512 = vunpack.c.h.b16 %v468
      %v513 = vunpack.c.l.b16 %v469
      %v514 = vunpack.c.h.b16 %v469
      %v515 = vunpack.c.l.b16 %v470
      %v516 = vunpack.c.h.b16 %v470
      %v517 = vunpack.c.l.b16 %v471
      %v518 = vunpack.c.h.b16 %v471
      %v519 = vunpack.c.l.b16 %v472
      %v520 = vunpack.c.h.b16 %v472
      %v521 = vpack.c.b16 %v489, %v489
      %v522 = vpack.c.b16 %v490, %v490
      %v523 = vpack.c.b16 %v491, %v491
      %v524 = vpack.c.b16 %v492, %v492
      %v525 = vpack.c.b16 %v493, %v493
      %v526 = vpack.c.b16 %v494, %v494
      %v527 = vpack.c.b16 %v495, %v495
      %v528 = vpack.c.b16 %v496, %v496
      %v529 = vpack.c.b16 %v497, %v497
      %v530 = vpack.c.b16 %v498, %v498
      %v531 = vpack.c.b16 %v499, %v499
      %v532 = vpack.c.b16 %v500, %v500
      %v533 = vpack.c.b16 %v501, %v501
      %v534 = vpack.c.b16 %v502, %v502
      %v535 = vpack.c.b16 %v503, %v503
      %v536 = vpack.c.b16 %v504, %v504
      %v537 = vpack.c.b16 %v505, %v505
      %v538 = vpack.c.b16 %v506, %v506
      %v539 = vpack.c.b16 %v507, %v507
      %v540 = vpack.c.b16 %v508, %v508
      %v541 = vpack.c.b16 %v509, %v509
      %v542 = vpack.c.b16 %v510, %v510
      %v543 = vpack.c.b16 %v511, %v511
      %v544 = vpack.c.b16 %v512, %v512
      %v545 = vpack.c.b16 %v513, %v513
      %v546 = vpack.c.b16 %v514, %v514
      %v547 = vpack.c.b16 %v515, %v515
      %v548 = vpack.c.b16 %v516, %v516
      %v549 = vpack.c.b16 %v517, %v517
      %v550 = vpack.c.b16 %v518, %v518
      %v551 = vpack.c.b16 %v519, %v519
      %v552 = vpack.c.b16 %v520, %v520
      %553 = vrot.lane.b32.xlu0 %v521, 120
      %v554 = vpop.permute.xlu0 %553
      %555 = vrot.lane.b32.xlu0 %v522, 120
      %v556 = vpop.permute.xlu0 %555
      %557 = vrot.lane.b32.xlu0 %v523, 120
      %v558 = vpop.permute.xlu0 %557
      %559 = vrot.lane.b32.xlu0 %v524, 120
      %v560 = vpop.permute.xlu0 %559
      %561 = vrot.lane.b32.xlu0 %v525, 120
      %v562 = vpop.permute.xlu0 %561
      %563 = vrot.lane.b32.xlu0 %v526, 120
      %v564 = vpop.permute.xlu0 %563
      %565 = vrot.lane.b32.xlu0 %v527, 120
      %v566 = vpop.permute.xlu0 %565
      %567 = vrot.lane.b32.xlu0 %v528, 120
      %v568 = vpop.permute.xlu0 %567
      %569 = vrot.lane.b32.xlu0 %v529, 120
      %v570 = vpop.permute.xlu0 %569
      %571 = vrot.lane.b32.xlu0 %v530, 120
      %v572 = vpop.permute.xlu0 %571
      %573 = vrot.lane.b32.xlu0 %v531, 120
      %v574 = vpop.permute.xlu0 %573
      %575 = vrot.lane.b32.xlu0 %v532, 120
      %v576 = vpop.permute.xlu0 %575
      %577 = vrot.lane.b32.xlu0 %v533, 120
      %v578 = vpop.permute.xlu0 %577
      %579 = vrot.lane.b32.xlu0 %v534, 120
      %v580 = vpop.permute.xlu0 %579
      %581 = vrot.lane.b32.xlu0 %v535, 120
      %v582 = vpop.permute.xlu0 %581
      %583 = vrot.lane.b32.xlu0 %v536, 120
      %v584 = vpop.permute.xlu0 %583
      %585 = vrot.lane.b32.xlu0 %v537, 120
      %v586 = vpop.permute.xlu0 %585
      %587 = vrot.lane.b32.xlu0 %v538, 120
      %v588 = vpop.permute.xlu0 %587
      %589 = vrot.lane.b32.xlu0 %v539, 120
      %v590 = vpop.permute.xlu0 %589
      %591 = vrot.lane.b32.xlu0 %v540, 120
      %v592 = vpop.permute.xlu0 %591
      %593 = vrot.lane.b32.xlu0 %v541, 120
      %v594 = vpop.permute.xlu0 %593
      %595 = vrot.lane.b32.xlu0 %v542, 120
      %v596 = vpop.permute.xlu0 %595
      %597 = vrot.lane.b32.xlu0 %v543, 120
      %v598 = vpop.permute.xlu0 %597
      %599 = vrot.lane.b32.xlu0 %v544, 120
      %v600 = vpop.permute.xlu0 %599
      %601 = vrot.lane.b32.xlu0 %v545, 120
      %v602 = vpop.permute.xlu0 %601
      %603 = vrot.lane.b32.xlu0 %v546, 120
      %v604 = vpop.permute.xlu0 %603
      %605 = vrot.lane.b32.xlu0 %v547, 120
      %v606 = vpop.permute.xlu0 %605
      %607 = vrot.lane.b32.xlu0 %v548, 120
      %v608 = vpop.permute.xlu0 %607
      %609 = vrot.lane.b32.xlu0 %v549, 120
      %v610 = vpop.permute.xlu0 %609
      %611 = vrot.lane.b32.xlu0 %v550, 120
      %v612 = vpop.permute.xlu0 %611
      %613 = vrot.lane.b32.xlu0 %v551, 120
      %v614 = vpop.permute.xlu0 %613
      %615 = vrot.lane.b32.xlu0 %v552, 120
      %v616 = vpop.permute.xlu0 %615
      %vm649 = vcmask 44032
      %650 = vst.msk [vmem:[%s244] sm:$0xf] %vm649, %v554
      %651 = vst.msk [vmem:[%s244 + $0x4] sm:$0xf] %vm649, %v556
      %652 = vst.msk [vmem:[%s244 + $0x8] sm:$0xf] %vm649, %v558
      %653 = vst.msk [vmem:[%s244 + $0xc] sm:$0xf] %vm649, %v560
      %654 = vst.msk [vmem:[%s244 + $0x10] sm:$0xf] %vm649, %v562
      %655 = vst.msk [vmem:[%s244 + $0x14] sm:$0xf] %vm649, %v564
      %656 = vst.msk [vmem:[%s244 + $0x18] sm:$0xf] %vm649, %v566
      %657 = vst.msk [vmem:[%s244 + $0x1c] sm:$0xf] %vm649, %v568
      %658 = vst.msk [vmem:[%s244 + $0x20] sm:$0xf] %vm649, %v570
      %659 = vst.msk [vmem:[%s244 + $0x24] sm:$0xf] %vm649, %v572
      %660 = vst.msk [vmem:[%s244 + $0x28] sm:$0xf] %vm649, %v574
      %661 = vst.msk [vmem:[%s244 + $0x2c] sm:$0xf] %vm649, %v576
      %662 = vst.msk [vmem:[%s244 + $0x30] sm:$0xf] %vm649, %v578
      %663 = vst.msk [vmem:[%s244 + $0x34] sm:$0xf] %vm649, %v580
      %664 = vst.msk [vmem:[%s244 + $0x38] sm:$0xf] %vm649, %v582
      %665 = vst.msk [vmem:[%s244 + $0x3c] sm:$0xf] %vm649, %v584
      %666 = vst.msk [vmem:[%s244 + $0x40] sm:$0xf] %vm649, %v586
      %667 = vst.msk [vmem:[%s244 + $0x44] sm:$0xf] %vm649, %v588
      %668 = vst.msk [vmem:[%s244 + $0x48] sm:$0xf] %vm649, %v590
      %669 = vst.msk [vmem:[%s244 + $0x4c] sm:$0xf] %vm649, %v592
      %670 = vst.msk [vmem:[%s244 + $0x50] sm:$0xf] %vm649, %v594
      %671 = vst.msk [vmem:[%s244 + $0x54] sm:$0xf] %vm649, %v596
      %672 = vst.msk [vmem:[%s244 + $0x58] sm:$0xf] %vm649, %v598
      %673 = vst.msk [vmem:[%s244 + $0x5c] sm:$0xf] %vm649, %v600
      %674 = vst.msk [vmem:[%s244 + $0x60] sm:$0xf] %vm649, %v602
      %675 = vst.msk [vmem:[%s244 + $0x64] sm:$0xf] %vm649, %v604
      %676 = vst.msk [vmem:[%s244 + $0x68] sm:$0xf] %vm649, %v606
      %677 = vst.msk [vmem:[%s244 + $0x6c] sm:$0xf] %vm649, %v608
      %678 = vst.msk [vmem:[%s244 + $0x70] sm:$0xf] %vm649, %v610
      %679 = vst.msk [vmem:[%s244 + $0x74] sm:$0xf] %vm649, %v612
      %680 = vst.msk [vmem:[%s244 + $0x78] sm:$0xf] %vm649, %v614
      %681 = vst.msk [vmem:[%s244 + $0x7c] sm:$0xf] %vm649, %v616
      %682 = vrot.lane.b32.xlu0 %v521, 114
      %v683 = vpop.permute.xlu0 %682
      %684 = vrot.lane.b32.xlu0 %v522, 114
      %v685 = vpop.permute.xlu0 %684
      %686 = vrot.lane.b32.xlu0 %v523, 114
      %v687 = vpop.permute.xlu0 %686
      %688 = vrot.lane.b32.xlu0 %v524, 114
      %v689 = vpop.permute.xlu0 %688
      %690 = vrot.lane.b32.xlu0 %v525, 114
      %v691 = vpop.permute.xlu0 %690
      %692 = vrot.lane.b32.xlu0 %v526, 114
      %v693 = vpop.permute.xlu0 %692
      %694 = vrot.lane.b32.xlu0 %v527, 114
      %v695 = vpop.permute.xlu0 %694
      %696 = vrot.lane.b32.xlu0 %v528, 114
      %v697 = vpop.permute.xlu0 %696
      %698 = vrot.lane.b32.xlu0 %v529, 114
      %v699 = vpop.permute.xlu0 %698
      %700 = vrot.lane.b32.xlu0 %v530, 114
      %v701 = vpop.permute.xlu0 %700
      %702 = vrot.lane.b32.xlu0 %v531, 114
      %v703 = vpop.permute.xlu0 %702
      %704 = vrot.lane.b32.xlu0 %v532, 114
      %v705 = vpop.permute.xlu0 %704
      %706 = vrot.lane.b32.xlu0 %v533, 114
      %v707 = vpop.permute.xlu0 %706
      %708 = vrot.lane.b32.xlu0 %v534, 114
      %v709 = vpop.permute.xlu0 %708
      %710 = vrot.lane.b32.xlu0 %v535, 114
      %v711 = vpop.permute.xlu0 %710
      %712 = vrot.lane.b32.xlu0 %v536, 114
      %v713 = vpop.permute.xlu0 %712
      %714 = vrot.lane.b32.xlu0 %v537, 114
      %v715 = vpop.permute.xlu0 %714
      %716 = vrot.lane.b32.xlu0 %v538, 114
      %v717 = vpop.permute.xlu0 %716
      %718 = vrot.lane.b32.xlu0 %v539, 114
      %v719 = vpop.permute.xlu0 %718
      %720 = vrot.lane.b32.xlu0 %v540, 114
      %v721 = vpop.permute.xlu0 %720
      %722 = vrot.lane.b32.xlu0 %v541, 114
      %v723 = vpop.permute.xlu0 %722
      %724 = vrot.lane.b32.xlu0 %v542, 114
      %v725 = vpop.permute.xlu0 %724
      %726 = vrot.lane.b32.xlu0 %v543, 114
      %v727 = vpop.permute.xlu0 %726
      %728 = vrot.lane.b32.xlu0 %v544, 114
      %v729 = vpop.permute.xlu0 %728
      %730 = vrot.lane.b32.xlu0 %v545, 114
      %v731 = vpop.permute.xlu0 %730
      %732 = vrot.lane.b32.xlu0 %v546, 114
      %v733 = vpop.permute.xlu0 %732
      %734 = vrot.lane.b32.xlu0 %v547, 114
      %v735 = vpop.permute.xlu0 %734
      %736 = vrot.lane.b32.xlu0 %v548, 114
      %v737 = vpop.permute.xlu0 %736
      %738 = vrot.lane.b32.xlu0 %v549, 114
      %v739 = vpop.permute.xlu0 %738
      %740 = vrot.lane.b32.xlu0 %v550, 114
      %v741 = vpop.permute.xlu0 %740
      %742 = vrot.lane.b32.xlu0 %v551, 114
      %v743 = vpop.permute.xlu0 %742
      %744 = vrot.lane.b32.xlu0 %v552, 114
      %v745 = vpop.permute.xlu0 %744
      %vm778 = vcmask 27648
      %779 = vst.msk [vmem:[%s249] sm:$0xf] %vm778, %v683
      %780 = vst.msk [vmem:[%s249 + $0x4] sm:$0xf] %vm778, %v685
      %781 = vst.msk [vmem:[%s249 + $0x8] sm:$0xf] %vm778, %v687
      %782 = vst.msk [vmem:[%s249 + $0xc] sm:$0xf] %vm778, %v689
      %783 = vst.msk [vmem:[%s249 + $0x10] sm:$0xf] %vm778, %v691
      %784 = vst.msk [vmem:[%s249 + $0x14] sm:$0xf] %vm778, %v693
      %785 = vst.msk [vmem:[%s249 + $0x18] sm:$0xf] %vm778, %v695
      %786 = vst.msk [vmem:[%s249 + $0x1c] sm:$0xf] %vm778, %v697
      %787 = vst.msk [vmem:[%s249 + $0x20] sm:$0xf] %vm778, %v699
      %788 = vst.msk [vmem:[%s249 + $0x24] sm:$0xf] %vm778, %v701
      %789 = vst.msk [vmem:[%s249 + $0x28] sm:$0xf] %vm778, %v703
      %790 = vst.msk [vmem:[%s249 + $0x2c] sm:$0xf] %vm778, %v705
      %791 = vst.msk [vmem:[%s249 + $0x30] sm:$0xf] %vm778, %v707
      %792 = vst.msk [vmem:[%s249 + $0x34] sm:$0xf] %vm778, %v709
      %793 = vst.msk [vmem:[%s249 + $0x38] sm:$0xf] %vm778, %v711
      %794 = vst.msk [vmem:[%s249 + $0x3c] sm:$0xf] %vm778, %v713
      %795 = vst.msk [vmem:[%s249 + $0x40] sm:$0xf] %vm778, %v715
      %796 = vst.msk [vmem:[%s249 + $0x44] sm:$0xf] %vm778, %v717
      %797 = vst.msk [vmem:[%s249 + $0x48] sm:$0xf] %vm778, %v719
      %798 = vst.msk [vmem:[%s249 + $0x4c] sm:$0xf] %vm778, %v721
      %799 = vst.msk [vmem:[%s249 + $0x50] sm:$0xf] %vm778, %v723
      %800 = vst.msk [vmem:[%s249 + $0x54] sm:$0xf] %vm778, %v725
      %801 = vst.msk [vmem:[%s249 + $0x58] sm:$0xf] %vm778, %v727
      %802 = vst.msk [vmem:[%s249 + $0x5c] sm:$0xf] %vm778, %v729
      %803 = vst.msk [vmem:[%s249 + $0x60] sm:$0xf] %vm778, %v731
      %804 = vst.msk [vmem:[%s249 + $0x64] sm:$0xf] %vm778, %v733
      %805 = vst.msk [vmem:[%s249 + $0x68] sm:$0xf] %vm778, %v735
      %806 = vst.msk [vmem:[%s249 + $0x6c] sm:$0xf] %vm778, %v737
      %807 = vst.msk [vmem:[%s249 + $0x70] sm:$0xf] %vm778, %v739
      %808 = vst.msk [vmem:[%s249 + $0x74] sm:$0xf] %vm778, %v741
      %809 = vst.msk [vmem:[%s249 + $0x78] sm:$0xf] %vm778, %v743
      %810 = vst.msk [vmem:[%s249 + $0x7c] sm:$0xf] %vm778, %v745
      %p811 = scmp.lt.s32.totalorder %s17, 1
      %s812 = scalar_select %p811, %s17, 1
      %s813 = smul.addr %s812, 32
      %s814 = smul.addr %s813, 8
      %s815 = scalar_lea.vmem %s3, %s814
      %p816 = scmp.lt.s32.totalorder %s17, 1
      %s817 = scalar_select %p816, %s17, 1
      %s818 = smul.addr %s817, 32
      %s819 = smul.addr %s818, 4
      %s820 = scalar_lea.vmem %s4, %s819
      %p821 = scmp.lt.s32.totalorder %s17, 1
      %s822 = scalar_select %p821, %s17, 1
      %s823 = smul.addr %s822, 32
      %s824 = smul.addr %s823, 4
      %s825 = scalar_lea.vmem %s5, %s824
      // Predicated region
      $region33: #{inception_forward.7} parent=31 // pred_check
        %p826 = pneg %p103
      $region34: #{inception_forward.7} parent=31 // pred_check_branch
        %828 = sbr.rel (%p826) target = $region36
      $region35: #{inception_forward.7} parent=31 // pred_region
        _
      $region36: #{inception_forward.7} parent=31 // pred_fallthru
        _
      // Predicated region
      $region37: #{inception_forward.7} parent=31 // pred_check
        %p829 = pneg %p129
      $region38: #{inception_forward.7} parent=31 // pred_check_branch
        %831 = sbr.rel (%p829) target = $region40
      $region39: #{inception_forward.7} parent=31 // pred_region
        _
      $region40: #{inception_forward.7} parent=31 // pred_fallthru
        _
      // Predicated region
      $region41: #{inception_forward.7} parent=31 // pred_check
        %p832 = pneg %p155
      $region42: #{inception_forward.7} parent=31 // pred_check_branch
        %834 = sbr.rel (%p832) target = $region44
      $region43: #{inception_forward.7} parent=31 // pred_region
        _
      $region44: #{inception_forward.7} parent=31 // pred_fallthru
        _
    $region32: #{inception_forward.7} parent=5 // pred_fallthru
      _
    %p835 = scmp.le.s32.totalorder 2, %s12
    // Predicated region
    $region45: #{inception_forward.7} parent=5 // pred_check
      %p836 = pneg %p835
    $region46: #{inception_forward.7} parent=5 // pred_check_branch
      %838 = sbr.rel (%p836) target = $region48
    $region47: #{inception_forward.7} parent=5 // pred_region
      %s839 = ssub.s32 %s12, 2
      // Predicated region
      $region49: #{inception_forward.7} parent=47 // pred_check
        %p840 = pneg %p109
      $region50: #{inception_forward.7} parent=47 // pred_check_branch
        %842 = sbr.rel (%p840) target = $region52
      $region51: #{inception_forward.7} parent=47 // pred_region
        %p843 = scmp.lt.s32.totalorder %s18, 1
        %s844 = scalar_select %p843, %s18, 1
        %s845 = smul.addr %s844, 32
        %s846 = smul.addr %s845, 8
        %s847 = scalar_lea.vmem %s3, %s846
      $region52: #{inception_forward.7} parent=47 // pred_fallthru
        _
      // Predicated region
      $region53: #{inception_forward.7} parent=47 // pred_check
        %p848 = pneg %p135
      $region54: #{inception_forward.7} parent=47 // pred_check_branch
        %850 = sbr.rel (%p848) target = $region56
      $region55: #{inception_forward.7} parent=47 // pred_region
        %p851 = scmp.lt.s32.totalorder %s18, 1
        %s852 = scalar_select %p851, %s18, 1
        %s853 = smul.addr %s852, 32
        %s854 = smul.addr %s853, 4
        %s855 = scalar_lea.vmem %s4, %s854
      $region56: #{inception_forward.7} parent=47 // pred_fallthru
        _
      // Predicated region
      $region57: #{inception_forward.7} parent=47 // pred_check
        %p856 = pneg %p161
      $region58: #{inception_forward.7} parent=47 // pred_check_branch
        %858 = sbr.rel (%p856) target = $region60
      $region59: #{inception_forward.7} parent=47 // pred_region
        %p859 = scmp.lt.s32.totalorder %s18, 1
        %s860 = scalar_select %p859, %s18, 1
        %s861 = smul.addr %s860, 32
        %s862 = smul.addr %s861, 4
        %s863 = scalar_lea.vmem %s5, %s862
      $region60: #{inception_forward.7} parent=47 // pred_fallthru
        _
    $region48: #{inception_forward.7} parent=5 // pred_fallthru
      _
  $region6: #{inception_forward.7} parent=0 // loop_footer
    %s16 = sadd.s32 1, %s12
  $region7: #{inception_forward.7} parent=0 // loop_footer_branch
    %11 = sbr.rel target = $region3
  $region8: #{inception_forward.7} parent=0 // loop_exit
    _

// kernel: inception_forward.8
$region0: #{inception_forward.8}
  #allocation0 [shape = 'u32[]', space=smem, size = 0x4, offset = 0x4, fixed_abs, tag = 'smem constant byte address 0x4 - core index']
  #allocation1 [shape = 'u32[144,128]{1,0:T(1,128)}', space=vmem, size = 0x12000, scoped, tag = 'internal scratch']
  #allocation2 [shape = 'f32[18,18,6]{2,1,0:T(8,128)}', space=vmem, size = 0x36000, scoped, tag = 'scratch operand']
  %s0 = inlined_call_operand.vmem [shape: bf16[2,16,16,6], index: 0, kind: input, shape index: {}]
  %s1 = inlined_call_operand.vmem [shape: bf16[54,12], index: 1, kind: input, shape index: {}]
  %s2 = inlined_call_operand.vmem [shape: bf16[2,256,12], index: 2, kind: output, shape index: {0}]
  %s3 = inlined_call_operand.vmem [shape: f32[2,1,12], index: 3, kind: output, shape index: {1}]
  %s4 = inlined_call_operand.vmem [shape: f32[2,1,12], index: 4, kind: output, shape index: {2}]
  %5 = xla_tuple %s2, %s3, %s4
  %s6 = sld [smem:[#allocation0]]
  $region57: #{inception_forward.8} parent=0
    _
  %s8 = ssub.s32 1, %s6
  %s9 = scalar_select 0, %s8, %s6
  loop: start=0, step=1, limit=4
  $region2: #{inception_forward.8} parent=0 // loop_pre_header
    _
  $region3: #{inception_forward.8} parent=0 // loop_header
    %s11 = sphi 0, %s15
    %p12 = scmp.ge.s32.totalorder %s11, 4
    %s21 = sphi 0, %s23
    %s24 = sphi 0, %s21
    %s25 = sphi 0, %s24
    %s41 = sphi 0, %s25
    %s45 = sphi 0, %s45
    %s47 = sphi 0, %s45
    %s48 = sphi 0, %s47
    %s62 = sphi 0, %s48
    %s68 = sphi 0, %s70
    %s71 = sphi 0, %s68
    %s72 = sphi 0, %s71
    %s88 = sphi 0, %s72
    %s94 = sphi 0, %s96
    %s97 = sphi 0, %s94
    %s98 = sphi 0, %s97
    %s114 = sphi 0, %s98
    %s120 = sphi 0, %s122
    %s123 = sphi 0, %s120
    %s124 = sphi 0, %s123
    %s140 = sphi 0, %s124
  $region4: #{inception_forward.8} parent=0 // loop_header_branch
    %14 = sbr.rel (%p12) target = $region8
  $region5: #{inception_forward.8} parent=0 // loop_body
    %s16 = ssub.s32 %s11, 1
    %s17 = ssub.s32 %s11, 2
    %s18 = sadd.s32 %s11, 1
    %s19 = ssub.s32 %s11, %s18
    %p20 = scmp.eq.s32.totalorder %s19, 0
    %s22 = sadd.s32 %s21, 1
    %s23 = scalar_select %p20, %s21, %s22
    %p26 = pneg %p20
    %p27 = scmp.eq.s32.totalorder %s11, 1
    %p28 = por %p26, %p27
    %p29 = scmp.ne.s32.totalorder %s21, %s24
    %p30 = scmp.eq.s32.totalorder %s11, 0
    %p31 = por %p29, %p30
    %p32 = scmp.ne.s32.totalorder %s21, %s24
    %p33 = scmp.eq.s32.totalorder %s16, 1
    %p34 = por %p32, %p33
    %p35 = scmp.ne.s32.totalorder %s24, %s25
    %p36 = scmp.eq.s32.totalorder %s16, 0
    %p37 = por %p35, %p36
    %p38 = scmp.ne.s32.totalorder %s24, %s25
    %p39 = scmp.eq.s32.totalorder %s17, 1
    %p40 = por %p38, %p39
    %p42 = scmp.ne.s32.totalorder %s25, %s41
    %p43 = scmp.eq.s32.totalorder %s17, 0
    %p44 = por %p42, %p43
    %s46 = sadd.s32 %s45, 1
    %p49 = scmp.eq.s32.totalorder %s11, 1
    %p50 = scmp.ne.s32.totalorder %s45, %s47
    %p51 = scmp.eq.s32.totalorder %s11, 0
    %p52 = por %p50, %p51
    %p53 = scmp.ne.s32.totalorder %s45, %s47
    %p54 = scmp.eq.s32.totalorder %s16, 1
    %p55 = por %p53, %p54
    %p56 = scmp.ne.s32.totalorder %s47, %s48
    %p57 = scmp.eq.s32.totalorder %s16, 0
    %p58 = por %p56, %p57
    %p59 = scmp.ne.s32.totalorder %s47, %s48
    %p60 = scmp.eq.s32.totalorder %s17, 1
    %p61 = por %p59, %p60
    %p63 = scmp.ne.s32.totalorder %s48, %s62
    %p64 = scmp.eq.s32.totalorder %s17, 0
    %p65 = por %p63, %p64
    %s66 = ssub.s32 %s11, %s18
    %p67 = scmp.eq.s32.totalorder %s66, 0
    %s69 = sadd.s32 %s68, 1
    %s70 = scalar_select %p67, %s68, %s69
    %p73 = pneg %p67
    %p74 = scmp.eq.s32.totalorder %s11, 1
    %p75 = por %p73, %p74
    %p76 = scmp.ne.s32.totalorder %s68, %s71
    %p77 = scmp.eq.s32.totalorder %s11, 0
    %p78 = por %p76, %p77
    %p79 = scmp.ne.s32.totalorder %s68, %s71
    %p80 = scmp.eq.s32.totalorder %s16, 1
    %p81 = por %p79, %p80
    %p82 = scmp.ne.s32.totalorder %s71, %s72
    %p83 = scmp.eq.s32.totalorder %s16, 0
    %p84 = por %p82, %p83
    %p85 = scmp.ne.s32.totalorder %s71, %s72
    %p86 = scmp.eq.s32.totalorder %s17, 1
    %p87 = por %p85, %p86
    %p89 = scmp.ne.s32.totalorder %s72, %s88
    %p90 = scmp.eq.s32.totalorder %s17, 0
    %p91 = por %p89, %p90
    %s92 = ssub.s32 %s11, %s18
    %p93 = scmp.eq.s32.totalorder %s92, 0
    %s95 = sadd.s32 %s94, 1
    %s96 = scalar_select %p93, %s94, %s95
    %p99 = pneg %p93
    %p100 = scmp.eq.s32.totalorder %s11, 1
    %p101 = por %p99, %p100
    %p102 = scmp.ne.s32.totalorder %s94, %s97
    %p103 = scmp.eq.s32.totalorder %s11, 0
    %p104 = por %p102, %p103
    %p105 = scmp.ne.s32.totalorder %s94, %s97
    %p106 = scmp.eq.s32.totalorder %s16, 1
    %p107 = por %p105, %p106
    %p108 = scmp.ne.s32.totalorder %s97, %s98
    %p109 = scmp.eq.s32.totalorder %s16, 0
    %p110 = por %p108, %p109
    %p111 = scmp.ne.s32.totalorder %s97, %s98
    %p112 = scmp.eq.s32.totalorder %s17, 1
    %p113 = por %p111, %p112
    %p115 = scmp.ne.s32.totalorder %s98, %s114
    %p116 = scmp.eq.s32.totalorder %s17, 0
    %p117 = por %p115, %p116
    %s118 = ssub.s32 %s11, %s18
    %p119 = scmp.eq.s32.totalorder %s118, 0
    %s121 = sadd.s32 %s120, 1
    %s122 = scalar_select %p119, %s120, %s121
    %p125 = pneg %p119
    %p126 = scmp.eq.s32.totalorder %s11, 1
    %p127 = por %p125, %p126
    %p128 = scmp.ne.s32.totalorder %s120, %s123
    %p129 = scmp.eq.s32.totalorder %s11, 0
    %p130 = por %p128, %p129
    %p131 = scmp.ne.s32.totalorder %s120, %s123
    %p132 = scmp.eq.s32.totalorder %s16, 1
    %p133 = por %p131, %p132
    %p134 = scmp.ne.s32.totalorder %s123, %s124
    %p135 = scmp.eq.s32.totalorder %s16, 0
    %p136 = por %p134, %p135
    %p137 = scmp.ne.s32.totalorder %s123, %s124
    %p138 = scmp.eq.s32.totalorder %s17, 1
    %p139 = por %p137, %p138
    %p141 = scmp.ne.s32.totalorder %s124, %s140
    %p142 = scmp.eq.s32.totalorder %s17, 0
    %p143 = por %p141, %p142
    %p144 = scmp.le.s32.totalorder 1, %s11
    %p145 = scmp.lt.s32.totalorder %s11, 3
    %p146 = pnand %p144, %p145
    %p147 = pneg %p146
    // Predicated region
    $region9: #{inception_forward.8} parent=5 // pred_check
      _
    $region10: #{inception_forward.8} parent=5 // pred_check_branch
      %149 = sbr.rel (%p146) target = $region12
    $region11: #{inception_forward.8} parent=5 // pred_region
      %s150 = ssub.s32 %s11, 1
      // Predicated region
      $region13: #{inception_forward.8} parent=11 // pred_check
        %p151 = pneg %p58
      $region14: #{inception_forward.8} parent=11 // pred_check_branch
        %153 = sbr.rel (%p151) target = $region16
      $region15: #{inception_forward.8} parent=11 // pred_region
        _
      $region16: #{inception_forward.8} parent=11 // pred_fallthru
        _
    $region12: #{inception_forward.8} parent=5 // pred_fallthru
      _
    %p154 = scmp.lt.s32.totalorder %s11, 2
    // Predicated region
    $region17: #{inception_forward.8} parent=5 // pred_check
      %p155 = pneg %p154
    $region18: #{inception_forward.8} parent=5 // pred_check_branch
      %157 = sbr.rel (%p155) target = $region20
    $region19: #{inception_forward.8} parent=5 // pred_region
      // Predicated region
      $region21: #{inception_forward.8} parent=19 // pred_check
        %p158 = pneg %p31
      $region22: #{inception_forward.8} parent=19 // pred_check_branch
        %160 = sbr.rel (%p158) target = $region24
      $region23: #{inception_forward.8} parent=19 // pred_region
        %p161 = scmp.lt.s32.totalorder %s11, 1
        %s162 = scalar_select %p161, %s11, 1
        %s163 = smul.addr %s162, 32
        %s164 = smul.addr %s163, 4
        %s165 = scalar_lea.vmem %s0, %s164
      $region24: #{inception_forward.8} parent=19 // pred_fallthru
        _
    $region20: #{inception_forward.8} parent=5 // pred_fallthru
      _
    %p166 = scmp.le.s32.totalorder 1, %s11
    %p167 = scmp.lt.s32.totalorder %s11, 3
    %p168 = pnand %p166, %p167
    %p169 = pneg %p168
    // Predicated region
    $region25: #{inception_forward.8} parent=5 // pred_check
      _
    $region26: #{inception_forward.8} parent=5 // pred_check_branch
      %171 = sbr.rel (%p168) target = $region28
    $region27: #{inception_forward.8} parent=5 // pred_region
      %s172 = ssub.s32 %s11, 1
      %p173 = scmp.lt.s32.totalorder %s16, 1
      %s174 = scalar_select %p173, %s16, 1
      %s175 = smul.addr %s174, 32
      %s176 = smul.addr %s175, 4
      %s177 = scalar_lea.vmem %s0, %s176
      %p178 = pneg %p37
      %p179 = pneg %p34
      %p180 = pneg %p58
      %p181 = pneg %p55
      %p182 = pneg %p84
      %p183 = pneg %p81
      %p184 = scmp.lt.s32.totalorder %s16, 1
      %s185 = scalar_select %p184, %s16, 1
      %s186 = smul.addr %s185, 32
      %s187 = smul.addr %s186, 4
      %s188 = scalar_lea.vmem %s2, %s187
      %p189 = pneg %p110
      %p190 = pneg %p107
      %p191 = scmp.lt.s32.totalorder %s16, 1
      %s192 = scalar_select %p191, %s16, 1
      %s193 = scalar_lea.vmem %s3, %s192
      %p194 = pneg %p136
      %p195 = pneg %p133
      %p196 = scmp.lt.s32.totalorder %s16, 1
      %s197 = scalar_select %p196, %s16, 1
      %s198 = scalar_lea.vmem %s4, %s197
      %p199 = scmp.lt.s32.totalorder %s16, 1
      %s200 = scalar_select %p199, %s16, 1
      %s201 = smul.addr %s200, 32
      %s202 = smul.addr %s201, 4
      %s203 = scalar_lea.vmem %s0, %s202
      %p204 = scmp.lt.s32.totalorder %s16, 1
      %s205 = scalar_select %p204, %s16, 1
      %s206 = smul.addr %s205, 32
      %s207 = smul.addr %s206, 4
      %s208 = scalar_lea.vmem %s2, %s207
      %p209 = scmp.lt.s32.totalorder %s16, 1
      %s210 = scalar_select %p209, %s16, 1
      %s211 = scalar_lea.vmem %s3, %s210
      %p212 = scmp.lt.s32.totalorder %s16, 1
      %s213 = scalar_select %p212, %s16, 1
      %s214 = scalar_lea.vmem %s4, %s213
      %vm216 = vcmask 48128
      %217 = vst.msk [vmem:[#allocation2] sm:$0xff] %vm216, 0.0
      %218 = vst.msk [vmem:[#allocation2 + $0x8] sm:$0xff] %vm216, 0.0
      %vm219 = vcmask 41984
      %220 = vst.msk [vmem:[#allocation2 + $0x10] sm:$0x3] %vm219, 0.0
      %221 = vst.msk [vmem:[#allocation2 + $0x18] sm:$0xff] %vm216, 0.0
      %222 = vst.msk [vmem:[#allocation2 + $0x20] sm:$0xff] %vm216, 0.0
      %223 = vst.msk [vmem:[#allocation2 + $0x28] sm:$0x3] %vm219, 0.0
      %224 = vst.msk [vmem:[#allocation2 + $0x30] sm:$0xff] %vm216, 0.0
      %225 = vst.msk [vmem:[#allocation2 + $0x38] sm:$0xff] %vm216, 0.0
      %226 = vst.msk [vmem:[#allocation2 + $0x40] sm:$0x3] %vm219, 0.0
      %227 = vst.msk [vmem:[#allocation2 + $0x48] sm:$0xff] %vm216, 0.0
      %228 = vst.msk [vmem:[#allocation2 + $0x50] sm:$0xff] %vm216, 0.0
      %229 = vst.msk [vmem:[#allocation2 + $0x58] sm:$0x3] %vm219, 0.0
      %230 = vst.msk [vmem:[#allocation2 + $0x60] sm:$0xff] %vm216, 0.0
      %231 = vst.msk [vmem:[#allocation2 + $0x68] sm:$0xff] %vm216, 0.0
      %232 = vst.msk [vmem:[#allocation2 + $0x70] sm:$0x3] %vm219, 0.0
      %233 = vst.msk [vmem:[#allocation2 + $0x78] sm:$0xff] %vm216, 0.0
      %234 = vst.msk [vmem:[#allocation2 + $0x80] sm:$0xff] %vm216, 0.0
      %235 = vst.msk [vmem:[#allocation2 + $0x88] sm:$0x3] %vm219, 0.0
      %236 = vst.msk [vmem:[#allocation2 + $0x90] sm:$0xff] %vm216, 0.0
      %237 = vst.msk [vmem:[#allocation2 + $0x98] sm:$0xff] %vm216, 0.0
      %238 = vst.msk [vmem:[#allocation2 + $0xa0] sm:$0x3] %vm219, 0.0
      %239 = vst.msk [vmem:[#allocation2 + $0xa8] sm:$0xff] %vm216, 0.0
      %240 = vst.msk [vmem:[#allocation2 + $0xb0] sm:$0xff] %vm216, 0.0
      %241 = vst.msk [vmem:[#allocation2 + $0xb8] sm:$0x3] %vm219, 0.0
      %242 = vst.msk [vmem:[#allocation2 + $0xc0] sm:$0xff] %vm216, 0.0
      %243 = vst.msk [vmem:[#allocation2 + $0xc8] sm:$0xff] %vm216, 0.0
      %244 = vst.msk [vmem:[#allocation2 + $0xd0] sm:$0x3] %vm219, 0.0
      %245 = vst.msk [vmem:[#allocation2 + $0xd8] sm:$0xff] %vm216, 0.0
      %246 = vst.msk [vmem:[#allocation2 + $0xe0] sm:$0xff] %vm216, 0.0
      %247 = vst.msk [vmem:[#allocation2 + $0xe8] sm:$0x3] %vm219, 0.0
      %248 = vst.msk [vmem:[#allocation2 + $0xf0] sm:$0xff] %vm216, 0.0
      %249 = vst.msk [vmem:[#allocation2 + $0xf8] sm:$0xff] %vm216, 0.0
      %250 = vst.msk [vmem:[#allocation2 + $0x100] sm:$0x3] %vm219, 0.0
      %251 = vst.msk [vmem:[#allocation2 + $0x108] sm:$0xff] %vm216, 0.0
      %252 = vst.msk [vmem:[#allocation2 + $0x110] sm:$0xff] %vm216, 0.0
      %253 = vst.msk [vmem:[#allocation2 + $0x118] sm:$0x3] %vm219, 0.0
      %254 = vst.msk [vmem:[#allocation2 + $0x120] sm:$0xff] %vm216, 0.0
      %255 = vst.msk [vmem:[#allocation2 + $0x128] sm:$0xff] %vm216, 0.0
      %256 = vst.msk [vmem:[#allocation2 + $0x130] sm:$0x3] %vm219, 0.0
      %257 = vst.msk [vmem:[#allocation2 + $0x138] sm:$0xff] %vm216, 0.0
      %258 = vst.msk [vmem:[#allocation2 + $0x140] sm:$0xff] %vm216, 0.0
      %259 = vst.msk [vmem:[#allocation2 + $0x148] sm:$0x3] %vm219, 0.0
      %260 = vst.msk [vmem:[#allocation2 + $0x150] sm:$0xff] %vm216, 0.0
      %261 = vst.msk [vmem:[#allocation2 + $0x158] sm:$0xff] %vm216, 0.0
      %262 = vst.msk [vmem:[#allocation2 + $0x160] sm:$0x3] %vm219, 0.0
      %263 = vst.msk [vmem:[#allocation2 + $0x168] sm:$0xff] %vm216, 0.0
      %264 = vst.msk [vmem:[#allocation2 + $0x170] sm:$0xff] %vm216, 0.0
      %265 = vst.msk [vmem:[#allocation2 + $0x178] sm:$0x3] %vm219, 0.0
      %266 = vst.msk [vmem:[#allocation2 + $0x180] sm:$0xff] %vm216, 0.0
      %267 = vst.msk [vmem:[#allocation2 + $0x188] sm:$0xff] %vm216, 0.0
      %268 = vst.msk [vmem:[#allocation2 + $0x190] sm:$0x3] %vm219, 0.0
      %269 = vst.msk [vmem:[#allocation2 + $0x198] sm:$0xff] %vm216, 0.0
      %270 = vst.msk [vmem:[#allocation2 + $0x1a0] sm:$0xff] %vm216, 0.0
      %271 = vst.msk [vmem:[#allocation2 + $0x1a8] sm:$0x3] %vm219, 0.0
      %v272 = vld [vmem:[%s203] sm:$0xf]
      %v273 = vld [vmem:[%s203 + $0x4] sm:$0xf]
      %v274 = vld [vmem:[%s203 + $0x8] sm:$0xf]
      %v275 = vld [vmem:[%s203 + $0xc] sm:$0xf]
      %v276 = vld [vmem:[%s203 + $0x10] sm:$0xf]
      %v277 = vld [vmem:[%s203 + $0x14] sm:$0xf]
      %v278 = vld [vmem:[%s203 + $0x18] sm:$0xf]
      %v279 = vld [vmem:[%s203 + $0x1c] sm:$0xf]
      %v280 = vld [vmem:[%s203 + $0x20] sm:$0xf]
      %v281 = vld [vmem:[%s203 + $0x24] sm:$0xf]
      %v282 = vld [vmem:[%s203 + $0x28] sm:$0xf]
      %v283 = vld [vmem:[%s203 + $0x2c] sm:$0xf]
      %v284 = vld [vmem:[%s203 + $0x30] sm:$0xf]
      %v285 = vld [vmem:[%s203 + $0x34] sm:$0xf]
      %v286 = vld [vmem:[%s203 + $0x38] sm:$0xf]
      %v287 = vld [vmem:[%s203 + $0x3c] sm:$0xf]
      %v288 = vld [vmem:[%s203 + $0x40] sm:$0xf]
      %v289 = vld [vmem:[%s203 + $0x44] sm:$0xf]
      %v290 = vld [vmem:[%s203 + $0x48] sm:$0xf]
      %v291 = vld [vmem:[%s203 + $0x4c] sm:$0xf]
      %v292 = vld [vmem:[%s203 + $0x50] sm:$0xf]
      %v293 = vld [vmem:[%s203 + $0x54] sm:$0xf]
      %v294 = vld [vmem:[%s203 + $0x58] sm:$0xf]
      %v295 = vld [vmem:[%s203 + $0x5c] sm:$0xf]
      %v296 = vld [vmem:[%s203 + $0x60] sm:$0xf]
      %v297 = vld [vmem:[%s203 + $0x64] sm:$0xf]
      %v298 = vld [vmem:[%s203 + $0x68] sm:$0xf]
      %v299 = vld [vmem:[%s203 + $0x6c] sm:$0xf]
      %v300 = vld [vmem:[%s203 + $0x70] sm:$0xf]
      %v301 = vld [vmem:[%s203 + $0x74] sm:$0xf]
      %v302 = vld [vmem:[%s203 + $0x78] sm:$0xf]
      %v303 = vld [vmem:[%s203 + $0x7c] sm:$0xf]
      %v304 = vunpack.c.l.bf16 %v272
      %v305 = vunpack.c.l.bf16 %v273
      %v306 = vunpack.c.l.bf16 %v274
      %v307 = vunpack.c.l.bf16 %v275
      %v308 = vunpack.c.l.bf16 %v276
      %v309 = vunpack.c.l.bf16 %v277
      %v310 = vunpack.c.l.bf16 %v278
      %v311 = vunpack.c.l.bf16 %v279
      %v312 = vunpack.c.l.bf16 %v280
      %v313 = vunpack.c.l.bf16 %v281
      %v314 = vunpack.c.l.bf16 %v282
      %v315 = vunpack.c.l.bf16 %v283
      %v316 = vunpack.c.l.bf16 %v284
      %v317 = vunpack.c.l.bf16 %v285
      %v318 = vunpack.c.l.bf16 %v286
      %v319 = vunpack.c.l.bf16 %v287
      %v320 = vunpack.c.l.bf16 %v288
      %v321 = vunpack.c.l.bf16 %v289
      %v322 = vunpack.c.l.bf16 %v290
      %v323 = vunpack.c.l.bf16 %v291
      %v324 = vunpack.c.l.bf16 %v292
      %v325 = vunpack.c.l.bf16 %v293
      %v326 = vunpack.c.l.bf16 %v294
      %v327 = vunpack.c.l.bf16 %v295
      %v328 = vunpack.c.l.bf16 %v296
      %v329 = vunpack.c.l.bf16 %v297
      %v330 = vunpack.c.l.bf16 %v298
      %v331 = vunpack.c.l.bf16 %v299
      %v332 = vunpack.c.l.bf16 %v300
      %v333 = vunpack.c.l.bf16 %v301
      %v334 = vunpack.c.l.bf16 %v302
      %v335 = vunpack.c.l.bf16 %v303
      %s336 = scalar_lea.vmem [#allocation2], 24
      %337 = vst.msk [vmem:[%s336 + $0x1] sm:$0xff] %vm216, %v304
      %338 = vst.msk [vmem:[%s336 + $0x9] sm:$0xff] %vm216, %v305
      %339 = vst.msk [vmem:[%s336 + $0x19] sm:$0xff] %vm216, %v306
      %340 = vst.msk [vmem:[%s336 + $0x21] sm:$0xff] %vm216, %v307
      %341 = vst.msk [vmem:[%s336 + $0x31] sm:$0xff] %vm216, %v308
      %342 = vst.msk [vmem:[%s336 + $0x39] sm:$0xff] %vm216, %v309
      %343 = vst.msk [vmem:[%s336 + $0x49] sm:$0xff] %vm216, %v310
      %344 = vst.msk [vmem:[%s336 + $0x51] sm:$0xff] %vm216, %v311
      %345 = vst.msk [vmem:[%s336 + $0x61] sm:$0xff] %vm216, %v312
      %346 = vst.msk [vmem:[%s336 + $0x69] sm:$0xff] %vm216, %v313
      %347 = vst.msk [vmem:[%s336 + $0x79] sm:$0xff] %vm216, %v314
      %348 = vst.msk [vmem:[%s336 + $0x81] sm:$0xff] %vm216, %v315
      %349 = vst.msk [vmem:[%s336 + $0x91] sm:$0xff] %vm216, %v316
      %350 = vst.msk [vmem:[%s336 + $0x99] sm:$0xff] %vm216, %v317
      %351 = vst.msk [vmem:[%s336 + $0xa9] sm:$0xff] %vm216, %v318
      %352 = vst.msk [vmem:[%s336 + $0xb1] sm:$0xff] %vm216, %v319
      %353 = vst.msk [vmem:[%s336 + $0xc1] sm:$0xff] %vm216, %v320
      %354 = vst.msk [vmem:[%s336 + $0xc9] sm:$0xff] %vm216, %v321
      %355 = vst.msk [vmem:[%s336 + $0xd9] sm:$0xff] %vm216, %v322
      %356 = vst.msk [vmem:[%s336 + $0xe1] sm:$0xff] %vm216, %v323
      %357 = vst.msk [vmem:[%s336 + $0xf1] sm:$0xff] %vm216, %v324
      %358 = vst.msk [vmem:[%s336 + $0xf9] sm:$0xff] %vm216, %v325
      %359 = vst.msk [vmem:[%s336 + $0x109] sm:$0xff] %vm216, %v326
      %360 = vst.msk [vmem:[%s336 + $0x111] sm:$0xff] %vm216, %v327
      %361 = vst.msk [vmem:[%s336 + $0x121] sm:$0xff] %vm216, %v328
      %362 = vst.msk [vmem:[%s336 + $0x129] sm:$0xff] %vm216, %v329
      %363 = vst.msk [vmem:[%s336 + $0x139] sm:$0xff] %vm216, %v330
      %364 = vst.msk [vmem:[%s336 + $0x141] sm:$0xff] %vm216, %v331
      %365 = vst.msk [vmem:[%s336 + $0x151] sm:$0xff] %vm216, %v332
      %366 = vst.msk [vmem:[%s336 + $0x159] sm:$0xff] %vm216, %v333
      %367 = vst.msk [vmem:[%s336 + $0x169] sm:$0xff] %vm216, %v334
      %368 = vst.msk [vmem:[%s336 + $0x171] sm:$0xff] %vm216, %v335
      %v369 = vld [vmem:[#allocation2] sm:$0xff]
      %v370 = vld [vmem:[#allocation2 + $0x8] sm:$0xff]
      %v371 = vld [vmem:[#allocation2 + $0x10] sm:$0x3]
      %v372 = vld [vmem:[#allocation2 + $0x18] sm:$0xff]
      %v373 = vld [vmem:[#allocation2 + $0x20] sm:$0xff]
      %v374 = vld [vmem:[#allocation2 + $0x28] sm:$0x3]
      %v375 = vld [vmem:[#allocation2 + $0x30] sm:$0xff]
      %v376 = vld [vmem:[#allocation2 + $0x38] sm:$0xff]
      %v377 = vld [vmem:[#allocation2 + $0x40] sm:$0x3]
      %v378 = vld [vmem:[#allocation2 + $0x48] sm:$0xff]
      %v379 = vld [vmem:[#allocation2 + $0x50] sm:$0xff]
      %v380 = vld [vmem:[#allocation2 + $0x58] sm:$0x3]
      %v381 = vld [vmem:[#allocation2 + $0x60] sm:$0xff]
      %v382 = vld [vmem:[#allocation2 + $0x68] sm:$0xff]
      %v383 = vld [vmem:[#allocation2 + $0x70] sm:$0x3]
      %v384 = vld [vmem:[#allocation2 + $0x78] sm:$0xff]
      %v385 = vld [vmem:[#allocation2 + $0x80] sm:$0xff]
      %v386 = vld [vmem:[#allocation2 + $0x88] sm:$0x3]
      %v387 = vld [vmem:[#allocation2 + $0x90] sm:$0xff]
      %v388 = vld [vmem:[#allocation2 + $0x98] sm:$0xff]
      %v389 = vld [vmem:[#allocation2 + $0xa0] sm:$0x3]
      %v390 = vld [vmem:[#allocation2 + $0xa8] sm:$0xff]
      %v391 = vld [vmem:[#allocation2 + $0xb0] sm:$0xff]
      %v392 = vld [vmem:[#allocation2 + $0xb8] sm:$0x3]
      %v393 = vld [vmem:[#allocation2 + $0xc0] sm:$0xff]
      %v394 = vld [vmem:[#allocation2 + $0xc8] sm:$0xff]
      %v395 = vld [vmem:[#allocation2 + $0xd0] sm:$0x3]
      %v396 = vld [vmem:[#allocation2 + $0xd8] sm:$0xff]
      %v397 = vld [vmem:[#allocation2 + $0xe0] sm:$0xff]
      %v398 = vld [vmem:[#allocation2 + $0xe8] sm:$0x3]
      %v399 = vld [vmem:[#allocation2 + $0xf0] sm:$0xff]
      %v400 = vld [vmem:[#allocation2 + $0xf8] sm:$0xff]
      %v401 = vld [vmem:[#allocation2 + $0x100] sm:$0x3]
      %v402 = vld [vmem:[#allocation2 + $0x108] sm:$0xff]
      %v403 = vld [vmem:[#allocation2 + $0x110] sm:$0xff]
      %v404 = vld [vmem:[#allocation2 + $0x118] sm:$0x3]
      %v405 = vld [vmem:[#allocation2 + $0x120] sm:$0xff]
      %v406 = vld [vmem:[#allocation2 + $0x128] sm:$0xff]
      %v407 = vld [vmem:[#allocation2 + $0x130] sm:$0x3]
      %v408 = vld [vmem:[#allocation2 + $0x138] sm:$0xff]
      %v409 = vld [vmem:[#allocation2 + $0x140] sm:$0xff]
      %v410 = vld [vmem:[#allocation2 + $0x148] sm:$0x3]
      %v411 = vld [vmem:[#allocation2 + $0x150] sm:$0xff]
      %v412 = vld [vmem:[#allocation2 + $0x158] sm:$0xff]
      %v413 = vld [vmem:[#allocation2 + $0x160] sm:$0x3]
      %v414 = vld [vmem:[#allocation2 + $0x168] sm:$0xff]
      %v415 = vld [vmem:[#allocation2 + $0x170] sm:$0xff]
      %v416 = vld [vmem:[#allocation2 + $0x178] sm:$0x3]
      %v417 = vld [vmem:[#allocation2 + $0x180] sm:$0xff]
      %v418 = vld [vmem:[#allocation2 + $0x188] sm:$0xff]
      %v419 = vld [vmem:[#allocation2 + $0x190] sm:$0x3]
      %v420 = vld [vmem:[#allocation2 + $0x198] sm:$0xff]
      %v421 = vld [vmem:[#allocation2 + $0x1a0] sm:$0xff]
      %v422 = vld [vmem:[#allocation2 + $0x1a8] sm:$0x3]
      %vm471 = vcmask 1046528
      %v472 = vrot.slane %v369, 1
      %v473 = vrot.slane %v370, 1
      %v474 = vsel %vm471, %v472, %v473
      %v475 = vrot.slane %v371, 1
      %v476 = vsel %vm471, %v473, %v475
      %v477 = vrot.slane %v372, 1
      %v478 = vrot.slane %v373, 1
      %v479 = vsel %vm471, %v477, %v478
      %v480 = vrot.slane %v374, 1
      %v481 = vsel %vm471, %v478, %v480
      %v482 = vrot.slane %v375, 1
      %v483 = vrot.slane %v376, 1
      %v484 = vsel %vm471, %v482, %v483
      %v485 = vrot.slane %v377, 1
      %v486 = vsel %vm471, %v483, %v485
      %v487 = vrot.slane %v378, 1
      %v488 = vrot.slane %v379, 1
      %v489 = vsel %vm471, %v487, %v488
      %v490 = vrot.slane %v380, 1
      %v491 = vsel %vm471, %v488, %v490
      %v492 = vrot.slane %v381, 1
      %v493 = vrot.slane %v382, 1
      %v494 = vsel %vm471, %v492, %v493
      %v495 = vrot.slane %v383, 1
      %v496 = vsel %vm471, %v493, %v495
      %v497 = vrot.slane %v384, 1
      %v498 = vrot.slane %v385, 1
      %v499 = vsel %vm471, %v497, %v498
      %v500 = vrot.slane %v386, 1
      %v501 = vsel %vm471, %v498, %v500
      %v502 = vrot.slane %v387, 1
      %v503 = vrot.slane %v388, 1
      %v504 = vsel %vm471, %v502, %v503
      %v505 = vrot.slane %v389, 1
      %v506 = vsel %vm471, %v503, %v505
      %v507 = vrot.slane %v390, 1
      %v508 = vrot.slane %v391, 1
      %v509 = vsel %vm471, %v507, %v508
      %v510 = vrot.slane %v392, 1
      %v511 = vsel %vm471, %v508, %v510
      %v512 = vrot.slane %v393, 1
      %v513 = vrot.slane %v394, 1
      %v514 = vsel %vm471, %v512, %v513
      %v515 = vrot.slane %v395, 1
      %v516 = vsel %vm471, %v513, %v515
      %v517 = vrot.slane %v396, 1
      %v518 = vrot.slane %v397, 1
      %v519 = vsel %vm471, %v517, %v518
      %v520 = vrot.slane %v398, 1
      %v521 = vsel %vm471, %v518, %v520
      %v522 = vrot.slane %v399, 1
      %v523 = vrot.slane %v400, 1
      %v524 = vsel %vm471, %v522, %v523
      %v525 = vrot.slane %v401, 1
      %v526 = vsel %vm471, %v523, %v525
      %v527 = vrot.slane %v402, 1
      %v528 = vrot.slane %v403, 1
      %v529 = vsel %vm471, %v527, %v528
      %v530 = vrot.slane %v404, 1
      %v531 = vsel %vm471, %v528, %v530
      %v532 = vrot.slane %v405, 1
      %v533 = vrot.slane %v406, 1
      %v534 = vsel %vm471, %v532, %v533
      %v535 = vrot.slane %v407, 1
      %v536 = vsel %vm471, %v533, %v535
      %v537 = vrot.slane %v408, 1
      %v538 = vrot.slane %v409, 1
      %v539 = vsel %vm471, %v537, %v538
      %v540 = vrot.slane %v410, 1
      %v541 = vsel %vm471, %v538, %v540
      %v542 = vrot.slane %v411, 1
      %v543 = vrot.slane %v412, 1
      %v544 = vsel %vm471, %v542, %v543
      %v545 = vrot.slane %v413, 1
      %v546 = vsel %vm471, %v543, %v545
      %v547 = vrot.slane %v414, 1
      %v548 = vrot.slane %v415, 1
      %v549 = vsel %vm471, %v547, %v548
      %v550 = vrot.slane %v416, 1
      %v551 = vsel %vm471, %v548, %v550
      %vm552 = vcmask 1045504
      %v553 = vrot.slane %v369, 2
      %v554 = vrot.slane %v370, 2
      %v555 = vsel %vm552, %v553, %v554
      %v556 = vrot.slane %v371, 2
      %v557 = vsel %vm552, %v554, %v556
      %v558 = vrot.slane %v372, 2
      %v559 = vrot.slane %v373, 2
      %v560 = vsel %vm552, %v558, %v559
      %v561 = vrot.slane %v374, 2
      %v562 = vsel %vm552, %v559, %v561
      %v563 = vrot.slane %v375, 2
      %v564 = vrot.slane %v376, 2
      %v565 = vsel %vm552, %v563, %v564
      %v566 = vrot.slane %v377, 2
      %v567 = vsel %vm552, %v564, %v566
      %v568 = vrot.slane %v378, 2
      %v569 = vrot.slane %v379, 2
      %v570 = vsel %vm552, %v568, %v569
      %v571 = vrot.slane %v380, 2
      %v572 = vsel %vm552, %v569, %v571
      %v573 = vrot.slane %v381, 2
      %v574 = vrot.slane %v382, 2
      %v575 = vsel %vm552, %v573, %v574
      %v576 = vrot.slane %v383, 2
      %v577 = vsel %vm552, %v574, %v576
      %v578 = vrot.slane %v384, 2
      %v579 = vrot.slane %v385, 2
      %v580 = vsel %vm552, %v578, %v579
      %v581 = vrot.slane %v386, 2
      %v582 = vsel %vm552, %v579, %v581
      %v583 = vrot.slane %v387, 2
      %v584 = vrot.slane %v388, 2
      %v585 = vsel %vm552, %v583, %v584
      %v586 = vrot.slane %v389, 2
      %v587 = vsel %vm552, %v584, %v586
      %v588 = vrot.slane %v390, 2
      %v589 = vrot.slane %v391, 2
      %v590 = vsel %vm552, %v588, %v589
      %v591 = vrot.slane %v392, 2
      %v592 = vsel %vm552, %v589, %v591
      %v593 = vrot.slane %v393, 2
      %v594 = vrot.slane %v394, 2
      %v595 = vsel %vm552, %v593, %v594
      %v596 = vrot.slane %v395, 2
      %v597 = vsel %vm552, %v594, %v596
      %v598 = vrot.slane %v396, 2
      %v599 = vrot.slane %v397, 2
      %v600 = vsel %vm552, %v598, %v599
      %v601 = vrot.slane %v398, 2
      %v602 = vsel %vm552, %v599, %v601
      %v603 = vrot.slane %v399, 2
      %v604 = vrot.slane %v400, 2
      %v605 = vsel %vm552, %v603, %v604
      %v606 = vrot.slane %v401, 2
      %v607 = vsel %vm552, %v604, %v606
      %v608 = vrot.slane %v402, 2
      %v609 = vrot.slane %v403, 2
      %v610 = vsel %vm552, %v608, %v609
      %v611 = vrot.slane %v404, 2
      %v612 = vsel %vm552, %v609, %v611
      %v613 = vrot.slane %v405, 2
      %v614 = vrot.slane %v406, 2
      %v615 = vsel %vm552, %v613, %v614
      %v616 = vrot.slane %v407, 2
      %v617 = vsel %vm552, %v614, %v616
      %v618 = vrot.slane %v408, 2
      %v619 = vrot.slane %v409, 2
      %v620 = vsel %vm552, %v618, %v619
      %v621 = vrot.slane %v410, 2
      %v622 = vsel %vm552, %v619, %v621
      %v623 = vrot.slane %v411, 2
      %v624 = vrot.slane %v412, 2
      %v625 = vsel %vm552, %v623, %v624
      %v626 = vrot.slane %v413, 2
      %v627 = vsel %vm552, %v624, %v626
      %v628 = vrot.slane %v414, 2
      %v629 = vrot.slane %v415, 2
      %v630 = vsel %vm552, %v628, %v629
      %v631 = vrot.slane %v416, 2
      %v632 = vsel %vm552, %v629, %v631
      %v636 = vrot.slane %v417, 1
      %v637 = vrot.slane %v418, 1
      %v638 = vsel %vm471, %v636, %v637
      %v639 = vrot.slane %v419, 1
      %v640 = vsel %vm471, %v637, %v639
      %v641 = vrot.slane %v417, 2
      %v642 = vrot.slane %v418, 2
      %v643 = vsel %vm552, %v641, %v642
      %v644 = vrot.slane %v419, 2
      %v645 = vsel %vm552, %v642, %v644
      %v649 = vrot.slane %v420, 1
      %v650 = vrot.slane %v421, 1
      %v651 = vsel %vm471, %v649, %v650
      %v652 = vrot.slane %v422, 1
      %v653 = vsel %vm471, %v650, %v652
      %v654 = vrot.slane %v420, 2
      %v655 = vrot.slane %v421, 2
      %v656 = vsel %vm552, %v654, %v655
      %v657 = vrot.slane %v422, 2
      %v658 = vsel %vm552, %v655, %v657
      %659 = vrot.lane.b32.xlu0 %v474, 6
      %v660 = vpop.permute.xlu0 %659
      %661 = vrot.lane.b32.xlu0 %v476, 6
      %v662 = vpop.permute.xlu0 %661
      %663 = vrot.lane.b32.xlu0 %v479, 6
      %v664 = vpop.permute.xlu0 %663
      %665 = vrot.lane.b32.xlu0 %v481, 6
      %v666 = vpop.permute.xlu0 %665
      %667 = vrot.lane.b32.xlu0 %v484, 6
      %v668 = vpop.permute.xlu0 %667
      %669 = vrot.lane.b32.xlu0 %v486, 6
      %v670 = vpop.permute.xlu0 %669
      %671 = vrot.lane.b32.xlu0 %v489, 6
      %v672 = vpop.permute.xlu0 %671
      %673 = vrot.lane.b32.xlu0 %v491, 6
      %v674 = vpop.permute.xlu0 %673
      %675 = vrot.lane.b32.xlu0 %v494, 6
      %v676 = vpop.permute.xlu0 %675
      %677 = vrot.lane.b32.xlu0 %v496, 6
      %v678 = vpop.permute.xlu0 %677
      %679 = vrot.lane.b32.xlu0 %v499, 6
      %v680 = vpop.permute.xlu0 %679
      %681 = vrot.lane.b32.xlu0 %v501, 6
      %v682 = vpop.permute.xlu0 %681
      %683 = vrot.lane.b32.xlu0 %v504, 6
      %v684 = vpop.permute.xlu0 %683
      %685 = vrot.lane.b32.xlu0 %v506, 6
      %v686 = vpop.permute.xlu0 %685
      %687 = vrot.lane.b32.xlu0 %v509, 6
      %v688 = vpop.permute.xlu0 %687
      %689 = vrot.lane.b32.xlu0 %v511, 6
      %v690 = vpop.permute.xlu0 %689
      %691 = vrot.lane.b32.xlu0 %v514, 6
      %v692 = vpop.permute.xlu0 %691
      %693 = vrot.lane.b32.xlu0 %v516, 6
      %v694 = vpop.permute.xlu0 %693
      %695 = vrot.lane.b32.xlu0 %v519, 6
      %v696 = vpop.permute.xlu0 %695
      %697 = vrot.lane.b32.xlu0 %v521, 6
      %v698 = vpop.permute.xlu0 %697
      %699 = vrot.lane.b32.xlu0 %v524, 6
      %v700 = vpop.permute.xlu0 %699
      %701 = vrot.lane.b32.xlu0 %v526, 6
      %v702 = vpop.permute.xlu0 %701
      %703 = vrot.lane.b32.xlu0 %v529, 6
      %v704 = vpop.permute.xlu0 %703
      %705 = vrot.lane.b32.xlu0 %v531, 6
      %v706 = vpop.permute.xlu0 %705
      %707 = vrot.lane.b32.xlu0 %v534, 6
      %v708 = vpop.permute.xlu0 %707
      %709 = vrot.lane.b32.xlu0 %v536, 6
      %v710 = vpop.permute.xlu0 %709
      %711 = vrot.lane.b32.xlu0 %v539, 6
      %v712 = vpop.permute.xlu0 %711
      %713 = vrot.lane.b32.xlu0 %v541, 6
      %v714 = vpop.permute.xlu0 %713
      %715 = vrot.lane.b32.xlu0 %v544, 6
      %v716 = vpop.permute.xlu0 %715
      %717 = vrot.lane.b32.xlu0 %v546, 6
      %v718 = vpop.permute.xlu0 %717
      %719 = vrot.lane.b32.xlu0 %v549, 6
      %v720 = vpop.permute.xlu0 %719
      %721 = vrot.lane.b32.xlu0 %v551, 6
      %v722 = vpop.permute.xlu0 %721
      %755 = vrot.lane.b32.xlu0 %v555, 12
      %v756 = vpop.permute.xlu0 %755
      %757 = vrot.lane.b32.xlu0 %v557, 12
      %v758 = vpop.permute.xlu0 %757
      %759 = vrot.lane.b32.xlu0 %v560, 12
      %v760 = vpop.permute.xlu0 %759
      %761 = vrot.lane.b32.xlu0 %v562, 12
      %v762 = vpop.permute.xlu0 %761
      %763 = vrot.lane.b32.xlu0 %v565, 12
      %v764 = vpop.permute.xlu0 %763
      %765 = vrot.lane.b32.xlu0 %v567, 12
      %v766 = vpop.permute.xlu0 %765
      %767 = vrot.lane.b32.xlu0 %v570, 12
      %v768 = vpop.permute.xlu0 %767
      %769 = vrot.lane.b32.xlu0 %v572, 12
      %v770 = vpop.permute.xlu0 %769
      %771 = vrot.lane.b32.xlu0 %v575, 12
      %v772 = vpop.permute.xlu0 %771
      %773 = vrot.lane.b32.xlu0 %v577, 12
      %v774 = vpop.permute.xlu0 %773
      %775 = vrot.lane.b32.xlu0 %v580, 12
      %v776 = vpop.permute.xlu0 %775
      %777 = vrot.lane.b32.xlu0 %v582, 12
      %v778 = vpop.permute.xlu0 %777
      %779 = vrot.lane.b32.xlu0 %v585, 12
      %v780 = vpop.permute.xlu0 %779
      %781 = vrot.lane.b32.xlu0 %v587, 12
      %v782 = vpop.permute.xlu0 %781
      %783 = vrot.lane.b32.xlu0 %v590, 12
      %v784 = vpop.permute.xlu0 %783
      %785 = vrot.lane.b32.xlu0 %v592, 12
      %v786 = vpop.permute.xlu0 %785
      %787 = vrot.lane.b32.xlu0 %v595, 12
      %v788 = vpop.permute.xlu0 %787
      %789 = vrot.lane.b32.xlu0 %v597, 12
      %v790 = vpop.permute.xlu0 %789
      %791 = vrot.lane.b32.xlu0 %v600, 12
      %v792 = vpop.permute.xlu0 %791
      %793 = vrot.lane.b32.xlu0 %v602, 12
      %v794 = vpop.permute.xlu0 %793
      %795 = vrot.lane.b32.xlu0 %v605, 12
      %v796 = vpop.permute.xlu0 %795
      %797 = vrot.lane.b32.xlu0 %v607, 12
      %v798 = vpop.permute.xlu0 %797
      %799 = vrot.lane.b32.xlu0 %v610, 12
      %v800 = vpop.permute.xlu0 %799
      %801 = vrot.lane.b32.xlu0 %v612, 12
      %v802 = vpop.permute.xlu0 %801
      %803 = vrot.lane.b32.xlu0 %v615, 12
      %v804 = vpop.permute.xlu0 %803
      %805 = vrot.lane.b32.xlu0 %v617, 12
      %v806 = vpop.permute.xlu0 %805
      %807 = vrot.lane.b32.xlu0 %v620, 12
      %v808 = vpop.permute.xlu0 %807
      %809 = vrot.lane.b32.xlu0 %v622, 12
      %v810 = vpop.permute.xlu0 %809
      %811 = vrot.lane.b32.xlu0 %v625, 12
      %v812 = vpop.permute.xlu0 %811
      %813 = vrot.lane.b32.xlu0 %v627, 12
      %v814 = vpop.permute.xlu0 %813
      %815 = vrot.lane.b32.xlu0 %v630, 12
      %v816 = vpop.permute.xlu0 %815
      %817 = vrot.lane.b32.xlu0 %v632, 12
      %v818 = vpop.permute.xlu0 %817
      %851 = vrot.lane.b32.xlu0 %v372, 18
      %v852 = vpop.permute.xlu0 %851
      %853 = vrot.lane.b32.xlu0 %v373, 18
      %v854 = vpop.permute.xlu0 %853
      %855 = vrot.lane.b32.xlu0 %v375, 18
      %v856 = vpop.permute.xlu0 %855
      %857 = vrot.lane.b32.xlu0 %v376, 18
      %v858 = vpop.permute.xlu0 %857
      %859 = vrot.lane.b32.xlu0 %v378, 18
      %v860 = vpop.permute.xlu0 %859
      %861 = vrot.lane.b32.xlu0 %v379, 18
      %v862 = vpop.permute.xlu0 %861
      %863 = vrot.lane.b32.xlu0 %v381, 18
      %v864 = vpop.permute.xlu0 %863
      %865 = vrot.lane.b32.xlu0 %v382, 18
      %v866 = vpop.permute.xlu0 %865
      %867 = vrot.lane.b32.xlu0 %v384, 18
      %v868 = vpop.permute.xlu0 %867
      %869 = vrot.lane.b32.xlu0 %v385, 18
      %v870 = vpop.permute.xlu0 %869
      %871 = vrot.lane.b32.xlu0 %v387, 18
      %v872 = vpop.permute.xlu0 %871
      %873 = vrot.lane.b32.xlu0 %v388, 18
      %v874 = vpop.permute.xlu0 %873
      %875 = vrot.lane.b32.xlu0 %v390, 18
      %v876 = vpop.permute.xlu0 %875
      %877 = vrot.lane.b32.xlu0 %v391, 18
      %v878 = vpop.permute.xlu0 %877
      %879 = vrot.lane.b32.xlu0 %v393, 18
      %v880 = vpop.permute.xlu0 %879
      %881 = vrot.lane.b32.xlu0 %v394, 18
      %v882 = vpop.permute.xlu0 %881
      %883 = vrot.lane.b32.xlu0 %v396, 18
      %v884 = vpop.permute.xlu0 %883
      %885 = vrot.lane.b32.xlu0 %v397, 18
      %v886 = vpop.permute.xlu0 %885
      %887 = vrot.lane.b32.xlu0 %v399, 18
      %v888 = vpop.permute.xlu0 %887
      %889 = vrot.lane.b32.xlu0 %v400, 18
      %v890 = vpop.permute.xlu0 %889
      %891 = vrot.lane.b32.xlu0 %v402, 18
      %v892 = vpop.permute.xlu0 %891
      %893 = vrot.lane.b32.xlu0 %v403, 18
      %v894 = vpop.permute.xlu0 %893
      %895 = vrot.lane.b32.xlu0 %v405, 18
      %v896 = vpop.permute.xlu0 %895
      %897 = vrot.lane.b32.xlu0 %v406, 18
      %v898 = vpop.permute.xlu0 %897
      %899 = vrot.lane.b32.xlu0 %v408, 18
      %v900 = vpop.permute.xlu0 %899
      %901 = vrot.lane.b32.xlu0 %v409, 18
      %v902 = vpop.permute.xlu0 %901
      %903 = vrot.lane.b32.xlu0 %v411, 18
      %v904 = vpop.permute.xlu0 %903
      %905 = vrot.lane.b32.xlu0 %v412, 18
      %v906 = vpop.permute.xlu0 %905
      %907 = vrot.lane.b32.xlu0 %v414, 18
      %v908 = vpop.permute.xlu0 %907
      %909 = vrot.lane.b32.xlu0 %v415, 18
      %v910 = vpop.permute.xlu0 %909
      %911 = vrot.lane.b32.xlu0 %v417, 18
      %v912 = vpop.permute.xlu0 %911
      %913 = vrot.lane.b32.xlu0 %v418, 18
      %v914 = vpop.permute.xlu0 %913
      %947 = vrot.lane.b32.xlu0 %v479, 24
      %v948 = vpop.permute.xlu0 %947
      %949 = vrot.lane.b32.xlu0 %v481, 24
      %v950 = vpop.permute.xlu0 %949
      %951 = vrot.lane.b32.xlu0 %v484, 24
      %v952 = vpop.permute.xlu0 %951
      %953 = vrot.lane.b32.xlu0 %v486, 24
      %v954 = vpop.permute.xlu0 %953
      %955 = vrot.lane.b32.xlu0 %v489, 24
      %v956 = vpop.permute.xlu0 %955
      %957 = vrot.lane.b32.xlu0 %v491, 24
      %v958 = vpop.permute.xlu0 %957
      %959 = vrot.lane.b32.xlu0 %v494, 24
      %v960 = vpop.permute.xlu0 %959
      %961 = vrot.lane.b32.xlu0 %v496, 24
      %v962 = vpop.permute.xlu0 %961
      %963 = vrot.lane.b32.xlu0 %v499, 24
      %v964 = vpop.permute.xlu0 %963
      %965 = vrot.lane.b32.xlu0 %v501, 24
      %v966 = vpop.permute.xlu0 %965
      %967 = vrot.lane.b32.xlu0 %v504, 24
      %v968 = vpop.permute.xlu0 %967
      %969 = vrot.lane.b32.xlu0 %v506, 24
      %v970 = vpop.permute.xlu0 %969
      %971 = vrot.lane.b32.xlu0 %v509, 24
      %v972 = vpop.permute.xlu0 %971
      %973 = vrot.lane.b32.xlu0 %v511, 24
      %v974 = vpop.permute.xlu0 %973
      %975 = vrot.lane.b32.xlu0 %v514, 24
      %v976 = vpop.permute.xlu0 %975
      %977 = vrot.lane.b32.xlu0 %v516, 24
      %v978 = vpop.permute.xlu0 %977
      %979 = vrot.lane.b32.xlu0 %v519, 24
      %v980 = vpop.permute.xlu0 %979
      %981 = vrot.lane.b32.xlu0 %v521, 24
      %v982 = vpop.permute.xlu0 %981
      %983 = vrot.lane.b32.xlu0 %v524, 24
      %v984 = vpop.permute.xlu0 %983
      %985 = vrot.lane.b32.xlu0 %v526, 24
      %v986 = vpop.permute.xlu0 %985
      %987 = vrot.lane.b32.xlu0 %v529, 24
      %v988 = vpop.permute.xlu0 %987
      %989 = vrot.lane.b32.xlu0 %v531, 24
      %v990 = vpop.permute.xlu0 %989
      %991 = vrot.lane.b32.xlu0 %v534, 24
      %v992 = vpop.permute.xlu0 %991
      %993 = vrot.lane.b32.xlu0 %v536, 24
      %v994 = vpop.permute.xlu0 %993
      %995 = vrot.lane.b32.xlu0 %v539, 24
      %v996 = vpop.permute.xlu0 %995
      %997 = vrot.lane.b32.xlu0 %v541, 24
      %v998 = vpop.permute.xlu0 %997
      %999 = vrot.lane.b32.xlu0 %v544, 24
      %v1000 = vpop.permute.xlu0 %999
      %1001 = vrot.lane.b32.xlu0 %v546, 24
      %v1002 = vpop.permute.xlu0 %1001
      %1003 = vrot.lane.b32.xlu0 %v549, 24
      %v1004 = vpop.permute.xlu0 %1003
      %1005 = vrot.lane.b32.xlu0 %v551, 24
      %v1006 = vpop.permute.xlu0 %1005
      %1007 = vrot.lane.b32.xlu0 %v638, 24
      %v1008 = vpop.permute.xlu0 %1007
      %1009 = vrot.lane.b32.xlu0 %v640, 24
      %v1010 = vpop.permute.xlu0 %1009
      %1043 = vrot.lane.b32.xlu0 %v560, 30
      %v1044 = vpop.permute.xlu0 %1043
      %1045 = vrot.lane.b32.xlu0 %v562, 30
      %v1046 = vpop.permute.xlu0 %1045
      %1047 = vrot.lane.b32.xlu0 %v565, 30
      %v1048 = vpop.permute.xlu0 %1047
      %1049 = vrot.lane.b32.xlu0 %v567, 30
      %v1050 = vpop.permute.xlu0 %1049
      %1051 = vrot.lane.b32.xlu0 %v570, 30
      %v1052 = vpop.permute.xlu0 %1051
      %1053 = vrot.lane.b32.xlu0 %v572, 30
      %v1054 = vpop.permute.xlu0 %1053
      %1055 = vrot.lane.b32.xlu0 %v575, 30
      %v1056 = vpop.permute.xlu0 %1055
      %1057 = vrot.lane.b32.xlu0 %v577, 30
      %v1058 = vpop.permute.xlu0 %1057
      %1059 = vrot.lane.b32.xlu0 %v580, 30
      %v1060 = vpop.permute.xlu0 %1059
      %1061 = vrot.lane.b32.xlu0 %v582, 30
      %v1062 = vpop.permute.xlu0 %1061
      %1063 = vrot.lane.b32.xlu0 %v585, 30
      %v1064 = vpop.permute.xlu0 %1063
      %1065 = vrot.lane.b32.xlu0 %v587, 30
      %v1066 = vpop.permute.xlu0 %1065
      %1067 = vrot.lane.b32.xlu0 %v590, 30
      %v1068 = vpop.permute.xlu0 %1067
      %1069 = vrot.lane.b32.xlu0 %v592, 30
      %v1070 = vpop.permute.xlu0 %1069
      %1071 = vrot.lane.b32.xlu0 %v595, 30
      %v1072 = vpop.permute.xlu0 %1071
      %1073 = vrot.lane.b32.xlu0 %v597, 30
      %v1074 = vpop.permute.xlu0 %1073
      %1075 = vrot.lane.b32.xlu0 %v600, 30
      %v1076 = vpop.permute.xlu0 %1075
      %1077 = vrot.lane.b32.xlu0 %v602, 30
      %v1078 = vpop.permute.xlu0 %1077
      %1079 = vrot.lane.b32.xlu0 %v605, 30
      %v1080 = vpop.permute.xlu0 %1079
      %1081 = vrot.lane.b32.xlu0 %v607, 30
      %v1082 = vpop.permute.xlu0 %1081
      %1083 = vrot.lane.b32.xlu0 %v610, 30
      %v1084 = vpop.permute.xlu0 %1083
      %1085 = vrot.lane.b32.xlu0 %v612, 30
      %v1086 = vpop.permute.xlu0 %1085
      %1087 = vrot.lane.b32.xlu0 %v615, 30
      %v1088 = vpop.permute.xlu0 %1087
      %1089 = vrot.lane.b32.xlu0 %v617, 30
      %v1090 = vpop.permute.xlu0 %1089
      %1091 = vrot.lane.b32.xlu0 %v620, 30
      %v1092 = vpop.permute.xlu0 %1091
      %1093 = vrot.lane.b32.xlu0 %v622, 30
      %v1094 = vpop.permute.xlu0 %1093
      %1095 = vrot.lane.b32.xlu0 %v625, 30
      %v1096 = vpop.permute.xlu0 %1095
      %1097 = vrot.lane.b32.xlu0 %v627, 30
      %v1098 = vpop.permute.xlu0 %1097
      %1099 = vrot.lane.b32.xlu0 %v630, 30
      %v1100 = vpop.permute.xlu0 %1099
      %1101 = vrot.lane.b32.xlu0 %v632, 30
      %v1102 = vpop.permute.xlu0 %1101
      %1103 = vrot.lane.b32.xlu0 %v643, 30
      %v1104 = vpop.permute.xlu0 %1103
      %1105 = vrot.lane.b32.xlu0 %v645, 30
      %v1106 = vpop.permute.xlu0 %1105
      %1139 = vrot.lane.b32.xlu0 %v375, 36
      %v1140 = vpop.permute.xlu0 %1139
      %1141 = vrot.lane.b32.xlu0 %v376, 36
      %v1142 = vpop.permute.xlu0 %1141
      %1143 = vrot.lane.b32.xlu0 %v378, 36
      %v1144 = vpop.permute.xlu0 %1143
      %1145 = vrot.lane.b32.xlu0 %v379, 36
      %v1146 = vpop.permute.xlu0 %1145
      %1147 = vrot.lane.b32.xlu0 %v381, 36
      %v1148 = vpop.permute.xlu0 %1147
      %1149 = vrot.lane.b32.xlu0 %v382, 36
      %v1150 = vpop.permute.xlu0 %1149
      %1151 = vrot.lane.b32.xlu0 %v384, 36
      %v1152 = vpop.permute.xlu0 %1151
      %1153 = vrot.lane.b32.xlu0 %v385, 36
      %v1154 = vpop.permute.xlu0 %1153
      %1155 = vrot.lane.b32.xlu0 %v387, 36
      %v1156 = vpop.permute.xlu0 %1155
      %1157 = vrot.lane.b32.xlu0 %v388, 36
      %v1158 = vpop.permute.xlu0 %1157
      %1159 = vrot.lane.b32.xlu0 %v390, 36
      %v1160 = vpop.permute.xlu0 %1159
      %1161 = vrot.lane.b32.xlu0 %v391, 36
      %v1162 = vpop.permute.xlu0 %1161
      %1163 = vrot.lane.b32.xlu0 %v393, 36
      %v1164 = vpop.permute.xlu0 %1163
      %1165 = vrot.lane.b32.xlu0 %v394, 36
      %v1166 = vpop.permute.xlu0 %1165
      %1167 = vrot.lane.b32.xlu0 %v396, 36
      %v1168 = vpop.permute.xlu0 %1167
      %1169 = vrot.lane.b32.xlu0 %v397, 36
      %v1170 = vpop.permute.xlu0 %1169
      %1171 = vrot.lane.b32.xlu0 %v399, 36
      %v1172 = vpop.permute.xlu0 %1171
      %1173 = vrot.lane.b32.xlu0 %v400, 36
      %v1174 = vpop.permute.xlu0 %1173
      %1175 = vrot.lane.b32.xlu0 %v402, 36
      %v1176 = vpop.permute.xlu0 %1175
      %1177 = vrot.lane.b32.xlu0 %v403, 36
      %v1178 = vpop.permute.xlu0 %1177
      %1179 = vrot.lane.b32.xlu0 %v405, 36
      %v1180 = vpop.permute.xlu0 %1179
      %1181 = vrot.lane.b32.xlu0 %v406, 36
      %v1182 = vpop.permute.xlu0 %1181
      %1183 = vrot.lane.b32.xlu0 %v408, 36
      %v1184 = vpop.permute.xlu0 %1183
      %1185 = vrot.lane.b32.xlu0 %v409, 36
      %v1186 = vpop.permute.xlu0 %1185
      %1187 = vrot.lane.b32.xlu0 %v411, 36
      %v1188 = vpop.permute.xlu0 %1187
      %1189 = vrot.lane.b32.xlu0 %v412, 36
      %v1190 = vpop.permute.xlu0 %1189
      %1191 = vrot.lane.b32.xlu0 %v414, 36
      %v1192 = vpop.permute.xlu0 %1191
      %1193 = vrot.lane.b32.xlu0 %v415, 36
      %v1194 = vpop.permute.xlu0 %1193
      %1195 = vrot.lane.b32.xlu0 %v417, 36
      %v1196 = vpop.permute.xlu0 %1195
      %1197 = vrot.lane.b32.xlu0 %v418, 36
      %v1198 = vpop.permute.xlu0 %1197
      %1199 = vrot.lane.b32.xlu0 %v420, 36
      %v1200 = vpop.permute.xlu0 %1199
      %1201 = vrot.lane.b32.xlu0 %v421, 36
      %v1202 = vpop.permute.xlu0 %1201
      %1235 = vrot.lane.b32.xlu0 %v484, 42
      %v1236 = vpop.permute.xlu0 %1235
      %1237 = vrot.lane.b32.xlu0 %v486, 42
      %v1238 = vpop.permute.xlu0 %1237
      %1239 = vrot.lane.b32.xlu0 %v489, 42
      %v1240 = vpop.permute.xlu0 %1239
      %1241 = vrot.lane.b32.xlu0 %v491, 42
      %v1242 = vpop.permute.xlu0 %1241
      %1243 = vrot.lane.b32.xlu0 %v494, 42
      %v1244 = vpop.permute.xlu0 %1243
      %1245 = vrot.lane.b32.xlu0 %v496, 42
      %v1246 = vpop.permute.xlu0 %1245
      %1247 = vrot.lane.b32.xlu0 %v499, 42
      %v1248 = vpop.permute.xlu0 %1247
      %1249 = vrot.lane.b32.xlu0 %v501, 42
      %v1250 = vpop.permute.xlu0 %1249
      %1251 = vrot.lane.b32.xlu0 %v504, 42
      %v1252 = vpop.permute.xlu0 %1251
      %1253 = vrot.lane.b32.xlu0 %v506, 42
      %v1254 = vpop.permute.xlu0 %1253
      %1255 = vrot.lane.b32.xlu0 %v509, 42
      %v1256 = vpop.permute.xlu0 %1255
      %1257 = vrot.lane.b32.xlu0 %v511, 42
      %v1258 = vpop.permute.xlu0 %1257
      %1259 = vrot.lane.b32.xlu0 %v514, 42
      %v1260 = vpop.permute.xlu0 %1259
      %1261 = vrot.lane.b32.xlu0 %v516, 42
      %v1262 = vpop.permute.xlu0 %1261
      %1263 = vrot.lane.b32.xlu0 %v519, 42
      %v1264 = vpop.permute.xlu0 %1263
      %1265 = vrot.lane.b32.xlu0 %v521, 42
      %v1266 = vpop.permute.xlu0 %1265
      %1267 = vrot.lane.b32.xlu0 %v524, 42
      %v1268 = vpop.permute.xlu0 %1267
      %1269 = vrot.lane.b32.xlu0 %v526, 42
      %v1270 = vpop.permute.xlu0 %1269
      %1271 = vrot.lane.b32.xlu0 %v529, 42
      %v1272 = vpop.permute.xlu0 %1271
      %1273 = vrot.lane.b32.xlu0 %v531, 42
      %v1274 = vpop.permute.xlu0 %1273
      %1275 = vrot.lane.b32.xlu0 %v534, 42
      %v1276 = vpop.permute.xlu0 %1275
      %1277 = vrot.lane.b32.xlu0 %v536, 42
      %v1278 = vpop.permute.xlu0 %1277
      %1279 = vrot.lane.b32.xlu0 %v539, 42
      %v1280 = vpop.permute.xlu0 %1279
      %1281 = vrot.lane.b32.xlu0 %v541, 42
      %v1282 = vpop.permute.xlu0 %1281
      %1283 = vrot.lane.b32.xlu0 %v544, 42
      %v1284 = vpop.permute.xlu0 %1283
      %1285 = vrot.lane.b32.xlu0 %v546, 42
      %v1286 = vpop.permute.xlu0 %1285
      %1287 = vrot.lane.b32.xlu0 %v549, 42
      %v1288 = vpop.permute.xlu0 %1287
      %1289 = vrot.lane.b32.xlu0 %v551, 42
      %v1290 = vpop.permute.xlu0 %1289
      %1291 = vrot.lane.b32.xlu0 %v638, 42
      %v1292 = vpop.permute.xlu0 %1291
      %1293 = vrot.lane.b32.xlu0 %v640, 42
      %v1294 = vpop.permute.xlu0 %1293
      %1295 = vrot.lane.b32.xlu0 %v651, 42
      %v1296 = vpop.permute.xlu0 %1295
      %1297 = vrot.lane.b32.xlu0 %v653, 42
      %v1298 = vpop.permute.xlu0 %1297
      %1331 = vrot.lane.b32.xlu0 %v565, 48
      %v1332 = vpop.permute.xlu0 %1331
      %1333 = vrot.lane.b32.xlu0 %v567, 48
      %v1334 = vpop.permute.xlu0 %1333
      %1335 = vrot.lane.b32.xlu0 %v570, 48
      %v1336 = vpop.permute.xlu0 %1335
      %1337 = vrot.lane.b32.xlu0 %v572, 48
      %v1338 = vpop.permute.xlu0 %1337
      %1339 = vrot.lane.b32.xlu0 %v575, 48
      %v1340 = vpop.permute.xlu0 %1339
      %1341 = vrot.lane.b32.xlu0 %v577, 48
      %v1342 = vpop.permute.xlu0 %1341
      %1343 = vrot.lane.b32.xlu0 %v580, 48
      %v1344 = vpop.permute.xlu0 %1343
      %1345 = vrot.lane.b32.xlu0 %v582, 48
      %v1346 = vpop.permute.xlu0 %1345
      %1347 = vrot.lane.b32.xlu0 %v585, 48
      %v1348 = vpop.permute.xlu0 %1347
      %1349 = vrot.lane.b32.xlu0 %v587, 48
      %v1350 = vpop.permute.xlu0 %1349
      %1351 = vrot.lane.b32.xlu0 %v590, 48
      %v1352 = vpop.permute.xlu0 %1351
      %1353 = vrot.lane.b32.xlu0 %v592, 48
      %v1354 = vpop.permute.xlu0 %1353
      %1355 = vrot.lane.b32.xlu0 %v595, 48
      %v1356 = vpop.permute.xlu0 %1355
      %1357 = vrot.lane.b32.xlu0 %v597, 48
      %v1358 = vpop.permute.xlu0 %1357
      %1359 = vrot.lane.b32.xlu0 %v600, 48
      %v1360 = vpop.permute.xlu0 %1359
      %1361 = vrot.lane.b32.xlu0 %v602, 48
      %v1362 = vpop.permute.xlu0 %1361
      %1363 = vrot.lane.b32.xlu0 %v605, 48
      %v1364 = vpop.permute.xlu0 %1363
      %1365 = vrot.lane.b32.xlu0 %v607, 48
      %v1366 = vpop.permute.xlu0 %1365
      %1367 = vrot.lane.b32.xlu0 %v610, 48
      %v1368 = vpop.permute.xlu0 %1367
      %1369 = vrot.lane.b32.xlu0 %v612, 48
      %v1370 = vpop.permute.xlu0 %1369
      %1371 = vrot.lane.b32.xlu0 %v615, 48
      %v1372 = vpop.permute.xlu0 %1371
      %1373 = vrot.lane.b32.xlu0 %v617, 48
      %v1374 = vpop.permute.xlu0 %1373
      %1375 = vrot.lane.b32.xlu0 %v620, 48
      %v1376 = vpop.permute.xlu0 %1375
      %1377 = vrot.lane.b32.xlu0 %v622, 48
      %v1378 = vpop.permute.xlu0 %1377
      %1379 = vrot.lane.b32.xlu0 %v625, 48
      %v1380 = vpop.permute.xlu0 %1379
      %1381 = vrot.lane.b32.xlu0 %v627, 48
      %v1382 = vpop.permute.xlu0 %1381
      %1383 = vrot.lane.b32.xlu0 %v630, 48
      %v1384 = vpop.permute.xlu0 %1383
      %1385 = vrot.lane.b32.xlu0 %v632, 48
      %v1386 = vpop.permute.xlu0 %1385
      %1387 = vrot.lane.b32.xlu0 %v643, 48
      %v1388 = vpop.permute.xlu0 %1387
      %1389 = vrot.lane.b32.xlu0 %v645, 48
      %v1390 = vpop.permute.xlu0 %1389
      %1391 = vrot.lane.b32.xlu0 %v656, 48
      %v1392 = vpop.permute.xlu0 %1391
      %1393 = vrot.lane.b32.xlu0 %v658, 48
      %v1394 = vpop.permute.xlu0 %1393
      %v1427 = vsel %vm216, %v369, %v660
      %v1428 = vsel %vm216, %v370, %v662
      %v1429 = vsel %vm216, %v372, %v664
      %v1430 = vsel %vm216, %v373, %v666
      %v1431 = vsel %vm216, %v375, %v668
      %v1432 = vsel %vm216, %v376, %v670
      %v1433 = vsel %vm216, %v378, %v672
      %v1434 = vsel %vm216, %v379, %v674
      %v1435 = vsel %vm216, %v381, %v676
      %v1436 = vsel %vm216, %v382, %v678
      %v1437 = vsel %vm216, %v384, %v680
      %v1438 = vsel %vm216, %v385, %v682
      %v1439 = vsel %vm216, %v387, %v684
      %v1440 = vsel %vm216, %v388, %v686
      %v1441 = vsel %vm216, %v390, %v688
      %v1442 = vsel %vm216, %v391, %v690
      %v1443 = vsel %vm216, %v393, %v692
      %v1444 = vsel %vm216, %v394, %v694
      %v1445 = vsel %vm216, %v396, %v696
      %v1446 = vsel %vm216, %v397, %v698
      %v1447 = vsel %vm216, %v399, %v700
      %v1448 = vsel %vm216, %v400, %v702
      %v1449 = vsel %vm216, %v402, %v704
      %v1450 = vsel %vm216, %v403, %v706
      %v1451 = vsel %vm216, %v405, %v708
      %v1452 = vsel %vm216, %v406, %v710
      %v1453 = vsel %vm216, %v408, %v712
      %v1454 = vsel %vm216, %v409, %v714
      %v1455 = vsel %vm216, %v411, %v716
      %v1456 = vsel %vm216, %v412, %v718
      %v1457 = vsel %vm216, %v414, %v720
      %v1458 = vsel %vm216, %v415, %v722
      %vm1459 = vcmask 97280
      %v1460 = vsel %vm1459, %v1427, %v756
      %v1461 = vsel %vm1459, %v1428, %v758
      %v1462 = vsel %vm1459, %v1429, %v760
      %v1463 = vsel %vm1459, %v1430, %v762
      %v1464 = vsel %vm1459, %v1431, %v764
      %v1465 = vsel %vm1459, %v1432, %v766
      %v1466 = vsel %vm1459, %v1433, %v768
      %v1467 = vsel %vm1459, %v1434, %v770
      %v1468 = vsel %vm1459, %v1435, %v772
      %v1469 = vsel %vm1459, %v1436, %v774
      %v1470 = vsel %vm1459, %v1437, %v776
      %v1471 = vsel %vm1459, %v1438, %v778
      %v1472 = vsel %vm1459, %v1439, %v780
      %v1473 = vsel %vm1459, %v1440, %v782
      %v1474 = vsel %vm1459, %v1441, %v784
      %v1475 = vsel %vm1459, %v1442, %v786
      %v1476 = vsel %vm1459, %v1443, %v788
      %v1477 = vsel %vm1459, %v1444, %v790
      %v1478 = vsel %vm1459, %v1445, %v792
      %v1479 = vsel %vm1459, %v1446, %v794
      %v1480 = vsel %vm1459, %v1447, %v796
      %v1481 = vsel %vm1459, %v1448, %v798
      %v1482 = vsel %vm1459, %v1449, %v800
      %v1483 = vsel %vm1459, %v1450, %v802
      %v1484 = vsel %vm1459, %v1451, %v804
      %v1485 = vsel %vm1459, %v1452, %v806
      %v1486 = vsel %vm1459, %v1453, %v808
      %v1487 = vsel %vm1459, %v1454, %v810
      %v1488 = vsel %vm1459, %v1455, %v812
      %v1489 = vsel %vm1459, %v1456, %v814
      %v1490 = vsel %vm1459, %v1457, %v816
      %v1491 = vsel %vm1459, %v1458, %v818
      %vm1492 = vcmask 146432
      %v1493 = vsel %vm1492, %v1460, %v852
      %v1494 = vsel %vm1492, %v1461, %v854
      %v1495 = vsel %vm1492, %v1462, %v856
      %v1496 = vsel %vm1492, %v1463, %v858
      %v1497 = vsel %vm1492, %v1464, %v860
      %v1498 = vsel %vm1492, %v1465, %v862
      %v1499 = vsel %vm1492, %v1466, %v864
      %v1500 = vsel %vm1492, %v1467, %v866
      %v1501 = vsel %vm1492, %v1468, %v868
      %v1502 = vsel %vm1492, %v1469, %v870
      %v1503 = vsel %vm1492, %v1470, %v872
      %v1504 = vsel %vm1492, %v1471, %v874
      %v1505 = vsel %vm1492, %v1472, %v876
      %v1506 = vsel %vm1492, %v1473, %v878
      %v1507 = vsel %vm1492, %v1474, %v880
      %v1508 = vsel %vm1492, %v1475, %v882
      %v1509 = vsel %vm1492, %v1476, %v884
      %v1510 = vsel %vm1492, %v1477, %v886
      %v1511 = vsel %vm1492, %v1478, %v888
      %v1512 = vsel %vm1492, %v1479, %v890
      %v1513 = vsel %vm1492, %v1480, %v892
      %v1514 = vsel %vm1492, %v1481, %v894
      %v1515 = vsel %vm1492, %v1482, %v896
      %v1516 = vsel %vm1492, %v1483, %v898
      %v1517 = vsel %vm1492, %v1484, %v900
      %v1518 = vsel %vm1492, %v1485, %v902
      %v1519 = vsel %vm1492, %v1486, %v904
      %v1520 = vsel %vm1492, %v1487, %v906
      %v1521 = vsel %vm1492, %v1488, %v908
      %v1522 = vsel %vm1492, %v1489, %v910
      %v1523 = vsel %vm1492, %v1490, %v912
      %v1524 = vsel %vm1492, %v1491, %v914
      %vm1525 = vcmask 195584
      %v1526 = vsel %vm1525, %v1493, %v948
      %v1527 = vsel %vm1525, %v1494, %v950
      %v1528 = vsel %vm1525, %v1495, %v952
      %v1529 = vsel %vm1525, %v1496, %v954
      %v1530 = vsel %vm1525, %v1497, %v956
      %v1531 = vsel %vm1525, %v1498, %v958
      %v1532 = vsel %vm1525, %v1499, %v960
      %v1533 = vsel %vm1525, %v1500, %v962
      %v1534 = vsel %vm1525, %v1501, %v964
      %v1535 = vsel %vm1525, %v1502, %v966
      %v1536 = vsel %vm1525, %v1503, %v968
      %v1537 = vsel %vm1525, %v1504, %v970
      %v1538 = vsel %vm1525, %v1505, %v972
      %v1539 = vsel %vm1525, %v1506, %v974
      %v1540 = vsel %vm1525, %v1507, %v976
      %v1541 = vsel %vm1525, %v1508, %v978
      %v1542 = vsel %vm1525, %v1509, %v980
      %v1543 = vsel %vm1525, %v1510, %v982
      %v1544 = vsel %vm1525, %v1511, %v984
      %v1545 = vsel %vm1525, %v1512, %v986
      %v1546 = vsel %vm1525, %v1513, %v988
      %v1547 = vsel %vm1525, %v1514, %v990
      %v1548 = vsel %vm1525, %v1515, %v992
      %v1549 = vsel %vm1525, %v1516, %v994
      %v1550 = vsel %vm1525, %v1517, %v996
      %v1551 = vsel %vm1525, %v1518, %v998
      %v1552 = vsel %vm1525, %v1519, %v1000
      %v1553 = vsel %vm1525, %v1520, %v1002
      %v1554 = vsel %vm1525, %v1521, %v1004
      %v1555 = vsel %vm1525, %v1522, %v1006
      %v1556 = vsel %vm1525, %v1523, %v1008
      %v1557 = vsel %vm1525, %v1524, %v1010
      %vm1558 = vcmask 244736
      %v1559 = vsel %vm1558, %v1526, %v1044
      %v1560 = vsel %vm1558, %v1527, %v1046
      %v1561 = vsel %vm1558, %v1528, %v1048
      %v1562 = vsel %vm1558, %v1529, %v1050
      %v1563 = vsel %vm1558, %v1530, %v1052
      %v1564 = vsel %vm1558, %v1531, %v1054
      %v1565 = vsel %vm1558, %v1532, %v1056
      %v1566 = vsel %vm1558, %v1533, %v1058
      %v1567 = vsel %vm1558, %v1534, %v1060
      %v1568 = vsel %vm1558, %v1535, %v1062
      %v1569 = vsel %vm1558, %v1536, %v1064
      %v1570 = vsel %vm1558, %v1537, %v1066
      %v1571 = vsel %vm1558, %v1538, %v1068
      %v1572 = vsel %vm1558, %v1539, %v1070
      %v1573 = vsel %vm1558, %v1540, %v1072
      %v1574 = vsel %vm1558, %v1541, %v1074
      %v1575 = vsel %vm1558, %v1542, %v1076
      %v1576 = vsel %vm1558, %v1543, %v1078
      %v1577 = vsel %vm1558, %v1544, %v1080
      %v1578 = vsel %vm1558, %v1545, %v1082
      %v1579 = vsel %vm1558, %v1546, %v1084
      %v1580 = vsel %vm1558, %v1547, %v1086
      %v1581 = vsel %vm1558, %v1548, %v1088
      %v1582 = vsel %vm1558, %v1549, %v1090
      %v1583 = vsel %vm1558, %v1550, %v1092
      %v1584 = vsel %vm1558, %v1551, %v1094
      %v1585 = vsel %vm1558, %v1552, %v1096
      %v1586 = vsel %vm1558, %v1553, %v1098
      %v1587 = vsel %vm1558, %v1554, %v1100
      %v1588 = vsel %vm1558, %v1555, %v1102
      %v1589 = vsel %vm1558, %v1556, %v1104
      %v1590 = vsel %vm1558, %v1557, %v1106
      %vm1591 = vcmask 293888
      %v1592 = vsel %vm1591, %v1559, %v1140
      %v1593 = vsel %vm1591, %v1560, %v1142
      %v1594 = vsel %vm1591, %v1561, %v1144
      %v1595 = vsel %vm1591, %v1562, %v1146
      %v1596 = vsel %vm1591, %v1563, %v1148
      %v1597 = vsel %vm1591, %v1564, %v1150
      %v1598 = vsel %vm1591, %v1565, %v1152
      %v1599 = vsel %vm1591, %v1566, %v1154
      %v1600 = vsel %vm1591, %v1567, %v1156
      %v1601 = vsel %vm1591, %v1568, %v1158
      %v1602 = vsel %vm1591, %v1569, %v1160
      %v1603 = vsel %vm1591, %v1570, %v1162
      %v1604 = vsel %vm1591, %v1571, %v1164
      %v1605 = vsel %vm1591, %v1572, %v1166
      %v1606 = vsel %vm1591, %v1573, %v1168
      %v1607 = vsel %vm1591, %v1574, %v1170
      %v1608 = vsel %vm1591, %v1575, %v1172
      %v1609 = vsel %vm1591, %v1576, %v1174
      %v1610 = vsel %vm1591, %v1577, %v1176
      %v1611 = vsel %vm1591, %v1578, %v1178
      %v1612 = vsel %vm1591, %v1579, %v1180
      %v1613 = vsel %vm1591, %v1580, %v1182
      %v1614 = vsel %vm1591, %v1581, %v1184
      %v1615 = vsel %vm1591, %v1582, %v1186
      %v1616 = vsel %vm1591, %v1583, %v1188
      %v1617 = vsel %vm1591, %v1584, %v1190
      %v1618 = vsel %vm1591, %v1585, %v1192
      %v1619 = vsel %vm1591, %v1586, %v1194
      %v1620 = vsel %vm1591, %v1587, %v1196
      %v1621 = vsel %vm1591, %v1588, %v1198
      %v1622 = vsel %vm1591, %v1589, %v1200
      %v1623 = vsel %vm1591, %v1590, %v1202
      %vm1624 = vcmask 343040
      %v1625 = vsel %vm1624, %v1592, %v1236
      %v1626 = vsel %vm1624, %v1593, %v1238
      %v1627 = vsel %vm1624, %v1594, %v1240
      %v1628 = vsel %vm1624, %v1595, %v1242
      %v1629 = vsel %vm1624, %v1596, %v1244
      %v1630 = vsel %vm1624, %v1597, %v1246
      %v1631 = vsel %vm1624, %v1598, %v1248
      %v1632 = vsel %vm1624, %v1599, %v1250
      %v1633 = vsel %vm1624, %v1600, %v1252
      %v1634 = vsel %vm1624, %v1601, %v1254
      %v1635 = vsel %vm1624, %v1602, %v1256
      %v1636 = vsel %vm1624, %v1603, %v1258
      %v1637 = vsel %vm1624, %v1604, %v1260
      %v1638 = vsel %vm1624, %v1605, %v1262
      %v1639 = vsel %vm1624, %v1606, %v1264
      %v1640 = vsel %vm1624, %v1607, %v1266
      %v1641 = vsel %vm1624, %v1608, %v1268
      %v1642 = vsel %vm1624, %v1609, %v1270
      %v1643 = vsel %vm1624, %v1610, %v1272
      %v1644 = vsel %vm1624, %v1611, %v1274
      %v1645 = vsel %vm1624, %v1612, %v1276
      %v1646 = vsel %vm1624, %v1613, %v1278
      %v1647 = vsel %vm1624, %v1614, %v1280
      %v1648 = vsel %vm1624, %v1615, %v1282
      %v1649 = vsel %vm1624, %v1616, %v1284
      %v1650 = vsel %vm1624, %v1617, %v1286
      %v1651 = vsel %vm1624, %v1618, %v1288
      %v1652 = vsel %vm1624, %v1619, %v1290
      %v1653 = vsel %vm1624, %v1620, %v1292
      %v1654 = vsel %vm1624, %v1621, %v1294
      %v1655 = vsel %vm1624, %v1622, %v1296
      %v1656 = vsel %vm1624, %v1623, %v1298
      %vm1657 = vcmask 392192
      %v1658 = vsel %vm1657, %v1625, %v1332
      %v1659 = vsel %vm1657, %v1626, %v1334
      %v1660 = vsel %vm1657, %v1627, %v1336
      %v1661 = vsel %vm1657, %v1628, %v1338
      %v1662 = vsel %vm1657, %v1629, %v1340
      %v1663 = vsel %vm1657, %v1630, %v1342
      %v1664 = vsel %vm1657, %v1631, %v1344
      %v1665 = vsel %vm1657, %v1632, %v1346
      %v1666 = vsel %vm1657, %v1633, %v1348
      %v1667 = vsel %vm1657, %v1634, %v1350
      %v1668 = vsel %vm1657, %v1635, %v1352
      %v1669 = vsel %vm1657, %v1636, %v1354
      %v1670 = vsel %vm1657, %v1637, %v1356
      %v1671 = vsel %vm1657, %v1638, %v1358
      %v1672 = vsel %vm1657, %v1639, %v1360
      %v1673 = vsel %vm1657, %v1640, %v1362
      %v1674 = vsel %vm1657, %v1641, %v1364
      %v1675 = vsel %vm1657, %v1642, %v1366
      %v1676 = vsel %vm1657, %v1643, %v1368
      %v1677 = vsel %vm1657, %v1644, %v1370
      %v1678 = vsel %vm1657, %v1645, %v1372
      %v1679 = vsel %vm1657, %v1646, %v1374
      %v1680 = vsel %vm1657, %v1647, %v1376
      %v1681 = vsel %vm1657, %v1648, %v1378
      %v1682 = vsel %vm1657, %v1649, %v1380
      %v1683 = vsel %vm1657, %v1650, %v1382
      %v1684 = vsel %vm1657, %v1651, %v1384
      %v1685 = vsel %vm1657, %v1652, %v1386
      %v1686 = vsel %vm1657, %v1653, %v1388
      %v1687 = vsel %vm1657, %v1654, %v1390
      %v1688 = vsel %vm1657, %v1655, %v1392
      %v1689 = vsel %vm1657, %v1656, %v1394
      %v1690 = vpack.c.bf16 %v1659, %v1658
      %v1691 = vpack.c.bf16 %v1661, %v1660
      %v1692 = vpack.c.bf16 %v1663, %v1662
      %v1693 = vpack.c.bf16 %v1665, %v1664
      %v1694 = vpack.c.bf16 %v1667, %v1666
      %v1695 = vpack.c.bf16 %v1669, %v1668
      %v1696 = vpack.c.bf16 %v1671, %v1670
      %v1697 = vpack.c.bf16 %v1673, %v1672
      %v1698 = vpack.c.bf16 %v1675, %v1674
      %v1699 = vpack.c.bf16 %v1677, %v1676
      %v1700 = vpack.c.bf16 %v1679, %v1678
      %v1701 = vpack.c.bf16 %v1681, %v1680
      %v1702 = vpack.c.bf16 %v1683, %v1682
      %v1703 = vpack.c.bf16 %v1685, %v1684
      %v1704 = vpack.c.bf16 %v1687, %v1686
      %v1705 = vpack.c.bf16 %v1689, %v1688
      %v1706 = vld [vmem:[%s1] sm:$0xf]
      %v1707 = vld [vmem:[%s1 + $0x4] sm:$0xf]
      %v1708 = vld [vmem:[%s1 + $0x8] sm:$0xf]
      %v1709 = vld [vmem:[%s1 + $0xc] sm:$0xf]
      %v1710 = vld [vmem:[%s1 + $0x10] sm:$0xf]
      %v1711 = vld [vmem:[%s1 + $0x14] sm:$0xf]
      %v1712 = vld [vmem:[%s1 + $0x18] sm:$0x7]
      %v1720 = vunpack.c.l.b16 %v1706
      %v1721 = vunpack.c.l.b16 %v1707
      %v1722 = vunpack.c.l.b16 %v1708
      %v1723 = vunpack.c.l.b16 %v1709
      %v1724 = vunpack.c.l.b16 %v1710
      %v1725 = vunpack.c.l.b16 %v1711
      %v1726 = vunpack.c.l.b16 %v1712
      %v1727 = vpack.c.b16 %v1721, %v1720
      %v1728 = vpack.c.b16 %v1723, %v1722
      %v1729 = vpack.c.b16 %v1725, %v1724
      %v1730 = vpack.c.b16 %v1726, %v1726
      %vm1734 = vcmask 441344
      %v1736 = vsel %vm1734, %v1690, 0
      %v1739 = vsel %vm1734, %v1691, 0
      %v1742 = vsel %vm1734, %v1692, 0
      %v1745 = vsel %vm1734, %v1693, 0
      %v1748 = vsel %vm1734, %v1694, 0
      %v1751 = vsel %vm1734, %v1695, 0
      %v1754 = vsel %vm1734, %v1696, 0
      %v1757 = vsel %vm1734, %v1697, 0
      %v1760 = vsel %vm1734, %v1698, 0
      %v1763 = vsel %vm1734, %v1699, 0
      %v1766 = vsel %vm1734, %v1700, 0
      %v1769 = vsel %vm1734, %v1701, 0
      %v1772 = vsel %vm1734, %v1702, 0
      %v1775 = vsel %vm1734, %v1703, 0
      %v1778 = vsel %vm1734, %v1704, 0
      %v1781 = vsel %vm1734, %v1705, 0
      %vm1783 = vcmask 1042432
      %v1785 = vsel %vm1783, %v1730, 0
      %1787 = vmatprep.subr.bf16.mxu0 0
      %1788 = vmatpush1.bf16.msra.mxu0 %v1727
      %1789 = vmatprep.subr.bf16.mxu0 0
      %1790 = vmatpush1.bf16.msra.mxu0 %v1728
      %1791 = vmatprep.subr.bf16.mxu0 0
      %1792 = vmatpush1.bf16.msra.mxu0 %v1729
      %1793 = vmatprep.subr.bf16.mxu0 0
      %1794 = vmatpush1.bf16.msra.mxu0 %v1785
      %1795 = vmatprep.subr.bf16.mxu0 0
      %1796 = vmatpush1.bf16.msra.mxu0 0
      %1797 = vmatprep.subr.bf16.mxu0 0
      %1798 = vmatpush1.bf16.msra.mxu0 0
      %1799 = vmatprep.subr.bf16.mxu0 0
      %1800 = vmatpush1.bf16.msra.mxu0 0
      %1801 = vmatprep.subr.bf16.mxu0 0
      %1802 = vmatpush1.bf16.msra.mxu0 0
      %1803 = vmatprep.subr.bf16.mxu0 0
      %1804 = vmatpush1.bf16.msra.mxu0 0
      %1805 = vmatprep.subr.bf16.mxu0 0
      %1806 = vmatpush1.bf16.msra.mxu0 0
      %1807 = vmatprep.subr.bf16.mxu0 0
      %1808 = vmatpush1.bf16.msra.mxu0 0
      %1809 = vmatprep.subr.bf16.mxu0 0
      %1810 = vmatpush1.bf16.msra.mxu0 0
      %1811 = vmatprep.subr.bf16.mxu0 0
      %1812 = vmatpush1.bf16.msra.mxu0 0
      %1813 = vmatprep.subr.bf16.mxu0 0
      %1814 = vmatpush1.bf16.msra.mxu0 0
      %1815 = vmatprep.subr.bf16.mxu0 0
      %1816 = vmatpush1.bf16.msra.mxu0 0
      %1817 = vmatprep.subr.bf16.mxu0 0
      %1818 = vmatpush1.bf16.msra.mxu0 0
      %1819 = vmatprep.mubr.bf16.mxu0 0
      %1820 = vmatmul.mubr.bf16.gmra.mrb[0].mxu0 %v1736
      %v1821 = vpop.f32.mrb[0].mxu0
      %v1822 = vadd.f32 0.0, %v1821
      %v1823 = vpop.f32.mrb[0].mxu0
      %v1824 = vpop.f32.mrb[0].mxu0
      %v1825 = vadd.f32 0.0, %v1824
      %v1826 = vpop.f32.mrb[0].mxu0
      %1827 = vmatprep.mubr.bf16.mxu0 0
      %1828 = vmatmul.mubr.bf16.gmra.mrb[0].mxu0 %v1739
      %v1829 = vpop.f32.mrb[0].mxu0
      %v1830 = vadd.f32 0.0, %v1829
      %v1831 = vpop.f32.mrb[0].mxu0
      %v1832 = vpop.f32.mrb[0].mxu0
      %v1833 = vadd.f32 0.0, %v1832
      %v1834 = vpop.f32.mrb[0].mxu0
      %1835 = vmatprep.mubr.bf16.mxu0 0
      %1836 = vmatmul.mubr.bf16.gmra.mrb[0].mxu0 %v1742
      %v1837 = vpop.f32.mrb[0].mxu0
      %v1838 = vadd.f32 0.0, %v1837
      %v1839 = vpop.f32.mrb[0].mxu0
      %v1840 = vpop.f32.mrb[0].mxu0
      %v1841 = vadd.f32 0.0, %v1840
      %v1842 = vpop.f32.mrb[0].mxu0
      %1843 = vmatprep.mubr.bf16.mxu0 0
      %1844 = vmatmul.mubr.bf16.gmra.mrb[0].mxu0 %v1745
      %v1845 = vpop.f32.mrb[0].mxu0
      %v1846 = vadd.f32 0.0, %v1845
      %v1847 = vpop.f32.mrb[0].mxu0
      %v1848 = vpop.f32.mrb[0].mxu0
      %v1849 = vadd.f32 0.0, %v1848
      %v1850 = vpop.f32.mrb[0].mxu0
      %1851 = vmatprep.mubr.bf16.mxu0 0
      %1852 = vmatmul.mubr.bf16.gmra.mrb[0].mxu0 %v1748
      %v1853 = vpop.f32.mrb[0].mxu0
      %v1854 = vadd.f32 0.0, %v1853
      %v1855 = vpop.f32.mrb[0].mxu0
      %v1856 = vpop.f32.mrb[0].mxu0
      %v1857 = vadd.f32 0.0, %v1856
      %v1858 = vpop.f32.mrb[0].mxu0
      %1859 = vmatprep.mubr.bf16.mxu0 0
      %1860 = vmatmul.mubr.bf16.gmra.mrb[0].mxu0 %v1751
      %v1861 = vpop.f32.mrb[0].mxu0
      %v1862 = vadd.f32 0.0, %v1861
      %v1863 = vpop.f32.mrb[0].mxu0
      %v1864 = vpop.f32.mrb[0].mxu0
      %v1865 = vadd.f32 0.0, %v1864
      %v1866 = vpop.f32.mrb[0].mxu0
      %1867 = vmatprep.mubr.bf16.mxu0 0
      %1868 = vmatmul.mubr.bf16.gmra.mrb[0].mxu0 %v1754
      %v1869 = vpop.f32.mrb[0].mxu0
      %v1870 = vadd.f32 0.0, %v1869
      %v1871 = vpop.f32.mrb[0].mxu0
      %v1872 = vpop.f32.mrb[0].mxu0
      %v1873 = vadd.f32 0.0, %v1872
      %v1874 = vpop.f32.mrb[0].mxu0
      %1875 = vmatprep.mubr.bf16.mxu0 0
      %1876 = vmatmul.mubr.bf16.gmra.mrb[0].mxu0 %v1757
      %v1877 = vpop.f32.mrb[0].mxu0
      %v1878 = vadd.f32 0.0, %v1877
      %v1879 = vpop.f32.mrb[0].mxu0
      %v1880 = vpop.f32.mrb[0].mxu0
      %v1881 = vadd.f32 0.0, %v1880
      %v1882 = vpop.f32.mrb[0].mxu0
      %1883 = vmatprep.mubr.bf16.mxu0 0
      %1884 = vmatmul.mubr.bf16.gmra.mrb[0].mxu0 %v1760
      %v1885 = vpop.f32.mrb[0].mxu0
      %v1886 = vadd.f32 0.0, %v1885
      %v1887 = vpop.f32.mrb[0].mxu0
      %v1888 = vpop.f32.mrb[0].mxu0
      %v1889 = vadd.f32 0.0, %v1888
      %v1890 = vpop.f32.mrb[0].mxu0
      %1891 = vmatprep.mubr.bf16.mxu0 0
      %1892 = vmatmul.mubr.bf16.gmra.mrb[0].mxu0 %v1763
      %v1893 = vpop.f32.mrb[0].mxu0
      %v1894 = vadd.f32 0.0, %v1893
      %v1895 = vpop.f32.mrb[0].mxu0
      %v1896 = vpop.f32.mrb[0].mxu0
      %v1897 = vadd.f32 0.0, %v1896
      %v1898 = vpop.f32.mrb[0].mxu0
      %1899 = vmatprep.mubr.bf16.mxu0 0
      %1900 = vmatmul.mubr.bf16.gmra.mrb[0].mxu0 %v1766
      %v1901 = vpop.f32.mrb[0].mxu0
      %v1902 = vadd.f32 0.0, %v1901
      %v1903 = vpop.f32.mrb[0].mxu0
      %v1904 = vpop.f32.mrb[0].mxu0
      %v1905 = vadd.f32 0.0, %v1904
      %v1906 = vpop.f32.mrb[0].mxu0
      %1907 = vmatprep.mubr.bf16.mxu0 0
      %1908 = vmatmul.mubr.bf16.gmra.mrb[0].mxu0 %v1769
      %v1909 = vpop.f32.mrb[0].mxu0
      %v1910 = vadd.f32 0.0, %v1909
      %v1911 = vpop.f32.mrb[0].mxu0
      %v1912 = vpop.f32.mrb[0].mxu0
      %v1913 = vadd.f32 0.0, %v1912
      %v1914 = vpop.f32.mrb[0].mxu0
      %1915 = vmatprep.mubr.bf16.mxu0 0
      %1916 = vmatmul.mubr.bf16.gmra.mrb[0].mxu0 %v1772
      %v1917 = vpop.f32.mrb[0].mxu0
      %v1918 = vadd.f32 0.0, %v1917
      %v1919 = vpop.f32.mrb[0].mxu0
      %v1920 = vpop.f32.mrb[0].mxu0
      %v1921 = vadd.f32 0.0, %v1920
      %v1922 = vpop.f32.mrb[0].mxu0
      %1923 = vmatprep.mubr.bf16.mxu0 0
      %1924 = vmatmul.mubr.bf16.gmra.mrb[0].mxu0 %v1775
      %v1925 = vpop.f32.mrb[0].mxu0
      %v1926 = vadd.f32 0.0, %v1925
      %v1927 = vpop.f32.mrb[0].mxu0
      %v1928 = vpop.f32.mrb[0].mxu0
      %v1929 = vadd.f32 0.0, %v1928
      %v1930 = vpop.f32.mrb[0].mxu0
      %1931 = vmatprep.mubr.bf16.mxu0 0
      %1932 = vmatmul.mubr.bf16.gmra.mrb[0].mxu0 %v1778
      %v1933 = vpop.f32.mrb[0].mxu0
      %v1934 = vadd.f32 0.0, %v1933
      %v1935 = vpop.f32.mrb[0].mxu0
      %v1936 = vpop.f32.mrb[0].mxu0
      %v1937 = vadd.f32 0.0, %v1936
      %v1938 = vpop.f32.mrb[0].mxu0
      %1939 = vmatprep.mubr.bf16.mxu0 0
      %1940 = vmatmul.mubr.bf16.gmra.mrb[0].mxu0 %v1781
      %v1941 = vpop.f32.mrb[0].mxu0
      %v1942 = vadd.f32 0.0, %v1941
      %v1943 = vpop.f32.mrb[0].mxu0
      %v1944 = vpop.f32.mrb[0].mxu0
      %v1945 = vadd.f32 0.0, %v1944
      %v1946 = vpop.f32.mrb[0].mxu0
      %1947 = vdwg.mxu0
      %v1948 = vpack.c.bf16 %v1825, %v1822
      %v1949 = vpack.c.bf16 %v1833, %v1830
      %v1950 = vpack.c.bf16 %v1841, %v1838
      %v1951 = vpack.c.bf16 %v1849, %v1846
      %v1952 = vpack.c.bf16 %v1857, %v1854
      %v1953 = vpack.c.bf16 %v1865, %v1862
      %v1954 = vpack.c.bf16 %v1873, %v1870
      %v1955 = vpack.c.bf16 %v1881, %v1878
      %v1956 = vpack.c.bf16 %v1889, %v1886
      %v1957 = vpack.c.bf16 %v1897, %v1894
      %v1958 = vpack.c.bf16 %v1905, %v1902
      %v1959 = vpack.c.bf16 %v1913, %v1910
      %v1960 = vpack.c.bf16 %v1921, %v1918
      %v1961 = vpack.c.bf16 %v1929, %v1926
      %v1962 = vpack.c.bf16 %v1937, %v1934
      %v1963 = vpack.c.bf16 %v1945, %v1942
      %v1980 = vunpack.c.l.b16 %v1948
      %v1981 = vunpack.c.h.b16 %v1948
      %v1982 = vunpack.c.l.b16 %v1949
      %v1983 = vunpack.c.h.b16 %v1949
      %v1984 = vunpack.c.l.b16 %v1950
      %v1985 = vunpack.c.h.b16 %v1950
      %v1986 = vunpack.c.l.b16 %v1951
      %v1987 = vunpack.c.h.b16 %v1951
      %v1988 = vunpack.c.l.b16 %v1952
      %v1989 = vunpack.c.h.b16 %v1952
      %v1990 = vunpack.c.l.b16 %v1953
      %v1991 = vunpack.c.h.b16 %v1953
      %v1992 = vunpack.c.l.b16 %v1954
      %v1993 = vunpack.c.h.b16 %v1954
      %v1994 = vunpack.c.l.b16 %v1955
      %v1995 = vunpack.c.h.b16 %v1955
      %v1996 = vunpack.c.l.b16 %v1956
      %v1997 = vunpack.c.h.b16 %v1956
      %v1998 = vunpack.c.l.b16 %v1957
      %v1999 = vunpack.c.h.b16 %v1957
      %v2000 = vunpack.c.l.b16 %v1958
      %v2001 = vunpack.c.h.b16 %v1958
      %v2002 = vunpack.c.l.b16 %v1959
      %v2003 = vunpack.c.h.b16 %v1959
      %v2004 = vunpack.c.l.b16 %v1960
      %v2005 = vunpack.c.h.b16 %v1960
      %v2006 = vunpack.c.l.b16 %v1961
      %v2007 = vunpack.c.h.b16 %v1961
      %v2008 = vunpack.c.l.b16 %v1962
      %v2009 = vunpack.c.h.b16 %v1962
      %v2010 = vunpack.c.l.b16 %v1963
      %v2011 = vunpack.c.h.b16 %v1963
      %v2012 = vpack.c.b16 %v1980, %v1980
      %v2013 = vpack.c.b16 %v1981, %v1981
      %v2014 = vpack.c.b16 %v1982, %v1982
      %v2015 = vpack.c.b16 %v1983, %v1983
      %v2016 = vpack.c.b16 %v1984, %v1984
      %v2017 = vpack.c.b16 %v1985, %v1985
      %v2018 = vpack.c.b16 %v1986, %v1986
      %v2019 = vpack.c.b16 %v1987, %v1987
      %v2020 = vpack.c.b16 %v1988, %v1988
      %v2021 = vpack.c.b16 %v1989, %v1989
      %v2022 = vpack.c.b16 %v1990, %v1990
      %v2023 = vpack.c.b16 %v1991, %v1991
      %v2024 = vpack.c.b16 %v1992, %v1992
      %v2025 = vpack.c.b16 %v1993, %v1993
      %v2026 = vpack.c.b16 %v1994, %v1994
      %v2027 = vpack.c.b16 %v1995, %v1995
      %v2028 = vpack.c.b16 %v1996, %v1996
      %v2029 = vpack.c.b16 %v1997, %v1997
      %v2030 = vpack.c.b16 %v1998, %v1998
      %v2031 = vpack.c.b16 %v1999, %v1999
      %v2032 = vpack.c.b16 %v2000, %v2000
      %v2033 = vpack.c.b16 %v2001, %v2001
      %v2034 = vpack.c.b16 %v2002, %v2002
      %v2035 = vpack.c.b16 %v2003, %v2003
      %v2036 = vpack.c.b16 %v2004, %v2004
      %v2037 = vpack.c.b16 %v2005, %v2005
      %v2038 = vpack.c.b16 %v2006, %v2006
      %v2039 = vpack.c.b16 %v2007, %v2007
      %v2040 = vpack.c.b16 %v2008, %v2008
      %v2041 = vpack.c.b16 %v2009, %v2009
      %v2042 = vpack.c.b16 %v2010, %v2010
      %v2043 = vpack.c.b16 %v2011, %v2011
      %vm2076 = vcmask 93184
      %2077 = vst.msk [vmem:[%s208] sm:$0xf] %vm2076, %v2012
      %2078 = vst.msk [vmem:[%s208 + $0x4] sm:$0xf] %vm2076, %v2013
      %2079 = vst.msk [vmem:[%s208 + $0x8] sm:$0xf] %vm2076, %v2014
      %2080 = vst.msk [vmem:[%s208 + $0xc] sm:$0xf] %vm2076, %v2015
      %2081 = vst.msk [vmem:[%s208 + $0x10] sm:$0xf] %vm2076, %v2016
      %2082 = vst.msk [vmem:[%s208 + $0x14] sm:$0xf] %vm2076, %v2017
      %2083 = vst.msk [vmem:[%s208 + $0x18] sm:$0xf] %vm2076, %v2018
      %2084 = vst.msk [vmem:[%s208 + $0x1c] sm:$0xf] %vm2076, %v2019
      %2085 = vst.msk [vmem:[%s208 + $0x20] sm:$0xf] %vm2076, %v2020
      %2086 = vst.msk [vmem:[%s208 + $0x24] sm:$0xf] %vm2076, %v2021
      %2087 = vst.msk [vmem:[%s208 + $0x28] sm:$0xf] %vm2076, %v2022
      %2088 = vst.msk [vmem:[%s208 + $0x2c] sm:$0xf] %vm2076, %v2023
      %2089 = vst.msk [vmem:[%s208 + $0x30] sm:$0xf] %vm2076, %v2024
      %2090 = vst.msk [vmem:[%s208 + $0x34] sm:$0xf] %vm2076, %v2025
      %2091 = vst.msk [vmem:[%s208 + $0x38] sm:$0xf] %vm2076, %v2026
      %2092 = vst.msk [vmem:[%s208 + $0x3c] sm:$0xf] %vm2076, %v2027
      %2093 = vst.msk [vmem:[%s208 + $0x40] sm:$0xf] %vm2076, %v2028
      %2094 = vst.msk [vmem:[%s208 + $0x44] sm:$0xf] %vm2076, %v2029
      %2095 = vst.msk [vmem:[%s208 + $0x48] sm:$0xf] %vm2076, %v2030
      %2096 = vst.msk [vmem:[%s208 + $0x4c] sm:$0xf] %vm2076, %v2031
      %2097 = vst.msk [vmem:[%s208 + $0x50] sm:$0xf] %vm2076, %v2032
      %2098 = vst.msk [vmem:[%s208 + $0x54] sm:$0xf] %vm2076, %v2033
      %2099 = vst.msk [vmem:[%s208 + $0x58] sm:$0xf] %vm2076, %v2034
      %2100 = vst.msk [vmem:[%s208 + $0x5c] sm:$0xf] %vm2076, %v2035
      %2101 = vst.msk [vmem:[%s208 + $0x60] sm:$0xf] %vm2076, %v2036
      %2102 = vst.msk [vmem:[%s208 + $0x64] sm:$0xf] %vm2076, %v2037
      %2103 = vst.msk [vmem:[%s208 + $0x68] sm:$0xf] %vm2076, %v2038
      %2104 = vst.msk [vmem:[%s208 + $0x6c] sm:$0xf] %vm2076, %v2039
      %2105 = vst.msk [vmem:[%s208 + $0x70] sm:$0xf] %vm2076, %v2040
      %2106 = vst.msk [vmem:[%s208 + $0x74] sm:$0xf] %vm2076, %v2041
      %2107 = vst.msk [vmem:[%s208 + $0x78] sm:$0xf] %vm2076, %v2042
      %2108 = vst.msk [vmem:[%s208 + $0x7c] sm:$0xf] %vm2076, %v2043
      %v2109 = vsel %vm1459, %v1822, 0.0
      %v2110 = vsel %vm1459, %v1825, 0.0
      %v2111 = vadd.f32 %v2109, %v2110
      %v2112 = vsel %vm1459, %v1830, 0.0
      %v2113 = vadd.f32 %v2111, %v2112
      %v2114 = vsel %vm1459, %v1833, 0.0
      %v2115 = vadd.f32 %v2113, %v2114
      %v2116 = vsel %vm1459, %v1838, 0.0
      %v2117 = vadd.f32 %v2115, %v2116
      %v2118 = vsel %vm1459, %v1841, 0.0
      %v2119 = vadd.f32 %v2117, %v2118
      %v2120 = vsel %vm1459, %v1846, 0.0
      %v2121 = vadd.f32 %v2119, %v2120
      %v2122 = vsel %vm1459, %v1849, 0.0
      %v2123 = vadd.f32 %v2121, %v2122
      %v2124 = vsel %vm1459, %v1854, 0.0
      %v2125 = vadd.f32 %v2123, %v2124
      %v2126 = vsel %vm1459, %v1857, 0.0
      %v2127 = vadd.f32 %v2125, %v2126
      %v2128 = vsel %vm1459, %v1862, 0.0
      %v2129 = vadd.f32 %v2127, %v2128
      %v2130 = vsel %vm1459, %v1865, 0.0
      %v2131 = vadd.f32 %v2129, %v2130
      %v2132 = vsel %vm1459, %v1870, 0.0
      %v2133 = vadd.f32 %v2131, %v2132
      %v2134 = vsel %vm1459, %v1873, 0.0
      %v2135 = vadd.f32 %v2133, %v2134
      %v2136 = vsel %vm1459, %v1878, 0.0
      %v2137 = vadd.f32 %v2135, %v2136
      %v2138 = vsel %vm1459, %v1881, 0.0
      %v2139 = vadd.f32 %v2137, %v2138
      %v2140 = vsel %vm1459, %v1886, 0.0
      %v2141 = vadd.f32 %v2139, %v2140
      %v2142 = vsel %vm1459, %v1889, 0.0
      %v2143 = vadd.f32 %v2141, %v2142
      %v2144 = vsel %vm1459, %v1894, 0.0
      %v2145 = vadd.f32 %v2143, %v2144
      %v2146 = vsel %vm1459, %v1897, 0.0
      %v2147 = vadd.f32 %v2145, %v2146
      %v2148 = vsel %vm1459, %v1902, 0.0
      %v2149 = vadd.f32 %v2147, %v2148
      %v2150 = vsel %vm1459, %v1905, 0.0
      %v2151 = vadd.f32 %v2149, %v2150
      %v2152 = vsel %vm1459, %v1910, 0.0
      %v2153 = vadd.f32 %v2151, %v2152
      %v2154 = vsel %vm1459, %v1913, 0.0
      %v2155 = vadd.f32 %v2153, %v2154
      %v2156 = vsel %vm1459, %v1918, 0.0
      %v2157 = vadd.f32 %v2155, %v2156
      %v2158 = vsel %vm1459, %v1921, 0.0
      %v2159 = vadd.f32 %v2157, %v2158
      %v2160 = vsel %vm1459, %v1926, 0.0
      %v2161 = vadd.f32 %v2159, %v2160
      %v2162 = vsel %vm1459, %v1929, 0.0
      %v2163 = vadd.f32 %v2161, %v2162
      %v2164 = vsel %vm1459, %v1934, 0.0
      %v2165 = vadd.f32 %v2163, %v2164
      %v2166 = vsel %vm1459, %v1937, 0.0
      %v2167 = vadd.f32 %v2165, %v2166
      %v2168 = vsel %vm1459, %v1942, 0.0
      %v2169 = vadd.f32 %v2167, %v2168
      %v2170 = vsel %vm1459, %v1945, 0.0
      %v2171 = vadd.f32 %v2169, %v2170
      %v2172 = vrot.slane %v2171, 4
      %v2173 = vadd.f32 %v2171, %v2172
      %v2174 = vrot.slane %v2173, 2
      %v2175 = vadd.f32 %v2173, %v2174
      %v2176 = vrot.slane %v2175, 1
      %v2177 = vadd.f32 %v2175, %v2176
      %vm2178 = vcmask 90112
      %2179 = vst.msk [vmem:[%s211] sm:$0x1] %vm2178, %v2177
      %v2180 = vmul.f32 %v1822, %v1822
      %v2181 = vmul.f32 %v1825, %v1825
      %v2182 = vmul.f32 %v1830, %v1830
      %v2183 = vmul.f32 %v1833, %v1833
      %v2184 = vmul.f32 %v1838, %v1838
      %v2185 = vmul.f32 %v1841, %v1841
      %v2186 = vmul.f32 %v1846, %v1846
      %v2187 = vmul.f32 %v1849, %v1849
      %v2188 = vmul.f32 %v1854, %v1854
      %v2189 = vmul.f32 %v1857, %v1857
      %v2190 = vmul.f32 %v1862, %v1862
      %v2191 = vmul.f32 %v1865, %v1865
      %v2192 = vmul.f32 %v1870, %v1870
      %v2193 = vmul.f32 %v1873, %v1873
      %v2194 = vmul.f32 %v1878, %v1878
      %v2195 = vmul.f32 %v1881, %v1881
      %v2196 = vmul.f32 %v1886, %v1886
      %v2197 = vmul.f32 %v1889, %v1889
      %v2198 = vmul.f32 %v1894, %v1894
      %v2199 = vmul.f32 %v1897, %v1897
      %v2200 = vmul.f32 %v1902, %v1902
      %v2201 = vmul.f32 %v1905, %v1905
      %v2202 = vmul.f32 %v1910, %v1910
      %v2203 = vmul.f32 %v1913, %v1913
      %v2204 = vmul.f32 %v1918, %v1918
      %v2205 = vmul.f32 %v1921, %v1921
      %v2206 = vmul.f32 %v1926, %v1926
      %v2207 = vmul.f32 %v1929, %v1929
      %v2208 = vmul.f32 %v1934, %v1934
      %v2209 = vmul.f32 %v1937, %v1937
      %v2210 = vmul.f32 %v1942, %v1942
      %v2211 = vmul.f32 %v1945, %v1945
      %v2212 = vsel %vm1459, %v2180, 0.0
      %v2213 = vsel %vm1459, %v2181, 0.0
      %v2214 = vadd.f32 %v2212, %v2213
      %v2215 = vsel %vm1459, %v2182, 0.0
      %v2216 = vadd.f32 %v2214, %v2215
      %v2217 = vsel %vm1459, %v2183, 0.0
      %v2218 = vadd.f32 %v2216, %v2217
      %v2219 = vsel %vm1459, %v2184, 0.0
      %v2220 = vadd.f32 %v2218, %v2219
      %v2221 = vsel %vm1459, %v2185, 0.0
      %v2222 = vadd.f32 %v2220, %v2221
      %v2223 = vsel %vm1459, %v2186, 0.0
      %v2224 = vadd.f32 %v2222, %v2223
      %v2225 = vsel %vm1459, %v2187, 0.0
      %v2226 = vadd.f32 %v2224, %v2225
      %v2227 = vsel %vm1459, %v2188, 0.0
      %v2228 = vadd.f32 %v2226, %v2227
      %v2229 = vsel %vm1459, %v2189, 0.0
      %v2230 = vadd.f32 %v2228, %v2229
      %v2231 = vsel %vm1459, %v2190, 0.0
      %v2232 = vadd.f32 %v2230, %v2231
      %v2233 = vsel %vm1459, %v2191, 0.0
      %v2234 = vadd.f32 %v2232, %v2233
      %v2235 = vsel %vm1459, %v2192, 0.0
      %v2236 = vadd.f32 %v2234, %v2235
      %v2237 = vsel %vm1459, %v2193, 0.0
      %v2238 = vadd.f32 %v2236, %v2237
      %v2239 = vsel %vm1459, %v2194, 0.0
      %v2240 = vadd.f32 %v2238, %v2239
      %v2241 = vsel %vm1459, %v2195, 0.0
      %v2242 = vadd.f32 %v2240, %v2241
      %v2243 = vsel %vm1459, %v2196, 0.0
      %v2244 = vadd.f32 %v2242, %v2243
      %v2245 = vsel %vm1459, %v2197, 0.0
      %v2246 = vadd.f32 %v2244, %v2245
      %v2247 = vsel %vm1459, %v2198, 0.0
      %v2248 = vadd.f32 %v2246, %v2247
      %v2249 = vsel %vm1459, %v2199, 0.0
      %v2250 = vadd.f32 %v2248, %v2249
      %v2251 = vsel %vm1459, %v2200, 0.0
      %v2252 = vadd.f32 %v2250, %v2251
      %v2253 = vsel %vm1459, %v2201, 0.0
      %v2254 = vadd.f32 %v2252, %v2253
      %v2255 = vsel %vm1459, %v2202, 0.0
      %v2256 = vadd.f32 %v2254, %v2255
      %v2257 = vsel %vm1459, %v2203, 0.0
      %v2258 = vadd.f32 %v2256, %v2257
      %v2259 = vsel %vm1459, %v2204, 0.0
      %v2260 = vadd.f32 %v2258, %v2259
      %v2261 = vsel %vm1459, %v2205, 0.0
      %v2262 = vadd.f32 %v2260, %v2261
      %v2263 = vsel %vm1459, %v2206, 0.0
      %v2264 = vadd.f32 %v2262, %v2263
      %v2265 = vsel %vm1459, %v2207, 0.0
      %v2266 = vadd.f32 %v2264, %v2265
      %v2267 = vsel %vm1459, %v2208, 0.0
      %v2268 = vadd.f32 %v2266, %v2267
      %v2269 = vsel %vm1459, %v2209, 0.0
      %v2270 = vadd.f32 %v2268, %v2269
      %v2271 = vsel %vm1459, %v2210, 0.0
      %v2272 = vadd.f32 %v2270, %v2271
      %v2273 = vsel %vm1459, %v2211, 0.0
      %v2274 = vadd.f32 %v2272, %v2273
      %v2275 = vrot.slane %v2274, 4
      %v2276 = vadd.f32 %v2274, %v2275
      %v2277 = vrot.slane %v2276, 2
      %v2278 = vadd.f32 %v2276, %v2277
      %v2279 = vrot.slane %v2278, 1
      %v2280 = vadd.f32 %v2278, %v2279
      %2281 = vst.msk [vmem:[%s214] sm:$0x1] %vm2178, %v2280
      %p2282 = scmp.lt.s32.totalorder %s16, 1
      %s2283 = scalar_select %p2282, %s16, 1
      %s2284 = smul.addr %s2283, 32
      %s2285 = smul.addr %s2284, 4
      %s2286 = scalar_lea.vmem %s2, %s2285
      %p2287 = scmp.lt.s32.totalorder %s16, 1
      %s2288 = scalar_select %p2287, %s16, 1
      %s2289 = scalar_lea.vmem %s3, %s2288
      %p2290 = scmp.lt.s32.totalorder %s16, 1
      %s2291 = scalar_select %p2290, %s16, 1
      %s2292 = scalar_lea.vmem %s4, %s2291
      // Predicated region
      $region29: #{inception_forward.8} parent=27 // pred_check
        %p2293 = pneg %p81
      $region30: #{inception_forward.8} parent=27 // pred_check_branch
        %2295 = sbr.rel (%p2293) target = $region32
      $region31: #{inception_forward.8} parent=27 // pred_region
        _
      $region32: #{inception_forward.8} parent=27 // pred_fallthru
        _
      // Predicated region
      $region33: #{inception_forward.8} parent=27 // pred_check
        %p2296 = pneg %p107
      $region34: #{inception_forward.8} parent=27 // pred_check_branch
        %2298 = sbr.rel (%p2296) target = $region36
      $region35: #{inception_forward.8} parent=27 // pred_region
        _
      $region36: #{inception_forward.8} parent=27 // pred_fallthru
        _
      // Predicated region
      $region37: #{inception_forward.8} parent=27 // pred_check
        %p2299 = pneg %p133
      $region38: #{inception_forward.8} parent=27 // pred_check_branch
        %2301 = sbr.rel (%p2299) target = $region40
      $region39: #{inception_forward.8} parent=27 // pred_region
        _
      $region40: #{inception_forward.8} parent=27 // pred_fallthru
        _
    $region28: #{inception_forward.8} parent=5 // pred_fallthru
      _
    %p2302 = scmp.le.s32.totalorder 2, %s11
    // Predicated region
    $region41: #{inception_forward.8} parent=5 // pred_check
      %p2303 = pneg %p2302
    $region42: #{inception_forward.8} parent=5 // pred_check_branch
      %2305 = sbr.rel (%p2303) target = $region44
    $region43: #{inception_forward.8} parent=5 // pred_region
      %s2306 = ssub.s32 %s11, 2
      // Predicated region
      $region45: #{inception_forward.8} parent=43 // pred_check
        %p2307 = pneg %p87
      $region46: #{inception_forward.8} parent=43 // pred_check_branch
        %2309 = sbr.rel (%p2307) target = $region48
      $region47: #{inception_forward.8} parent=43 // pred_region
        %p2310 = scmp.lt.s32.totalorder %s17, 1
        %s2311 = scalar_select %p2310, %s17, 1
        %s2312 = smul.addr %s2311, 32
        %s2313 = smul.addr %s2312, 4
        %s2314 = scalar_lea.vmem %s2, %s2313
      $region48: #{inception_forward.8} parent=43 // pred_fallthru
        _
      // Predicated region
      $region49: #{inception_forward.8} parent=43 // pred_check
        %p2315 = pneg %p113
      $region50: #{inception_forward.8} parent=43 // pred_check_branch
        %2317 = sbr.rel (%p2315) target = $region52
      $region51: #{inception_forward.8} parent=43 // pred_region
        %p2318 = scmp.lt.s32.totalorder %s17, 1
        %s2319 = scalar_select %p2318, %s17, 1
        %s2320 = scalar_lea.vmem %s3, %s2319
      $region52: #{inception_forward.8} parent=43 // pred_fallthru
        _
      // Predicated region
      $region53: #{inception_forward.8} parent=43 // pred_check
        %p2321 = pneg %p139
      $region54: #{inception_forward.8} parent=43 // pred_check_branch
        %2323 = sbr.rel (%p2321) target = $region56
      $region55: #{inception_forward.8} parent=43 // pred_region
        %p2324 = scmp.lt.s32.totalorder %s17, 1
        %s2325 = scalar_select %p2324, %s17, 1
        %s2326 = scalar_lea.vmem %s4, %s2325
      $region56: #{inception_forward.8} parent=43 // pred_fallthru
        _
    $region44: #{inception_forward.8} parent=5 // pred_fallthru
      _
  $region6: #{inception_forward.8} parent=0 // loop_footer
    %s15 = sadd.s32 1, %s11
  $region7: #{inception_forward.8} parent=0 // loop_footer_branch
    %10 = sbr.rel target = $region3
  $region8: #{inception_forward.8} parent=0 // loop_exit
    _

// kernel: inception_forward.11
$region0: #{inception_forward.11}
  #allocation0 [shape = 'u32[]', space=smem, size = 0x4, offset = 0x4, fixed_abs, tag = 'smem constant byte address 0x4 - core index']
  #allocation1 [shape = 'u32[144,128]{1,0:T(1,128)}', space=vmem, size = 0x12000, scoped, tag = 'internal scratch']
  %s0 = inlined_call_operand.vmem [shape: f32[2,256,8], index: 0, kind: input, shape index: {}]
  %s1 = inlined_call_operand.vmem [shape: bf16[2,256,12], index: 1, kind: input, shape index: {}]
  %s2 = inlined_call_operand.vmem [shape: bf16[2,256,8], index: 2, kind: input, shape index: {}]
  %s3 = inlined_call_operand.vmem [shape: bf16[2,256,6], index: 3, kind: input, shape index: {}]
  %s4 = inlined_call_operand.vmem [shape: f32[1,1,26], index: 4, kind: input, shape index: {}]
  %s5 = inlined_call_operand.vmem [shape: f32[1,1,26], index: 5, kind: input, shape index: {}]
  %s6 = inlined_call_operand.hbm [shape: f32[2,256,34], index: 6, kind: output, shape index: {}]
  %s7 = sld [smem:[#allocation0]]
  $region57: #{inception_forward.11} parent=0
    _
  %s9 = ssub.s32 1, %s7
  %s10 = scalar_select 0, %s9, %s7
  $region1: #{inception_forward.11} parent=0
    #allocation2 [shape = 'u8[262144]{0}', space=vmem, size = 0x40000, scoped, tag = 'output window, operand 0']
    #allocation3 [shape = 's32[2]{0}', space=sflag, size = 0x8, scoped, tag = 'scoped memory for inception_forward.11']
    %11 = vsyncpa [#allocation3], 0
    %s12 = scalar_lea.sflag [#allocation3], 1
    %13 = vsyncpa %s12, 0
    loop: start=0, step=1, limit=4
    $region2: #{inception_forward.11} parent=1 // loop_pre_header
      _
    $region3: #{inception_forward.11} parent=1 // loop_header
      %s15 = sphi 0, %s19
      %p16 = scmp.ge.s32.totalorder %s15, 4
      %s25 = sphi 0, %s27
      %s28 = sphi 0, %s25
      %s29 = sphi 0, %s28
      %s45 = sphi 0, %s29
      %s51 = sphi 0, %s53
      %s54 = sphi 0, %s51
      %s55 = sphi 0, %s54
      %s71 = sphi 0, %s55
      %s77 = sphi 0, %s79
      %s80 = sphi 0, %s77
      %s81 = sphi 0, %s80
      %s97 = sphi 0, %s81
      %s103 = sphi 0, %s105
      %s106 = sphi 0, %s103
      %s107 = sphi 0, %s106
      %s123 = sphi 0, %s107
      %s127 = sphi 0, %s127
      %s129 = sphi 0, %s127
      %s130 = sphi 0, %s129
      %s144 = sphi 0, %s130
      %s148 = sphi 0, %s148
      %s150 = sphi 0, %s148
      %s151 = sphi 0, %s150
      %s165 = sphi 0, %s151
      %s171 = sphi 0, %s173
      %s174 = sphi 0, %s171
      %s175 = sphi 0, %s174
      %s191 = sphi 0, %s175
    $region4: #{inception_forward.11} parent=1 // loop_header_branch
      %18 = sbr.rel (%p16) target = $region8
    $region5: #{inception_forward.11} parent=1 // loop_body
      %s20 = ssub.s32 %s15, 1
      %s21 = ssub.s32 %s15, 2
      %s22 = sadd.s32 %s15, 1
      %s23 = ssub.s32 %s15, %s22
      %p24 = scmp.eq.s32.totalorder %s23, 0
      %s26 = sadd.s32 %s25, 1
      %s27 = scalar_select %p24, %s25, %s26
      %p30 = pneg %p24
      %p31 = scmp.eq.s32.totalorder %s15, 1
      %p32 = por %p30, %p31
      %p33 = scmp.ne.s32.totalorder %s25, %s28
      %p34 = scmp.eq.s32.totalorder %s15, 0
      %p35 = por %p33, %p34
      %p36 = scmp.ne.s32.totalorder %s25, %s28
      %p37 = scmp.eq.s32.totalorder %s20, 1
      %p38 = por %p36, %p37
      %p39 = scmp.ne.s32.totalorder %s28, %s29
      %p40 = scmp.eq.s32.totalorder %s20, 0
      %p41 = por %p39, %p40
      %p42 = scmp.ne.s32.totalorder %s28, %s29
      %p43 = scmp.eq.s32.totalorder %s21, 1
      %p44 = por %p42, %p43
      %p46 = scmp.ne.s32.totalorder %s29, %s45
      %p47 = scmp.eq.s32.totalorder %s21, 0
      %p48 = por %p46, %p47
      %s49 = ssub.s32 %s15, %s22
      %p50 = scmp.eq.s32.totalorder %s49, 0
      %s52 = sadd.s32 %s51, 1
      %s53 = scalar_select %p50, %s51, %s52
      %p56 = pneg %p50
      %p57 = scmp.eq.s32.totalorder %s15, 1
      %p58 = por %p56, %p57
      %p59 = scmp.ne.s32.totalorder %s51, %s54
      %p60 = scmp.eq.s32.totalorder %s15, 0
      %p61 = por %p59, %p60
      %p62 = scmp.ne.s32.totalorder %s51, %s54
      %p63 = scmp.eq.s32.totalorder %s20, 1
      %p64 = por %p62, %p63
      %p65 = scmp.ne.s32.totalorder %s54, %s55
      %p66 = scmp.eq.s32.totalorder %s20, 0
      %p67 = por %p65, %p66
      %p68 = scmp.ne.s32.totalorder %s54, %s55
      %p69 = scmp.eq.s32.totalorder %s21, 1
      %p70 = por %p68, %p69
      %p72 = scmp.ne.s32.totalorder %s55, %s71
      %p73 = scmp.eq.s32.totalorder %s21, 0
      %p74 = por %p72, %p73
      %s75 = ssub.s32 %s15, %s22
      %p76 = scmp.eq.s32.totalorder %s75, 0
      %s78 = sadd.s32 %s77, 1
      %s79 = scalar_select %p76, %s77, %s78
      %p82 = pneg %p76
      %p83 = scmp.eq.s32.totalorder %s15, 1
      %p84 = por %p82, %p83
      %p85 = scmp.ne.s32.totalorder %s77, %s80
      %p86 = scmp.eq.s32.totalorder %s15, 0
      %p87 = por %p85, %p86
      %p88 = scmp.ne.s32.totalorder %s77, %s80
      %p89 = scmp.eq.s32.totalorder %s20, 1
      %p90 = por %p88, %p89
      %p91 = scmp.ne.s32.totalorder %s80, %s81
      %p92 = scmp.eq.s32.totalorder %s20, 0
      %p93 = por %p91, %p92
      %p94 = scmp.ne.s32.totalorder %s80, %s81
      %p95 = scmp.eq.s32.totalorder %s21, 1
      %p96 = por %p94, %p95
      %p98 = scmp.ne.s32.totalorder %s81, %s97
      %p99 = scmp.eq.s32.totalorder %s21, 0
      %p100 = por %p98, %p99
      %s101 = ssub.s32 %s15, %s22
      %p102 = scmp.eq.s32.totalorder %s101, 0
      %s104 = sadd.s32 %s103, 1
      %s105 = scalar_select %p102, %s103, %s104
      %p108 = pneg %p102
      %p109 = scmp.eq.s32.totalorder %s15, 1
      %p110 = por %p108, %p109
      %p111 = scmp.ne.s32.totalorder %s103, %s106
      %p112 = scmp.eq.s32.totalorder %s15, 0
      %p113 = por %p111, %p112
      %p114 = scmp.ne.s32.totalorder %s103, %s106
      %p115 = scmp.eq.s32.totalorder %s20, 1
      %p116 = por %p114, %p115
      %p117 = scmp.ne.s32.totalorder %s106, %s107
      %p118 = scmp.eq.s32.totalorder %s20, 0
      %p119 = por %p117, %p118
      %p120 = scmp.ne.s32.totalorder %s106, %s107
      %p121 = scmp.eq.s32.totalorder %s21, 1
      %p122 = por %p120, %p121
      %p124 = scmp.ne.s32.totalorder %s107, %s123
      %p125 = scmp.eq.s32.totalorder %s21, 0
      %p126 = por %p124, %p125
      %s128 = sadd.s32 %s127, 1
      %p131 = scmp.eq.s32.totalorder %s15, 1
      %p132 = scmp.ne.s32.totalorder %s127, %s129
      %p133 = scmp.eq.s32.totalorder %s15, 0
      %p134 = por %p132, %p133
      %p135 = scmp.ne.s32.totalorder %s127, %s129
      %p136 = scmp.eq.s32.totalorder %s20, 1
      %p137 = por %p135, %p136
      %p138 = scmp.ne.s32.totalorder %s129, %s130
      %p139 = scmp.eq.s32.totalorder %s20, 0
      %p140 = por %p138, %p139
      %p141 = scmp.ne.s32.totalorder %s129, %s130
      %p142 = scmp.eq.s32.totalorder %s21, 1
      %p143 = por %p141, %p142
      %p145 = scmp.ne.s32.totalorder %s130, %s144
      %p146 = scmp.eq.s32.totalorder %s21, 0
      %p147 = por %p145, %p146
      %s149 = sadd.s32 %s148, 1
      %p152 = scmp.eq.s32.totalorder %s15, 1
      %p153 = scmp.ne.s32.totalorder %s148, %s150
      %p154 = scmp.eq.s32.totalorder %s15, 0
      %p155 = por %p153, %p154
      %p156 = scmp.ne.s32.totalorder %s148, %s150
      %p157 = scmp.eq.s32.totalorder %s20, 1
      %p158 = por %p156, %p157
      %p159 = scmp.ne.s32.totalorder %s150, %s151
      %p160 = scmp.eq.s32.totalorder %s20, 0
      %p161 = por %p159, %p160
      %p162 = scmp.ne.s32.totalorder %s150, %s151
      %p163 = scmp.eq.s32.totalorder %s21, 1
      %p164 = por %p162, %p163
      %p166 = scmp.ne.s32.totalorder %s151, %s165
      %p167 = scmp.eq.s32.totalorder %s21, 0
      %p168 = por %p166, %p167
      %s169 = ssub.s32 %s15, %s22
      %p170 = scmp.eq.s32.totalorder %s169, 0
      %s172 = sadd.s32 %s171, 1
      %s173 = scalar_select %p170, %s171, %s172
      %p176 = pneg %p170
      %p177 = scmp.eq.s32.totalorder %s15, 1
      %p178 = por %p176, %p177
      %p179 = scmp.ne.s32.totalorder %s171, %s174
      %p180 = scmp.eq.s32.totalorder %s15, 0
      %p181 = por %p179, %p180
      %p182 = scmp.ne.s32.totalorder %s171, %s174
      %p183 = scmp.eq.s32.totalorder %s20, 1
      %p184 = por %p182, %p183
      %p185 = scmp.ne.s32.totalorder %s174, %s175
      %p186 = scmp.eq.s32.totalorder %s20, 0
      %p187 = por %p185, %p186
      %p188 = scmp.ne.s32.totalorder %s174, %s175
      %p189 = scmp.eq.s32.totalorder %s21, 1
      %p190 = por %p188, %p189
      %p192 = scmp.ne.s32.totalorder %s175, %s191
      %p193 = scmp.eq.s32.totalorder %s21, 0
      %p194 = por %p192, %p193
      %p195 = scmp.le.s32.totalorder 1, %s15
      %p196 = scmp.lt.s32.totalorder %s15, 3
      %p197 = pnand %p195, %p196
      %p198 = pneg %p197
      // Predicated region
      $region9: #{inception_forward.11} parent=5 // pred_check
        _
      $region10: #{inception_forward.11} parent=5 // pred_check_branch
        %200 = sbr.rel (%p197) target = $region12
      $region11: #{inception_forward.11} parent=5 // pred_region
        %s201 = ssub.s32 %s15, 1
        // Predicated region
        $region13: #{inception_forward.11} parent=11 // pred_check
          %p202 = pneg %p140
        $region14: #{inception_forward.11} parent=11 // pred_check_branch
          %204 = sbr.rel (%p202) target = $region16
        $region15: #{inception_forward.11} parent=11 // pred_region
          _
        $region16: #{inception_forward.11} parent=11 // pred_fallthru
          _
        // Predicated region
        $region17: #{inception_forward.11} parent=11 // pred_check
          %p205 = pneg %p161
        $region18: #{inception_forward.11} parent=11 // pred_check_branch
          %207 = sbr.rel (%p205) target = $region20
        $region19: #{inception_forward.11} parent=11 // pred_region
          _
        $region20: #{inception_forward.11} parent=11 // pred_fallthru
          _
      $region12: #{inception_forward.11} parent=5 // pred_fallthru
        _
      %p208 = scmp.lt.s32.totalorder %s15, 2
      // Predicated region
      $region21: #{inception_forward.11} parent=5 // pred_check
        %p209 = pneg %p208
      $region22: #{inception_forward.11} parent=5 // pred_check_branch
        %211 = sbr.rel (%p209) target = $region24
      $region23: #{inception_forward.11} parent=5 // pred_region
        // Predicated region
        $region25: #{inception_forward.11} parent=23 // pred_check
          %p212 = pneg %p35
        $region26: #{inception_forward.11} parent=23 // pred_check_branch
          %214 = sbr.rel (%p212) target = $region28
        $region27: #{inception_forward.11} parent=23 // pred_region
          %p215 = scmp.lt.s32.totalorder %s15, 1
          %s216 = scalar_select %p215, %s15, 1
          %s217 = smul.addr %s216, 32
          %s218 = smul.addr %s217, 8
          %s219 = scalar_lea.vmem %s0, %s218
        $region28: #{inception_forward.11} parent=23 // pred_fallthru
          _
        // Predicated region
        $region29: #{inception_forward.11} parent=23 // pred_check
          %p220 = pneg %p61
        $region30: #{inception_forward.11} parent=23 // pred_check_branch
          %222 = sbr.rel (%p220) target = $region32
        $region31: #{inception_forward.11} parent=23 // pred_region
          %p223 = scmp.lt.s32.totalorder %s15, 1
          %s224 = scalar_select %p223, %s15, 1
          %s225 = smul.addr %s224, 32
          %s226 = smul.addr %s225, 4
          %s227 = scalar_lea.vmem %s1, %s226
        $region32: #{inception_forward.11} parent=23 // pred_fallthru
          _
        // Predicated region
        $region33: #{inception_forward.11} parent=23 // pred_check
          %p228 = pneg %p87
        $region34: #{inception_forward.11} parent=23 // pred_check_branch
          %230 = sbr.rel (%p228) target = $region36
        $region35: #{inception_forward.11} parent=23 // pred_region
          %p231 = scmp.lt.s32.totalorder %s15, 1
          %s232 = scalar_select %p231, %s15, 1
          %s233 = smul.addr %s232, 32
          %s234 = smul.addr %s233, 4
          %s235 = scalar_lea.vmem %s2, %s234
        $region36: #{inception_forward.11} parent=23 // pred_fallthru
          _
        // Predicated region
        $region37: #{inception_forward.11} parent=23 // pred_check
          %p236 = pneg %p113
        $region38: #{inception_forward.11} parent=23 // pred_check_branch
          %238 = sbr.rel (%p236) target = $region40
        $region39: #{inception_forward.11} parent=23 // pred_region
          %p239 = scmp.lt.s32.totalorder %s15, 1
          %s240 = scalar_select %p239, %s15, 1
          %s241 = smul.addr %s240, 32
          %s242 = smul.addr %s241, 4
          %s243 = scalar_lea.vmem %s3, %s242
        $region40: #{inception_forward.11} parent=23 // pred_fallthru
          _
      $region24: #{inception_forward.11} parent=5 // pred_fallthru
        _
      %p244 = scmp.le.s32.totalorder 1, %s15
      %p245 = scmp.lt.s32.totalorder %s15, 3
      %p246 = pnand %p244, %p245
      %p247 = pneg %p246
      // Predicated region
      $region41: #{inception_forward.11} parent=5 // pred_check
        _
      $region42: #{inception_forward.11} parent=5 // pred_check_branch
        %249 = sbr.rel (%p246) target = $region44
      $region43: #{inception_forward.11} parent=5 // pred_region
        %s250 = ssub.s32 %s15, 1
        %p251 = scmp.lt.s32.totalorder %s20, 1
        %s252 = scalar_select %p251, %s20, 1
        %s253 = smul.addr %s252, 32
        %s254 = smul.addr %s253, 8
        %s255 = scalar_lea.vmem %s0, %s254
        %p256 = pneg %p41
        %p257 = pneg %p38
        %p258 = scmp.lt.s32.totalorder %s20, 1
        %s259 = scalar_select %p258, %s20, 1
        %s260 = smul.addr %s259, 32
        %s261 = smul.addr %s260, 4
        %s262 = scalar_lea.vmem %s1, %s261
        %p263 = pneg %p67
        %p264 = pneg %p64
        %p265 = scmp.lt.s32.totalorder %s20, 1
        %s266 = scalar_select %p265, %s20, 1
        %s267 = smul.addr %s266, 32
        %s268 = smul.addr %s267, 4
        %s269 = scalar_lea.vmem %s2, %s268
        %p270 = pneg %p93
        %p271 = pneg %p90
        %p272 = scmp.lt.s32.totalorder %s20, 1
        %s273 = scalar_select %p272, %s20, 1
        %s274 = smul.addr %s273, 32
        %s275 = smul.addr %s274, 4
        %s276 = scalar_lea.vmem %s3, %s275
        %p277 = pneg %p119
        %p278 = pneg %p116
        %p279 = pneg %p140
        %p280 = pneg %p137
        %p281 = pneg %p161
        %p282 = pneg %p158
        %p283 = pneg %p187
        %p284 = pneg %p184
        %s285 = sand.u32 %s174, 1
        %s286 = scalar_lea.sflag [#allocation3], %s285
        %s287 = sand.u32 %s174, 1
        %s288 = smul.addr %s287, 256
        %s289 = scalar_lea.vmem [#allocation2], %s288
        %p290 = scmp.lt.s32.totalorder %s20, 1
        %s291 = scalar_select %p290, %s20, 1
        %s292 = smul.addr %s291, 32
        %s293 = smul.addr %s292, 8
        %s294 = scalar_lea.vmem %s0, %s293
        %p295 = scmp.lt.s32.totalorder %s20, 1
        %s296 = scalar_select %p295, %s20, 1
        %s297 = smul.addr %s296, 32
        %s298 = smul.addr %s297, 4
        %s299 = scalar_lea.vmem %s1, %s298
        %p300 = scmp.lt.s32.totalorder %s20, 1
        %s301 = scalar_select %p300, %s20, 1
        %s302 = smul.addr %s301, 32
        %s303 = smul.addr %s302, 4
        %s304 = scalar_lea.vmem %s2, %s303
        %p305 = scmp.lt.s32.totalorder %s20, 1
        %s306 = scalar_select %p305, %s20, 1
        %s307 = smul.addr %s306, 32
        %s308 = smul.addr %s307, 4
        %s309 = scalar_lea.vmem %s3, %s308
        %v310 = vld [vmem:[%s4] sm:$0x1]
        %v311 = vld [vmem:[%s5] sm:$0x1]
        %v312 = vld [vmem:[%s299] sm:$0xf]
        %v313 = vld [vmem:[%s299 + $0x4] sm:$0xf]
        %v314 = vld [vmem:[%s299 + $0x8] sm:$0xf]
        %v315 = vld [vmem:[%s299 + $0xc] sm:$0xf]
        %v316 = vld [vmem:[%s299 + $0x10] sm:$0xf]
        %v317 = vld [vmem:[%s299 + $0x14] sm:$0xf]
        %v318 = vld [vmem:[%s299 + $0x18] sm:$0xf]
        %v319 = vld [vmem:[%s299 + $0x1c] sm:$0xf]
        %v320 = vld [vmem:[%s299 + $0x20] sm:$0xf]
        %v321 = vld [vmem:[%s299 + $0x24] sm:$0xf]
        %v322 = vld [vmem:[%s299 + $0x28] sm:$0xf]
        %v323 = vld [vmem:[%s299 + $0x2c] sm:$0xf]
        %v324 = vld [vmem:[%s299 + $0x30] sm:$0xf]
        %v325 = vld [vmem:[%s299 + $0x34] sm:$0xf]
        %v326 = vld [vmem:[%s299 + $0x38] sm:$0xf]
        %v327 = vld [vmem:[%s299 + $0x3c] sm:$0xf]
        %v328 = vld [vmem:[%s299 + $0x40] sm:$0xf]
        %v329 = vld [vmem:[%s299 + $0x44] sm:$0xf]
        %v330 = vld [vmem:[%s299 + $0x48] sm:$0xf]
        %v331 = vld [vmem:[%s299 + $0x4c] sm:$0xf]
        %v332 = vld [vmem:[%s299 + $0x50] sm:$0xf]
        %v333 = vld [vmem:[%s299 + $0x54] sm:$0xf]
        %v334 = vld [vmem:[%s299 + $0x58] sm:$0xf]
        %v335 = vld [vmem:[%s299 + $0x5c] sm:$0xf]
        %v336 = vld [vmem:[%s299 + $0x60] sm:$0xf]
        %v337 = vld [vmem:[%s299 + $0x64] sm:$0xf]
        %v338 = vld [vmem:[%s299 + $0x68] sm:$0xf]
        %v339 = vld [vmem:[%s299 + $0x6c] sm:$0xf]
        %v340 = vld [vmem:[%s299 + $0x70] sm:$0xf]
        %v341 = vld [vmem:[%s299 + $0x74] sm:$0xf]
        %v342 = vld [vmem:[%s299 + $0x78] sm:$0xf]
        %v343 = vld [vmem:[%s299 + $0x7c] sm:$0xf]
        %v344 = vunpack.c.l.bf16 %v312
        %v345 = vunpack.c.l.bf16 %v313
        %v346 = vunpack.c.l.bf16 %v314
        %v347 = vunpack.c.l.bf16 %v315
        %v348 = vunpack.c.l.bf16 %v316
        %v349 = vunpack.c.l.bf16 %v317
        %v350 = vunpack.c.l.bf16 %v318
        %v351 = vunpack.c.l.bf16 %v319
        %v352 = vunpack.c.l.bf16 %v320
        %v353 = vunpack.c.l.bf16 %v321
        %v354 = vunpack.c.l.bf16 %v322
        %v355 = vunpack.c.l.bf16 %v323
        %v356 = vunpack.c.l.bf16 %v324
        %v357 = vunpack.c.l.bf16 %v325
        %v358 = vunpack.c.l.bf16 %v326
        %v359 = vunpack.c.l.bf16 %v327
        %v360 = vunpack.c.l.bf16 %v328
        %v361 = vunpack.c.l.bf16 %v329
        %v362 = vunpack.c.l.bf16 %v330
        %v363 = vunpack.c.l.bf16 %v331
        %v364 = vunpack.c.l.bf16 %v332
        %v365 = vunpack.c.l.bf16 %v333
        %v366 = vunpack.c.l.bf16 %v334
        %v367 = vunpack.c.l.bf16 %v335
        %v368 = vunpack.c.l.bf16 %v336
        %v369 = vunpack.c.l.bf16 %v337
        %v370 = vunpack.c.l.bf16 %v338
        %v371 = vunpack.c.l.bf16 %v339
        %v372 = vunpack.c.l.bf16 %v340
        %v373 = vunpack.c.l.bf16 %v341
        %v374 = vunpack.c.l.bf16 %v342
        %v375 = vunpack.c.l.bf16 %v343
        %v377 = vlaneseq
        %v378 = vshrl.u32 %v377, 7
        %v379 = vsub.s32 0, %v378
        %v380 = vrot.slane %v310, %v379
        %v382 = vmul.f32 %v344, %v380
        %v383 = vmul.f32 %v345, %v380
        %v384 = vmul.f32 %v346, %v380
        %v385 = vmul.f32 %v347, %v380
        %v386 = vmul.f32 %v348, %v380
        %v387 = vmul.f32 %v349, %v380
        %v388 = vmul.f32 %v350, %v380
        %v389 = vmul.f32 %v351, %v380
        %v390 = vmul.f32 %v352, %v380
        %v391 = vmul.f32 %v353, %v380
        %v392 = vmul.f32 %v354, %v380
        %v393 = vmul.f32 %v355, %v380
        %v394 = vmul.f32 %v356, %v380
        %v395 = vmul.f32 %v357, %v380
        %v396 = vmul.f32 %v358, %v380
        %v397 = vmul.f32 %v359, %v380
        %v398 = vmul.f32 %v360, %v380
        %v399 = vmul.f32 %v361, %v380
        %v400 = vmul.f32 %v362, %v380
        %v401 = vmul.f32 %v363, %v380
        %v402 = vmul.f32 %v364, %v380
        %v403 = vmul.f32 %v365, %v380
        %v404 = vmul.f32 %v366, %v380
        %v405 = vmul.f32 %v367, %v380
        %v406 = vmul.f32 %v368, %v380
        %v407 = vmul.f32 %v369, %v380
        %v408 = vmul.f32 %v370, %v380
        %v409 = vmul.f32 %v371, %v380
        %v410 = vmul.f32 %v372, %v380
        %v411 = vmul.f32 %v373, %v380
        %v412 = vmul.f32 %v374, %v380
        %v413 = vmul.f32 %v375, %v380
        %v415 = vlaneseq
        %v416 = vshrl.u32 %v415, 7
        %v417 = vsub.s32 0, %v416
        %v418 = vrot.slane %v311, %v417
        %v420 = vadd.f32 %v382, %v418
        %v421 = vadd.f32 %v383, %v418
        %v422 = vadd.f32 %v384, %v418
        %v423 = vadd.f32 %v385, %v418
        %v424 = vadd.f32 %v386, %v418
        %v425 = vadd.f32 %v387, %v418
        %v426 = vadd.f32 %v388, %v418
        %v427 = vadd.f32 %v389, %v418
        %v428 = vadd.f32 %v390, %v418
        %v429 = vadd.f32 %v391, %v418
        %v430 = vadd.f32 %v392, %v418
        %v431 = vadd.f32 %v393, %v418
        %v432 = vadd.f32 %v394, %v418
        %v433 = vadd.f32 %v395, %v418
        %v434 = vadd.f32 %v396, %v418
        %v435 = vadd.f32 %v397, %v418
        %v436 = vadd.f32 %v398, %v418
        %v437 = vadd.f32 %v399, %v418
        %v438 = vadd.f32 %v400, %v418
        %v439 = vadd.f32 %v401, %v418
        %v440 = vadd.f32 %v402, %v418
        %v441 = vadd.f32 %v403, %v418
        %v442 = vadd.f32 %v404, %v418
        %v443 = vadd.f32 %v405, %v418
        %v444 = vadd.f32 %v406, %v418
        %v445 = vadd.f32 %v407, %v418
        %v446 = vadd.f32 %v408, %v418
        %v447 = vadd.f32 %v409, %v418
        %v448 = vadd.f32 %v410, %v418
        %v449 = vadd.f32 %v411, %v418
        %v450 = vadd.f32 %v412, %v418
        %v451 = vadd.f32 %v413, %v418
        %v452 = vmax.f32 %v420, 0.0
        %v453 = vmax.f32 %v421, 0.0
        %v454 = vmax.f32 %v422, 0.0
        %v455 = vmax.f32 %v423, 0.0
        %v456 = vmax.f32 %v424, 0.0
        %v457 = vmax.f32 %v425, 0.0
        %v458 = vmax.f32 %v426, 0.0
        %v459 = vmax.f32 %v427, 0.0
        %v460 = vmax.f32 %v428, 0.0
        %v461 = vmax.f32 %v429, 0.0
        %v462 = vmax.f32 %v430, 0.0
        %v463 = vmax.f32 %v431, 0.0
        %v464 = vmax.f32 %v432, 0.0
        %v465 = vmax.f32 %v433, 0.0
        %v466 = vmax.f32 %v434, 0.0
        %v467 = vmax.f32 %v435, 0.0
        %v468 = vmax.f32 %v436, 0.0
        %v469 = vmax.f32 %v437, 0.0
        %v470 = vmax.f32 %v438, 0.0
        %v471 = vmax.f32 %v439, 0.0
        %v472 = vmax.f32 %v440, 0.0
        %v473 = vmax.f32 %v441, 0.0
        %v474 = vmax.f32 %v442, 0.0
        %v475 = vmax.f32 %v443, 0.0
        %v476 = vmax.f32 %v444, 0.0
        %v477 = vmax.f32 %v445, 0.0
        %v478 = vmax.f32 %v446, 0.0
        %v479 = vmax.f32 %v447, 0.0
        %v480 = vmax.f32 %v448, 0.0
        %v481 = vmax.f32 %v449, 0.0
        %v482 = vmax.f32 %v450, 0.0
        %v483 = vmax.f32 %v451, 0.0
        %v484 = vld [vmem:[%s304] sm:$0xf]
        %v485 = vld [vmem:[%s304 + $0x4] sm:$0xf]
        %v486 = vld [vmem:[%s304 + $0x8] sm:$0xf]
        %v487 = vld [vmem:[%s304 + $0xc] sm:$0xf]
        %v488 = vld [vmem:[%s304 + $0x10] sm:$0xf]
        %v489 = vld [vmem:[%s304 + $0x14] sm:$0xf]
        %v490 = vld [vmem:[%s304 + $0x18] sm:$0xf]
        %v491 = vld [vmem:[%s304 + $0x1c] sm:$0xf]
        %v492 = vld [vmem:[%s304 + $0x20] sm:$0xf]
        %v493 = vld [vmem:[%s304 + $0x24] sm:$0xf]
        %v494 = vld [vmem:[%s304 + $0x28] sm:$0xf]
        %v495 = vld [vmem:[%s304 + $0x2c] sm:$0xf]
        %v496 = vld [vmem:[%s304 + $0x30] sm:$0xf]
        %v497 = vld [vmem:[%s304 + $0x34] sm:$0xf]
        %v498 = vld [vmem:[%s304 + $0x38] sm:$0xf]
        %v499 = vld [vmem:[%s304 + $0x3c] sm:$0xf]
        %v500 = vld [vmem:[%s304 + $0x40] sm:$0xf]
        %v501 = vld [vmem:[%s304 + $0x44] sm:$0xf]
        %v502 = vld [vmem:[%s304 + $0x48] sm:$0xf]
        %v503 = vld [vmem:[%s304 + $0x4c] sm:$0xf]
        %v504 = vld [vmem:[%s304 + $0x50] sm:$0xf]
        %v505 = vld [vmem:[%s304 + $0x54] sm:$0xf]
        %v506 = vld [vmem:[%s304 + $0x58] sm:$0xf]
        %v507 = vld [vmem:[%s304 + $0x5c] sm:$0xf]
        %v508 = vld [vmem:[%s304 + $0x60] sm:$0xf]
        %v509 = vld [vmem:[%s304 + $0x64] sm:$0xf]
        %v510 = vld [vmem:[%s304 + $0x68] sm:$0xf]
        %v511 = vld [vmem:[%s304 + $0x6c] sm:$0xf]
        %v512 = vld [vmem:[%s304 + $0x70] sm:$0xf]
        %v513 = vld [vmem:[%s304 + $0x74] sm:$0xf]
        %v514 = vld [vmem:[%s304 + $0x78] sm:$0xf]
        %v515 = vld [vmem:[%s304 + $0x7c] sm:$0xf]
        %v516 = vunpack.c.l.bf16 %v484
        %v517 = vunpack.c.l.bf16 %v485
        %v518 = vunpack.c.l.bf16 %v486
        %v519 = vunpack.c.l.bf16 %v487
        %v520 = vunpack.c.l.bf16 %v488
        %v521 = vunpack.c.l.bf16 %v489
        %v522 = vunpack.c.l.bf16 %v490
        %v523 = vunpack.c.l.bf16 %v491
        %v524 = vunpack.c.l.bf16 %v492
        %v525 = vunpack.c.l.bf16 %v493
        %v526 = vunpack.c.l.bf16 %v494
        %v527 = vunpack.c.l.bf16 %v495
        %v528 = vunpack.c.l.bf16 %v496
        %v529 = vunpack.c.l.bf16 %v497
        %v530 = vunpack.c.l.bf16 %v498
        %v531 = vunpack.c.l.bf16 %v499
        %v532 = vunpack.c.l.bf16 %v500
        %v533 = vunpack.c.l.bf16 %v501
        %v534 = vunpack.c.l.bf16 %v502
        %v535 = vunpack.c.l.bf16 %v503
        %v536 = vunpack.c.l.bf16 %v504
        %v537 = vunpack.c.l.bf16 %v505
        %v538 = vunpack.c.l.bf16 %v506
        %v539 = vunpack.c.l.bf16 %v507
        %v540 = vunpack.c.l.bf16 %v508
        %v541 = vunpack.c.l.bf16 %v509
        %v542 = vunpack.c.l.bf16 %v510
        %v543 = vunpack.c.l.bf16 %v511
        %v544 = vunpack.c.l.bf16 %v512
        %v545 = vunpack.c.l.bf16 %v513
        %v546 = vunpack.c.l.bf16 %v514
        %v547 = vunpack.c.l.bf16 %v515
        %548 = vrot.lane.b32.xlu0 %v380, 116
        %v549 = vpop.permute.xlu0 %548
        %v551 = vmul.f32 %v516, %v549
        %v552 = vmul.f32 %v517, %v549
        %v553 = vmul.f32 %v518, %v549
        %v554 = vmul.f32 %v519, %v549
        %v555 = vmul.f32 %v520, %v549
        %v556 = vmul.f32 %v521, %v549
        %v557 = vmul.f32 %v522, %v549
        %v558 = vmul.f32 %v523, %v549
        %v559 = vmul.f32 %v524, %v549
        %v560 = vmul.f32 %v525, %v549
        %v561 = vmul.f32 %v526, %v549
        %v562 = vmul.f32 %v527, %v549
        %v563 = vmul.f32 %v528, %v549
        %v564 = vmul.f32 %v529, %v549
        %v565 = vmul.f32 %v530, %v549
        %v566 = vmul.f32 %v531, %v549
        %v567 = vmul.f32 %v532, %v549
        %v568 = vmul.f32 %v533, %v549
        %v569 = vmul.f32 %v534, %v549
        %v570 = vmul.f32 %v535, %v549
        %v571 = vmul.f32 %v536, %v549
        %v572 = vmul.f32 %v537, %v549
        %v573 = vmul.f32 %v538, %v549
        %v574 = vmul.f32 %v539, %v549
        %v575 = vmul.f32 %v540, %v549
        %v576 = vmul.f32 %v541, %v549
        %v577 = vmul.f32 %v542, %v549
        %v578 = vmul.f32 %v543, %v549
        %v579 = vmul.f32 %v544, %v549
        %v580 = vmul.f32 %v545, %v549
        %v581 = vmul.f32 %v546, %v549
        %v582 = vmul.f32 %v547, %v549
        %583 = vrot.lane.b32.xlu0 %v418, 116
        %v584 = vpop.permute.xlu0 %583
        %v586 = vadd.f32 %v551, %v584
        %v587 = vadd.f32 %v552, %v584
        %v588 = vadd.f32 %v553, %v584
        %v589 = vadd.f32 %v554, %v584
        %v590 = vadd.f32 %v555, %v584
        %v591 = vadd.f32 %v556, %v584
        %v592 = vadd.f32 %v557, %v584
        %v593 = vadd.f32 %v558, %v584
        %v594 = vadd.f32 %v559, %v584
        %v595 = vadd.f32 %v560, %v584
        %v596 = vadd.f32 %v561, %v584
        %v597 = vadd.f32 %v562, %v584
        %v598 = vadd.f32 %v563, %v584
        %v599 = vadd.f32 %v564, %v584
        %v600 = vadd.f32 %v565, %v584
        %v601 = vadd.f32 %v566, %v584
        %v602 = vadd.f32 %v567, %v584
        %v603 = vadd.f32 %v568, %v584
        %v604 = vadd.f32 %v569, %v584
        %v605 = vadd.f32 %v570, %v584
        %v606 = vadd.f32 %v571, %v584
        %v607 = vadd.f32 %v572, %v584
        %v608 = vadd.f32 %v573, %v584
        %v609 = vadd.f32 %v574, %v584
        %v610 = vadd.f32 %v575, %v584
        %v611 = vadd.f32 %v576, %v584
        %v612 = vadd.f32 %v577, %v584
        %v613 = vadd.f32 %v578, %v584
        %v614 = vadd.f32 %v579, %v584
        %v615 = vadd.f32 %v580, %v584
        %v616 = vadd.f32 %v581, %v584
        %v617 = vadd.f32 %v582, %v584
        %v618 = vmax.f32 %v586, 0.0
        %v619 = vmax.f32 %v587, 0.0
        %v620 = vmax.f32 %v588, 0.0
        %v621 = vmax.f32 %v589, 0.0
        %v622 = vmax.f32 %v590, 0.0
        %v623 = vmax.f32 %v591, 0.0
        %v624 = vmax.f32 %v592, 0.0
        %v625 = vmax.f32 %v593, 0.0
        %v626 = vmax.f32 %v594, 0.0
        %v627 = vmax.f32 %v595, 0.0
        %v628 = vmax.f32 %v596, 0.0
        %v629 = vmax.f32 %v597, 0.0
        %v630 = vmax.f32 %v598, 0.0
        %v631 = vmax.f32 %v599, 0.0
        %v632 = vmax.f32 %v600, 0.0
        %v633 = vmax.f32 %v601, 0.0
        %v634 = vmax.f32 %v602, 0.0
        %v635 = vmax.f32 %v603, 0.0
        %v636 = vmax.f32 %v604, 0.0
        %v637 = vmax.f32 %v605, 0.0
        %v638 = vmax.f32 %v606, 0.0
        %v639 = vmax.f32 %v607, 0.0
        %v640 = vmax.f32 %v608, 0.0
        %v641 = vmax.f32 %v609, 0.0
        %v642 = vmax.f32 %v610, 0.0
        %v643 = vmax.f32 %v611, 0.0
        %v644 = vmax.f32 %v612, 0.0
        %v645 = vmax.f32 %v613, 0.0
        %v646 = vmax.f32 %v614, 0.0
        %v647 = vmax.f32 %v615, 0.0
        %v648 = vmax.f32 %v616, 0.0
        %v649 = vmax.f32 %v617, 0.0
        %v650 = vld [vmem:[%s309] sm:$0xf]
        %v651 = vld [vmem:[%s309 + $0x4] sm:$0xf]
        %v652 = vld [vmem:[%s309 + $0x8] sm:$0xf]
        %v653 = vld [vmem:[%s309 + $0xc] sm:$0xf]
        %v654 = vld [vmem:[%s309 + $0x10] sm:$0xf]
        %v655 = vld [vmem:[%s309 + $0x14] sm:$0xf]
        %v656 = vld [vmem:[%s309 + $0x18] sm:$0xf]
        %v657 = vld [vmem:[%s309 + $0x1c] sm:$0xf]
        %v658 = vld [vmem:[%s309 + $0x20] sm:$0xf]
        %v659 = vld [vmem:[%s309 + $0x24] sm:$0xf]
        %v660 = vld [vmem:[%s309 + $0x28] sm:$0xf]
        %v661 = vld [vmem:[%s309 + $0x2c] sm:$0xf]
        %v662 = vld [vmem:[%s309 + $0x30] sm:$0xf]
        %v663 = vld [vmem:[%s309 + $0x34] sm:$0xf]
        %v664 = vld [vmem:[%s309 + $0x38] sm:$0xf]
        %v665 = vld [vmem:[%s309 + $0x3c] sm:$0xf]
        %v666 = vld [vmem:[%s309 + $0x40] sm:$0xf]
        %v667 = vld [vmem:[%s309 + $0x44] sm:$0xf]
        %v668 = vld [vmem:[%s309 + $0x48] sm:$0xf]
        %v669 = vld [vmem:[%s309 + $0x4c] sm:$0xf]
        %v670 = vld [vmem:[%s309 + $0x50] sm:$0xf]
        %v671 = vld [vmem:[%s309 + $0x54] sm:$0xf]
        %v672 = vld [vmem:[%s309 + $0x58] sm:$0xf]
        %v673 = vld [vmem:[%s309 + $0x5c] sm:$0xf]
        %v674 = vld [vmem:[%s309 + $0x60] sm:$0xf]
        %v675 = vld [vmem:[%s309 + $0x64] sm:$0xf]
        %v676 = vld [vmem:[%s309 + $0x68] sm:$0xf]
        %v677 = vld [vmem:[%s309 + $0x6c] sm:$0xf]
        %v678 = vld [vmem:[%s309 + $0x70] sm:$0xf]
        %v679 = vld [vmem:[%s309 + $0x74] sm:$0xf]
        %v680 = vld [vmem:[%s309 + $0x78] sm:$0xf]
        %v681 = vld [vmem:[%s309 + $0x7c] sm:$0xf]
        %v682 = vunpack.c.l.bf16 %v650
        %v683 = vunpack.c.l.bf16 %v651
        %v684 = vunpack.c.l.bf16 %v652
        %v685 = vunpack.c.l.bf16 %v653
        %v686 = vunpack.c.l.bf16 %v654
        %v687 = vunpack.c.l.bf16 %v655
        %v688 = vunpack.c.l.bf16 %v656
        %v689 = vunpack.c.l.bf16 %v657
        %v690 = vunpack.c.l.bf16 %v658
        %v691 = vunpack.c.l.bf16 %v659
        %v692 = vunpack.c.l.bf16 %v660
        %v693 = vunpack.c.l.bf16 %v661
        %v694 = vunpack.c.l.bf16 %v662
        %v695 = vunpack.c.l.bf16 %v663
        %v696 = vunpack.c.l.bf16 %v664
        %v697 = vunpack.c.l.bf16 %v665
        %v698 = vunpack.c.l.bf16 %v666
        %v699 = vunpack.c.l.bf16 %v667
        %v700 = vunpack.c.l.bf16 %v668
        %v701 = vunpack.c.l.bf16 %v669
        %v702 = vunpack.c.l.bf16 %v670
        %v703 = vunpack.c.l.bf16 %v671
        %v704 = vunpack.c.l.bf16 %v672
        %v705 = vunpack.c.l.bf16 %v673
        %v706 = vunpack.c.l.bf16 %v674
        %v707 = vunpack.c.l.bf16 %v675
        %v708 = vunpack.c.l.bf16 %v676
        %v709 = vunpack.c.l.bf16 %v677
        %v710 = vunpack.c.l.bf16 %v678
        %v711 = vunpack.c.l.bf16 %v679
        %v712 = vunpack.c.l.bf16 %v680
        %v713 = vunpack.c.l.bf16 %v681
        %714 = vrot.lane.b32.xlu0 %v380, 108
        %v715 = vpop.permute.xlu0 %714
        %v717 = vmul.f32 %v682, %v715
        %v718 = vmul.f32 %v683, %v715
        %v719 = vmul.f32 %v684, %v715
        %v720 = vmul.f32 %v685, %v715
        %v721 = vmul.f32 %v686, %v715
        %v722 = vmul.f32 %v687, %v715
        %v723 = vmul.f32 %v688, %v715
        %v724 = vmul.f32 %v689, %v715
        %v725 = vmul.f32 %v690, %v715
        %v726 = vmul.f32 %v691, %v715
        %v727 = vmul.f32 %v692, %v715
        %v728 = vmul.f32 %v693, %v715
        %v729 = vmul.f32 %v694, %v715
        %v730 = vmul.f32 %v695, %v715
        %v731 = vmul.f32 %v696, %v715
        %v732 = vmul.f32 %v697, %v715
        %v733 = vmul.f32 %v698, %v715
        %v734 = vmul.f32 %v699, %v715
        %v735 = vmul.f32 %v700, %v715
        %v736 = vmul.f32 %v701, %v715
        %v737 = vmul.f32 %v702, %v715
        %v738 = vmul.f32 %v703, %v715
        %v739 = vmul.f32 %v704, %v715
        %v740 = vmul.f32 %v705, %v715
        %v741 = vmul.f32 %v706, %v715
        %v742 = vmul.f32 %v707, %v715
        %v743 = vmul.f32 %v708, %v715
        %v744 = vmul.f32 %v709, %v715
        %v745 = vmul.f32 %v710, %v715
        %v746 = vmul.f32 %v711, %v715
        %v747 = vmul.f32 %v712, %v715
        %v748 = vmul.f32 %v713, %v715
        %749 = vrot.lane.b32.xlu0 %v418, 108
        %v750 = vpop.permute.xlu0 %749
        %v752 = vadd.f32 %v717, %v750
        %v753 = vadd.f32 %v718, %v750
        %v754 = vadd.f32 %v719, %v750
        %v755 = vadd.f32 %v720, %v750
        %v756 = vadd.f32 %v721, %v750
        %v757 = vadd.f32 %v722, %v750
        %v758 = vadd.f32 %v723, %v750
        %v759 = vadd.f32 %v724, %v750
        %v760 = vadd.f32 %v725, %v750
        %v761 = vadd.f32 %v726, %v750
        %v762 = vadd.f32 %v727, %v750
        %v763 = vadd.f32 %v728, %v750
        %v764 = vadd.f32 %v729, %v750
        %v765 = vadd.f32 %v730, %v750
        %v766 = vadd.f32 %v731, %v750
        %v767 = vadd.f32 %v732, %v750
        %v768 = vadd.f32 %v733, %v750
        %v769 = vadd.f32 %v734, %v750
        %v770 = vadd.f32 %v735, %v750
        %v771 = vadd.f32 %v736, %v750
        %v772 = vadd.f32 %v737, %v750
        %v773 = vadd.f32 %v738, %v750
        %v774 = vadd.f32 %v739, %v750
        %v775 = vadd.f32 %v740, %v750
        %v776 = vadd.f32 %v741, %v750
        %v777 = vadd.f32 %v742, %v750
        %v778 = vadd.f32 %v743, %v750
        %v779 = vadd.f32 %v744, %v750
        %v780 = vadd.f32 %v745, %v750
        %v781 = vadd.f32 %v746, %v750
        %v782 = vadd.f32 %v747, %v750
        %v783 = vadd.f32 %v748, %v750
        %v784 = vmax.f32 %v752, 0.0
        %v785 = vmax.f32 %v753, 0.0
        %v786 = vmax.f32 %v754, 0.0
        %v787 = vmax.f32 %v755, 0.0
        %v788 = vmax.f32 %v756, 0.0
        %v789 = vmax.f32 %v757, 0.0
        %v790 = vmax.f32 %v758, 0.0
        %v791 = vmax.f32 %v759, 0.0
        %v792 = vmax.f32 %v760, 0.0
        %v793 = vmax.f32 %v761, 0.0
        %v794 = vmax.f32 %v762, 0.0
        %v795 = vmax.f32 %v763, 0.0
        %v796 = vmax.f32 %v764, 0.0
        %v797 = vmax.f32 %v765, 0.0
        %v798 = vmax.f32 %v766, 0.0
        %v799 = vmax.f32 %v767, 0.0
        %v800 = vmax.f32 %v768, 0.0
        %v801 = vmax.f32 %v769, 0.0
        %v802 = vmax.f32 %v770, 0.0
        %v803 = vmax.f32 %v771, 0.0
        %v804 = vmax.f32 %v772, 0.0
        %v805 = vmax.f32 %v773, 0.0
        %v806 = vmax.f32 %v774, 0.0
        %v807 = vmax.f32 %v775, 0.0
        %v808 = vmax.f32 %v776, 0.0
        %v809 = vmax.f32 %v777, 0.0
        %v810 = vmax.f32 %v778, 0.0
        %v811 = vmax.f32 %v779, 0.0
        %v812 = vmax.f32 %v780, 0.0
        %v813 = vmax.f32 %v781, 0.0
        %v814 = vmax.f32 %v782, 0.0
        %v815 = vmax.f32 %v783, 0.0
        %v816 = vld [vmem:[%s294] sm:$0xff]
        %v817 = vld [vmem:[%s294 + $0x8] sm:$0xff]
        %v818 = vld [vmem:[%s294 + $0x10] sm:$0xff]
        %v819 = vld [vmem:[%s294 + $0x18] sm:$0xff]
        %v820 = vld [vmem:[%s294 + $0x20] sm:$0xff]
        %v821 = vld [vmem:[%s294 + $0x28] sm:$0xff]
        %v822 = vld [vmem:[%s294 + $0x30] sm:$0xff]
        %v823 = vld [vmem:[%s294 + $0x38] sm:$0xff]
        %v824 = vld [vmem:[%s294 + $0x40] sm:$0xff]
        %v825 = vld [vmem:[%s294 + $0x48] sm:$0xff]
        %v826 = vld [vmem:[%s294 + $0x50] sm:$0xff]
        %v827 = vld [vmem:[%s294 + $0x58] sm:$0xff]
        %v828 = vld [vmem:[%s294 + $0x60] sm:$0xff]
        %v829 = vld [vmem:[%s294 + $0x68] sm:$0xff]
        %v830 = vld [vmem:[%s294 + $0x70] sm:$0xff]
        %v831 = vld [vmem:[%s294 + $0x78] sm:$0xff]
        %v832 = vld [vmem:[%s294 + $0x80] sm:$0xff]
        %v833 = vld [vmem:[%s294 + $0x88] sm:$0xff]
        %v834 = vld [vmem:[%s294 + $0x90] sm:$0xff]
        %v835 = vld [vmem:[%s294 + $0x98] sm:$0xff]
        %v836 = vld [vmem:[%s294 + $0xa0] sm:$0xff]
        %v837 = vld [vmem:[%s294 + $0xa8] sm:$0xff]
        %v838 = vld [vmem:[%s294 + $0xb0] sm:$0xff]
        %v839 = vld [vmem:[%s294 + $0xb8] sm:$0xff]
        %v840 = vld [vmem:[%s294 + $0xc0] sm:$0xff]
        %v841 = vld [vmem:[%s294 + $0xc8] sm:$0xff]
        %v842 = vld [vmem:[%s294 + $0xd0] sm:$0xff]
        %v843 = vld [vmem:[%s294 + $0xd8] sm:$0xff]
        %v844 = vld [vmem:[%s294 + $0xe0] sm:$0xff]
        %v845 = vld [vmem:[%s294 + $0xe8] sm:$0xff]
        %v846 = vld [vmem:[%s294 + $0xf0] sm:$0xff]
        %v847 = vld [vmem:[%s294 + $0xf8] sm:$0xff]
        %880 = vrot.lane.b32.xlu0 %v452, 8
        %v881 = vpop.permute.xlu0 %880
        %882 = vrot.lane.b32.xlu0 %v453, 8
        %v883 = vpop.permute.xlu0 %882
        %884 = vrot.lane.b32.xlu0 %v454, 8
        %v885 = vpop.permute.xlu0 %884
        %886 = vrot.lane.b32.xlu0 %v455, 8
        %v887 = vpop.permute.xlu0 %886
        %888 = vrot.lane.b32.xlu0 %v456, 8
        %v889 = vpop.permute.xlu0 %888
        %890 = vrot.lane.b32.xlu0 %v457, 8
        %v891 = vpop.permute.xlu0 %890
        %892 = vrot.lane.b32.xlu0 %v458, 8
        %v893 = vpop.permute.xlu0 %892
        %894 = vrot.lane.b32.xlu0 %v459, 8
        %v895 = vpop.permute.xlu0 %894
        %896 = vrot.lane.b32.xlu0 %v460, 8
        %v897 = vpop.permute.xlu0 %896
        %898 = vrot.lane.b32.xlu0 %v461, 8
        %v899 = vpop.permute.xlu0 %898
        %900 = vrot.lane.b32.xlu0 %v462, 8
        %v901 = vpop.permute.xlu0 %900
        %902 = vrot.lane.b32.xlu0 %v463, 8
        %v903 = vpop.permute.xlu0 %902
        %904 = vrot.lane.b32.xlu0 %v464, 8
        %v905 = vpop.permute.xlu0 %904
        %906 = vrot.lane.b32.xlu0 %v465, 8
        %v907 = vpop.permute.xlu0 %906
        %908 = vrot.lane.b32.xlu0 %v466, 8
        %v909 = vpop.permute.xlu0 %908
        %910 = vrot.lane.b32.xlu0 %v467, 8
        %v911 = vpop.permute.xlu0 %910
        %912 = vrot.lane.b32.xlu0 %v468, 8
        %v913 = vpop.permute.xlu0 %912
        %914 = vrot.lane.b32.xlu0 %v469, 8
        %v915 = vpop.permute.xlu0 %914
        %916 = vrot.lane.b32.xlu0 %v470, 8
        %v917 = vpop.permute.xlu0 %916
        %918 = vrot.lane.b32.xlu0 %v471, 8
        %v919 = vpop.permute.xlu0 %918
        %920 = vrot.lane.b32.xlu0 %v472, 8
        %v921 = vpop.permute.xlu0 %920
        %922 = vrot.lane.b32.xlu0 %v473, 8
        %v923 = vpop.permute.xlu0 %922
        %924 = vrot.lane.b32.xlu0 %v474, 8
        %v925 = vpop.permute.xlu0 %924
        %926 = vrot.lane.b32.xlu0 %v475, 8
        %v927 = vpop.permute.xlu0 %926
        %928 = vrot.lane.b32.xlu0 %v476, 8
        %v929 = vpop.permute.xlu0 %928
        %930 = vrot.lane.b32.xlu0 %v477, 8
        %v931 = vpop.permute.xlu0 %930
        %932 = vrot.lane.b32.xlu0 %v478, 8
        %v933 = vpop.permute.xlu0 %932
        %934 = vrot.lane.b32.xlu0 %v479, 8
        %v935 = vpop.permute.xlu0 %934
        %936 = vrot.lane.b32.xlu0 %v480, 8
        %v937 = vpop.permute.xlu0 %936
        %938 = vrot.lane.b32.xlu0 %v481, 8
        %v939 = vpop.permute.xlu0 %938
        %940 = vrot.lane.b32.xlu0 %v482, 8
        %v941 = vpop.permute.xlu0 %940
        %942 = vrot.lane.b32.xlu0 %v483, 8
        %v943 = vpop.permute.xlu0 %942
        %1008 = vrot.lane.b32.xlu0 %v618, 20
        %v1009 = vpop.permute.xlu0 %1008
        %1010 = vrot.lane.b32.xlu0 %v619, 20
        %v1011 = vpop.permute.xlu0 %1010
        %1012 = vrot.lane.b32.xlu0 %v620, 20
        %v1013 = vpop.permute.xlu0 %1012
        %1014 = vrot.lane.b32.xlu0 %v621, 20
        %v1015 = vpop.permute.xlu0 %1014
        %1016 = vrot.lane.b32.xlu0 %v622, 20
        %v1017 = vpop.permute.xlu0 %1016
        %1018 = vrot.lane.b32.xlu0 %v623, 20
        %v1019 = vpop.permute.xlu0 %1018
        %1020 = vrot.lane.b32.xlu0 %v624, 20
        %v1021 = vpop.permute.xlu0 %1020
        %1022 = vrot.lane.b32.xlu0 %v625, 20
        %v1023 = vpop.permute.xlu0 %1022
        %1024 = vrot.lane.b32.xlu0 %v626, 20
        %v1025 = vpop.permute.xlu0 %1024
        %1026 = vrot.lane.b32.xlu0 %v627, 20
        %v1027 = vpop.permute.xlu0 %1026
        %1028 = vrot.lane.b32.xlu0 %v628, 20
        %v1029 = vpop.permute.xlu0 %1028
        %1030 = vrot.lane.b32.xlu0 %v629, 20
        %v1031 = vpop.permute.xlu0 %1030
        %1032 = vrot.lane.b32.xlu0 %v630, 20
        %v1033 = vpop.permute.xlu0 %1032
        %1034 = vrot.lane.b32.xlu0 %v631, 20
        %v1035 = vpop.permute.xlu0 %1034
        %1036 = vrot.lane.b32.xlu0 %v632, 20
        %v1037 = vpop.permute.xlu0 %1036
        %1038 = vrot.lane.b32.xlu0 %v633, 20
        %v1039 = vpop.permute.xlu0 %1038
        %1040 = vrot.lane.b32.xlu0 %v634, 20
        %v1041 = vpop.permute.xlu0 %1040
        %1042 = vrot.lane.b32.xlu0 %v635, 20
        %v1043 = vpop.permute.xlu0 %1042
        %1044 = vrot.lane.b32.xlu0 %v636, 20
        %v1045 = vpop.permute.xlu0 %1044
        %1046 = vrot.lane.b32.xlu0 %v637, 20
        %v1047 = vpop.permute.xlu0 %1046
        %1048 = vrot.lane.b32.xlu0 %v638, 20
        %v1049 = vpop.permute.xlu0 %1048
        %1050 = vrot.lane.b32.xlu0 %v639, 20
        %v1051 = vpop.permute.xlu0 %1050
        %1052 = vrot.lane.b32.xlu0 %v640, 20
        %v1053 = vpop.permute.xlu0 %1052
        %1054 = vrot.lane.b32.xlu0 %v641, 20
        %v1055 = vpop.permute.xlu0 %1054
        %1056 = vrot.lane.b32.xlu0 %v642, 20
        %v1057 = vpop.permute.xlu0 %1056
        %1058 = vrot.lane.b32.xlu0 %v643, 20
        %v1059 = vpop.permute.xlu0 %1058
        %1060 = vrot.lane.b32.xlu0 %v644, 20
        %v1061 = vpop.permute.xlu0 %1060
        %1062 = vrot.lane.b32.xlu0 %v645, 20
        %v1063 = vpop.permute.xlu0 %1062
        %1064 = vrot.lane.b32.xlu0 %v646, 20
        %v1065 = vpop.permute.xlu0 %1064
        %1066 = vrot.lane.b32.xlu0 %v647, 20
        %v1067 = vpop.permute.xlu0 %1066
        %1068 = vrot.lane.b32.xlu0 %v648, 20
        %v1069 = vpop.permute.xlu0 %1068
        %1070 = vrot.lane.b32.xlu0 %v649, 20
        %v1071 = vpop.permute.xlu0 %1070
        %1136 = vrot.lane.b32.xlu0 %v784, 28
        %v1137 = vpop.permute.xlu0 %1136
        %1138 = vrot.lane.b32.xlu0 %v785, 28
        %v1139 = vpop.permute.xlu0 %1138
        %1140 = vrot.lane.b32.xlu0 %v786, 28
        %v1141 = vpop.permute.xlu0 %1140
        %1142 = vrot.lane.b32.xlu0 %v787, 28
        %v1143 = vpop.permute.xlu0 %1142
        %1144 = vrot.lane.b32.xlu0 %v788, 28
        %v1145 = vpop.permute.xlu0 %1144
        %1146 = vrot.lane.b32.xlu0 %v789, 28
        %v1147 = vpop.permute.xlu0 %1146
        %1148 = vrot.lane.b32.xlu0 %v790, 28
        %v1149 = vpop.permute.xlu0 %1148
        %1150 = vrot.lane.b32.xlu0 %v791, 28
        %v1151 = vpop.permute.xlu0 %1150
        %1152 = vrot.lane.b32.xlu0 %v792, 28
        %v1153 = vpop.permute.xlu0 %1152
        %1154 = vrot.lane.b32.xlu0 %v793, 28
        %v1155 = vpop.permute.xlu0 %1154
        %1156 = vrot.lane.b32.xlu0 %v794, 28
        %v1157 = vpop.permute.xlu0 %1156
        %1158 = vrot.lane.b32.xlu0 %v795, 28
        %v1159 = vpop.permute.xlu0 %1158
        %1160 = vrot.lane.b32.xlu0 %v796, 28
        %v1161 = vpop.permute.xlu0 %1160
        %1162 = vrot.lane.b32.xlu0 %v797, 28
        %v1163 = vpop.permute.xlu0 %1162
        %1164 = vrot.lane.b32.xlu0 %v798, 28
        %v1165 = vpop.permute.xlu0 %1164
        %1166 = vrot.lane.b32.xlu0 %v799, 28
        %v1167 = vpop.permute.xlu0 %1166
        %1168 = vrot.lane.b32.xlu0 %v800, 28
        %v1169 = vpop.permute.xlu0 %1168
        %1170 = vrot.lane.b32.xlu0 %v801, 28
        %v1171 = vpop.permute.xlu0 %1170
        %1172 = vrot.lane.b32.xlu0 %v802, 28
        %v1173 = vpop.permute.xlu0 %1172
        %1174 = vrot.lane.b32.xlu0 %v803, 28
        %v1175 = vpop.permute.xlu0 %1174
        %1176 = vrot.lane.b32.xlu0 %v804, 28
        %v1177 = vpop.permute.xlu0 %1176
        %1178 = vrot.lane.b32.xlu0 %v805, 28
        %v1179 = vpop.permute.xlu0 %1178
        %1180 = vrot.lane.b32.xlu0 %v806, 28
        %v1181 = vpop.permute.xlu0 %1180
        %1182 = vrot.lane.b32.xlu0 %v807, 28
        %v1183 = vpop.permute.xlu0 %1182
        %1184 = vrot.lane.b32.xlu0 %v808, 28
        %v1185 = vpop.permute.xlu0 %1184
        %1186 = vrot.lane.b32.xlu0 %v809, 28
        %v1187 = vpop.permute.xlu0 %1186
        %1188 = vrot.lane.b32.xlu0 %v810, 28
        %v1189 = vpop.permute.xlu0 %1188
        %1190 = vrot.lane.b32.xlu0 %v811, 28
        %v1191 = vpop.permute.xlu0 %1190
        %1192 = vrot.lane.b32.xlu0 %v812, 28
        %v1193 = vpop.permute.xlu0 %1192
        %1194 = vrot.lane.b32.xlu0 %v813, 28
        %v1195 = vpop.permute.xlu0 %1194
        %1196 = vrot.lane.b32.xlu0 %v814, 28
        %v1197 = vpop.permute.xlu0 %1196
        %1198 = vrot.lane.b32.xlu0 %v815, 28
        %v1199 = vpop.permute.xlu0 %1198
        %vm1232 = vcmask 64512
        %v1233 = vsel %vm1232, %v816, %v881
        %v1234 = vsel %vm1232, %v817, %v883
        %v1235 = vsel %vm1232, %v818, %v885
        %v1236 = vsel %vm1232, %v819, %v887
        %v1237 = vsel %vm1232, %v820, %v889
        %v1238 = vsel %vm1232, %v821, %v891
        %v1239 = vsel %vm1232, %v822, %v893
        %v1240 = vsel %vm1232, %v823, %v895
        %v1241 = vsel %vm1232, %v824, %v897
        %v1242 = vsel %vm1232, %v825, %v899
        %v1243 = vsel %vm1232, %v826, %v901
        %v1244 = vsel %vm1232, %v827, %v903
        %v1245 = vsel %vm1232, %v828, %v905
        %v1246 = vsel %vm1232, %v829, %v907
        %v1247 = vsel %vm1232, %v830, %v909
        %v1248 = vsel %vm1232, %v831, %v911
        %v1249 = vsel %vm1232, %v832, %v913
        %v1250 = vsel %vm1232, %v833, %v915
        %v1251 = vsel %vm1232, %v834, %v917
        %v1252 = vsel %vm1232, %v835, %v919
        %v1253 = vsel %vm1232, %v836, %v921
        %v1254 = vsel %vm1232, %v837, %v923
        %v1255 = vsel %vm1232, %v838, %v925
        %v1256 = vsel %vm1232, %v839, %v927
        %v1257 = vsel %vm1232, %v840, %v929
        %v1258 = vsel %vm1232, %v841, %v931
        %v1259 = vsel %vm1232, %v842, %v933
        %v1260 = vsel %vm1232, %v843, %v935
        %v1261 = vsel %vm1232, %v844, %v937
        %v1262 = vsel %vm1232, %v845, %v939
        %v1263 = vsel %vm1232, %v846, %v941
        %v1264 = vsel %vm1232, %v847, %v943
        %vm1265 = vcmask 162816
        %v1266 = vsel %vm1265, %v1233, %v1009
        %v1267 = vsel %vm1265, %v1234, %v1011
        %v1268 = vsel %vm1265, %v1235, %v1013
        %v1269 = vsel %vm1265, %v1236, %v1015
        %v1270 = vsel %vm1265, %v1237, %v1017
        %v1271 = vsel %vm1265, %v1238, %v1019
        %v1272 = vsel %vm1265, %v1239, %v1021
        %v1273 = vsel %vm1265, %v1240, %v1023
        %v1274 = vsel %vm1265, %v1241, %v1025
        %v1275 = vsel %vm1265, %v1242, %v1027
        %v1276 = vsel %vm1265, %v1243, %v1029
        %v1277 = vsel %vm1265, %v1244, %v1031
        %v1278 = vsel %vm1265, %v1245, %v1033
        %v1279 = vsel %vm1265, %v1246, %v1035
        %v1280 = vsel %vm1265, %v1247, %v1037
        %v1281 = vsel %vm1265, %v1248, %v1039
        %v1282 = vsel %vm1265, %v1249, %v1041
        %v1283 = vsel %vm1265, %v1250, %v1043
        %v1284 = vsel %vm1265, %v1251, %v1045
        %v1285 = vsel %vm1265, %v1252, %v1047
        %v1286 = vsel %vm1265, %v1253, %v1049
        %v1287 = vsel %vm1265, %v1254, %v1051
        %v1288 = vsel %vm1265, %v1255, %v1053
        %v1289 = vsel %vm1265, %v1256, %v1055
        %v1290 = vsel %vm1265, %v1257, %v1057
        %v1291 = vsel %vm1265, %v1258, %v1059
        %v1292 = vsel %vm1265, %v1259, %v1061
        %v1293 = vsel %vm1265, %v1260, %v1063
        %v1294 = vsel %vm1265, %v1261, %v1065
        %v1295 = vsel %vm1265, %v1262, %v1067
        %v1296 = vsel %vm1265, %v1263, %v1069
        %v1297 = vsel %vm1265, %v1264, %v1071
        %vm1298 = vcmask 228352
        %v1299 = vsel %vm1298, %v1266, %v1137
        %v1300 = vsel %vm1298, %v1267, %v1139
        %v1301 = vsel %vm1298, %v1268, %v1141
        %v1302 = vsel %vm1298, %v1269, %v1143
        %v1303 = vsel %vm1298, %v1270, %v1145
        %v1304 = vsel %vm1298, %v1271, %v1147
        %v1305 = vsel %vm1298, %v1272, %v1149
        %v1306 = vsel %vm1298, %v1273, %v1151
        %v1307 = vsel %vm1298, %v1274, %v1153
        %v1308 = vsel %vm1298, %v1275, %v1155
        %v1309 = vsel %vm1298, %v1276, %v1157
        %v1310 = vsel %vm1298, %v1277, %v1159
        %v1311 = vsel %vm1298, %v1278, %v1161
        %v1312 = vsel %vm1298, %v1279, %v1163
        %v1313 = vsel %vm1298, %v1280, %v1165
        %v1314 = vsel %vm1298, %v1281, %v1167
        %v1315 = vsel %vm1298, %v1282, %v1169
        %v1316 = vsel %vm1298, %v1283, %v1171
        %v1317 = vsel %vm1298, %v1284, %v1173
        %v1318 = vsel %vm1298, %v1285, %v1175
        %v1319 = vsel %vm1298, %v1286, %v1177
        %v1320 = vsel %vm1298, %v1287, %v1179
        %v1321 = vsel %vm1298, %v1288, %v1181
        %v1322 = vsel %vm1298, %v1289, %v1183
        %v1323 = vsel %vm1298, %v1290, %v1185
        %v1324 = vsel %vm1298, %v1291, %v1187
        %v1325 = vsel %vm1298, %v1292, %v1189
        %v1326 = vsel %vm1298, %v1293, %v1191
        %v1327 = vsel %vm1298, %v1294, %v1193
        %v1328 = vsel %vm1298, %v1295, %v1195
        %v1329 = vsel %vm1298, %v1296, %v1197
        %v1330 = vsel %vm1298, %v1297, %v1199
        %vm1331 = vcmask 277504
        %1332 = vst.msk [vmem:[%s289] sm:$0xff] %vm1331, %v1299
        %1333 = vst.msk [vmem:[%s289 + $0x8] sm:$0xff] %vm1331, %v1300
        %1334 = vst.msk [vmem:[%s289 + $0x10] sm:$0xff] %vm1331, %v1301
        %1335 = vst.msk [vmem:[%s289 + $0x18] sm:$0xff] %vm1331, %v1302
        %1336 = vst.msk [vmem:[%s289 + $0x20] sm:$0xff] %vm1331, %v1303
        %1337 = vst.msk [vmem:[%s289 + $0x28] sm:$0xff] %vm1331, %v1304
        %1338 = vst.msk [vmem:[%s289 + $0x30] sm:$0xff] %vm1331, %v1305
        %1339 = vst.msk [vmem:[%s289 + $0x38] sm:$0xff] %vm1331, %v1306
        %1340 = vst.msk [vmem:[%s289 + $0x40] sm:$0xff] %vm1331, %v1307
        %1341 = vst.msk [vmem:[%s289 + $0x48] sm:$0xff] %vm1331, %v1308
        %1342 = vst.msk [vmem:[%s289 + $0x50] sm:$0xff] %vm1331, %v1309
        %1343 = vst.msk [vmem:[%s289 + $0x58] sm:$0xff] %vm1331, %v1310
        %1344 = vst.msk [vmem:[%s289 + $0x60] sm:$0xff] %vm1331, %v1311
        %1345 = vst.msk [vmem:[%s289 + $0x68] sm:$0xff] %vm1331, %v1312
        %1346 = vst.msk [vmem:[%s289 + $0x70] sm:$0xff] %vm1331, %v1313
        %1347 = vst.msk [vmem:[%s289 + $0x78] sm:$0xff] %vm1331, %v1314
        %1348 = vst.msk [vmem:[%s289 + $0x80] sm:$0xff] %vm1331, %v1315
        %1349 = vst.msk [vmem:[%s289 + $0x88] sm:$0xff] %vm1331, %v1316
        %1350 = vst.msk [vmem:[%s289 + $0x90] sm:$0xff] %vm1331, %v1317
        %1351 = vst.msk [vmem:[%s289 + $0x98] sm:$0xff] %vm1331, %v1318
        %1352 = vst.msk [vmem:[%s289 + $0xa0] sm:$0xff] %vm1331, %v1319
        %1353 = vst.msk [vmem:[%s289 + $0xa8] sm:$0xff] %vm1331, %v1320
        %1354 = vst.msk [vmem:[%s289 + $0xb0] sm:$0xff] %vm1331, %v1321
        %1355 = vst.msk [vmem:[%s289 + $0xb8] sm:$0xff] %vm1331, %v1322
        %1356 = vst.msk [vmem:[%s289 + $0xc0] sm:$0xff] %vm1331, %v1323
        %1357 = vst.msk [vmem:[%s289 + $0xc8] sm:$0xff] %vm1331, %v1324
        %1358 = vst.msk [vmem:[%s289 + $0xd0] sm:$0xff] %vm1331, %v1325
        %1359 = vst.msk [vmem:[%s289 + $0xd8] sm:$0xff] %vm1331, %v1326
        %1360 = vst.msk [vmem:[%s289 + $0xe0] sm:$0xff] %vm1331, %v1327
        %1361 = vst.msk [vmem:[%s289 + $0xe8] sm:$0xff] %vm1331, %v1328
        %1362 = vst.msk [vmem:[%s289 + $0xf0] sm:$0xff] %vm1331, %v1329
        %1363 = vst.msk [vmem:[%s289 + $0xf8] sm:$0xff] %vm1331, %v1330
        %s1364 = sand.u32 %s174, 1
        %s1365 = scalar_lea.sflag [#allocation3], %s1364
        %s1366 = sand.u32 %s174, 1
        %s1367 = smul.addr %s1366, 256
        %s1368 = scalar_lea.vmem [#allocation2], %s1367
        // Predicated region
        $region45: #{inception_forward.11} parent=43 // pred_check
          %p1369 = pneg %p184
        $region46: #{inception_forward.11} parent=43 // pred_check_branch
          %1371 = sbr.rel (%p1369) target = $region48
        $region47: #{inception_forward.11} parent=43 // pred_region
          %s1373 = ssub.s32 4096, 4096
          %1374 = vsyncadd %s1365, %s1373
          %s1375 = smul.addr %s20, 32
          %s1376 = smul.addr %s1375, 128
          %s1377 = scalar_lea.hbm %s6, %s1376
          %s1378 = sshll.u32 %s1368, 4
          %s1379 = int_to_ptr.vmem [resolvable:$true] %s1378
          %1384 = dma.vmem_to_hbm [thread:$0]  %s1379, 4096, %s1377, %s1365, 128, 128, 8
        $region48: #{inception_forward.11} parent=43 // pred_fallthru
          _
      $region44: #{inception_forward.11} parent=5 // pred_fallthru
        _
      %p1385 = scmp.le.s32.totalorder 2, %s15
      // Predicated region
      $region49: #{inception_forward.11} parent=5 // pred_check
        %p1386 = pneg %p1385
      $region50: #{inception_forward.11} parent=5 // pred_check_branch
        %1388 = sbr.rel (%p1386) target = $region52
      $region51: #{inception_forward.11} parent=5 // pred_region
        %s1389 = ssub.s32 %s15, 2
        // Predicated region
        $region53: #{inception_forward.11} parent=51 // pred_check
          %p1390 = pneg %p190
        $region54: #{inception_forward.11} parent=51 // pred_check_branch
          %1392 = sbr.rel (%p1390) target = $region56
        $region55: #{inception_forward.11} parent=51 // pred_region
          %s1393 = sand.u32 %s175, 1
          %s1394 = scalar_lea.sflag [#allocation3], %s1393
          %s1395 = sand.u32 %s175, 1
          %s1396 = smul.addr %s1395, 256
          %s1397 = scalar_lea.vmem [#allocation2], %s1396
          %1398 = dma.done %s1394, 4096
        $region56: #{inception_forward.11} parent=51 // pred_fallthru
          _
      $region52: #{inception_forward.11} parent=5 // pred_fallthru
        _
    $region6: #{inception_forward.11} parent=1 // loop_footer
      %s19 = sadd.s32 1, %s15
    $region7: #{inception_forward.11} parent=1 // loop_footer_branch
      %14 = sbr.rel target = $region3
    $region8: #{inception_forward.11} parent=1 // loop_exit
      _
    %1399 = vsyncpa [#allocation3], 1
    %s1400 = scalar_lea.sflag [#allocation3], 1
    %1401 = vsyncpa %s1400, 1

// kernel: inception_forward.9
$region0: #{inception_forward.9}
  #allocation0 [shape = 'u32[]', space=smem, size = 0x4, offset = 0x4, fixed_abs, tag = 'smem constant byte address 0x4 - core index']
  #allocation1 [shape = 'u32[144,128]{1,0:T(1,128)}', space=vmem, size = 0x12000, scoped, tag = 'internal scratch']
  #allocation2 [shape = 'f32[18,18,4]{2,1,0:T(8,128)}', space=vmem, size = 0x36000, scoped, tag = 'scratch operand']
  %s0 = inlined_call_operand.vmem [shape: bf16[2,16,16,4], index: 0, kind: input, shape index: {}]
  %s1 = inlined_call_operand.vmem [shape: bf16[36,8], index: 1, kind: input, shape index: {}]
  %s2 = inlined_call_operand.vmem [shape: bf16[2,256,8], index: 2, kind: output, shape index: {0}]
  %s3 = inlined_call_operand.vmem [shape: f32[2,1,8], index: 3, kind: output, shape index: {1}]
  %s4 = inlined_call_operand.vmem [shape: f32[2,1,8], index: 4, kind: output, shape index: {2}]
  %5 = xla_tuple %s2, %s3, %s4
  %s6 = sld [smem:[#allocation0]]
  $region57: #{inception_forward.9} parent=0
    _
  %s8 = ssub.s32 1, %s6
  %s9 = scalar_select 0, %s8, %s6
  loop: start=0, step=1, limit=4
  $region2: #{inception_forward.9} parent=0 // loop_pre_header
    _
  $region3: #{inception_forward.9} parent=0 // loop_header
    %s11 = sphi 0, %s15
    %p12 = scmp.ge.s32.totalorder %s11, 4
    %s21 = sphi 0, %s23
    %s24 = sphi 0, %s21
    %s25 = sphi 0, %s24
    %s41 = sphi 0, %s25
    %s45 = sphi 0, %s45
    %s47 = sphi 0, %s45
    %s48 = sphi 0, %s47
    %s62 = sphi 0, %s48
    %s68 = sphi 0, %s70
    %s71 = sphi 0, %s68
    %s72 = sphi 0, %s71
    %s88 = sphi 0, %s72
    %s94 = sphi 0, %s96
    %s97 = sphi 0, %s94
    %s98 = sphi 0, %s97
    %s114 = sphi 0, %s98
    %s120 = sphi 0, %s122
    %s123 = sphi 0, %s120
    %s124 = sphi 0, %s123
    %s140 = sphi 0, %s124
  $region4: #{inception_forward.9} parent=0 // loop_header_branch
    %14 = sbr.rel (%p12) target = $region8
  $region5: #{inception_forward.9} parent=0 // loop_body
    %s16 = ssub.s32 %s11, 1
    %s17 = ssub.s32 %s11, 2
    %s18 = sadd.s32 %s11, 1
    %s19 = ssub.s32 %s11, %s18
    %p20 = scmp.eq.s32.totalorder %s19, 0
    %s22 = sadd.s32 %s21, 1
    %s23 = scalar_select %p20, %s21, %s22
    %p26 = pneg %p20
    %p27 = scmp.eq.s32.totalorder %s11, 1
    %p28 = por %p26, %p27
    %p29 = scmp.ne.s32.totalorder %s21, %s24
    %p30 = scmp.eq.s32.totalorder %s11, 0
    %p31 = por %p29, %p30
    %p32 = scmp.ne.s32.totalorder %s21, %s24
    %p33 = scmp.eq.s32.totalorder %s16, 1
    %p34 = por %p32, %p33
    %p35 = scmp.ne.s32.totalorder %s24, %s25
    %p36 = scmp.eq.s32.totalorder %s16, 0
    %p37 = por %p35, %p36
    %p38 = scmp.ne.s32.totalorder %s24, %s25
    %p39 = scmp.eq.s32.totalorder %s17, 1
    %p40 = por %p38, %p39
    %p42 = scmp.ne.s32.totalorder %s25, %s41
    %p43 = scmp.eq.s32.totalorder %s17, 0
    %p44 = por %p42, %p43
    %s46 = sadd.s32 %s45, 1
    %p49 = scmp.eq.s32.totalorder %s11, 1
    %p50 = scmp.ne.s32.totalorder %s45, %s47
    %p51 = scmp.eq.s32.totalorder %s11, 0
    %p52 = por %p50, %p51
    %p53 = scmp.ne.s32.totalorder %s45, %s47
    %p54 = scmp.eq.s32.totalorder %s16, 1
    %p55 = por %p53, %p54
    %p56 = scmp.ne.s32.totalorder %s47, %s48
    %p57 = scmp.eq.s32.totalorder %s16, 0
    %p58 = por %p56, %p57
    %p59 = scmp.ne.s32.totalorder %s47, %s48
    %p60 = scmp.eq.s32.totalorder %s17, 1
    %p61 = por %p59, %p60
    %p63 = scmp.ne.s32.totalorder %s48, %s62
    %p64 = scmp.eq.s32.totalorder %s17, 0
    %p65 = por %p63, %p64
    %s66 = ssub.s32 %s11, %s18
    %p67 = scmp.eq.s32.totalorder %s66, 0
    %s69 = sadd.s32 %s68, 1
    %s70 = scalar_select %p67, %s68, %s69
    %p73 = pneg %p67
    %p74 = scmp.eq.s32.totalorder %s11, 1
    %p75 = por %p73, %p74
    %p76 = scmp.ne.s32.totalorder %s68, %s71
    %p77 = scmp.eq.s32.totalorder %s11, 0
    %p78 = por %p76, %p77
    %p79 = scmp.ne.s32.totalorder %s68, %s71
    %p80 = scmp.eq.s32.totalorder %s16, 1
    %p81 = por %p79, %p80
    %p82 = scmp.ne.s32.totalorder %s71, %s72
    %p83 = scmp.eq.s32.totalorder %s16, 0
    %p84 = por %p82, %p83
    %p85 = scmp.ne.s32.totalorder %s71, %s72
    %p86 = scmp.eq.s32.totalorder %s17, 1
    %p87 = por %p85, %p86
    %p89 = scmp.ne.s32.totalorder %s72, %s88
    %p90 = scmp.eq.s32.totalorder %s17, 0
    %p91 = por %p89, %p90
    %s92 = ssub.s32 %s11, %s18
    %p93 = scmp.eq.s32.totalorder %s92, 0
    %s95 = sadd.s32 %s94, 1
    %s96 = scalar_select %p93, %s94, %s95
    %p99 = pneg %p93
    %p100 = scmp.eq.s32.totalorder %s11, 1
    %p101 = por %p99, %p100
    %p102 = scmp.ne.s32.totalorder %s94, %s97
    %p103 = scmp.eq.s32.totalorder %s11, 0
    %p104 = por %p102, %p103
    %p105 = scmp.ne.s32.totalorder %s94, %s97
    %p106 = scmp.eq.s32.totalorder %s16, 1
    %p107 = por %p105, %p106
    %p108 = scmp.ne.s32.totalorder %s97, %s98
    %p109 = scmp.eq.s32.totalorder %s16, 0
    %p110 = por %p108, %p109
    %p111 = scmp.ne.s32.totalorder %s97, %s98
    %p112 = scmp.eq.s32.totalorder %s17, 1
    %p113 = por %p111, %p112
    %p115 = scmp.ne.s32.totalorder %s98, %s114
    %p116 = scmp.eq.s32.totalorder %s17, 0
    %p117 = por %p115, %p116
    %s118 = ssub.s32 %s11, %s18
    %p119 = scmp.eq.s32.totalorder %s118, 0
    %s121 = sadd.s32 %s120, 1
    %s122 = scalar_select %p119, %s120, %s121
    %p125 = pneg %p119
    %p126 = scmp.eq.s32.totalorder %s11, 1
    %p127 = por %p125, %p126
    %p128 = scmp.ne.s32.totalorder %s120, %s123
    %p129 = scmp.eq.s32.totalorder %s11, 0
    %p130 = por %p128, %p129
    %p131 = scmp.ne.s32.totalorder %s120, %s123
    %p132 = scmp.eq.s32.totalorder %s16, 1
    %p133 = por %p131, %p132
    %p134 = scmp.ne.s32.totalorder %s123, %s124
    %p135 = scmp.eq.s32.totalorder %s16, 0
    %p136 = por %p134, %p135
    %p137 = scmp.ne.s32.totalorder %s123, %s124
    %p138 = scmp.eq.s32.totalorder %s17, 1
    %p139 = por %p137, %p138
    %p141 = scmp.ne.s32.totalorder %s124, %s140
    %p142 = scmp.eq.s32.totalorder %s17, 0
    %p143 = por %p141, %p142
    %p144 = scmp.le.s32.totalorder 1, %s11
    %p145 = scmp.lt.s32.totalorder %s11, 3
    %p146 = pnand %p144, %p145
    %p147 = pneg %p146
    // Predicated region
    $region9: #{inception_forward.9} parent=5 // pred_check
      _
    $region10: #{inception_forward.9} parent=5 // pred_check_branch
      %149 = sbr.rel (%p146) target = $region12
    $region11: #{inception_forward.9} parent=5 // pred_region
      %s150 = ssub.s32 %s11, 1
      // Predicated region
      $region13: #{inception_forward.9} parent=11 // pred_check
        %p151 = pneg %p58
      $region14: #{inception_forward.9} parent=11 // pred_check_branch
        %153 = sbr.rel (%p151) target = $region16
      $region15: #{inception_forward.9} parent=11 // pred_region
        _
      $region16: #{inception_forward.9} parent=11 // pred_fallthru
        _
    $region12: #{inception_forward.9} parent=5 // pred_fallthru
      _
    %p154 = scmp.lt.s32.totalorder %s11, 2
    // Predicated region
    $region17: #{inception_forward.9} parent=5 // pred_check
      %p155 = pneg %p154
    $region18: #{inception_forward.9} parent=5 // pred_check_branch
      %157 = sbr.rel (%p155) target = $region20
    $region19: #{inception_forward.9} parent=5 // pred_region
      // Predicated region
      $region21: #{inception_forward.9} parent=19 // pred_check
        %p158 = pneg %p31
      $region22: #{inception_forward.9} parent=19 // pred_check_branch
        %160 = sbr.rel (%p158) target = $region24
      $region23: #{inception_forward.9} parent=19 // pred_region
        %p161 = scmp.lt.s32.totalorder %s11, 1
        %s162 = scalar_select %p161, %s11, 1
        %s163 = smul.addr %s162, 32
        %s164 = smul.addr %s163, 4
        %s165 = scalar_lea.vmem %s0, %s164
      $region24: #{inception_forward.9} parent=19 // pred_fallthru
        _
    $region20: #{inception_forward.9} parent=5 // pred_fallthru
      _
    %p166 = scmp.le.s32.totalorder 1, %s11
    %p167 = scmp.lt.s32.totalorder %s11, 3
    %p168 = pnand %p166, %p167
    %p169 = pneg %p168
    // Predicated region
    $region25: #{inception_forward.9} parent=5 // pred_check
      _
    $region26: #{inception_forward.9} parent=5 // pred_check_branch
      %171 = sbr.rel (%p168) target = $region28
    $region27: #{inception_forward.9} parent=5 // pred_region
      %s172 = ssub.s32 %s11, 1
      %p173 = scmp.lt.s32.totalorder %s16, 1
      %s174 = scalar_select %p173, %s16, 1
      %s175 = smul.addr %s174, 32
      %s176 = smul.addr %s175, 4
      %s177 = scalar_lea.vmem %s0, %s176
      %p178 = pneg %p37
      %p179 = pneg %p34
      %p180 = pneg %p58
      %p181 = pneg %p55
      %p182 = pneg %p84
      %p183 = pneg %p81
      %p184 = scmp.lt.s32.totalorder %s16, 1
      %s185 = scalar_select %p184, %s16, 1
      %s186 = smul.addr %s185, 32
      %s187 = smul.addr %s186, 4
      %s188 = scalar_lea.vmem %s2, %s187
      %p189 = pneg %p110
      %p190 = pneg %p107
      %p191 = scmp.lt.s32.totalorder %s16, 1
      %s192 = scalar_select %p191, %s16, 1
      %s193 = scalar_lea.vmem %s3, %s192
      %p194 = pneg %p136
      %p195 = pneg %p133
      %p196 = scmp.lt.s32.totalorder %s16, 1
      %s197 = scalar_select %p196, %s16, 1
      %s198 = scalar_lea.vmem %s4, %s197
      %p199 = scmp.lt.s32.totalorder %s16, 1
      %s200 = scalar_select %p199, %s16, 1
      %s201 = smul.addr %s200, 32
      %s202 = smul.addr %s201, 4
      %s203 = scalar_lea.vmem %s0, %s202
      %p204 = scmp.lt.s32.totalorder %s16, 1
      %s205 = scalar_select %p204, %s16, 1
      %s206 = smul.addr %s205, 32
      %s207 = smul.addr %s206, 4
      %s208 = scalar_lea.vmem %s2, %s207
      %p209 = scmp.lt.s32.totalorder %s16, 1
      %s210 = scalar_select %p209, %s16, 1
      %s211 = scalar_lea.vmem %s3, %s210
      %p212 = scmp.lt.s32.totalorder %s16, 1
      %s213 = scalar_select %p212, %s16, 1
      %s214 = scalar_lea.vmem %s4, %s213
      %vm216 = vcmask 31744
      %217 = vst.msk [vmem:[#allocation2] sm:$0xff] %vm216, 0.0
      %218 = vst.msk [vmem:[#allocation2 + $0x8] sm:$0xff] %vm216, 0.0
      %vm219 = vcmask 25600
      %220 = vst.msk [vmem:[#allocation2 + $0x10] sm:$0x3] %vm219, 0.0
      %221 = vst.msk [vmem:[#allocation2 + $0x18] sm:$0xff] %vm216, 0.0
      %222 = vst.msk [vmem:[#allocation2 + $0x20] sm:$0xff] %vm216, 0.0
      %223 = vst.msk [vmem:[#allocation2 + $0x28] sm:$0x3] %vm219, 0.0
      %224 = vst.msk [vmem:[#allocation2 + $0x30] sm:$0xff] %vm216, 0.0
      %225 = vst.msk [vmem:[#allocation2 + $0x38] sm:$0xff] %vm216, 0.0
      %226 = vst.msk [vmem:[#allocation2 + $0x40] sm:$0x3] %vm219, 0.0
      %227 = vst.msk [vmem:[#allocation2 + $0x48] sm:$0xff] %vm216, 0.0
      %228 = vst.msk [vmem:[#allocation2 + $0x50] sm:$0xff] %vm216, 0.0
      %229 = vst.msk [vmem:[#allocation2 + $0x58] sm:$0x3] %vm219, 0.0
      %230 = vst.msk [vmem:[#allocation2 + $0x60] sm:$0xff] %vm216, 0.0
      %231 = vst.msk [vmem:[#allocation2 + $0x68] sm:$0xff] %vm216, 0.0
      %232 = vst.msk [vmem:[#allocation2 + $0x70] sm:$0x3] %vm219, 0.0
      %233 = vst.msk [vmem:[#allocation2 + $0x78] sm:$0xff] %vm216, 0.0
      %234 = vst.msk [vmem:[#allocation2 + $0x80] sm:$0xff] %vm216, 0.0
      %235 = vst.msk [vmem:[#allocation2 + $0x88] sm:$0x3] %vm219, 0.0
      %236 = vst.msk [vmem:[#allocation2 + $0x90] sm:$0xff] %vm216, 0.0
      %237 = vst.msk [vmem:[#allocation2 + $0x98] sm:$0xff] %vm216, 0.0
      %238 = vst.msk [vmem:[#allocation2 + $0xa0] sm:$0x3] %vm219, 0.0
      %239 = vst.msk [vmem:[#allocation2 + $0xa8] sm:$0xff] %vm216, 0.0
      %240 = vst.msk [vmem:[#allocation2 + $0xb0] sm:$0xff] %vm216, 0.0
      %241 = vst.msk [vmem:[#allocation2 + $0xb8] sm:$0x3] %vm219, 0.0
      %242 = vst.msk [vmem:[#allocation2 + $0xc0] sm:$0xff] %vm216, 0.0
      %243 = vst.msk [vmem:[#allocation2 + $0xc8] sm:$0xff] %vm216, 0.0
      %244 = vst.msk [vmem:[#allocation2 + $0xd0] sm:$0x3] %vm219, 0.0
      %245 = vst.msk [vmem:[#allocation2 + $0xd8] sm:$0xff] %vm216, 0.0
      %246 = vst.msk [vmem:[#allocation2 + $0xe0] sm:$0xff] %vm216, 0.0
      %247 = vst.msk [vmem:[#allocation2 + $0xe8] sm:$0x3] %vm219, 0.0
      %248 = vst.msk [vmem:[#allocation2 + $0xf0] sm:$0xff] %vm216, 0.0
      %249 = vst.msk [vmem:[#allocation2 + $0xf8] sm:$0xff] %vm216, 0.0
      %250 = vst.msk [vmem:[#allocation2 + $0x100] sm:$0x3] %vm219, 0.0
      %251 = vst.msk [vmem:[#allocation2 + $0x108] sm:$0xff] %vm216, 0.0
      %252 = vst.msk [vmem:[#allocation2 + $0x110] sm:$0xff] %vm216, 0.0
      %253 = vst.msk [vmem:[#allocation2 + $0x118] sm:$0x3] %vm219, 0.0
      %254 = vst.msk [vmem:[#allocation2 + $0x120] sm:$0xff] %vm216, 0.0
      %255 = vst.msk [vmem:[#allocation2 + $0x128] sm:$0xff] %vm216, 0.0
      %256 = vst.msk [vmem:[#allocation2 + $0x130] sm:$0x3] %vm219, 0.0
      %257 = vst.msk [vmem:[#allocation2 + $0x138] sm:$0xff] %vm216, 0.0
      %258 = vst.msk [vmem:[#allocation2 + $0x140] sm:$0xff] %vm216, 0.0
      %259 = vst.msk [vmem:[#allocation2 + $0x148] sm:$0x3] %vm219, 0.0
      %260 = vst.msk [vmem:[#allocation2 + $0x150] sm:$0xff] %vm216, 0.0
      %261 = vst.msk [vmem:[#allocation2 + $0x158] sm:$0xff] %vm216, 0.0
      %262 = vst.msk [vmem:[#allocation2 + $0x160] sm:$0x3] %vm219, 0.0
      %263 = vst.msk [vmem:[#allocation2 + $0x168] sm:$0xff] %vm216, 0.0
      %264 = vst.msk [vmem:[#allocation2 + $0x170] sm:$0xff] %vm216, 0.0
      %265 = vst.msk [vmem:[#allocation2 + $0x178] sm:$0x3] %vm219, 0.0
      %266 = vst.msk [vmem:[#allocation2 + $0x180] sm:$0xff] %vm216, 0.0
      %267 = vst.msk [vmem:[#allocation2 + $0x188] sm:$0xff] %vm216, 0.0
      %268 = vst.msk [vmem:[#allocation2 + $0x190] sm:$0x3] %vm219, 0.0
      %269 = vst.msk [vmem:[#allocation2 + $0x198] sm:$0xff] %vm216, 0.0
      %270 = vst.msk [vmem:[#allocation2 + $0x1a0] sm:$0xff] %vm216, 0.0
      %271 = vst.msk [vmem:[#allocation2 + $0x1a8] sm:$0x3] %vm219, 0.0
      %v272 = vld [vmem:[%s203] sm:$0xf]
      %v273 = vld [vmem:[%s203 + $0x4] sm:$0xf]
      %v274 = vld [vmem:[%s203 + $0x8] sm:$0xf]
      %v275 = vld [vmem:[%s203 + $0xc] sm:$0xf]
      %v276 = vld [vmem:[%s203 + $0x10] sm:$0xf]
      %v277 = vld [vmem:[%s203 + $0x14] sm:$0xf]
      %v278 = vld [vmem:[%s203 + $0x18] sm:$0xf]
      %v279 = vld [vmem:[%s203 + $0x1c] sm:$0xf]
      %v280 = vld [vmem:[%s203 + $0x20] sm:$0xf]
      %v281 = vld [vmem:[%s203 + $0x24] sm:$0xf]
      %v282 = vld [vmem:[%s203 + $0x28] sm:$0xf]
      %v283 = vld [vmem:[%s203 + $0x2c] sm:$0xf]
      %v284 = vld [vmem:[%s203 + $0x30] sm:$0xf]
      %v285 = vld [vmem:[%s203 + $0x34] sm:$0xf]
      %v286 = vld [vmem:[%s203 + $0x38] sm:$0xf]
      %v287 = vld [vmem:[%s203 + $0x3c] sm:$0xf]
      %v288 = vld [vmem:[%s203 + $0x40] sm:$0xf]
      %v289 = vld [vmem:[%s203 + $0x44] sm:$0xf]
      %v290 = vld [vmem:[%s203 + $0x48] sm:$0xf]
      %v291 = vld [vmem:[%s203 + $0x4c] sm:$0xf]
      %v292 = vld [vmem:[%s203 + $0x50] sm:$0xf]
      %v293 = vld [vmem:[%s203 + $0x54] sm:$0xf]
      %v294 = vld [vmem:[%s203 + $0x58] sm:$0xf]
      %v295 = vld [vmem:[%s203 + $0x5c] sm:$0xf]
      %v296 = vld [vmem:[%s203 + $0x60] sm:$0xf]
      %v297 = vld [vmem:[%s203 + $0x64] sm:$0xf]
      %v298 = vld [vmem:[%s203 + $0x68] sm:$0xf]
      %v299 = vld [vmem:[%s203 + $0x6c] sm:$0xf]
      %v300 = vld [vmem:[%s203 + $0x70] sm:$0xf]
      %v301 = vld [vmem:[%s203 + $0x74] sm:$0xf]
      %v302 = vld [vmem:[%s203 + $0x78] sm:$0xf]
      %v303 = vld [vmem:[%s203 + $0x7c] sm:$0xf]
      %v304 = vunpack.c.l.bf16 %v272
      %v305 = vunpack.c.l.bf16 %v273
      %v306 = vunpack.c.l.bf16 %v274
      %v307 = vunpack.c.l.bf16 %v275
      %v308 = vunpack.c.l.bf16 %v276
      %v309 = vunpack.c.l.bf16 %v277
      %v310 = vunpack.c.l.bf16 %v278
      %v311 = vunpack.c.l.bf16 %v279
      %v312 = vunpack.c.l.bf16 %v280
      %v313 = vunpack.c.l.bf16 %v281
      %v314 = vunpack.c.l.bf16 %v282
      %v315 = vunpack.c.l.bf16 %v283
      %v316 = vunpack.c.l.bf16 %v284
      %v317 = vunpack.c.l.bf16 %v285
      %v318 = vunpack.c.l.bf16 %v286
      %v319 = vunpack.c.l.bf16 %v287
      %v320 = vunpack.c.l.bf16 %v288
      %v321 = vunpack.c.l.bf16 %v289
      %v322 = vunpack.c.l.bf16 %v290
      %v323 = vunpack.c.l.bf16 %v291
      %v324 = vunpack.c.l.bf16 %v292
      %v325 = vunpack.c.l.bf16 %v293
      %v326 = vunpack.c.l.bf16 %v294
      %v327 = vunpack.c.l.bf16 %v295
      %v328 = vunpack.c.l.bf16 %v296
      %v329 = vunpack.c.l.bf16 %v297
      %v330 = vunpack.c.l.bf16 %v298
      %v331 = vunpack.c.l.bf16 %v299
      %v332 = vunpack.c.l.bf16 %v300
      %v333 = vunpack.c.l.bf16 %v301
      %v334 = vunpack.c.l.bf16 %v302
      %v335 = vunpack.c.l.bf16 %v303
      %s336 = scalar_lea.vmem [#allocation2], 24
      %337 = vst.msk [vmem:[%s336 + $0x1] sm:$0xff] %vm216, %v304
      %338 = vst.msk [vmem:[%s336 + $0x9] sm:$0xff] %vm216, %v305
      %339 = vst.msk [vmem:[%s336 + $0x19] sm:$0xff] %vm216, %v306
      %340 = vst.msk [vmem:[%s336 + $0x21] sm:$0xff] %vm216, %v307
      %341 = vst.msk [vmem:[%s336 + $0x31] sm:$0xff] %vm216, %v308
      %342 = vst.msk [vmem:[%s336 + $0x39] sm:$0xff] %vm216, %v309
      %343 = vst.msk [vmem:[%s336 + $0x49] sm:$0xff] %vm216, %v310
      %344 = vst.msk [vmem:[%s336 + $0x51] sm:$0xff] %vm216, %v311
      %345 = vst.msk [vmem:[%s336 + $0x61] sm:$0xff] %vm216, %v312
      %346 = vst.msk [vmem:[%s336 + $0x69] sm:$0xff] %vm216, %v313
      %347 = vst.msk [vmem:[%s336 + $0x79] sm:$0xff] %vm216, %v314
      %348 = vst.msk [vmem:[%s336 + $0x81] sm:$0xff] %vm216, %v315
      %349 = vst.msk [vmem:[%s336 + $0x91] sm:$0xff] %vm216, %v316
      %350 = vst.msk [vmem:[%s336 + $0x99] sm:$0xff] %vm216, %v317
      %351 = vst.msk [vmem:[%s336 + $0xa9] sm:$0xff] %vm216, %v318
      %352 = vst.msk [vmem:[%s336 + $0xb1] sm:$0xff] %vm216, %v319
      %353 = vst.msk [vmem:[%s336 + $0xc1] sm:$0xff] %vm216, %v320
      %354 = vst.msk [vmem:[%s336 + $0xc9] sm:$0xff] %vm216, %v321
      %355 = vst.msk [vmem:[%s336 + $0xd9] sm:$0xff] %vm216, %v322
      %356 = vst.msk [vmem:[%s336 + $0xe1] sm:$0xff] %vm216, %v323
      %357 = vst.msk [vmem:[%s336 + $0xf1] sm:$0xff] %vm216, %v324
      %358 = vst.msk [vmem:[%s336 + $0xf9] sm:$0xff] %vm216, %v325
      %359 = vst.msk [vmem:[%s336 + $0x109] sm:$0xff] %vm216, %v326
      %360 = vst.msk [vmem:[%s336 + $0x111] sm:$0xff] %vm216, %v327
      %361 = vst.msk [vmem:[%s336 + $0x121] sm:$0xff] %vm216, %v328
      %362 = vst.msk [vmem:[%s336 + $0x129] sm:$0xff] %vm216, %v329
      %363 = vst.msk [vmem:[%s336 + $0x139] sm:$0xff] %vm216, %v330
      %364 = vst.msk [vmem:[%s336 + $0x141] sm:$0xff] %vm216, %v331
      %365 = vst.msk [vmem:[%s336 + $0x151] sm:$0xff] %vm216, %v332
      %366 = vst.msk [vmem:[%s336 + $0x159] sm:$0xff] %vm216, %v333
      %367 = vst.msk [vmem:[%s336 + $0x169] sm:$0xff] %vm216, %v334
      %368 = vst.msk [vmem:[%s336 + $0x171] sm:$0xff] %vm216, %v335
      %v369 = vld [vmem:[#allocation2] sm:$0xff]
      %v370 = vld [vmem:[#allocation2 + $0x8] sm:$0xff]
      %v371 = vld [vmem:[#allocation2 + $0x10] sm:$0x3]
      %v372 = vld [vmem:[#allocation2 + $0x18] sm:$0xff]
      %v373 = vld [vmem:[#allocation2 + $0x20] sm:$0xff]
      %v374 = vld [vmem:[#allocation2 + $0x28] sm:$0x3]
      %v375 = vld [vmem:[#allocation2 + $0x30] sm:$0xff]
      %v376 = vld [vmem:[#allocation2 + $0x38] sm:$0xff]
      %v377 = vld [vmem:[#allocation2 + $0x40] sm:$0x3]
      %v378 = vld [vmem:[#allocation2 + $0x48] sm:$0xff]
      %v379 = vld [vmem:[#allocation2 + $0x50] sm:$0xff]
      %v380 = vld [vmem:[#allocation2 + $0x58] sm:$0x3]
      %v381 = vld [vmem:[#allocation2 + $0x60] sm:$0xff]
      %v382 = vld [vmem:[#allocation2 + $0x68] sm:$0xff]
      %v383 = vld [vmem:[#allocation2 + $0x70] sm:$0x3]
      %v384 = vld [vmem:[#allocation2 + $0x78] sm:$0xff]
      %v385 = vld [vmem:[#allocation2 + $0x80] sm:$0xff]
      %v386 = vld [vmem:[#allocation2 + $0x88] sm:$0x3]
      %v387 = vld [vmem:[#allocation2 + $0x90] sm:$0xff]
      %v388 = vld [vmem:[#allocation2 + $0x98] sm:$0xff]
      %v389 = vld [vmem:[#allocation2 + $0xa0] sm:$0x3]
      %v390 = vld [vmem:[#allocation2 + $0xa8] sm:$0xff]
      %v391 = vld [vmem:[#allocation2 + $0xb0] sm:$0xff]
      %v392 = vld [vmem:[#allocation2 + $0xb8] sm:$0x3]
      %v393 = vld [vmem:[#allocation2 + $0xc0] sm:$0xff]
      %v394 = vld [vmem:[#allocation2 + $0xc8] sm:$0xff]
      %v395 = vld [vmem:[#allocation2 + $0xd0] sm:$0x3]
      %v396 = vld [vmem:[#allocation2 + $0xd8] sm:$0xff]
      %v397 = vld [vmem:[#allocation2 + $0xe0] sm:$0xff]
      %v398 = vld [vmem:[#allocation2 + $0xe8] sm:$0x3]
      %v399 = vld [vmem:[#allocation2 + $0xf0] sm:$0xff]
      %v400 = vld [vmem:[#allocation2 + $0xf8] sm:$0xff]
      %v401 = vld [vmem:[#allocation2 + $0x100] sm:$0x3]
      %v402 = vld [vmem:[#allocation2 + $0x108] sm:$0xff]
      %v403 = vld [vmem:[#allocation2 + $0x110] sm:$0xff]
      %v404 = vld [vmem:[#allocation2 + $0x118] sm:$0x3]
      %v405 = vld [vmem:[#allocation2 + $0x120] sm:$0xff]
      %v406 = vld [vmem:[#allocation2 + $0x128] sm:$0xff]
      %v407 = vld [vmem:[#allocation2 + $0x130] sm:$0x3]
      %v408 = vld [vmem:[#allocation2 + $0x138] sm:$0xff]
      %v409 = vld [vmem:[#allocation2 + $0x140] sm:$0xff]
      %v410 = vld [vmem:[#allocation2 + $0x148] sm:$0x3]
      %v411 = vld [vmem:[#allocation2 + $0x150] sm:$0xff]
      %v412 = vld [vmem:[#allocation2 + $0x158] sm:$0xff]
      %v413 = vld [vmem:[#allocation2 + $0x160] sm:$0x3]
      %v414 = vld [vmem:[#allocation2 + $0x168] sm:$0xff]
      %v415 = vld [vmem:[#allocation2 + $0x170] sm:$0xff]
      %v416 = vld [vmem:[#allocation2 + $0x178] sm:$0x3]
      %v417 = vld [vmem:[#allocation2 + $0x180] sm:$0xff]
      %v418 = vld [vmem:[#allocation2 + $0x188] sm:$0xff]
      %v419 = vld [vmem:[#allocation2 + $0x190] sm:$0x3]
      %v420 = vld [vmem:[#allocation2 + $0x198] sm:$0xff]
      %v421 = vld [vmem:[#allocation2 + $0x1a0] sm:$0xff]
      %v422 = vld [vmem:[#allocation2 + $0x1a8] sm:$0x3]
      %vm471 = vcmask 1046528
      %v472 = vrot.slane %v369, 1
      %v473 = vrot.slane %v370, 1
      %v474 = vsel %vm471, %v472, %v473
      %v475 = vrot.slane %v371, 1
      %v476 = vsel %vm471, %v473, %v475
      %v477 = vrot.slane %v372, 1
      %v478 = vrot.slane %v373, 1
      %v479 = vsel %vm471, %v477, %v478
      %v480 = vrot.slane %v374, 1
      %v481 = vsel %vm471, %v478, %v480
      %v482 = vrot.slane %v375, 1
      %v483 = vrot.slane %v376, 1
      %v484 = vsel %vm471, %v482, %v483
      %v485 = vrot.slane %v377, 1
      %v486 = vsel %vm471, %v483, %v485
      %v487 = vrot.slane %v378, 1
      %v488 = vrot.slane %v379, 1
      %v489 = vsel %vm471, %v487, %v488
      %v490 = vrot.slane %v380, 1
      %v491 = vsel %vm471, %v488, %v490
      %v492 = vrot.slane %v381, 1
      %v493 = vrot.slane %v382, 1
      %v494 = vsel %vm471, %v492, %v493
      %v495 = vrot.slane %v383, 1
      %v496 = vsel %vm471, %v493, %v495
      %v497 = vrot.slane %v384, 1
      %v498 = vrot.slane %v385, 1
      %v499 = vsel %vm471, %v497, %v498
      %v500 = vrot.slane %v386, 1
      %v501 = vsel %vm471, %v498, %v500
      %v502 = vrot.slane %v387, 1
      %v503 = vrot.slane %v388, 1
      %v504 = vsel %vm471, %v502, %v503
      %v505 = vrot.slane %v389, 1
      %v506 = vsel %vm471, %v503, %v505
      %v507 = vrot.slane %v390, 1
      %v508 = vrot.slane %v391, 1
      %v509 = vsel %vm471, %v507, %v508
      %v510 = vrot.slane %v392, 1
      %v511 = vsel %vm471, %v508, %v510
      %v512 = vrot.slane %v393, 1
      %v513 = vrot.slane %v394, 1
      %v514 = vsel %vm471, %v512, %v513
      %v515 = vrot.slane %v395, 1
      %v516 = vsel %vm471, %v513, %v515
      %v517 = vrot.slane %v396, 1
      %v518 = vrot.slane %v397, 1
      %v519 = vsel %vm471, %v517, %v518
      %v520 = vrot.slane %v398, 1
      %v521 = vsel %vm471, %v518, %v520
      %v522 = vrot.slane %v399, 1
      %v523 = vrot.slane %v400, 1
      %v524 = vsel %vm471, %v522, %v523
      %v525 = vrot.slane %v401, 1
      %v526 = vsel %vm471, %v523, %v525
      %v527 = vrot.slane %v402, 1
      %v528 = vrot.slane %v403, 1
      %v529 = vsel %vm471, %v527, %v528
      %v530 = vrot.slane %v404, 1
      %v531 = vsel %vm471, %v528, %v530
      %v532 = vrot.slane %v405, 1
      %v533 = vrot.slane %v406, 1
      %v534 = vsel %vm471, %v532, %v533
      %v535 = vrot.slane %v407, 1
      %v536 = vsel %vm471, %v533, %v535
      %v537 = vrot.slane %v408, 1
      %v538 = vrot.slane %v409, 1
      %v539 = vsel %vm471, %v537, %v538
      %v540 = vrot.slane %v410, 1
      %v541 = vsel %vm471, %v538, %v540
      %v542 = vrot.slane %v411, 1
      %v543 = vrot.slane %v412, 1
      %v544 = vsel %vm471, %v542, %v543
      %v545 = vrot.slane %v413, 1
      %v546 = vsel %vm471, %v543, %v545
      %v547 = vrot.slane %v414, 1
      %v548 = vrot.slane %v415, 1
      %v549 = vsel %vm471, %v547, %v548
      %v550 = vrot.slane %v416, 1
      %v551 = vsel %vm471, %v548, %v550
      %vm552 = vcmask 1045504
      %v553 = vrot.slane %v369, 2
      %v554 = vrot.slane %v370, 2
      %v555 = vsel %vm552, %v553, %v554
      %v556 = vrot.slane %v371, 2
      %v557 = vsel %vm552, %v554, %v556
      %v558 = vrot.slane %v372, 2
      %v559 = vrot.slane %v373, 2
      %v560 = vsel %vm552, %v558, %v559
      %v561 = vrot.slane %v374, 2
      %v562 = vsel %vm552, %v559, %v561
      %v563 = vrot.slane %v375, 2
      %v564 = vrot.slane %v376, 2
      %v565 = vsel %vm552, %v563, %v564
      %v566 = vrot.slane %v377, 2
      %v567 = vsel %vm552, %v564, %v566
      %v568 = vrot.slane %v378, 2
      %v569 = vrot.slane %v379, 2
      %v570 = vsel %vm552, %v568, %v569
      %v571 = vrot.slane %v380, 2
      %v572 = vsel %vm552, %v569, %v571
      %v573 = vrot.slane %v381, 2
      %v574 = vrot.slane %v382, 2
      %v575 = vsel %vm552, %v573, %v574
      %v576 = vrot.slane %v383, 2
      %v577 = vsel %vm552, %v574, %v576
      %v578 = vrot.slane %v384, 2
      %v579 = vrot.slane %v385, 2
      %v580 = vsel %vm552, %v578, %v579
      %v581 = vrot.slane %v386, 2
      %v582 = vsel %vm552, %v579, %v581
      %v583 = vrot.slane %v387, 2
      %v584 = vrot.slane %v388, 2
      %v585 = vsel %vm552, %v583, %v584
      %v586 = vrot.slane %v389, 2
      %v587 = vsel %vm552, %v584, %v586
      %v588 = vrot.slane %v390, 2
      %v589 = vrot.slane %v391, 2
      %v590 = vsel %vm552, %v588, %v589
      %v591 = vrot.slane %v392, 2
      %v592 = vsel %vm552, %v589, %v591
      %v593 = vrot.slane %v393, 2
      %v594 = vrot.slane %v394, 2
      %v595 = vsel %vm552, %v593, %v594
      %v596 = vrot.slane %v395, 2
      %v597 = vsel %vm552, %v594, %v596
      %v598 = vrot.slane %v396, 2
      %v599 = vrot.slane %v397, 2
      %v600 = vsel %vm552, %v598, %v599
      %v601 = vrot.slane %v398, 2
      %v602 = vsel %vm552, %v599, %v601
      %v603 = vrot.slane %v399, 2
      %v604 = vrot.slane %v400, 2
      %v605 = vsel %vm552, %v603, %v604
      %v606 = vrot.slane %v401, 2
      %v607 = vsel %vm552, %v604, %v606
      %v608 = vrot.slane %v402, 2
      %v609 = vrot.slane %v403, 2
      %v610 = vsel %vm552, %v608, %v609
      %v611 = vrot.slane %v404, 2
      %v612 = vsel %vm552, %v609, %v611
      %v613 = vrot.slane %v405, 2
      %v614 = vrot.slane %v406, 2
      %v615 = vsel %vm552, %v613, %v614
      %v616 = vrot.slane %v407, 2
      %v617 = vsel %vm552, %v614, %v616
      %v618 = vrot.slane %v408, 2
      %v619 = vrot.slane %v409, 2
      %v620 = vsel %vm552, %v618, %v619
      %v621 = vrot.slane %v410, 2
      %v622 = vsel %vm552, %v619, %v621
      %v623 = vrot.slane %v411, 2
      %v624 = vrot.slane %v412, 2
      %v625 = vsel %vm552, %v623, %v624
      %v626 = vrot.slane %v413, 2
      %v627 = vsel %vm552, %v624, %v626
      %v628 = vrot.slane %v414, 2
      %v629 = vrot.slane %v415, 2
      %v630 = vsel %vm552, %v628, %v629
      %v631 = vrot.slane %v416, 2
      %v632 = vsel %vm552, %v629, %v631
      %v636 = vrot.slane %v417, 1
      %v637 = vrot.slane %v418, 1
      %v638 = vsel %vm471, %v636, %v637
      %v639 = vrot.slane %v419, 1
      %v640 = vsel %vm471, %v637, %v639
      %v641 = vrot.slane %v417, 2
      %v642 = vrot.slane %v418, 2
      %v643 = vsel %vm552, %v641, %v642
      %v644 = vrot.slane %v419, 2
      %v645 = vsel %vm552, %v642, %v644
      %v649 = vrot.slane %v420, 1
      %v650 = vrot.slane %v421, 1
      %v651 = vsel %vm471, %v649, %v650
      %v652 = vrot.slane %v422, 1
      %v653 = vsel %vm471, %v650, %v652
      %v654 = vrot.slane %v420, 2
      %v655 = vrot.slane %v421, 2
      %v656 = vsel %vm552, %v654, %v655
      %v657 = vrot.slane %v422, 2
      %v658 = vsel %vm552, %v655, %v657
      %659 = vrot.lane.b32.xlu0 %v474, 4
      %v660 = vpop.permute.xlu0 %659
      %661 = vrot.lane.b32.xlu0 %v476, 4
      %v662 = vpop.permute.xlu0 %661
      %663 = vrot.lane.b32.xlu0 %v479, 4
      %v664 = vpop.permute.xlu0 %663
      %665 = vrot.lane.b32.xlu0 %v481, 4
      %v666 = vpop.permute.xlu0 %665
      %667 = vrot.lane.b32.xlu0 %v484, 4
      %v668 = vpop.permute.xlu0 %667
      %669 = vrot.lane.b32.xlu0 %v486, 4
      %v670 = vpop.permute.xlu0 %669
      %671 = vrot.lane.b32.xlu0 %v489, 4
      %v672 = vpop.permute.xlu0 %671
      %673 = vrot.lane.b32.xlu0 %v491, 4
      %v674 = vpop.permute.xlu0 %673
      %675 = vrot.lane.b32.xlu0 %v494, 4
      %v676 = vpop.permute.xlu0 %675
      %677 = vrot.lane.b32.xlu0 %v496, 4
      %v678 = vpop.permute.xlu0 %677
      %679 = vrot.lane.b32.xlu0 %v499, 4
      %v680 = vpop.permute.xlu0 %679
      %681 = vrot.lane.b32.xlu0 %v501, 4
      %v682 = vpop.permute.xlu0 %681
      %683 = vrot.lane.b32.xlu0 %v504, 4
      %v684 = vpop.permute.xlu0 %683
      %685 = vrot.lane.b32.xlu0 %v506, 4
      %v686 = vpop.permute.xlu0 %685
      %687 = vrot.lane.b32.xlu0 %v509, 4
      %v688 = vpop.permute.xlu0 %687
      %689 = vrot.lane.b32.xlu0 %v511, 4
      %v690 = vpop.permute.xlu0 %689
      %691 = vrot.lane.b32.xlu0 %v514, 4
      %v692 = vpop.permute.xlu0 %691
      %693 = vrot.lane.b32.xlu0 %v516, 4
      %v694 = vpop.permute.xlu0 %693
      %695 = vrot.lane.b32.xlu0 %v519, 4
      %v696 = vpop.permute.xlu0 %695
      %697 = vrot.lane.b32.xlu0 %v521, 4
      %v698 = vpop.permute.xlu0 %697
      %699 = vrot.lane.b32.xlu0 %v524, 4
      %v700 = vpop.permute.xlu0 %699
      %701 = vrot.lane.b32.xlu0 %v526, 4
      %v702 = vpop.permute.xlu0 %701
      %703 = vrot.lane.b32.xlu0 %v529, 4
      %v704 = vpop.permute.xlu0 %703
      %705 = vrot.lane.b32.xlu0 %v531, 4
      %v706 = vpop.permute.xlu0 %705
      %707 = vrot.lane.b32.xlu0 %v534, 4
      %v708 = vpop.permute.xlu0 %707
      %709 = vrot.lane.b32.xlu0 %v536, 4
      %v710 = vpop.permute.xlu0 %709
      %711 = vrot.lane.b32.xlu0 %v539, 4
      %v712 = vpop.permute.xlu0 %711
      %713 = vrot.lane.b32.xlu0 %v541, 4
      %v714 = vpop.permute.xlu0 %713
      %715 = vrot.lane.b32.xlu0 %v544, 4
      %v716 = vpop.permute.xlu0 %715
      %717 = vrot.lane.b32.xlu0 %v546, 4
      %v718 = vpop.permute.xlu0 %717
      %719 = vrot.lane.b32.xlu0 %v549, 4
      %v720 = vpop.permute.xlu0 %719
      %721 = vrot.lane.b32.xlu0 %v551, 4
      %v722 = vpop.permute.xlu0 %721
      %755 = vrot.lane.b32.xlu0 %v555, 8
      %v756 = vpop.permute.xlu0 %755
      %757 = vrot.lane.b32.xlu0 %v557, 8
      %v758 = vpop.permute.xlu0 %757
      %759 = vrot.lane.b32.xlu0 %v560, 8
      %v760 = vpop.permute.xlu0 %759
      %761 = vrot.lane.b32.xlu0 %v562, 8
      %v762 = vpop.permute.xlu0 %761
      %763 = vrot.lane.b32.xlu0 %v565, 8
      %v764 = vpop.permute.xlu0 %763
      %765 = vrot.lane.b32.xlu0 %v567, 8
      %v766 = vpop.permute.xlu0 %765
      %767 = vrot.lane.b32.xlu0 %v570, 8
      %v768 = vpop.permute.xlu0 %767
      %769 = vrot.lane.b32.xlu0 %v572, 8
      %v770 = vpop.permute.xlu0 %769
      %771 = vrot.lane.b32.xlu0 %v575, 8
      %v772 = vpop.permute.xlu0 %771
      %773 = vrot.lane.b32.xlu0 %v577, 8
      %v774 = vpop.permute.xlu0 %773
      %775 = vrot.lane.b32.xlu0 %v580, 8
      %v776 = vpop.permute.xlu0 %775
      %777 = vrot.lane.b32.xlu0 %v582, 8
      %v778 = vpop.permute.xlu0 %777
      %779 = vrot.lane.b32.xlu0 %v585, 8
      %v780 = vpop.permute.xlu0 %779
      %781 = vrot.lane.b32.xlu0 %v587, 8
      %v782 = vpop.permute.xlu0 %781
      %783 = vrot.lane.b32.xlu0 %v590, 8
      %v784 = vpop.permute.xlu0 %783
      %785 = vrot.lane.b32.xlu0 %v592, 8
      %v786 = vpop.permute.xlu0 %785
      %787 = vrot.lane.b32.xlu0 %v595, 8
      %v788 = vpop.permute.xlu0 %787
      %789 = vrot.lane.b32.xlu0 %v597, 8
      %v790 = vpop.permute.xlu0 %789
      %791 = vrot.lane.b32.xlu0 %v600, 8
      %v792 = vpop.permute.xlu0 %791
      %793 = vrot.lane.b32.xlu0 %v602, 8
      %v794 = vpop.permute.xlu0 %793
      %795 = vrot.lane.b32.xlu0 %v605, 8
      %v796 = vpop.permute.xlu0 %795
      %797 = vrot.lane.b32.xlu0 %v607, 8
      %v798 = vpop.permute.xlu0 %797
      %799 = vrot.lane.b32.xlu0 %v610, 8
      %v800 = vpop.permute.xlu0 %799
      %801 = vrot.lane.b32.xlu0 %v612, 8
      %v802 = vpop.permute.xlu0 %801
      %803 = vrot.lane.b32.xlu0 %v615, 8
      %v804 = vpop.permute.xlu0 %803
      %805 = vrot.lane.b32.xlu0 %v617, 8
      %v806 = vpop.permute.xlu0 %805
      %807 = vrot.lane.b32.xlu0 %v620, 8
      %v808 = vpop.permute.xlu0 %807
      %809 = vrot.lane.b32.xlu0 %v622, 8
      %v810 = vpop.permute.xlu0 %809
      %811 = vrot.lane.b32.xlu0 %v625, 8
      %v812 = vpop.permute.xlu0 %811
      %813 = vrot.lane.b32.xlu0 %v627, 8
      %v814 = vpop.permute.xlu0 %813
      %815 = vrot.lane.b32.xlu0 %v630, 8
      %v816 = vpop.permute.xlu0 %815
      %817 = vrot.lane.b32.xlu0 %v632, 8
      %v818 = vpop.permute.xlu0 %817
      %851 = vrot.lane.b32.xlu0 %v372, 12
      %v852 = vpop.permute.xlu0 %851
      %853 = vrot.lane.b32.xlu0 %v373, 12
      %v854 = vpop.permute.xlu0 %853
      %855 = vrot.lane.b32.xlu0 %v375, 12
      %v856 = vpop.permute.xlu0 %855
      %857 = vrot.lane.b32.xlu0 %v376, 12
      %v858 = vpop.permute.xlu0 %857
      %859 = vrot.lane.b32.xlu0 %v378, 12
      %v860 = vpop.permute.xlu0 %859
      %861 = vrot.lane.b32.xlu0 %v379, 12
      %v862 = vpop.permute.xlu0 %861
      %863 = vrot.lane.b32.xlu0 %v381, 12
      %v864 = vpop.permute.xlu0 %863
      %865 = vrot.lane.b32.xlu0 %v382, 12
      %v866 = vpop.permute.xlu0 %865
      %867 = vrot.lane.b32.xlu0 %v384, 12
      %v868 = vpop.permute.xlu0 %867
      %869 = vrot.lane.b32.xlu0 %v385, 12
      %v870 = vpop.permute.xlu0 %869
      %871 = vrot.lane.b32.xlu0 %v387, 12
      %v872 = vpop.permute.xlu0 %871
      %873 = vrot.lane.b32.xlu0 %v388, 12
      %v874 = vpop.permute.xlu0 %873
      %875 = vrot.lane.b32.xlu0 %v390, 12
      %v876 = vpop.permute.xlu0 %875
      %877 = vrot.lane.b32.xlu0 %v391, 12
      %v878 = vpop.permute.xlu0 %877
      %879 = vrot.lane.b32.xlu0 %v393, 12
      %v880 = vpop.permute.xlu0 %879
      %881 = vrot.lane.b32.xlu0 %v394, 12
      %v882 = vpop.permute.xlu0 %881
      %883 = vrot.lane.b32.xlu0 %v396, 12
      %v884 = vpop.permute.xlu0 %883
      %885 = vrot.lane.b32.xlu0 %v397, 12
      %v886 = vpop.permute.xlu0 %885
      %887 = vrot.lane.b32.xlu0 %v399, 12
      %v888 = vpop.permute.xlu0 %887
      %889 = vrot.lane.b32.xlu0 %v400, 12
      %v890 = vpop.permute.xlu0 %889
      %891 = vrot.lane.b32.xlu0 %v402, 12
      %v892 = vpop.permute.xlu0 %891
      %893 = vrot.lane.b32.xlu0 %v403, 12
      %v894 = vpop.permute.xlu0 %893
      %895 = vrot.lane.b32.xlu0 %v405, 12
      %v896 = vpop.permute.xlu0 %895
      %897 = vrot.lane.b32.xlu0 %v406, 12
      %v898 = vpop.permute.xlu0 %897
      %899 = vrot.lane.b32.xlu0 %v408, 12
      %v900 = vpop.permute.xlu0 %899
      %901 = vrot.lane.b32.xlu0 %v409, 12
      %v902 = vpop.permute.xlu0 %901
      %903 = vrot.lane.b32.xlu0 %v411, 12
      %v904 = vpop.permute.xlu0 %903
      %905 = vrot.lane.b32.xlu0 %v412, 12
      %v906 = vpop.permute.xlu0 %905
      %907 = vrot.lane.b32.xlu0 %v414, 12
      %v908 = vpop.permute.xlu0 %907
      %909 = vrot.lane.b32.xlu0 %v415, 12
      %v910 = vpop.permute.xlu0 %909
      %911 = vrot.lane.b32.xlu0 %v417, 12
      %v912 = vpop.permute.xlu0 %911
      %913 = vrot.lane.b32.xlu0 %v418, 12
      %v914 = vpop.permute.xlu0 %913
      %947 = vrot.lane.b32.xlu0 %v479, 16
      %v948 = vpop.permute.xlu0 %947
      %949 = vrot.lane.b32.xlu0 %v481, 16
      %v950 = vpop.permute.xlu0 %949
      %951 = vrot.lane.b32.xlu0 %v484, 16
      %v952 = vpop.permute.xlu0 %951
      %953 = vrot.lane.b32.xlu0 %v486, 16
      %v954 = vpop.permute.xlu0 %953
      %955 = vrot.lane.b32.xlu0 %v489, 16
      %v956 = vpop.permute.xlu0 %955
      %957 = vrot.lane.b32.xlu0 %v491, 16
      %v958 = vpop.permute.xlu0 %957
      %959 = vrot.lane.b32.xlu0 %v494, 16
      %v960 = vpop.permute.xlu0 %959
      %961 = vrot.lane.b32.xlu0 %v496, 16
      %v962 = vpop.permute.xlu0 %961
      %963 = vrot.lane.b32.xlu0 %v499, 16
      %v964 = vpop.permute.xlu0 %963
      %965 = vrot.lane.b32.xlu0 %v501, 16
      %v966 = vpop.permute.xlu0 %965
      %967 = vrot.lane.b32.xlu0 %v504, 16
      %v968 = vpop.permute.xlu0 %967
      %969 = vrot.lane.b32.xlu0 %v506, 16
      %v970 = vpop.permute.xlu0 %969
      %971 = vrot.lane.b32.xlu0 %v509, 16
      %v972 = vpop.permute.xlu0 %971
      %973 = vrot.lane.b32.xlu0 %v511, 16
      %v974 = vpop.permute.xlu0 %973
      %975 = vrot.lane.b32.xlu0 %v514, 16
      %v976 = vpop.permute.xlu0 %975
      %977 = vrot.lane.b32.xlu0 %v516, 16
      %v978 = vpop.permute.xlu0 %977
      %979 = vrot.lane.b32.xlu0 %v519, 16
      %v980 = vpop.permute.xlu0 %979
      %981 = vrot.lane.b32.xlu0 %v521, 16
      %v982 = vpop.permute.xlu0 %981
      %983 = vrot.lane.b32.xlu0 %v524, 16
      %v984 = vpop.permute.xlu0 %983
      %985 = vrot.lane.b32.xlu0 %v526, 16
      %v986 = vpop.permute.xlu0 %985
      %987 = vrot.lane.b32.xlu0 %v529, 16
      %v988 = vpop.permute.xlu0 %987
      %989 = vrot.lane.b32.xlu0 %v531, 16
      %v990 = vpop.permute.xlu0 %989
      %991 = vrot.lane.b32.xlu0 %v534, 16
      %v992 = vpop.permute.xlu0 %991
      %993 = vrot.lane.b32.xlu0 %v536, 16
      %v994 = vpop.permute.xlu0 %993
      %995 = vrot.lane.b32.xlu0 %v539, 16
      %v996 = vpop.permute.xlu0 %995
      %997 = vrot.lane.b32.xlu0 %v541, 16
      %v998 = vpop.permute.xlu0 %997
      %999 = vrot.lane.b32.xlu0 %v544, 16
      %v1000 = vpop.permute.xlu0 %999
      %1001 = vrot.lane.b32.xlu0 %v546, 16
      %v1002 = vpop.permute.xlu0 %1001
      %1003 = vrot.lane.b32.xlu0 %v549, 16
      %v1004 = vpop.permute.xlu0 %1003
      %1005 = vrot.lane.b32.xlu0 %v551, 16
      %v1006 = vpop.permute.xlu0 %1005
      %1007 = vrot.lane.b32.xlu0 %v638, 16
      %v1008 = vpop.permute.xlu0 %1007
      %1009 = vrot.lane.b32.xlu0 %v640, 16
      %v1010 = vpop.permute.xlu0 %1009
      %1043 = vrot.lane.b32.xlu0 %v560, 20
      %v1044 = vpop.permute.xlu0 %1043
      %1045 = vrot.lane.b32.xlu0 %v562, 20
      %v1046 = vpop.permute.xlu0 %1045
      %1047 = vrot.lane.b32.xlu0 %v565, 20
      %v1048 = vpop.permute.xlu0 %1047
      %1049 = vrot.lane.b32.xlu0 %v567, 20
      %v1050 = vpop.permute.xlu0 %1049
      %1051 = vrot.lane.b32.xlu0 %v570, 20
      %v1052 = vpop.permute.xlu0 %1051
      %1053 = vrot.lane.b32.xlu0 %v572, 20
      %v1054 = vpop.permute.xlu0 %1053
      %1055 = vrot.lane.b32.xlu0 %v575, 20
      %v1056 = vpop.permute.xlu0 %1055
      %1057 = vrot.lane.b32.xlu0 %v577, 20
      %v1058 = vpop.permute.xlu0 %1057
      %1059 = vrot.lane.b32.xlu0 %v580, 20
      %v1060 = vpop.permute.xlu0 %1059
      %1061 = vrot.lane.b32.xlu0 %v582, 20
      %v1062 = vpop.permute.xlu0 %1061
      %1063 = vrot.lane.b32.xlu0 %v585, 20
      %v1064 = vpop.permute.xlu0 %1063
      %1065 = vrot.lane.b32.xlu0 %v587, 20
      %v1066 = vpop.permute.xlu0 %1065
      %1067 = vrot.lane.b32.xlu0 %v590, 20
      %v1068 = vpop.permute.xlu0 %1067
      %1069 = vrot.lane.b32.xlu0 %v592, 20
      %v1070 = vpop.permute.xlu0 %1069
      %1071 = vrot.lane.b32.xlu0 %v595, 20
      %v1072 = vpop.permute.xlu0 %1071
      %1073 = vrot.lane.b32.xlu0 %v597, 20
      %v1074 = vpop.permute.xlu0 %1073
      %1075 = vrot.lane.b32.xlu0 %v600, 20
      %v1076 = vpop.permute.xlu0 %1075
      %1077 = vrot.lane.b32.xlu0 %v602, 20
      %v1078 = vpop.permute.xlu0 %1077
      %1079 = vrot.lane.b32.xlu0 %v605, 20
      %v1080 = vpop.permute.xlu0 %1079
      %1081 = vrot.lane.b32.xlu0 %v607, 20
      %v1082 = vpop.permute.xlu0 %1081
      %1083 = vrot.lane.b32.xlu0 %v610, 20
      %v1084 = vpop.permute.xlu0 %1083
      %1085 = vrot.lane.b32.xlu0 %v612, 20
      %v1086 = vpop.permute.xlu0 %1085
      %1087 = vrot.lane.b32.xlu0 %v615, 20
      %v1088 = vpop.permute.xlu0 %1087
      %1089 = vrot.lane.b32.xlu0 %v617, 20
      %v1090 = vpop.permute.xlu0 %1089
      %1091 = vrot.lane.b32.xlu0 %v620, 20
      %v1092 = vpop.permute.xlu0 %1091
      %1093 = vrot.lane.b32.xlu0 %v622, 20
      %v1094 = vpop.permute.xlu0 %1093
      %1095 = vrot.lane.b32.xlu0 %v625, 20
      %v1096 = vpop.permute.xlu0 %1095
      %1097 = vrot.lane.b32.xlu0 %v627, 20
      %v1098 = vpop.permute.xlu0 %1097
      %1099 = vrot.lane.b32.xlu0 %v630, 20
      %v1100 = vpop.permute.xlu0 %1099
      %1101 = vrot.lane.b32.xlu0 %v632, 20
      %v1102 = vpop.permute.xlu0 %1101
      %1103 = vrot.lane.b32.xlu0 %v643, 20
      %v1104 = vpop.permute.xlu0 %1103
      %1105 = vrot.lane.b32.xlu0 %v645, 20
      %v1106 = vpop.permute.xlu0 %1105
      %1139 = vrot.lane.b32.xlu0 %v375, 24
      %v1140 = vpop.permute.xlu0 %1139
      %1141 = vrot.lane.b32.xlu0 %v376, 24
      %v1142 = vpop.permute.xlu0 %1141
      %1143 = vrot.lane.b32.xlu0 %v378, 24
      %v1144 = vpop.permute.xlu0 %1143
      %1145 = vrot.lane.b32.xlu0 %v379, 24
      %v1146 = vpop.permute.xlu0 %1145
      %1147 = vrot.lane.b32.xlu0 %v381, 24
      %v1148 = vpop.permute.xlu0 %1147
      %1149 = vrot.lane.b32.xlu0 %v382, 24
      %v1150 = vpop.permute.xlu0 %1149
      %1151 = vrot.lane.b32.xlu0 %v384, 24
      %v1152 = vpop.permute.xlu0 %1151
      %1153 = vrot.lane.b32.xlu0 %v385, 24
      %v1154 = vpop.permute.xlu0 %1153
      %1155 = vrot.lane.b32.xlu0 %v387, 24
      %v1156 = vpop.permute.xlu0 %1155
      %1157 = vrot.lane.b32.xlu0 %v388, 24
      %v1158 = vpop.permute.xlu0 %1157
      %1159 = vrot.lane.b32.xlu0 %v390, 24
      %v1160 = vpop.permute.xlu0 %1159
      %1161 = vrot.lane.b32.xlu0 %v391, 24
      %v1162 = vpop.permute.xlu0 %1161
      %1163 = vrot.lane.b32.xlu0 %v393, 24
      %v1164 = vpop.permute.xlu0 %1163
      %1165 = vrot.lane.b32.xlu0 %v394, 24
      %v1166 = vpop.permute.xlu0 %1165
      %1167 = vrot.lane.b32.xlu0 %v396, 24
      %v1168 = vpop.permute.xlu0 %1167
      %1169 = vrot.lane.b32.xlu0 %v397, 24
      %v1170 = vpop.permute.xlu0 %1169
      %1171 = vrot.lane.b32.xlu0 %v399, 24
      %v1172 = vpop.permute.xlu0 %1171
      %1173 = vrot.lane.b32.xlu0 %v400, 24
      %v1174 = vpop.permute.xlu0 %1173
      %1175 = vrot.lane.b32.xlu0 %v402, 24
      %v1176 = vpop.permute.xlu0 %1175
      %1177 = vrot.lane.b32.xlu0 %v403, 24
      %v1178 = vpop.permute.xlu0 %1177
      %1179 = vrot.lane.b32.xlu0 %v405, 24
      %v1180 = vpop.permute.xlu0 %1179
      %1181 = vrot.lane.b32.xlu0 %v406, 24
      %v1182 = vpop.permute.xlu0 %1181
      %1183 = vrot.lane.b32.xlu0 %v408, 24
      %v1184 = vpop.permute.xlu0 %1183
      %1185 = vrot.lane.b32.xlu0 %v409, 24
      %v1186 = vpop.permute.xlu0 %1185
      %1187 = vrot.lane.b32.xlu0 %v411, 24
      %v1188 = vpop.permute.xlu0 %1187
      %1189 = vrot.lane.b32.xlu0 %v412, 24
      %v1190 = vpop.permute.xlu0 %1189
      %1191 = vrot.lane.b32.xlu0 %v414, 24
      %v1192 = vpop.permute.xlu0 %1191
      %1193 = vrot.lane.b32.xlu0 %v415, 24
      %v1194 = vpop.permute.xlu0 %1193
      %1195 = vrot.lane.b32.xlu0 %v417, 24
      %v1196 = vpop.permute.xlu0 %1195
      %1197 = vrot.lane.b32.xlu0 %v418, 24
      %v1198 = vpop.permute.xlu0 %1197
      %1199 = vrot.lane.b32.xlu0 %v420, 24
      %v1200 = vpop.permute.xlu0 %1199
      %1201 = vrot.lane.b32.xlu0 %v421, 24
      %v1202 = vpop.permute.xlu0 %1201
      %1235 = vrot.lane.b32.xlu0 %v484, 28
      %v1236 = vpop.permute.xlu0 %1235
      %1237 = vrot.lane.b32.xlu0 %v486, 28
      %v1238 = vpop.permute.xlu0 %1237
      %1239 = vrot.lane.b32.xlu0 %v489, 28
      %v1240 = vpop.permute.xlu0 %1239
      %1241 = vrot.lane.b32.xlu0 %v491, 28
      %v1242 = vpop.permute.xlu0 %1241
      %1243 = vrot.lane.b32.xlu0 %v494, 28
      %v1244 = vpop.permute.xlu0 %1243
      %1245 = vrot.lane.b32.xlu0 %v496, 28
      %v1246 = vpop.permute.xlu0 %1245
      %1247 = vrot.lane.b32.xlu0 %v499, 28
      %v1248 = vpop.permute.xlu0 %1247
      %1249 = vrot.lane.b32.xlu0 %v501, 28
      %v1250 = vpop.permute.xlu0 %1249
      %1251 = vrot.lane.b32.xlu0 %v504, 28
      %v1252 = vpop.permute.xlu0 %1251
      %1253 = vrot.lane.b32.xlu0 %v506, 28
      %v1254 = vpop.permute.xlu0 %1253
      %1255 = vrot.lane.b32.xlu0 %v509, 28
      %v1256 = vpop.permute.xlu0 %1255
      %1257 = vrot.lane.b32.xlu0 %v511, 28
      %v1258 = vpop.permute.xlu0 %1257
      %1259 = vrot.lane.b32.xlu0 %v514, 28
      %v1260 = vpop.permute.xlu0 %1259
      %1261 = vrot.lane.b32.xlu0 %v516, 28
      %v1262 = vpop.permute.xlu0 %1261
      %1263 = vrot.lane.b32.xlu0 %v519, 28
      %v1264 = vpop.permute.xlu0 %1263
      %1265 = vrot.lane.b32.xlu0 %v521, 28
      %v1266 = vpop.permute.xlu0 %1265
      %1267 = vrot.lane.b32.xlu0 %v524, 28
      %v1268 = vpop.permute.xlu0 %1267
      %1269 = vrot.lane.b32.xlu0 %v526, 28
      %v1270 = vpop.permute.xlu0 %1269
      %1271 = vrot.lane.b32.xlu0 %v529, 28
      %v1272 = vpop.permute.xlu0 %1271
      %1273 = vrot.lane.b32.xlu0 %v531, 28
      %v1274 = vpop.permute.xlu0 %1273
      %1275 = vrot.lane.b32.xlu0 %v534, 28
      %v1276 = vpop.permute.xlu0 %1275
      %1277 = vrot.lane.b32.xlu0 %v536, 28
      %v1278 = vpop.permute.xlu0 %1277
      %1279 = vrot.lane.b32.xlu0 %v539, 28
      %v1280 = vpop.permute.xlu0 %1279
      %1281 = vrot.lane.b32.xlu0 %v541, 28
      %v1282 = vpop.permute.xlu0 %1281
      %1283 = vrot.lane.b32.xlu0 %v544, 28
      %v1284 = vpop.permute.xlu0 %1283
      %1285 = vrot.lane.b32.xlu0 %v546, 28
      %v1286 = vpop.permute.xlu0 %1285
      %1287 = vrot.lane.b32.xlu0 %v549, 28
      %v1288 = vpop.permute.xlu0 %1287
      %1289 = vrot.lane.b32.xlu0 %v551, 28
      %v1290 = vpop.permute.xlu0 %1289
      %1291 = vrot.lane.b32.xlu0 %v638, 28
      %v1292 = vpop.permute.xlu0 %1291
      %1293 = vrot.lane.b32.xlu0 %v640, 28
      %v1294 = vpop.permute.xlu0 %1293
      %1295 = vrot.lane.b32.xlu0 %v651, 28
      %v1296 = vpop.permute.xlu0 %1295
      %1297 = vrot.lane.b32.xlu0 %v653, 28
      %v1298 = vpop.permute.xlu0 %1297
      %1331 = vrot.lane.b32.xlu0 %v565, 32
      %v1332 = vpop.permute.xlu0 %1331
      %1333 = vrot.lane.b32.xlu0 %v567, 32
      %v1334 = vpop.permute.xlu0 %1333
      %1335 = vrot.lane.b32.xlu0 %v570, 32
      %v1336 = vpop.permute.xlu0 %1335
      %1337 = vrot.lane.b32.xlu0 %v572, 32
      %v1338 = vpop.permute.xlu0 %1337
      %1339 = vrot.lane.b32.xlu0 %v575, 32
      %v1340 = vpop.permute.xlu0 %1339
      %1341 = vrot.lane.b32.xlu0 %v577, 32
      %v1342 = vpop.permute.xlu0 %1341
      %1343 = vrot.lane.b32.xlu0 %v580, 32
      %v1344 = vpop.permute.xlu0 %1343
      %1345 = vrot.lane.b32.xlu0 %v582, 32
      %v1346 = vpop.permute.xlu0 %1345
      %1347 = vrot.lane.b32.xlu0 %v585, 32
      %v1348 = vpop.permute.xlu0 %1347
      %1349 = vrot.lane.b32.xlu0 %v587, 32
      %v1350 = vpop.permute.xlu0 %1349
      %1351 = vrot.lane.b32.xlu0 %v590, 32
      %v1352 = vpop.permute.xlu0 %1351
      %1353 = vrot.lane.b32.xlu0 %v592, 32
      %v1354 = vpop.permute.xlu0 %1353
      %1355 = vrot.lane.b32.xlu0 %v595, 32
      %v1356 = vpop.permute.xlu0 %1355
      %1357 = vrot.lane.b32.xlu0 %v597, 32
      %v1358 = vpop.permute.xlu0 %1357
      %1359 = vrot.lane.b32.xlu0 %v600, 32
      %v1360 = vpop.permute.xlu0 %1359
      %1361 = vrot.lane.b32.xlu0 %v602, 32
      %v1362 = vpop.permute.xlu0 %1361
      %1363 = vrot.lane.b32.xlu0 %v605, 32
      %v1364 = vpop.permute.xlu0 %1363
      %1365 = vrot.lane.b32.xlu0 %v607, 32
      %v1366 = vpop.permute.xlu0 %1365
      %1367 = vrot.lane.b32.xlu0 %v610, 32
      %v1368 = vpop.permute.xlu0 %1367
      %1369 = vrot.lane.b32.xlu0 %v612, 32
      %v1370 = vpop.permute.xlu0 %1369
      %1371 = vrot.lane.b32.xlu0 %v615, 32
      %v1372 = vpop.permute.xlu0 %1371
      %1373 = vrot.lane.b32.xlu0 %v617, 32
      %v1374 = vpop.permute.xlu0 %1373
      %1375 = vrot.lane.b32.xlu0 %v620, 32
      %v1376 = vpop.permute.xlu0 %1375
      %1377 = vrot.lane.b32.xlu0 %v622, 32
      %v1378 = vpop.permute.xlu0 %1377
      %1379 = vrot.lane.b32.xlu0 %v625, 32
      %v1380 = vpop.permute.xlu0 %1379
      %1381 = vrot.lane.b32.xlu0 %v627, 32
      %v1382 = vpop.permute.xlu0 %1381
      %1383 = vrot.lane.b32.xlu0 %v630, 32
      %v1384 = vpop.permute.xlu0 %1383
      %1385 = vrot.lane.b32.xlu0 %v632, 32
      %v1386 = vpop.permute.xlu0 %1385
      %1387 = vrot.lane.b32.xlu0 %v643, 32
      %v1388 = vpop.permute.xlu0 %1387
      %1389 = vrot.lane.b32.xlu0 %v645, 32
      %v1390 = vpop.permute.xlu0 %1389
      %1391 = vrot.lane.b32.xlu0 %v656, 32
      %v1392 = vpop.permute.xlu0 %1391
      %1393 = vrot.lane.b32.xlu0 %v658, 32
      %v1394 = vpop.permute.xlu0 %1393
      %v1427 = vsel %vm216, %v369, %v660
      %v1428 = vsel %vm216, %v370, %v662
      %v1429 = vsel %vm216, %v372, %v664
      %v1430 = vsel %vm216, %v373, %v666
      %v1431 = vsel %vm216, %v375, %v668
      %v1432 = vsel %vm216, %v376, %v670
      %v1433 = vsel %vm216, %v378, %v672
      %v1434 = vsel %vm216, %v379, %v674
      %v1435 = vsel %vm216, %v381, %v676
      %v1436 = vsel %vm216, %v382, %v678
      %v1437 = vsel %vm216, %v384, %v680
      %v1438 = vsel %vm216, %v385, %v682
      %v1439 = vsel %vm216, %v387, %v684
      %v1440 = vsel %vm216, %v388, %v686
      %v1441 = vsel %vm216, %v390, %v688
      %v1442 = vsel %vm216, %v391, %v690
      %v1443 = vsel %vm216, %v393, %v692
      %v1444 = vsel %vm216, %v394, %v694
      %v1445 = vsel %vm216, %v396, %v696
      %v1446 = vsel %vm216, %v397, %v698
      %v1447 = vsel %vm216, %v399, %v700
      %v1448 = vsel %vm216, %v400, %v702
      %v1449 = vsel %vm216, %v402, %v704
      %v1450 = vsel %vm216, %v403, %v706
      %v1451 = vsel %vm216, %v405, %v708
      %v1452 = vsel %vm216, %v406, %v710
      %v1453 = vsel %vm216, %v408, %v712
      %v1454 = vsel %vm216, %v409, %v714
      %v1455 = vsel %vm216, %v411, %v716
      %v1456 = vsel %vm216, %v412, %v718
      %v1457 = vsel %vm216, %v414, %v720
      %v1458 = vsel %vm216, %v415, %v722
      %vm1459 = vcmask 64512
      %v1460 = vsel %vm1459, %v1427, %v756
      %v1461 = vsel %vm1459, %v1428, %v758
      %v1462 = vsel %vm1459, %v1429, %v760
      %v1463 = vsel %vm1459, %v1430, %v762
      %v1464 = vsel %vm1459, %v1431, %v764
      %v1465 = vsel %vm1459, %v1432, %v766
      %v1466 = vsel %vm1459, %v1433, %v768
      %v1467 = vsel %vm1459, %v1434, %v770
      %v1468 = vsel %vm1459, %v1435, %v772
      %v1469 = vsel %vm1459, %v1436, %v774
      %v1470 = vsel %vm1459, %v1437, %v776
      %v1471 = vsel %vm1459, %v1438, %v778
      %v1472 = vsel %vm1459, %v1439, %v780
      %v1473 = vsel %vm1459, %v1440, %v782
      %v1474 = vsel %vm1459, %v1441, %v784
      %v1475 = vsel %vm1459, %v1442, %v786
      %v1476 = vsel %vm1459, %v1443, %v788
      %v1477 = vsel %vm1459, %v1444, %v790
      %v1478 = vsel %vm1459, %v1445, %v792
      %v1479 = vsel %vm1459, %v1446, %v794
      %v1480 = vsel %vm1459, %v1447, %v796
      %v1481 = vsel %vm1459, %v1448, %v798
      %v1482 = vsel %vm1459, %v1449, %v800
      %v1483 = vsel %vm1459, %v1450, %v802
      %v1484 = vsel %vm1459, %v1451, %v804
      %v1485 = vsel %vm1459, %v1452, %v806
      %v1486 = vsel %vm1459, %v1453, %v808
      %v1487 = vsel %vm1459, %v1454, %v810
      %v1488 = vsel %vm1459, %v1455, %v812
      %v1489 = vsel %vm1459, %v1456, %v814
      %v1490 = vsel %vm1459, %v1457, %v816
      %v1491 = vsel %vm1459, %v1458, %v818
      %vm1492 = vcmask 97280
      %v1493 = vsel %vm1492, %v1460, %v852
      %v1494 = vsel %vm1492, %v1461, %v854
      %v1495 = vsel %vm1492, %v1462, %v856
      %v1496 = vsel %vm1492, %v1463, %v858
      %v1497 = vsel %vm1492, %v1464, %v860
      %v1498 = vsel %vm1492, %v1465, %v862
      %v1499 = vsel %vm1492, %v1466, %v864
      %v1500 = vsel %vm1492, %v1467, %v866
      %v1501 = vsel %vm1492, %v1468, %v868
      %v1502 = vsel %vm1492, %v1469, %v870
      %v1503 = vsel %vm1492, %v1470, %v872
      %v1504 = vsel %vm1492, %v1471, %v874
      %v1505 = vsel %vm1492, %v1472, %v876
      %v1506 = vsel %vm1492, %v1473, %v878
      %v1507 = vsel %vm1492, %v1474, %v880
      %v1508 = vsel %vm1492, %v1475, %v882
      %v1509 = vsel %vm1492, %v1476, %v884
      %v1510 = vsel %vm1492, %v1477, %v886
      %v1511 = vsel %vm1492, %v1478, %v888
      %v1512 = vsel %vm1492, %v1479, %v890
      %v1513 = vsel %vm1492, %v1480, %v892
      %v1514 = vsel %vm1492, %v1481, %v894
      %v1515 = vsel %vm1492, %v1482, %v896
      %v1516 = vsel %vm1492, %v1483, %v898
      %v1517 = vsel %vm1492, %v1484, %v900
      %v1518 = vsel %vm1492, %v1485, %v902
      %v1519 = vsel %vm1492, %v1486, %v904
      %v1520 = vsel %vm1492, %v1487, %v906
      %v1521 = vsel %vm1492, %v1488, %v908
      %v1522 = vsel %vm1492, %v1489, %v910
      %v1523 = vsel %vm1492, %v1490, %v912
      %v1524 = vsel %vm1492, %v1491, %v914
      %vm1525 = vcmask 130048
      %v1526 = vsel %vm1525, %v1493, %v948
      %v1527 = vsel %vm1525, %v1494, %v950
      %v1528 = vsel %vm1525, %v1495, %v952
      %v1529 = vsel %vm1525, %v1496, %v954
      %v1530 = vsel %vm1525, %v1497, %v956
      %v1531 = vsel %vm1525, %v1498, %v958
      %v1532 = vsel %vm1525, %v1499, %v960
      %v1533 = vsel %vm1525, %v1500, %v962
      %v1534 = vsel %vm1525, %v1501, %v964
      %v1535 = vsel %vm1525, %v1502, %v966
      %v1536 = vsel %vm1525, %v1503, %v968
      %v1537 = vsel %vm1525, %v1504, %v970
      %v1538 = vsel %vm1525, %v1505, %v972
      %v1539 = vsel %vm1525, %v1506, %v974
      %v1540 = vsel %vm1525, %v1507, %v976
      %v1541 = vsel %vm1525, %v1508, %v978
      %v1542 = vsel %vm1525, %v1509, %v980
      %v1543 = vsel %vm1525, %v1510, %v982
      %v1544 = vsel %vm1525, %v1511, %v984
      %v1545 = vsel %vm1525, %v1512, %v986
      %v1546 = vsel %vm1525, %v1513, %v988
      %v1547 = vsel %vm1525, %v1514, %v990
      %v1548 = vsel %vm1525, %v1515, %v992
      %v1549 = vsel %vm1525, %v1516, %v994
      %v1550 = vsel %vm1525, %v1517, %v996
      %v1551 = vsel %vm1525, %v1518, %v998
      %v1552 = vsel %vm1525, %v1519, %v1000
      %v1553 = vsel %vm1525, %v1520, %v1002
      %v1554 = vsel %vm1525, %v1521, %v1004
      %v1555 = vsel %vm1525, %v1522, %v1006
      %v1556 = vsel %vm1525, %v1523, %v1008
      %v1557 = vsel %vm1525, %v1524, %v1010
      %vm1558 = vcmask 162816
      %v1559 = vsel %vm1558, %v1526, %v1044
      %v1560 = vsel %vm1558, %v1527, %v1046
      %v1561 = vsel %vm1558, %v1528, %v1048
      %v1562 = vsel %vm1558, %v1529, %v1050
      %v1563 = vsel %vm1558, %v1530, %v1052
      %v1564 = vsel %vm1558, %v1531, %v1054
      %v1565 = vsel %vm1558, %v1532, %v1056
      %v1566 = vsel %vm1558, %v1533, %v1058
      %v1567 = vsel %vm1558, %v1534, %v1060
      %v1568 = vsel %vm1558, %v1535, %v1062
      %v1569 = vsel %vm1558, %v1536, %v1064
      %v1570 = vsel %vm1558, %v1537, %v1066
      %v1571 = vsel %vm1558, %v1538, %v1068
      %v1572 = vsel %vm1558, %v1539, %v1070
      %v1573 = vsel %vm1558, %v1540, %v1072
      %v1574 = vsel %vm1558, %v1541, %v1074
      %v1575 = vsel %vm1558, %v1542, %v1076
      %v1576 = vsel %vm1558, %v1543, %v1078
      %v1577 = vsel %vm1558, %v1544, %v1080
      %v1578 = vsel %vm1558, %v1545, %v1082
      %v1579 = vsel %vm1558, %v1546, %v1084
      %v1580 = vsel %vm1558, %v1547, %v1086
      %v1581 = vsel %vm1558, %v1548, %v1088
      %v1582 = vsel %vm1558, %v1549, %v1090
      %v1583 = vsel %vm1558, %v1550, %v1092
      %v1584 = vsel %vm1558, %v1551, %v1094
      %v1585 = vsel %vm1558, %v1552, %v1096
      %v1586 = vsel %vm1558, %v1553, %v1098
      %v1587 = vsel %vm1558, %v1554, %v1100
      %v1588 = vsel %vm1558, %v1555, %v1102
      %v1589 = vsel %vm1558, %v1556, %v1104
      %v1590 = vsel %vm1558, %v1557, %v1106
      %vm1591 = vcmask 195584
      %v1592 = vsel %vm1591, %v1559, %v1140
      %v1593 = vsel %vm1591, %v1560, %v1142
      %v1594 = vsel %vm1591, %v1561, %v1144
      %v1595 = vsel %vm1591, %v1562, %v1146
      %v1596 = vsel %vm1591, %v1563, %v1148
      %v1597 = vsel %vm1591, %v1564, %v1150
      %v1598 = vsel %vm1591, %v1565, %v1152
      %v1599 = vsel %vm1591, %v1566, %v1154
      %v1600 = vsel %vm1591, %v1567, %v1156
      %v1601 = vsel %vm1591, %v1568, %v1158
      %v1602 = vsel %vm1591, %v1569, %v1160
      %v1603 = vsel %vm1591, %v1570, %v1162
      %v1604 = vsel %vm1591, %v1571, %v1164
      %v1605 = vsel %vm1591, %v1572, %v1166
      %v1606 = vsel %vm1591, %v1573, %v1168
      %v1607 = vsel %vm1591, %v1574, %v1170
      %v1608 = vsel %vm1591, %v1575, %v1172
      %v1609 = vsel %vm1591, %v1576, %v1174
      %v1610 = vsel %vm1591, %v1577, %v1176
      %v1611 = vsel %vm1591, %v1578, %v1178
      %v1612 = vsel %vm1591, %v1579, %v1180
      %v1613 = vsel %vm1591, %v1580, %v1182
      %v1614 = vsel %vm1591, %v1581, %v1184
      %v1615 = vsel %vm1591, %v1582, %v1186
      %v1616 = vsel %vm1591, %v1583, %v1188
      %v1617 = vsel %vm1591, %v1584, %v1190
      %v1618 = vsel %vm1591, %v1585, %v1192
      %v1619 = vsel %vm1591, %v1586, %v1194
      %v1620 = vsel %vm1591, %v1587, %v1196
      %v1621 = vsel %vm1591, %v1588, %v1198
      %v1622 = vsel %vm1591, %v1589, %v1200
      %v1623 = vsel %vm1591, %v1590, %v1202
      %vm1624 = vcmask 228352
      %v1625 = vsel %vm1624, %v1592, %v1236
      %v1626 = vsel %vm1624, %v1593, %v1238
      %v1627 = vsel %vm1624, %v1594, %v1240
      %v1628 = vsel %vm1624, %v1595, %v1242
      %v1629 = vsel %vm1624, %v1596, %v1244
      %v1630 = vsel %vm1624, %v1597, %v1246
      %v1631 = vsel %vm1624, %v1598, %v1248
      %v1632 = vsel %vm1624, %v1599, %v1250
      %v1633 = vsel %vm1624, %v1600, %v1252
      %v1634 = vsel %vm1624, %v1601, %v1254
      %v1635 = vsel %vm1624, %v1602, %v1256
      %v1636 = vsel %vm1624, %v1603, %v1258
      %v1637 = vsel %vm1624, %v1604, %v1260
      %v1638 = vsel %vm1624, %v1605, %v1262
      %v1639 = vsel %vm1624, %v1606, %v1264
      %v1640 = vsel %vm1624, %v1607, %v1266
      %v1641 = vsel %vm1624, %v1608, %v1268
      %v1642 = vsel %vm1624, %v1609, %v1270
      %v1643 = vsel %vm1624, %v1610, %v1272
      %v1644 = vsel %vm1624, %v1611, %v1274
      %v1645 = vsel %vm1624, %v1612, %v1276
      %v1646 = vsel %vm1624, %v1613, %v1278
      %v1647 = vsel %vm1624, %v1614, %v1280
      %v1648 = vsel %vm1624, %v1615, %v1282
      %v1649 = vsel %vm1624, %v1616, %v1284
      %v1650 = vsel %vm1624, %v1617, %v1286
      %v1651 = vsel %vm1624, %v1618, %v1288
      %v1652 = vsel %vm1624, %v1619, %v1290
      %v1653 = vsel %vm1624, %v1620, %v1292
      %v1654 = vsel %vm1624, %v1621, %v1294
      %v1655 = vsel %vm1624, %v1622, %v1296
      %v1656 = vsel %vm1624, %v1623, %v1298
      %vm1657 = vcmask 261120
      %v1658 = vsel %vm1657, %v1625, %v1332
      %v1659 = vsel %vm1657, %v1626, %v1334
      %v1660 = vsel %vm1657, %v1627, %v1336
      %v1661 = vsel %vm1657, %v1628, %v1338
      %v1662 = vsel %vm1657, %v1629, %v1340
      %v1663 = vsel %vm1657, %v1630, %v1342
      %v1664 = vsel %vm1657, %v1631, %v1344
      %v1665 = vsel %vm1657, %v1632, %v1346
      %v1666 = vsel %vm1657, %v1633, %v1348
      %v1667 = vsel %vm1657, %v1634, %v1350
      %v1668 = vsel %vm1657, %v1635, %v1352
      %v1669 = vsel %vm1657, %v1636, %v1354
      %v1670 = vsel %vm1657, %v1637, %v1356
      %v1671 = vsel %vm1657, %v1638, %v1358
      %v1672 = vsel %vm1657, %v1639, %v1360
      %v1673 = vsel %vm1657, %v1640, %v1362
      %v1674 = vsel %vm1657, %v1641, %v1364
      %v1675 = vsel %vm1657, %v1642, %v1366
      %v1676 = vsel %vm1657, %v1643, %v1368
      %v1677 = vsel %vm1657, %v1644, %v1370
      %v1678 = vsel %vm1657, %v1645, %v1372
      %v1679 = vsel %vm1657, %v1646, %v1374
      %v1680 = vsel %vm1657, %v1647, %v1376
      %v1681 = vsel %vm1657, %v1648, %v1378
      %v1682 = vsel %vm1657, %v1649, %v1380
      %v1683 = vsel %vm1657, %v1650, %v1382
      %v1684 = vsel %vm1657, %v1651, %v1384
      %v1685 = vsel %vm1657, %v1652, %v1386
      %v1686 = vsel %vm1657, %v1653, %v1388
      %v1687 = vsel %vm1657, %v1654, %v1390
      %v1688 = vsel %vm1657, %v1655, %v1392
      %v1689 = vsel %vm1657, %v1656, %v1394
      %v1690 = vpack.c.bf16 %v1659, %v1658
      %v1691 = vpack.c.bf16 %v1661, %v1660
      %v1692 = vpack.c.bf16 %v1663, %v1662
      %v1693 = vpack.c.bf16 %v1665, %v1664
      %v1694 = vpack.c.bf16 %v1667, %v1666
      %v1695 = vpack.c.bf16 %v1669, %v1668
      %v1696 = vpack.c.bf16 %v1671, %v1670
      %v1697 = vpack.c.bf16 %v1673, %v1672
      %v1698 = vpack.c.bf16 %v1675, %v1674
      %v1699 = vpack.c.bf16 %v1677, %v1676
      %v1700 = vpack.c.bf16 %v1679, %v1678
      %v1701 = vpack.c.bf16 %v1681, %v1680
      %v1702 = vpack.c.bf16 %v1683, %v1682
      %v1703 = vpack.c.bf16 %v1685, %v1684
      %v1704 = vpack.c.bf16 %v1687, %v1686
      %v1705 = vpack.c.bf16 %v1689, %v1688
      %v1706 = vld [vmem:[%s1] sm:$0xf]
      %v1707 = vld [vmem:[%s1 + $0x4] sm:$0xf]
      %v1708 = vld [vmem:[%s1 + $0x8] sm:$0xf]
      %v1709 = vld [vmem:[%s1 + $0xc] sm:$0xf]
      %v1710 = vld [vmem:[%s1 + $0x10] sm:$0x3]
      %v1716 = vunpack.c.l.b16 %v1706
      %v1717 = vunpack.c.l.b16 %v1707
      %v1718 = vunpack.c.l.b16 %v1708
      %v1719 = vunpack.c.l.b16 %v1709
      %v1720 = vunpack.c.l.b16 %v1710
      %v1721 = vpack.c.b16 %v1717, %v1716
      %v1722 = vpack.c.b16 %v1719, %v1718
      %v1723 = vpack.c.b16 %v1720, %v1720
      %vm1726 = vcmask 293888
      %v1728 = vsel %vm1726, %v1690, 0
      %v1731 = vsel %vm1726, %v1691, 0
      %v1734 = vsel %vm1726, %v1692, 0
      %v1737 = vsel %vm1726, %v1693, 0
      %v1740 = vsel %vm1726, %v1694, 0
      %v1743 = vsel %vm1726, %v1695, 0
      %v1746 = vsel %vm1726, %v1696, 0
      %v1749 = vsel %vm1726, %v1697, 0
      %v1752 = vsel %vm1726, %v1698, 0
      %v1755 = vsel %vm1726, %v1699, 0
      %v1758 = vsel %vm1726, %v1700, 0
      %v1761 = vsel %vm1726, %v1701, 0
      %v1764 = vsel %vm1726, %v1702, 0
      %v1767 = vsel %vm1726, %v1703, 0
      %v1770 = vsel %vm1726, %v1704, 0
      %v1773 = vsel %vm1726, %v1705, 0
      %vm1775 = vcmask 1041408
      %v1777 = vsel %vm1775, %v1723, 0
      %1779 = vmatprep.subr.bf16.mxu0 0
      %1780 = vmatpush1.bf16.msra.mxu0 %v1721
      %1781 = vmatprep.subr.bf16.mxu0 0
      %1782 = vmatpush1.bf16.msra.mxu0 %v1722
      %1783 = vmatprep.subr.bf16.mxu0 0
      %1784 = vmatpush1.bf16.msra.mxu0 %v1777
      %1785 = vmatprep.subr.bf16.mxu0 0
      %1786 = vmatpush1.bf16.msra.mxu0 0
      %1787 = vmatprep.subr.bf16.mxu0 0
      %1788 = vmatpush1.bf16.msra.mxu0 0
      %1789 = vmatprep.subr.bf16.mxu0 0
      %1790 = vmatpush1.bf16.msra.mxu0 0
      %1791 = vmatprep.subr.bf16.mxu0 0
      %1792 = vmatpush1.bf16.msra.mxu0 0
      %1793 = vmatprep.subr.bf16.mxu0 0
      %1794 = vmatpush1.bf16.msra.mxu0 0
      %1795 = vmatprep.subr.bf16.mxu0 0
      %1796 = vmatpush1.bf16.msra.mxu0 0
      %1797 = vmatprep.subr.bf16.mxu0 0
      %1798 = vmatpush1.bf16.msra.mxu0 0
      %1799 = vmatprep.subr.bf16.mxu0 0
      %1800 = vmatpush1.bf16.msra.mxu0 0
      %1801 = vmatprep.subr.bf16.mxu0 0
      %1802 = vmatpush1.bf16.msra.mxu0 0
      %1803 = vmatprep.subr.bf16.mxu0 0
      %1804 = vmatpush1.bf16.msra.mxu0 0
      %1805 = vmatprep.subr.bf16.mxu0 0
      %1806 = vmatpush1.bf16.msra.mxu0 0
      %1807 = vmatprep.subr.bf16.mxu0 0
      %1808 = vmatpush1.bf16.msra.mxu0 0
      %1809 = vmatprep.subr.bf16.mxu0 0
      %1810 = vmatpush1.bf16.msra.mxu0 0
      %1811 = vmatprep.mubr.bf16.mxu0 0
      %1812 = vmatmul.mubr.bf16.gmra.mrb[0].mxu0 %v1728
      %v1813 = vpop.f32.mrb[0].mxu0
      %v1814 = vadd.f32 0.0, %v1813
      %v1815 = vpop.f32.mrb[0].mxu0
      %v1816 = vpop.f32.mrb[0].mxu0
      %v1817 = vadd.f32 0.0, %v1816
      %v1818 = vpop.f32.mrb[0].mxu0
      %1819 = vmatprep.mubr.bf16.mxu0 0
      %1820 = vmatmul.mubr.bf16.gmra.mrb[0].mxu0 %v1731
      %v1821 = vpop.f32.mrb[0].mxu0
      %v1822 = vadd.f32 0.0, %v1821
      %v1823 = vpop.f32.mrb[0].mxu0
      %v1824 = vpop.f32.mrb[0].mxu0
      %v1825 = vadd.f32 0.0, %v1824
      %v1826 = vpop.f32.mrb[0].mxu0
      %1827 = vmatprep.mubr.bf16.mxu0 0
      %1828 = vmatmul.mubr.bf16.gmra.mrb[0].mxu0 %v1734
      %v1829 = vpop.f32.mrb[0].mxu0
      %v1830 = vadd.f32 0.0, %v1829
      %v1831 = vpop.f32.mrb[0].mxu0
      %v1832 = vpop.f32.mrb[0].mxu0
      %v1833 = vadd.f32 0.0, %v1832
      %v1834 = vpop.f32.mrb[0].mxu0
      %1835 = vmatprep.mubr.bf16.mxu0 0
      %1836 = vmatmul.mubr.bf16.gmra.mrb[0].mxu0 %v1737
      %v1837 = vpop.f32.mrb[0].mxu0
      %v1838 = vadd.f32 0.0, %v1837
      %v1839 = vpop.f32.mrb[0].mxu0
      %v1840 = vpop.f32.mrb[0].mxu0
      %v1841 = vadd.f32 0.0, %v1840
      %v1842 = vpop.f32.mrb[0].mxu0
      %1843 = vmatprep.mubr.bf16.mxu0 0
      %1844 = vmatmul.mubr.bf16.gmra.mrb[0].mxu0 %v1740
      %v1845 = vpop.f32.mrb[0].mxu0
      %v1846 = vadd.f32 0.0, %v1845
      %v1847 = vpop.f32.mrb[0].mxu0
      %v1848 = vpop.f32.mrb[0].mxu0
      %v1849 = vadd.f32 0.0, %v1848
      %v1850 = vpop.f32.mrb[0].mxu0
      %1851 = vmatprep.mubr.bf16.mxu0 0
      %1852 = vmatmul.mubr.bf16.gmra.mrb[0].mxu0 %v1743
      %v1853 = vpop.f32.mrb[0].mxu0
      %v1854 = vadd.f32 0.0, %v1853
      %v1855 = vpop.f32.mrb[0].mxu0
      %v1856 = vpop.f32.mrb[0].mxu0
      %v1857 = vadd.f32 0.0, %v1856
      %v1858 = vpop.f32.mrb[0].mxu0
      %1859 = vmatprep.mubr.bf16.mxu0 0
      %1860 = vmatmul.mubr.bf16.gmra.mrb[0].mxu0 %v1746
      %v1861 = vpop.f32.mrb[0].mxu0
      %v1862 = vadd.f32 0.0, %v1861
      %v1863 = vpop.f32.mrb[0].mxu0
      %v1864 = vpop.f32.mrb[0].mxu0
      %v1865 = vadd.f32 0.0, %v1864
      %v1866 = vpop.f32.mrb[0].mxu0
      %1867 = vmatprep.mubr.bf16.mxu0 0
      %1868 = vmatmul.mubr.bf16.gmra.mrb[0].mxu0 %v1749
      %v1869 = vpop.f32.mrb[0].mxu0
      %v1870 = vadd.f32 0.0, %v1869
      %v1871 = vpop.f32.mrb[0].mxu0
      %v1872 = vpop.f32.mrb[0].mxu0
      %v1873 = vadd.f32 0.0, %v1872
      %v1874 = vpop.f32.mrb[0].mxu0
      %1875 = vmatprep.mubr.bf16.mxu0 0
      %1876 = vmatmul.mubr.bf16.gmra.mrb[0].mxu0 %v1752
      %v1877 = vpop.f32.mrb[0].mxu0
      %v1878 = vadd.f32 0.0, %v1877
      %v1879 = vpop.f32.mrb[0].mxu0
      %v1880 = vpop.f32.mrb[0].mxu0
      %v1881 = vadd.f32 0.0, %v1880
      %v1882 = vpop.f32.mrb[0].mxu0
      %1883 = vmatprep.mubr.bf16.mxu0 0
      %1884 = vmatmul.mubr.bf16.gmra.mrb[0].mxu0 %v1755
      %v1885 = vpop.f32.mrb[0].mxu0
      %v1886 = vadd.f32 0.0, %v1885
      %v1887 = vpop.f32.mrb[0].mxu0
      %v1888 = vpop.f32.mrb[0].mxu0
      %v1889 = vadd.f32 0.0, %v1888
      %v1890 = vpop.f32.mrb[0].mxu0
      %1891 = vmatprep.mubr.bf16.mxu0 0
      %1892 = vmatmul.mubr.bf16.gmra.mrb[0].mxu0 %v1758
      %v1893 = vpop.f32.mrb[0].mxu0
      %v1894 = vadd.f32 0.0, %v1893
      %v1895 = vpop.f32.mrb[0].mxu0
      %v1896 = vpop.f32.mrb[0].mxu0
      %v1897 = vadd.f32 0.0, %v1896
      %v1898 = vpop.f32.mrb[0].mxu0
      %1899 = vmatprep.mubr.bf16.mxu0 0
      %1900 = vmatmul.mubr.bf16.gmra.mrb[0].mxu0 %v1761
      %v1901 = vpop.f32.mrb[0].mxu0
      %v1902 = vadd.f32 0.0, %v1901
      %v1903 = vpop.f32.mrb[0].mxu0
      %v1904 = vpop.f32.mrb[0].mxu0
      %v1905 = vadd.f32 0.0, %v1904
      %v1906 = vpop.f32.mrb[0].mxu0
      %1907 = vmatprep.mubr.bf16.mxu0 0
      %1908 = vmatmul.mubr.bf16.gmra.mrb[0].mxu0 %v1764
      %v1909 = vpop.f32.mrb[0].mxu0
      %v1910 = vadd.f32 0.0, %v1909
      %v1911 = vpop.f32.mrb[0].mxu0
      %v1912 = vpop.f32.mrb[0].mxu0
      %v1913 = vadd.f32 0.0, %v1912
      %v1914 = vpop.f32.mrb[0].mxu0
      %1915 = vmatprep.mubr.bf16.mxu0 0
      %1916 = vmatmul.mubr.bf16.gmra.mrb[0].mxu0 %v1767
      %v1917 = vpop.f32.mrb[0].mxu0
      %v1918 = vadd.f32 0.0, %v1917
      %v1919 = vpop.f32.mrb[0].mxu0
      %v1920 = vpop.f32.mrb[0].mxu0
      %v1921 = vadd.f32 0.0, %v1920
      %v1922 = vpop.f32.mrb[0].mxu0
      %1923 = vmatprep.mubr.bf16.mxu0 0
      %1924 = vmatmul.mubr.bf16.gmra.mrb[0].mxu0 %v1770
      %v1925 = vpop.f32.mrb[0].mxu0
      %v1926 = vadd.f32 0.0, %v1925
      %v1927 = vpop.f32.mrb[0].mxu0
      %v1928 = vpop.f32.mrb[0].mxu0
      %v1929 = vadd.f32 0.0, %v1928
      %v1930 = vpop.f32.mrb[0].mxu0
      %1931 = vmatprep.mubr.bf16.mxu0 0
      %1932 = vmatmul.mubr.bf16.gmra.mrb[0].mxu0 %v1773
      %v1933 = vpop.f32.mrb[0].mxu0
      %v1934 = vadd.f32 0.0, %v1933
      %v1935 = vpop.f32.mrb[0].mxu0
      %v1936 = vpop.f32.mrb[0].mxu0
      %v1937 = vadd.f32 0.0, %v1936
      %v1938 = vpop.f32.mrb[0].mxu0
      %1939 = vdwg.mxu0
      %v1940 = vpack.c.bf16 %v1817, %v1814
      %v1941 = vpack.c.bf16 %v1825, %v1822
      %v1942 = vpack.c.bf16 %v1833, %v1830
      %v1943 = vpack.c.bf16 %v1841, %v1838
      %v1944 = vpack.c.bf16 %v1849, %v1846
      %v1945 = vpack.c.bf16 %v1857, %v1854
      %v1946 = vpack.c.bf16 %v1865, %v1862
      %v1947 = vpack.c.bf16 %v1873, %v1870
      %v1948 = vpack.c.bf16 %v1881, %v1878
      %v1949 = vpack.c.bf16 %v1889, %v1886
      %v1950 = vpack.c.bf16 %v1897, %v1894
      %v1951 = vpack.c.bf16 %v1905, %v1902
      %v1952 = vpack.c.bf16 %v1913, %v1910
      %v1953 = vpack.c.bf16 %v1921, %v1918
      %v1954 = vpack.c.bf16 %v1929, %v1926
      %v1955 = vpack.c.bf16 %v1937, %v1934
      %v1972 = vunpack.c.l.b16 %v1940
      %v1973 = vunpack.c.h.b16 %v1940
      %v1974 = vunpack.c.l.b16 %v1941
      %v1975 = vunpack.c.h.b16 %v1941
      %v1976 = vunpack.c.l.b16 %v1942
      %v1977 = vunpack.c.h.b16 %v1942
      %v1978 = vunpack.c.l.b16 %v1943
      %v1979 = vunpack.c.h.b16 %v1943
      %v1980 = vunpack.c.l.b16 %v1944
      %v1981 = vunpack.c.h.b16 %v1944
      %v1982 = vunpack.c.l.b16 %v1945
      %v1983 = vunpack.c.h.b16 %v1945
      %v1984 = vunpack.c.l.b16 %v1946
      %v1985 = vunpack.c.h.b16 %v1946
      %v1986 = vunpack.c.l.b16 %v1947
      %v1987 = vunpack.c.h.b16 %v1947
      %v1988 = vunpack.c.l.b16 %v1948
      %v1989 = vunpack.c.h.b16 %v1948
      %v1990 = vunpack.c.l.b16 %v1949
      %v1991 = vunpack.c.h.b16 %v1949
      %v1992 = vunpack.c.l.b16 %v1950
      %v1993 = vunpack.c.h.b16 %v1950
      %v1994 = vunpack.c.l.b16 %v1951
      %v1995 = vunpack.c.h.b16 %v1951
      %v1996 = vunpack.c.l.b16 %v1952
      %v1997 = vunpack.c.h.b16 %v1952
      %v1998 = vunpack.c.l.b16 %v1953
      %v1999 = vunpack.c.h.b16 %v1953
      %v2000 = vunpack.c.l.b16 %v1954
      %v2001 = vunpack.c.h.b16 %v1954
      %v2002 = vunpack.c.l.b16 %v1955
      %v2003 = vunpack.c.h.b16 %v1955
      %v2004 = vpack.c.b16 %v1972, %v1972
      %v2005 = vpack.c.b16 %v1973, %v1973
      %v2006 = vpack.c.b16 %v1974, %v1974
      %v2007 = vpack.c.b16 %v1975, %v1975
      %v2008 = vpack.c.b16 %v1976, %v1976
      %v2009 = vpack.c.b16 %v1977, %v1977
      %v2010 = vpack.c.b16 %v1978, %v1978
      %v2011 = vpack.c.b16 %v1979, %v1979
      %v2012 = vpack.c.b16 %v1980, %v1980
      %v2013 = vpack.c.b16 %v1981, %v1981
      %v2014 = vpack.c.b16 %v1982, %v1982
      %v2015 = vpack.c.b16 %v1983, %v1983
      %v2016 = vpack.c.b16 %v1984, %v1984
      %v2017 = vpack.c.b16 %v1985, %v1985
      %v2018 = vpack.c.b16 %v1986, %v1986
      %v2019 = vpack.c.b16 %v1987, %v1987
      %v2020 = vpack.c.b16 %v1988, %v1988
      %v2021 = vpack.c.b16 %v1989, %v1989
      %v2022 = vpack.c.b16 %v1990, %v1990
      %v2023 = vpack.c.b16 %v1991, %v1991
      %v2024 = vpack.c.b16 %v1992, %v1992
      %v2025 = vpack.c.b16 %v1993, %v1993
      %v2026 = vpack.c.b16 %v1994, %v1994
      %v2027 = vpack.c.b16 %v1995, %v1995
      %v2028 = vpack.c.b16 %v1996, %v1996
      %v2029 = vpack.c.b16 %v1997, %v1997
      %v2030 = vpack.c.b16 %v1998, %v1998
      %v2031 = vpack.c.b16 %v1999, %v1999
      %v2032 = vpack.c.b16 %v2000, %v2000
      %v2033 = vpack.c.b16 %v2001, %v2001
      %v2034 = vpack.c.b16 %v2002, %v2002
      %v2035 = vpack.c.b16 %v2003, %v2003
      %vm2068 = vcmask 60416
      %2069 = vst.msk [vmem:[%s208] sm:$0xf] %vm2068, %v2004
      %2070 = vst.msk [vmem:[%s208 + $0x4] sm:$0xf] %vm2068, %v2005
      %2071 = vst.msk [vmem:[%s208 + $0x8] sm:$0xf] %vm2068, %v2006
      %2072 = vst.msk [vmem:[%s208 + $0xc] sm:$0xf] %vm2068, %v2007
      %2073 = vst.msk [vmem:[%s208 + $0x10] sm:$0xf] %vm2068, %v2008
      %2074 = vst.msk [vmem:[%s208 + $0x14] sm:$0xf] %vm2068, %v2009
      %2075 = vst.msk [vmem:[%s208 + $0x18] sm:$0xf] %vm2068, %v2010
      %2076 = vst.msk [vmem:[%s208 + $0x1c] sm:$0xf] %vm2068, %v2011
      %2077 = vst.msk [vmem:[%s208 + $0x20] sm:$0xf] %vm2068, %v2012
      %2078 = vst.msk [vmem:[%s208 + $0x24] sm:$0xf] %vm2068, %v2013
      %2079 = vst.msk [vmem:[%s208 + $0x28] sm:$0xf] %vm2068, %v2014
      %2080 = vst.msk [vmem:[%s208 + $0x2c] sm:$0xf] %vm2068, %v2015
      %2081 = vst.msk [vmem:[%s208 + $0x30] sm:$0xf] %vm2068, %v2016
      %2082 = vst.msk [vmem:[%s208 + $0x34] sm:$0xf] %vm2068, %v2017
      %2083 = vst.msk [vmem:[%s208 + $0x38] sm:$0xf] %vm2068, %v2018
      %2084 = vst.msk [vmem:[%s208 + $0x3c] sm:$0xf] %vm2068, %v2019
      %2085 = vst.msk [vmem:[%s208 + $0x40] sm:$0xf] %vm2068, %v2020
      %2086 = vst.msk [vmem:[%s208 + $0x44] sm:$0xf] %vm2068, %v2021
      %2087 = vst.msk [vmem:[%s208 + $0x48] sm:$0xf] %vm2068, %v2022
      %2088 = vst.msk [vmem:[%s208 + $0x4c] sm:$0xf] %vm2068, %v2023
      %2089 = vst.msk [vmem:[%s208 + $0x50] sm:$0xf] %vm2068, %v2024
      %2090 = vst.msk [vmem:[%s208 + $0x54] sm:$0xf] %vm2068, %v2025
      %2091 = vst.msk [vmem:[%s208 + $0x58] sm:$0xf] %vm2068, %v2026
      %2092 = vst.msk [vmem:[%s208 + $0x5c] sm:$0xf] %vm2068, %v2027
      %2093 = vst.msk [vmem:[%s208 + $0x60] sm:$0xf] %vm2068, %v2028
      %2094 = vst.msk [vmem:[%s208 + $0x64] sm:$0xf] %vm2068, %v2029
      %2095 = vst.msk [vmem:[%s208 + $0x68] sm:$0xf] %vm2068, %v2030
      %2096 = vst.msk [vmem:[%s208 + $0x6c] sm:$0xf] %vm2068, %v2031
      %2097 = vst.msk [vmem:[%s208 + $0x70] sm:$0xf] %vm2068, %v2032
      %2098 = vst.msk [vmem:[%s208 + $0x74] sm:$0xf] %vm2068, %v2033
      %2099 = vst.msk [vmem:[%s208 + $0x78] sm:$0xf] %vm2068, %v2034
      %2100 = vst.msk [vmem:[%s208 + $0x7c] sm:$0xf] %vm2068, %v2035
      %v2101 = vsel %vm1459, %v1814, 0.0
      %v2102 = vsel %vm1459, %v1817, 0.0
      %v2103 = vadd.f32 %v2101, %v2102
      %v2104 = vsel %vm1459, %v1822, 0.0
      %v2105 = vadd.f32 %v2103, %v2104
      %v2106 = vsel %vm1459, %v1825, 0.0
      %v2107 = vadd.f32 %v2105, %v2106
      %v2108 = vsel %vm1459, %v1830, 0.0
      %v2109 = vadd.f32 %v2107, %v2108
      %v2110 = vsel %vm1459, %v1833, 0.0
      %v2111 = vadd.f32 %v2109, %v2110
      %v2112 = vsel %vm1459, %v1838, 0.0
      %v2113 = vadd.f32 %v2111, %v2112
      %v2114 = vsel %vm1459, %v1841, 0.0
      %v2115 = vadd.f32 %v2113, %v2114
      %v2116 = vsel %vm1459, %v1846, 0.0
      %v2117 = vadd.f32 %v2115, %v2116
      %v2118 = vsel %vm1459, %v1849, 0.0
      %v2119 = vadd.f32 %v2117, %v2118
      %v2120 = vsel %vm1459, %v1854, 0.0
      %v2121 = vadd.f32 %v2119, %v2120
      %v2122 = vsel %vm1459, %v1857, 0.0
      %v2123 = vadd.f32 %v2121, %v2122
      %v2124 = vsel %vm1459, %v1862, 0.0
      %v2125 = vadd.f32 %v2123, %v2124
      %v2126 = vsel %vm1459, %v1865, 0.0
      %v2127 = vadd.f32 %v2125, %v2126
      %v2128 = vsel %vm1459, %v1870, 0.0
      %v2129 = vadd.f32 %v2127, %v2128
      %v2130 = vsel %vm1459, %v1873, 0.0
      %v2131 = vadd.f32 %v2129, %v2130
      %v2132 = vsel %vm1459, %v1878, 0.0
      %v2133 = vadd.f32 %v2131, %v2132
      %v2134 = vsel %vm1459, %v1881, 0.0
      %v2135 = vadd.f32 %v2133, %v2134
      %v2136 = vsel %vm1459, %v1886, 0.0
      %v2137 = vadd.f32 %v2135, %v2136
      %v2138 = vsel %vm1459, %v1889, 0.0
      %v2139 = vadd.f32 %v2137, %v2138
      %v2140 = vsel %vm1459, %v1894, 0.0
      %v2141 = vadd.f32 %v2139, %v2140
      %v2142 = vsel %vm1459, %v1897, 0.0
      %v2143 = vadd.f32 %v2141, %v2142
      %v2144 = vsel %vm1459, %v1902, 0.0
      %v2145 = vadd.f32 %v2143, %v2144
      %v2146 = vsel %vm1459, %v1905, 0.0
      %v2147 = vadd.f32 %v2145, %v2146
      %v2148 = vsel %vm1459, %v1910, 0.0
      %v2149 = vadd.f32 %v2147, %v2148
      %v2150 = vsel %vm1459, %v1913, 0.0
      %v2151 = vadd.f32 %v2149, %v2150
      %v2152 = vsel %vm1459, %v1918, 0.0
      %v2153 = vadd.f32 %v2151, %v2152
      %v2154 = vsel %vm1459, %v1921, 0.0
      %v2155 = vadd.f32 %v2153, %v2154
      %v2156 = vsel %vm1459, %v1926, 0.0
      %v2157 = vadd.f32 %v2155, %v2156
      %v2158 = vsel %vm1459, %v1929, 0.0
      %v2159 = vadd.f32 %v2157, %v2158
      %v2160 = vsel %vm1459, %v1934, 0.0
      %v2161 = vadd.f32 %v2159, %v2160
      %v2162 = vsel %vm1459, %v1937, 0.0
      %v2163 = vadd.f32 %v2161, %v2162
      %v2164 = vrot.slane %v2163, 4
      %v2165 = vadd.f32 %v2163, %v2164
      %v2166 = vrot.slane %v2165, 2
      %v2167 = vadd.f32 %v2165, %v2166
      %v2168 = vrot.slane %v2167, 1
      %v2169 = vadd.f32 %v2167, %v2168
      %vm2170 = vcmask 57344
      %2171 = vst.msk [vmem:[%s211] sm:$0x1] %vm2170, %v2169
      %v2172 = vmul.f32 %v1814, %v1814
      %v2173 = vmul.f32 %v1817, %v1817
      %v2174 = vmul.f32 %v1822, %v1822
      %v2175 = vmul.f32 %v1825, %v1825
      %v2176 = vmul.f32 %v1830, %v1830
      %v2177 = vmul.f32 %v1833, %v1833
      %v2178 = vmul.f32 %v1838, %v1838
      %v2179 = vmul.f32 %v1841, %v1841
      %v2180 = vmul.f32 %v1846, %v1846
      %v2181 = vmul.f32 %v1849, %v1849
      %v2182 = vmul.f32 %v1854, %v1854
      %v2183 = vmul.f32 %v1857, %v1857
      %v2184 = vmul.f32 %v1862, %v1862
      %v2185 = vmul.f32 %v1865, %v1865
      %v2186 = vmul.f32 %v1870, %v1870
      %v2187 = vmul.f32 %v1873, %v1873
      %v2188 = vmul.f32 %v1878, %v1878
      %v2189 = vmul.f32 %v1881, %v1881
      %v2190 = vmul.f32 %v1886, %v1886
      %v2191 = vmul.f32 %v1889, %v1889
      %v2192 = vmul.f32 %v1894, %v1894
      %v2193 = vmul.f32 %v1897, %v1897
      %v2194 = vmul.f32 %v1902, %v1902
      %v2195 = vmul.f32 %v1905, %v1905
      %v2196 = vmul.f32 %v1910, %v1910
      %v2197 = vmul.f32 %v1913, %v1913
      %v2198 = vmul.f32 %v1918, %v1918
      %v2199 = vmul.f32 %v1921, %v1921
      %v2200 = vmul.f32 %v1926, %v1926
      %v2201 = vmul.f32 %v1929, %v1929
      %v2202 = vmul.f32 %v1934, %v1934
      %v2203 = vmul.f32 %v1937, %v1937
      %v2204 = vsel %vm1459, %v2172, 0.0
      %v2205 = vsel %vm1459, %v2173, 0.0
      %v2206 = vadd.f32 %v2204, %v2205
      %v2207 = vsel %vm1459, %v2174, 0.0
      %v2208 = vadd.f32 %v2206, %v2207
      %v2209 = vsel %vm1459, %v2175, 0.0
      %v2210 = vadd.f32 %v2208, %v2209
      %v2211 = vsel %vm1459, %v2176, 0.0
      %v2212 = vadd.f32 %v2210, %v2211
      %v2213 = vsel %vm1459, %v2177, 0.0
      %v2214 = vadd.f32 %v2212, %v2213
      %v2215 = vsel %vm1459, %v2178, 0.0
      %v2216 = vadd.f32 %v2214, %v2215
      %v2217 = vsel %vm1459, %v2179, 0.0
      %v2218 = vadd.f32 %v2216, %v2217
      %v2219 = vsel %vm1459, %v2180, 0.0
      %v2220 = vadd.f32 %v2218, %v2219
      %v2221 = vsel %vm1459, %v2181, 0.0
      %v2222 = vadd.f32 %v2220, %v2221
      %v2223 = vsel %vm1459, %v2182, 0.0
      %v2224 = vadd.f32 %v2222, %v2223
      %v2225 = vsel %vm1459, %v2183, 0.0
      %v2226 = vadd.f32 %v2224, %v2225
      %v2227 = vsel %vm1459, %v2184, 0.0
      %v2228 = vadd.f32 %v2226, %v2227
      %v2229 = vsel %vm1459, %v2185, 0.0
      %v2230 = vadd.f32 %v2228, %v2229
      %v2231 = vsel %vm1459, %v2186, 0.0
      %v2232 = vadd.f32 %v2230, %v2231
      %v2233 = vsel %vm1459, %v2187, 0.0
      %v2234 = vadd.f32 %v2232, %v2233
      %v2235 = vsel %vm1459, %v2188, 0.0
      %v2236 = vadd.f32 %v2234, %v2235
      %v2237 = vsel %vm1459, %v2189, 0.0
      %v2238 = vadd.f32 %v2236, %v2237
      %v2239 = vsel %vm1459, %v2190, 0.0
      %v2240 = vadd.f32 %v2238, %v2239
      %v2241 = vsel %vm1459, %v2191, 0.0
      %v2242 = vadd.f32 %v2240, %v2241
      %v2243 = vsel %vm1459, %v2192, 0.0
      %v2244 = vadd.f32 %v2242, %v2243
      %v2245 = vsel %vm1459, %v2193, 0.0
      %v2246 = vadd.f32 %v2244, %v2245
      %v2247 = vsel %vm1459, %v2194, 0.0
      %v2248 = vadd.f32 %v2246, %v2247
      %v2249 = vsel %vm1459, %v2195, 0.0
      %v2250 = vadd.f32 %v2248, %v2249
      %v2251 = vsel %vm1459, %v2196, 0.0
      %v2252 = vadd.f32 %v2250, %v2251
      %v2253 = vsel %vm1459, %v2197, 0.0
      %v2254 = vadd.f32 %v2252, %v2253
      %v2255 = vsel %vm1459, %v2198, 0.0
      %v2256 = vadd.f32 %v2254, %v2255
      %v2257 = vsel %vm1459, %v2199, 0.0
      %v2258 = vadd.f32 %v2256, %v2257
      %v2259 = vsel %vm1459, %v2200, 0.0
      %v2260 = vadd.f32 %v2258, %v2259
      %v2261 = vsel %vm1459, %v2201, 0.0
      %v2262 = vadd.f32 %v2260, %v2261
      %v2263 = vsel %vm1459, %v2202, 0.0
      %v2264 = vadd.f32 %v2262, %v2263
      %v2265 = vsel %vm1459, %v2203, 0.0
      %v2266 = vadd.f32 %v2264, %v2265
      %v2267 = vrot.slane %v2266, 4
      %v2268 = vadd.f32 %v2266, %v2267
      %v2269 = vrot.slane %v2268, 2
      %v2270 = vadd.f32 %v2268, %v2269
      %v2271 = vrot.slane %v2270, 1
      %v2272 = vadd.f32 %v2270, %v2271
      %2273 = vst.msk [vmem:[%s214] sm:$0x1] %vm2170, %v2272
      %p2274 = scmp.lt.s32.totalorder %s16, 1
      %s2275 = scalar_select %p2274, %s16, 1
      %s2276 = smul.addr %s2275, 32
      %s2277 = smul.addr %s2276, 4
      %s2278 = scalar_lea.vmem %s2, %s2277
      %p2279 = scmp.lt.s32.totalorder %s16, 1
      %s2280 = scalar_select %p2279, %s16, 1
      %s2281 = scalar_lea.vmem %s3, %s2280
      %p2282 = scmp.lt.s32.totalorder %s16, 1
      %s2283 = scalar_select %p2282, %s16, 1
      %s2284 = scalar_lea.vmem %s4, %s2283
      // Predicated region
      $region29: #{inception_forward.9} parent=27 // pred_check
        %p2285 = pneg %p81
      $region30: #{inception_forward.9} parent=27 // pred_check_branch
        %2287 = sbr.rel (%p2285) target = $region32
      $region31: #{inception_forward.9} parent=27 // pred_region
        _
      $region32: #{inception_forward.9} parent=27 // pred_fallthru
        _
      // Predicated region
      $region33: #{inception_forward.9} parent=27 // pred_check
        %p2288 = pneg %p107
      $region34: #{inception_forward.9} parent=27 // pred_check_branch
        %2290 = sbr.rel (%p2288) target = $region36
      $region35: #{inception_forward.9} parent=27 // pred_region
        _
      $region36: #{inception_forward.9} parent=27 // pred_fallthru
        _
      // Predicated region
      $region37: #{inception_forward.9} parent=27 // pred_check
        %p2291 = pneg %p133
      $region38: #{inception_forward.9} parent=27 // pred_check_branch
        %2293 = sbr.rel (%p2291) target = $region40
      $region39: #{inception_forward.9} parent=27 // pred_region
        _
      $region40: #{inception_forward.9} parent=27 // pred_fallthru
        _
    $region28: #{inception_forward.9} parent=5 // pred_fallthru
      _
    %p2294 = scmp.le.s32.totalorder 2, %s11
    // Predicated region
    $region41: #{inception_forward.9} parent=5 // pred_check
      %p2295 = pneg %p2294
    $region42: #{inception_forward.9} parent=5 // pred_check_branch
      %2297 = sbr.rel (%p2295) target = $region44
    $region43: #{inception_forward.9} parent=5 // pred_region
      %s2298 = ssub.s32 %s11, 2
      // Predicated region
      $region45: #{inception_forward.9} parent=43 // pred_check
        %p2299 = pneg %p87
      $region46: #{inception_forward.9} parent=43 // pred_check_branch
        %2301 = sbr.rel (%p2299) target = $region48
      $region47: #{inception_forward.9} parent=43 // pred_region
        %p2302 = scmp.lt.s32.totalorder %s17, 1
        %s2303 = scalar_select %p2302, %s17, 1
        %s2304 = smul.addr %s2303, 32
        %s2305 = smul.addr %s2304, 4
        %s2306 = scalar_lea.vmem %s2, %s2305
      $region48: #{inception_forward.9} parent=43 // pred_fallthru
        _
      // Predicated region
      $region49: #{inception_forward.9} parent=43 // pred_check
        %p2307 = pneg %p113
      $region50: #{inception_forward.9} parent=43 // pred_check_branch
        %2309 = sbr.rel (%p2307) target = $region52
      $region51: #{inception_forward.9} parent=43 // pred_region
        %p2310 = scmp.lt.s32.totalorder %s17, 1
        %s2311 = scalar_select %p2310, %s17, 1
        %s2312 = scalar_lea.vmem %s3, %s2311
      $region52: #{inception_forward.9} parent=43 // pred_fallthru
        _
      // Predicated region
      $region53: #{inception_forward.9} parent=43 // pred_check
        %p2313 = pneg %p139
      $region54: #{inception_forward.9} parent=43 // pred_check_branch
        %2315 = sbr.rel (%p2313) target = $region56
      $region55: #{inception_forward.9} parent=43 // pred_region
        %p2316 = scmp.lt.s32.totalorder %s17, 1
        %s2317 = scalar_select %p2316, %s17, 1
        %s2318 = scalar_lea.vmem %s4, %s2317
      $region56: #{inception_forward.9} parent=43 // pred_fallthru
        _
    $region44: #{inception_forward.9} parent=5 // pred_fallthru
      _
  $region6: #{inception_forward.9} parent=0 // loop_footer
    %s15 = sadd.s32 1, %s11
  $region7: #{inception_forward.9} parent=0 // loop_footer_branch
    %10 = sbr.rel target = $region3
  $region8: #{inception_forward.9} parent=0 // loop_exit
    _

</llo_original>
